<compile_context>
chip_gen: v5e
topology: v5e:2x2
jax: 0.10.0
libtpu: 0.0.40
codegen_flags: <defaults>
</compile_context>

<pallas_src>
import functools

import jax
import jax.numpy as jnp
from jax.experimental import pallas as pl
from jax.experimental.pallas import tpu as pltpu

EPS = 1e-5


# ---------------------------------------------------------------------------
# In-kernel helpers
# ---------------------------------------------------------------------------
def _mm16(a, w_bf16):
    """MXU matmul: bf16 operands, f32 accumulation."""
    return jnp.dot(a.astype(jnp.bfloat16), w_bf16, preferred_element_type=jnp.float32)


def _conv1(x_t, w1):
    """1x1 conv over 3 input channels as pure VPU FMAs.  x_t:(T,3) f32, w1:(3,64) f32."""
    h = x_t[:, 0:1] * w1[0:1, :]            # initialize with the j=0 term (no zeros+add)
    h = h + x_t[:, 1:2] * w1[1:2, :]
    h = h + x_t[:, 2:3] * w1[2:3, :]
    return h                                # (T, 64)


def _affine_relu(h, scale, shift):
    """Folded training-mode BN (precomputed scale/shift) + ReLU: 2 VPU passes + max."""
    return jnp.maximum(h * scale + shift, 0.0)


def _accum_stats(h, is_first, m0_ref, sumc_ref, sqc_ref):
    """First-tile-mean-centered single-pass BN statistics, accumulated across tiles."""
    @pl.when(is_first)
    def _():
        m0_ref[...] = jnp.sum(h, axis=0, keepdims=True) * (1.0 / h.shape[0])
        sumc_ref[...] = jnp.zeros_like(sumc_ref)
        sqc_ref[...] = jnp.zeros_like(sqc_ref)
    c = h - m0_ref[...]
    sumc_ref[...] += jnp.sum(c, axis=0, keepdims=True)
    sqc_ref[...] += jnp.sum(c * c, axis=0, keepdims=True)


def _bn_relu_rows(h, gamma, beta):
    """Training-mode BN over the (small) batch dim + ReLU, for the TNet FC head."""
    mean = jnp.mean(h, axis=0, keepdims=True)
    c = h - mean
    var = jnp.mean(c * c, axis=0, keepdims=True)
    return jnp.maximum(c * (gamma * jax.lax.rsqrt(var + EPS)) + beta, 0.0)


# ---------------------------------------------------------------------------
# Tiled statistics passes over the points.  Grid = (batch, point_tile); both axes are
# "arbitrary" because the channel-stat output blocks are revisited across the whole grid
# (per-sample max/min blocks are revisited across the tile axis only).
# ---------------------------------------------------------------------------
def _pass1_kernel(x_ref, w1_ref, m0_ref, sumc_ref, sqc_ref):
    b, t = pl.program_id(0), pl.program_id(1)
    h1 = _conv1(x_ref[0], w1_ref[0])                                  # (T, 64)
    _accum_stats(h1, jnp.logical_and(b == 0, t == 0), m0_ref, sumc_ref, sqc_ref)


def _pass2_kernel(x_ref, w1_ref, s1_ref, t1_ref, w2_ref, m0_ref, sumc_ref, sqc_ref):
    b, t = pl.program_id(0), pl.program_id(1)
    a1 = _affine_relu(_conv1(x_ref[0], w1_ref[0]), s1_ref[...], t1_ref[...])
    h2 = _mm16(a1, w2_ref[...])                                       # (T, 128)
    _accum_stats(h2, jnp.logical_and(b == 0, t == 0), m0_ref, sumc_ref, sqc_ref)


def _pass3_kernel(x_ref, w1_ref, s1_ref, t1_ref, w2_ref, s2_ref, t2_ref, w3_ref,
                  m0_ref, sumc_ref, sqc_ref, maxv_ref, minv_ref):
    b, t = pl.program_id(0), pl.program_id(1)
    a1 = _affine_relu(_conv1(x_ref[0], w1_ref[0]), s1_ref[...], t1_ref[...])
    a2 = _affine_relu(_mm16(a1, w2_ref[...]), s2_ref[...], t2_ref[...])
    h3 = _mm16(a2, w3_ref[...])                                       # (T, 1024), pre-BN
    _accum_stats(h3, jnp.logical_and(b == 0, t == 0), m0_ref, sumc_ref, sqc_ref)

    # Per-sample running max AND min of the pre-BN activation: the BN affine (+ optional
    # ReLU) is applied after pooling, selecting max where scale > 0 and min where < 0.
    tile_max = jnp.max(h3, axis=0, keepdims=True).reshape(1, 1, h3.shape[1])
    tile_min = jnp.min(h3, axis=0, keepdims=True).reshape(1, 1, h3.shape[1])

    @pl.when(t == 0)
    def _():
        maxv_ref[...] = tile_max
        minv_ref[...] = tile_min

    @pl.when(t > 0)
    def _():
        maxv_ref[...] = jnp.maximum(maxv_ref[...], tile_max)
        minv_ref[...] = jnp.minimum(minv_ref[...], tile_min)


# ---------------------------------------------------------------------------
# TNet head: hoisted pooled BN+ReLU, FC 1024->512->256 (BN over batch), 256->9 (padded).
# Tiny (B rows), single program, everything VMEM-resident.
# ---------------------------------------------------------------------------
def _tnet_head_kernel(maxv_ref, minv_ref, s3_ref, t3_ref,
                      wf1_ref, gf1_ref, bf1_ref, wf2_ref, gf2_ref, bf2_ref,
                      wt_ref, t9_ref):
    s3 = s3_ref[...]
    pooled = jnp.where(s3 > 0, maxv_ref[...], minv_ref[...]) * s3 + t3_ref[...]
    pooled = jnp.maximum(pooled, 0.0)                                 # (B, 1024)
    f = _bn_relu_rows(_mm16(pooled, wf1_ref[...]), gf1_ref[...], bf1_ref[...])  # (B,512)
    f = _bn_relu_rows(_mm16(f, wf2_ref[...]), gf2_ref[...], bf2_ref[...])       # (B,256)
    t9_ref[...] = _mm16(f, wt_ref[...])                               # (B,128) lane-dense


# ---------------------------------------------------------------------------
# Host-side (traced, tiny) helpers
# ---------------------------------------------------------------------------
def _finalize_bn(m0, sumc, sqc, gamma, beta, n_rows):
    """scale/shift for the folded training-mode BN from centered accumulated stats."""
    inv_n = 1.0 / float(n_rows)
    dm = sumc * inv_n
    mean = m0 + dm
    var = sqc * inv_n - dm * dm                  # biased variance (PyTorch training mode)
    scale = gamma * jax.lax.rsqrt(var + EPS)
    shift = beta - mean * scale
    return scale, shift


def _conv_stack_pooled(x, w1b, bn1, w2, bn2, w3, bn3, tile):
    """Tiled 3-pass conv stack (3->64->128->1024).  Returns the hoisted BN scale/shift of
    the 1024-wide layer and the per-sample pooled pre-BN max/min."""
    B, N, _ = x.shape
    nt = N // tile
    n_rows = B * N
    (g1, b1), (g2, b2), (g3, b3) = bn1, bn2, bn3

    cp = pltpu.CompilerParams(
        # tile axis carries resident accumulators -> "arbitrary"; the batch axis also
        # revisits the channel-stat blocks -> "arbitrary".
        # TODO(synk): v7x — add a "parallel" channel-split axis across the two TCs.
        dimension_semantics=("arbitrary", "arbitrary"),
        vmem_limit_bytes=32 * 1024 * 1024,   # accepted on v5e/v6e/v7x; usage is a few MB
    )

    x_spec = pl.BlockSpec((1, tile, 3), lambda b, t: (b, t, 0))        # streamed per tile
    w1_spec = pl.BlockSpec((1, 3, 64), lambda b, t: (b, 0, 0))         # per-sample conv1 W

    def const(shape):                                                  # VMEM-resident
        return pl.BlockSpec(shape, lambda b, t: (0,) * len(shape))

    def stats_out(c):
        return (tuple(jax.ShapeDtypeStruct((1, c), jnp.float32) for _ in range(3)),
                tuple(const((1, c)) for _ in range(3)))

    # pass 1: statistics of conv1 output (64-wide)
    shp, osp = stats_out(64)
    m01, sc1, sq1 = pl.pallas_call(
        _pass1_kernel, grid=(B, nt), in_specs=[x_spec, w1_spec],
        out_specs=osp, out_shape=shp, compiler_params=cp)(x, w1b)
    s1, t1 = _finalize_bn(m01, sc1, sq1, g1, b1, n_rows)

    # pass 2: statistics of conv2 output (128-wide)
    shp, osp = stats_out(128)
    m02, sc2, sq2 = pl.pallas_call(
        _pass2_kernel, grid=(B, nt),
        in_specs=[x_spec, w1_spec, const((1, 64)), const((1, 64)), const((64, 128))],
        out_specs=osp, out_shape=shp, compiler_params=cp)(x, w1b, s1, t1, w2)
    s2, t2 = _finalize_bn(m02, sc2, sq2, g2, b2, n_rows)

    # pass 3: statistics of conv3 output (1024-wide) + per-sample pooled pre-BN max/min
    shp, osp = stats_out(1024)
    shp = shp + tuple(jax.ShapeDtypeStruct((B, 1, 1024), jnp.float32) for _ in range(2))
    osp = osp + tuple(pl.BlockSpec((1, 1, 1024), lambda b, t: (b, 0, 0)) for _ in range(2))
    m03, sc3, sq3, maxv, minv = pl.pallas_call(
        _pass3_kernel, grid=(B, nt),
        in_specs=[x_spec, w1_spec, const((1, 64)), const((1, 64)), const((64, 128)),
                  const((1, 128)), const((1, 128)), const((128, 1024))],
        out_specs=osp, out_shape=shp, compiler_params=cp)(x, w1b, s1, t1, w2, s2, t2, w3)
    s3, t3 = _finalize_bn(m03, sc3, sq3, g3, b3, n_rows)
    return s3, t3, maxv[:, 0, :], minv[:, 0, :]


def _pick_point_tile(n, max_tile=512):
    """Largest point tile (multiple of 8, or the whole axis) that divides N."""
    if n <= max_tile:
        return n
    for t in range(max_tile, 7, -8):
        if n % t == 0:
            return t
    return n   # TODO(synk): pad + mask ragged point counts instead of one full-axis tile


def _vmem():
    return pl.BlockSpec(memory_space=pltpu.MemorySpace.VMEM)


# ---------------------------------------------------------------------------
# Forward wrapper
# ---------------------------------------------------------------------------
@functools.partial(jax.jit, static_argnames=("point_tile",))
def pointnetfeat_forward(x_bcn, tnet_params, main_params, point_tile=None):
    """x_bcn: (B, 3, N) in PyTorch layout.  Returns (global_feat, trans, trans_feat)."""
    B, C, N = x_bcn.shape
    assert C == 3
    tile = point_tile if point_tile is not None else _pick_point_tile(N)
    assert N % tile == 0

    x = jnp.transpose(x_bcn, (0, 2, 1)).astype(jnp.float32)           # (B, N, 3)

    (w1t, g1t, b1t), (w2t, g2t, b2t), (w3t, g3t, b3t) = tnet_params["conv"]
    (wf1, gf1, bf1), (wf2, gf2, bf2) = tnet_params["fc"]
    wt = tnet_params["wt"]                                            # (256, 9)
    (w1m, g1m, b1m), (w2m, g2m, b2m), (w3m, g3m, b3m) = main_params

    bf = lambda w: w.astype(jnp.bfloat16)                             # MXU operands only

    # ---- phase 1: TNet conv stack (tiled) -> pooled pre-BN max/min + hoisted affine ----
    w1t_b = jnp.broadcast_to(w1t[None], (B, 3, 64))
    s3t, t3t, maxt, mint = _conv_stack_pooled(
        x, w1t_b, (g1t, b1t), bf(w2t), (g2t, b2t), bf(w3t), (g3t, b3t), tile)

    # ---- TNet head: pooled BN+ReLU -> FC 1024->512->256 -> 256->9 (lane-padded) ----
    wt_pad = jnp.zeros((256, 128), jnp.float32).at[:, :9].set(wt).astype(jnp.bfloat16)
    head_args = (maxt, mint, s3t, t3t, bf(wf1), gf1, bf1, bf(wf2), gf2, bf2, wt_pad)
    t9pad = pl.pallas_call(
        _tnet_head_kernel,
        out_shape=jax.ShapeDtypeStruct((B, 128), jnp.float32),
        in_specs=[_vmem() for _ in head_args],
        out_specs=_vmem(),
    )(*head_args)

    # x = x.view(-1, 3, 3); x = x + eye(3)
    trans = t9pad[:, :9].reshape(B, 3, 3) + jnp.eye(3, dtype=jnp.float32)

    # ---- phase 2: main conv stack; trans folded into conv1 as a per-sample weight ----
    # h1[b,n,c] = sum_j x[b,n,j] * w_eff[b,j,c],  w_eff[b,j,c] = sum_i trans[b,i,j]*w1m[i,c]
    w_eff = jnp.einsum("bij,ic->bjc", trans, w1m)                     # (B, 3, 64), tiny
    s3m, t3m, maxm, minm = _conv_stack_pooled(
        x, w_eff, (g1m, b1m), bf(w2m), (g2m, b2m), bf(w3m), (g3m, b3m), tile)

    # c_block3 has relu=False: pooled max/min + sign-selected BN affine, no ReLU.
    gfeat = jnp.where(s3m > 0, maxm, minm) * s3m + t3m                # (B, 1024)
    return gfeat, trans, None            # trans_feat is None (feature_transform=False)


# ---------------------------------------------------------------------------
# Deterministic parameter init (shapes from the module's __init__)
# ---------------------------------------------------------------------------
def _block_params(key, cin, cout):
    kw, kg, kb, ks = jax.random.split(key, 4)
    w = jax.random.normal(kw, (cin, cout), jnp.float32) / jnp.sqrt(float(cin))
    gamma = 1.0 + 0.1 * jax.random.normal(kg, (1, cout), jnp.float32)
    # flip ~25% of the channels negative so the hoisted max/min sign-select is exercised
    gamma = jnp.where(jax.random.uniform(ks, (1, cout)) < 0.25, -gamma, gamma)
    beta = 0.1 * jax.random.normal(kb, (1, cout), jnp.float32)
    return (w, gamma, beta)


def init_params(key):
    keys = jax.random.split(key, 9)
    tnet = {
        "conv": [_block_params(keys[0], 3, 64),
                 _block_params(keys[1], 64, 128),
                 _block_params(keys[2], 128, 1024)],
        "fc": [_block_params(keys[3], 1024, 512),
               _block_params(keys[4], 512, 256)],
        # the module initializes this to zeros (trans == I); small random keeps the
        # transform path non-trivial for the test
        "wt": 0.01 * jax.random.normal(keys[5], (256, 9), jnp.float32),
    }
    main = [_block_params(keys[6], 3, 64),
            _block_params(keys[7], 64, 128),
            _block_params(keys[8], 128, 1024)]
    return tnet, main


# ---------------------------------------------------------------------------
# Plain-JAX reference (natural unfused structure: trans -> bmm -> convs -> BN -> max).
# Same precision policy as the kernel: bf16 MXU operands on the wide layers, f32 elsewhere.
# ---------------------------------------------------------------------------
def reference_forward(x_bcn, tnet_params, main_params):
    B, _, N = x_bcn.shape
    x = jnp.transpose(x_bcn, (0, 2, 1)).astype(jnp.float32)          # (B, N, 3)

    def bn(h, g, b):                                                  # two-pass variance
        m = jnp.mean(h, axis=0, keepdims=True)
        v = jnp.mean((h - m) ** 2, axis=0, keepdims=True)
        return (h - m) / jnp.sqrt(v + EPS) * g + b

    def dot32(a, w):
        return jnp.dot(a, w, precision="highest")

    def dot16(a, w):
        return jnp.dot(a.astype(jnp.bfloat16), w.astype(jnp.bfloat16),
                       preferred_element_type=jnp.float32)

    (w1t, g1t, b1t), (w2t, g2t, b2t), (w3t, g3t, b3t) = tnet_params["conv"]
    (wf1, gf1, bf1), (wf2, gf2, bf2) = tnet_params["fc"]
    wt = tnet_params["wt"]
    (w1m, g1m, b1m), (w2m, g2m, b2m), (w3m, g3m, b3m) = main_params

    h = x.reshape(B * N, 3)
    h = jnp.maximum(bn(dot32(h, w1t), g1t, b1t), 0.0)
    h = jnp.maximum(bn(dot16(h, w2t), g2t, b2t), 0.0)
    h = jnp.maximum(bn(dot16(h, w3t), g3t, b3t), 0.0)
    p = h.reshape(B, N, -1).max(axis=1)
    f = jnp.maximum(bn(dot16(p, wf1), gf1, bf1), 0.0)
    f = jnp.maximum(bn(dot16(f, wf2), gf2, bf2), 0.0)
    trans = dot32(f, wt).reshape(B, 3, 3) + jnp.eye(3, dtype=jnp.float32)

    y = jnp.einsum("bij,bnj->bni", trans, x, precision="highest").reshape(B * N, 3)
    h = jnp.maximum(bn(dot32(y, w1m), g1m, b1m), 0.0)
    h = jnp.maximum(bn(dot16(h, w2m), g2m, b2m), 0.0)
    h = bn(dot16(h, w3m), g3m, b3m)
    gfeat = h.reshape(B, N, -1).max(axis=1)
    return gfeat, trans


if __name__ == "__main__":
    key = jax.random.PRNGKey(0)
    k_x, k_p = jax.random.split(key)
    B, N = 2, 256
    x = jax.random.normal(k_x, (B, 3, N), jnp.float32)   # PyTorch layout: (B, C=3, n_pts)
    tnet_params, main_params = init_params(k_p)

    # point_tile=64 -> a (B, 4)-step grid, exercising the cross-tile BN / max accumulators.
    gfeat, trans, trans_feat = pointnetfeat_forward(x, tnet_params, main_params,
                                                    point_tile=64)
    jax.block_until_ready((gfeat, trans))

    ref_gfeat, ref_trans = reference_forward(x, tnet_params, main_params)
    assert gfeat.shape == (B, 1024) and trans.shape == (B, 3, 3) and trans_feat is None
    assert jnp.allclose(trans, ref_trans, atol=2e-2, rtol=2e-2)
    assert jnp.allclose(gfeat, ref_gfeat, atol=1e-1, rtol=1e-1)
    print("KERNEL_OK")
</pallas_src>

<mosaic_0001>
module attributes {stable_mosaic.version = 11 : i64} {
  func.func @_pass1_kernel(%arg0: i32, %arg1: i32, %arg2: memref<1x64x3xf32, #tpu.memory_space<vmem>>, %arg3: memref<1x3x64xf32, #tpu.memory_space<vmem>>, %arg4: memref<1x64xf32, #tpu.memory_space<vmem>>, %arg5: memref<1x64xf32, #tpu.memory_space<vmem>>, %arg6: memref<1x64xf32, #tpu.memory_space<vmem>>) attributes {dimension_semantics = [#tpu.dimension_semantics<arbitrary>, #tpu.dimension_semantics<arbitrary>], iteration_bounds = array<i64: 2, 4>, scalar_prefetch = 0 : i64, scratch_operands = 0 : i64, tpu.core_type = #tpu.core_type<tc>, window_params = [{transform_indices = @transform_0, window_bounds = array<i64: 1, 64, 3>}, {transform_indices = @transform_1, window_bounds = array<i64: 1, 3, 64>}, {pipeline_mode = #tpu.pipeline_mode<synchronous>, transform_indices = @transform_2, window_bounds = array<i64: 1, 64>}, {pipeline_mode = #tpu.pipeline_mode<synchronous>, transform_indices = @transform_3, window_bounds = array<i64: 1, 64>}, {pipeline_mode = #tpu.pipeline_mode<synchronous>, transform_indices = @transform_4, window_bounds = array<i64: 1, 64>}]} {
    %c0 = arith.constant 0 : index
    %c0_0 = arith.constant 0 : index
    %c0_1 = arith.constant 0 : index
    %0 = vector.load %arg2[%c0, %c0_0, %c0_1] : memref<1x64x3xf32, #tpu.memory_space<vmem>>, vector<1x64x3xf32>
    %1 = vector.shape_cast %0 : vector<1x64x3xf32> to vector<64x3xf32>
    %c0_2 = arith.constant 0 : index
    %c0_3 = arith.constant 0 : index
    %c0_4 = arith.constant 0 : index
    %2 = vector.load %arg3[%c0_2, %c0_3, %c0_4] : memref<1x3x64xf32, #tpu.memory_space<vmem>>, vector<1x3x64xf32>
    %3 = vector.shape_cast %2 : vector<1x3x64xf32> to vector<3x64xf32>
    %4 = vector.extract_strided_slice %1 {offsets = [0, 0], sizes = [64, 1], strides = [1, 1]} : vector<64x3xf32> to vector<64x1xf32>
    %5 = vector.extract_strided_slice %3 {offsets = [0, 0], sizes = [1, 64], strides = [1, 1]} : vector<3x64xf32> to vector<1x64xf32>
    %6 = vector.broadcast %4 : vector<64x1xf32> to vector<64x64xf32>
    %7 = vector.broadcast %5 : vector<1x64xf32> to vector<64x64xf32>
    %8 = arith.mulf %6, %7 : vector<64x64xf32>
    %9 = vector.extract_strided_slice %1 {offsets = [0, 1], sizes = [64, 1], strides = [1, 1]} : vector<64x3xf32> to vector<64x1xf32>
    %10 = vector.extract_strided_slice %3 {offsets = [1, 0], sizes = [1, 64], strides = [1, 1]} : vector<3x64xf32> to vector<1x64xf32>
    %11 = vector.broadcast %9 : vector<64x1xf32> to vector<64x64xf32>
    %12 = vector.broadcast %10 : vector<1x64xf32> to vector<64x64xf32>
    %13 = arith.mulf %11, %12 : vector<64x64xf32>
    %14 = arith.addf %8, %13 : vector<64x64xf32>
    %15 = vector.extract_strided_slice %1 {offsets = [0, 2], sizes = [64, 1], strides = [1, 1]} : vector<64x3xf32> to vector<64x1xf32>
    %16 = vector.extract_strided_slice %3 {offsets = [2, 0], sizes = [1, 64], strides = [1, 1]} : vector<3x64xf32> to vector<1x64xf32>
    %17 = vector.broadcast %15 : vector<64x1xf32> to vector<64x64xf32>
    %18 = vector.broadcast %16 : vector<1x64xf32> to vector<64x64xf32>
    %19 = arith.mulf %17, %18 : vector<64x64xf32>
    %20 = arith.addf %14, %19 : vector<64x64xf32>
    %c0_i32 = arith.constant 0 : i32
    %21 = arith.cmpi eq, %arg0, %c0_i32 : i32
    %c0_i32_5 = arith.constant 0 : i32
    %22 = arith.cmpi eq, %arg1, %c0_i32_5 : i32
    %23 = arith.andi %21, %22 : i1
    %24 = arith.extui %23 : i1 to i32
    %c0_i32_6 = arith.constant 0 : i32
    %25 = arith.cmpi ne, %24, %c0_i32_6 : i32
    scf.if %25 {
      %cst_18 = arith.constant dense<0.000000e+00> : vector<64xf32>
      %40 = vector.multi_reduction <add>, %20, %cst_18 [0] : vector<64x64xf32> to vector<64xf32>
      %41 = vector.shape_cast %40 : vector<64xf32> to vector<1x64xf32>
      %cst_19 = arith.constant 1.562500e-02 : f32
      %42 = vector.broadcast %cst_19 : f32 to vector<1x64xf32>
      %43 = arith.mulf %41, %42 : vector<1x64xf32>
      %c0_20 = arith.constant 0 : index
      %c0_21 = arith.constant 0 : index
      %44 = vector.load %arg4[%c0_20, %c0_21] : memref<1x64xf32, #tpu.memory_space<vmem>>, vector<1x64xf32>
      tpu.vector_store %arg4[%c0_20, %c0_21], %43 {strides = array<i32>} : memref<1x64xf32, #tpu.memory_space<vmem>>, vector<1x64xf32>,
      %cst_22 = arith.constant 0.000000e+00 : f32
      %45 = vector.broadcast %cst_22 : f32 to vector<1x64xf32>
      %c0_23 = arith.constant 0 : index
      %c0_24 = arith.constant 0 : index
      %46 = vector.load %arg5[%c0_23, %c0_24] : memref<1x64xf32, #tpu.memory_space<vmem>>, vector<1x64xf32>
      tpu.vector_store %arg5[%c0_23, %c0_24], %45 {strides = array<i32>} : memref<1x64xf32, #tpu.memory_space<vmem>>, vector<1x64xf32>,
      %cst_25 = arith.constant 0.000000e+00 : f32
      %47 = vector.broadcast %cst_25 : f32 to vector<1x64xf32>
      %c0_26 = arith.constant 0 : index
      %c0_27 = arith.constant 0 : index
      %48 = vector.load %arg6[%c0_26, %c0_27] : memref<1x64xf32, #tpu.memory_space<vmem>>, vector<1x64xf32>
      tpu.vector_store %arg6[%c0_26, %c0_27], %47 {strides = array<i32>} : memref<1x64xf32, #tpu.memory_space<vmem>>, vector<1x64xf32>,
    } else {
    }
    %c0_7 = arith.constant 0 : index
    %c0_8 = arith.constant 0 : index
    %26 = vector.load %arg4[%c0_7, %c0_8] : memref<1x64xf32, #tpu.memory_space<vmem>>, vector<1x64xf32>
    %27 = vector.broadcast %26 : vector<1x64xf32> to vector<64x64xf32>
    %28 = arith.subf %20, %27 : vector<64x64xf32>
    %c0_9 = arith.constant 0 : index
    %c0_10 = arith.constant 0 : index
    %29 = vector.load %arg5[%c0_9, %c0_10] : memref<1x64xf32, #tpu.memory_space<vmem>>, vector<1x64xf32>
    %cst = arith.constant dense<0.000000e+00> : vector<64xf32>
    %30 = vector.multi_reduction <add>, %28, %cst [0] : vector<64x64xf32> to vector<64xf32>
    %31 = vector.shape_cast %30 : vector<64xf32> to vector<1x64xf32>
    %32 = arith.addf %29, %31 : vector<1x64xf32>
    %c0_11 = arith.constant 0 : index
    %c0_12 = arith.constant 0 : index
    %33 = vector.load %arg5[%c0_11, %c0_12] : memref<1x64xf32, #tpu.memory_space<vmem>>, vector<1x64xf32>
    tpu.vector_store %arg5[%c0_11, %c0_12], %32 {strides = array<i32>} : memref<1x64xf32, #tpu.memory_space<vmem>>, vector<1x64xf32>,
    %c0_13 = arith.constant 0 : index
    %c0_14 = arith.constant 0 : index
    %34 = vector.load %arg6[%c0_13, %c0_14] : memref<1x64xf32, #tpu.memory_space<vmem>>, vector<1x64xf32>
    %35 = arith.mulf %28, %28 : vector<64x64xf32>
    %cst_15 = arith.constant dense<0.000000e+00> : vector<64xf32>
    %36 = vector.multi_reduction <add>, %35, %cst_15 [0] : vector<64x64xf32> to vector<64xf32>
    %37 = vector.shape_cast %36 : vector<64xf32> to vector<1x64xf32>
    %38 = arith.addf %34, %37 : vector<1x64xf32>
    %c0_16 = arith.constant 0 : index
    %c0_17 = arith.constant 0 : index
    %39 = vector.load %arg6[%c0_16, %c0_17] : memref<1x64xf32, #tpu.memory_space<vmem>>, vector<1x64xf32>
    tpu.vector_store %arg6[%c0_16, %c0_17], %38 {strides = array<i32>} : memref<1x64xf32, #tpu.memory_space<vmem>>, vector<1x64xf32>,
    return
  }
  func.func @transform_0(%arg0: i32, %arg1: i32) -> (i32, i32, i32) {
    %c0_i32 = arith.constant 0 : i32
    %c0_i32_0 = arith.constant 0 : i32
    return %arg0, %arg1, %c0_i32 : i32, i32, i32
  }
  func.func @transform_1(%arg0: i32, %arg1: i32) -> (i32, i32, i32) {
    %c0_i32 = arith.constant 0 : i32
    %c0_i32_0 = arith.constant 0 : i32
    %c0_i32_1 = arith.constant 0 : i32
    return %arg0, %c0_i32, %c0_i32_0 : i32, i32, i32
  }
  func.func @transform_2(%arg0: i32, %arg1: i32) -> (i32, i32) {
    %c0_i32 = arith.constant 0 : i32
    %c0_i32_0 = arith.constant 0 : i32
    %c0_i32_1 = arith.constant 0 : i32
    return %c0_i32, %c0_i32_0 : i32, i32
  }
  func.func @transform_3(%arg0: i32, %arg1: i32) -> (i32, i32) {
    %c0_i32 = arith.constant 0 : i32
    %c0_i32_0 = arith.constant 0 : i32
    %c0_i32_1 = arith.constant 0 : i32
    return %c0_i32, %c0_i32_0 : i32, i32
  }
  func.func @transform_4(%arg0: i32, %arg1: i32) -> (i32, i32) {
    %c0_i32 = arith.constant 0 : i32
    %c0_i32_0 = arith.constant 0 : i32
    %c0_i32_1 = arith.constant 0 : i32
    return %c0_i32, %c0_i32_0 : i32, i32
  }
}

module attributes {stable_mosaic.version = 11 : i64} {
  func.func @_pass2_kernel(%arg0: i32, %arg1: i32, %arg2: memref<1x64x3xf32, #tpu.memory_space<vmem>>, %arg3: memref<1x3x64xf32, #tpu.memory_space<vmem>>, %arg4: memref<1x64xf32, #tpu.memory_space<vmem>>, %arg5: memref<1x64xf32, #tpu.memory_space<vmem>>, %arg6: memref<64x128xbf16, #tpu.memory_space<vmem>>, %arg7: memref<1x128xf32, #tpu.memory_space<vmem>>, %arg8: memref<1x128xf32, #tpu.memory_space<vmem>>, %arg9: memref<1x128xf32, #tpu.memory_space<vmem>>) attributes {dimension_semantics = [#tpu.dimension_semantics<arbitrary>, #tpu.dimension_semantics<arbitrary>], iteration_bounds = array<i64: 2, 4>, scalar_prefetch = 0 : i64, scratch_operands = 0 : i64, tpu.core_type = #tpu.core_type<tc>, window_params = [{transform_indices = @transform_0, window_bounds = array<i64: 1, 64, 3>}, {transform_indices = @transform_1, window_bounds = array<i64: 1, 3, 64>}, {pipeline_mode = #tpu.pipeline_mode<synchronous>, transform_indices = @transform_2, window_bounds = array<i64: 1, 64>}, {pipeline_mode = #tpu.pipeline_mode<synchronous>, transform_indices = @transform_3, window_bounds = array<i64: 1, 64>}, {pipeline_mode = #tpu.pipeline_mode<synchronous>, transform_indices = @transform_4, window_bounds = array<i64: 64, 128>}, {pipeline_mode = #tpu.pipeline_mode<synchronous>, transform_indices = @transform_5, window_bounds = array<i64: 1, 128>}, {pipeline_mode = #tpu.pipeline_mode<synchronous>, transform_indices = @transform_6, window_bounds = array<i64: 1, 128>}, {pipeline_mode = #tpu.pipeline_mode<synchronous>, transform_indices = @transform_7, window_bounds = array<i64: 1, 128>}]} {
    %c0 = arith.constant 0 : index
    %c0_0 = arith.constant 0 : index
    %c0_1 = arith.constant 0 : index
    %0 = vector.load %arg2[%c0, %c0_0, %c0_1] : memref<1x64x3xf32, #tpu.memory_space<vmem>>, vector<1x64x3xf32>
    %1 = vector.shape_cast %0 : vector<1x64x3xf32> to vector<64x3xf32>
    %c0_2 = arith.constant 0 : index
    %c0_3 = arith.constant 0 : index
    %c0_4 = arith.constant 0 : index
    %2 = vector.load %arg3[%c0_2, %c0_3, %c0_4] : memref<1x3x64xf32, #tpu.memory_space<vmem>>, vector<1x3x64xf32>
    %3 = vector.shape_cast %2 : vector<1x3x64xf32> to vector<3x64xf32>
    %4 = vector.extract_strided_slice %1 {offsets = [0, 0], sizes = [64, 1], strides = [1, 1]} : vector<64x3xf32> to vector<64x1xf32>
    %5 = vector.extract_strided_slice %3 {offsets = [0, 0], sizes = [1, 64], strides = [1, 1]} : vector<3x64xf32> to vector<1x64xf32>
    %6 = vector.broadcast %4 : vector<64x1xf32> to vector<64x64xf32>
    %7 = vector.broadcast %5 : vector<1x64xf32> to vector<64x64xf32>
    %8 = arith.mulf %6, %7 : vector<64x64xf32>
    %9 = vector.extract_strided_slice %1 {offsets = [0, 1], sizes = [64, 1], strides = [1, 1]} : vector<64x3xf32> to vector<64x1xf32>
    %10 = vector.extract_strided_slice %3 {offsets = [1, 0], sizes = [1, 64], strides = [1, 1]} : vector<3x64xf32> to vector<1x64xf32>
    %11 = vector.broadcast %9 : vector<64x1xf32> to vector<64x64xf32>
    %12 = vector.broadcast %10 : vector<1x64xf32> to vector<64x64xf32>
    %13 = arith.mulf %11, %12 : vector<64x64xf32>
    %14 = arith.addf %8, %13 : vector<64x64xf32>
    %15 = vector.extract_strided_slice %1 {offsets = [0, 2], sizes = [64, 1], strides = [1, 1]} : vector<64x3xf32> to vector<64x1xf32>
    %16 = vector.extract_strided_slice %3 {offsets = [2, 0], sizes = [1, 64], strides = [1, 1]} : vector<3x64xf32> to vector<1x64xf32>
    %17 = vector.broadcast %15 : vector<64x1xf32> to vector<64x64xf32>
    %18 = vector.broadcast %16 : vector<1x64xf32> to vector<64x64xf32>
    %19 = arith.mulf %17, %18 : vector<64x64xf32>
    %20 = arith.addf %14, %19 : vector<64x64xf32>
    %c0_5 = arith.constant 0 : index
    %c0_6 = arith.constant 0 : index
    %21 = vector.load %arg4[%c0_5, %c0_6] : memref<1x64xf32, #tpu.memory_space<vmem>>, vector<1x64xf32>
    %c0_7 = arith.constant 0 : index
    %c0_8 = arith.constant 0 : index
    %22 = vector.load %arg5[%c0_7, %c0_8] : memref<1x64xf32, #tpu.memory_space<vmem>>, vector<1x64xf32>
    %23 = vector.broadcast %21 : vector<1x64xf32> to vector<64x64xf32>
    %24 = arith.mulf %20, %23 : vector<64x64xf32>
    %25 = vector.broadcast %22 : vector<1x64xf32> to vector<64x64xf32>
    %26 = arith.addf %24, %25 : vector<64x64xf32>
    %cst = arith.constant 0.000000e+00 : f32
    %27 = vector.broadcast %cst : f32 to vector<64x64xf32>
    %28 = arith.maximumf %26, %27 : vector<64x64xf32>
    %c0_9 = arith.constant 0 : index
    %c0_10 = arith.constant 0 : index
    %29 = vector.load %arg6[%c0_9, %c0_10] : memref<64x128xbf16, #tpu.memory_space<vmem>>, vector<64x128xbf16>
    %30 = arith.truncf %28 : vector<64x64xf32> to vector<64x64xbf16>
    %cst_11 = arith.constant dense<0.000000e+00> : vector<64x128xf32>
    %31 = tpu.matmul %30, %29, %cst_11 {dimension_numbers = #tpu.dot_dimension_numbers<[1], [0], [0], [1], [0, 0, 1, 1], [], []>} : vector<64x64xbf16>, vector<64x128xbf16>, vector<64x128xf32> -> vector<64x128xf32>
    %c0_i32 = arith.constant 0 : i32
    %32 = arith.cmpi eq, %arg0, %c0_i32 : i32
    %c0_i32_12 = arith.constant 0 : i32
    %33 = arith.cmpi eq, %arg1, %c0_i32_12 : i32
    %34 = arith.andi %32, %33 : i1
    %35 = arith.extui %34 : i1 to i32
    %c0_i32_13 = arith.constant 0 : i32
    %36 = arith.cmpi ne, %35, %c0_i32_13 : i32
    scf.if %36 {
      %cst_26 = arith.constant dense<0.000000e+00> : vector<128xf32>
      %51 = vector.multi_reduction <add>, %31, %cst_26 [0] : vector<64x128xf32> to vector<128xf32>
      %52 = vector.shape_cast %51 : vector<128xf32> to vector<1x128xf32>
      %cst_27 = arith.constant 1.562500e-02 : f32
      %53 = vector.broadcast %cst_27 : f32 to vector<1x128xf32>
      %54 = arith.mulf %52, %53 : vector<1x128xf32>
      %c0_28 = arith.constant 0 : index
      %c0_29 = arith.constant 0 : index
      %55 = vector.load %arg7[%c0_28, %c0_29] : memref<1x128xf32, #tpu.memory_space<vmem>>, vector<1x128xf32>
      tpu.vector_store %arg7[%c0_28, %c0_29], %54 {strides = array<i32>} : memref<1x128xf32, #tpu.memory_space<vmem>>, vector<1x128xf32>,
      %cst_30 = arith.constant 0.000000e+00 : f32
      %56 = vector.broadcast %cst_30 : f32 to vector<1x128xf32>
      %c0_31 = arith.constant 0 : index
      %c0_32 = arith.constant 0 : index
      %57 = vector.load %arg8[%c0_31, %c0_32] : memref<1x128xf32, #tpu.memory_space<vmem>>, vector<1x128xf32>
      tpu.vector_store %arg8[%c0_31, %c0_32], %56 {strides = array<i32>} : memref<1x128xf32, #tpu.memory_space<vmem>>, vector<1x128xf32>,
      %cst_33 = arith.constant 0.000000e+00 : f32
      %58 = vector.broadcast %cst_33 : f32 to vector<1x128xf32>
      %c0_34 = arith.constant 0 : index
      %c0_35 = arith.constant 0 : index
      %59 = vector.load %arg9[%c0_34, %c0_35] : memref<1x128xf32, #tpu.memory_space<vmem>>, vector<1x128xf32>
      tpu.vector_store %arg9[%c0_34, %c0_35], %58 {strides = array<i32>} : memref<1x128xf32, #tpu.memory_space<vmem>>, vector<1x128xf32>,
    } else {
    }
    %c0_14 = arith.constant 0 : index
    %c0_15 = arith.constant 0 : index
    %37 = vector.load %arg7[%c0_14, %c0_15] : memref<1x128xf32, #tpu.memory_space<vmem>>, vector<1x128xf32>
    %38 = vector.broadcast %37 : vector<1x128xf32> to vector<64x128xf32>
    %39 = arith.subf %31, %38 : vector<64x128xf32>
    %c0_16 = arith.constant 0 : index
    %c0_17 = arith.constant 0 : index
    %40 = vector.load %arg8[%c0_16, %c0_17] : memref<1x128xf32, #tpu.memory_space<vmem>>, vector<1x128xf32>
    %cst_18 = arith.constant dense<0.000000e+00> : vector<128xf32>
    %41 = vector.multi_reduction <add>, %39, %cst_18 [0] : vector<64x128xf32> to vector<128xf32>
    %42 = vector.shape_cast %41 : vector<128xf32> to vector<1x128xf32>
    %43 = arith.addf %40, %42 : vector<1x128xf32>
    %c0_19 = arith.constant 0 : index
    %c0_20 = arith.constant 0 : index
    %44 = vector.load %arg8[%c0_19, %c0_20] : memref<1x128xf32, #tpu.memory_space<vmem>>, vector<1x128xf32>
    tpu.vector_store %arg8[%c0_19, %c0_20], %43 {strides = array<i32>} : memref<1x128xf32, #tpu.memory_space<vmem>>, vector<1x128xf32>,
    %c0_21 = arith.constant 0 : index
    %c0_22 = arith.constant 0 : index
    %45 = vector.load %arg9[%c0_21, %c0_22] : memref<1x128xf32, #tpu.memory_space<vmem>>, vector<1x128xf32>
    %46 = arith.mulf %39, %39 : vector<64x128xf32>
    %cst_23 = arith.constant dense<0.000000e+00> : vector<128xf32>
    %47 = vector.multi_reduction <add>, %46, %cst_23 [0] : vector<64x128xf32> to vector<128xf32>
    %48 = vector.shape_cast %47 : vector<128xf32> to vector<1x128xf32>
    %49 = arith.addf %45, %48 : vector<1x128xf32>
    %c0_24 = arith.constant 0 : index
    %c0_25 = arith.constant 0 : index
    %50 = vector.load %arg9[%c0_24, %c0_25] : memref<1x128xf32, #tpu.memory_space<vmem>>, vector<1x128xf32>
    tpu.vector_store %arg9[%c0_24, %c0_25], %49 {strides = array<i32>} : memref<1x128xf32, #tpu.memory_space<vmem>>, vector<1x128xf32>,
    return
  }
  func.func @transform_0(%arg0: i32, %arg1: i32) -> (i32, i32, i32) {
    %c0_i32 = arith.constant 0 : i32
    %c0_i32_0 = arith.constant 0 : i32
    return %arg0, %arg1, %c0_i32 : i32, i32, i32
  }
  func.func @transform_1(%arg0: i32, %arg1: i32) -> (i32, i32, i32) {
    %c0_i32 = arith.constant 0 : i32
    %c0_i32_0 = arith.constant 0 : i32
    %c0_i32_1 = arith.constant 0 : i32
    return %arg0, %c0_i32, %c0_i32_0 : i32, i32, i32
  }
  func.func @transform_2(%arg0: i32, %arg1: i32) -> (i32, i32) {
    %c0_i32 = arith.constant 0 : i32
    %c0_i32_0 = arith.constant 0 : i32
    %c0_i32_1 = arith.constant 0 : i32
    return %c0_i32, %c0_i32_0 : i32, i32
  }
  func.func @transform_3(%arg0: i32, %arg1: i32) -> (i32, i32) {
    %c0_i32 = arith.constant 0 : i32
    %c0_i32_0 = arith.constant 0 : i32
    %c0_i32_1 = arith.constant 0 : i32
    return %c0_i32, %c0_i32_0 : i32, i32
  }
  func.func @transform_4(%arg0: i32, %arg1: i32) -> (i32, i32) {
    %c0_i32 = arith.constant 0 : i32
    %c0_i32_0 = arith.constant 0 : i32
    %c0_i32_1 = arith.constant 0 : i32
    return %c0_i32, %c0_i32_0 : i32, i32
  }
  func.func @transform_5(%arg0: i32, %arg1: i32) -> (i32, i32) {
    %c0_i32 = arith.constant 0 : i32
    %c0_i32_0 = arith.constant 0 : i32
    %c0_i32_1 = arith.constant 0 : i32
    return %c0_i32, %c0_i32_0 : i32, i32
  }
  func.func @transform_6(%arg0: i32, %arg1: i32) -> (i32, i32) {
    %c0_i32 = arith.constant 0 : i32
    %c0_i32_0 = arith.constant 0 : i32
    %c0_i32_1 = arith.constant 0 : i32
    return %c0_i32, %c0_i32_0 : i32, i32
  }
  func.func @transform_7(%arg0: i32, %arg1: i32) -> (i32, i32) {
    %c0_i32 = arith.constant 0 : i32
    %c0_i32_0 = arith.constant 0 : i32
    %c0_i32_1 = arith.constant 0 : i32
    return %c0_i32, %c0_i32_0 : i32, i32
  }
}

module attributes {stable_mosaic.version = 11 : i64} {
  func.func @_pass3_kernel(%arg0: i32, %arg1: i32, %arg2: memref<1x64x3xf32, #tpu.memory_space<vmem>>, %arg3: memref<1x3x64xf32, #tpu.memory_space<vmem>>, %arg4: memref<1x64xf32, #tpu.memory_space<vmem>>, %arg5: memref<1x64xf32, #tpu.memory_space<vmem>>, %arg6: memref<64x128xbf16, #tpu.memory_space<vmem>>, %arg7: memref<1x128xf32, #tpu.memory_space<vmem>>, %arg8: memref<1x128xf32, #tpu.memory_space<vmem>>, %arg9: memref<128x1024xbf16, #tpu.memory_space<vmem>>, %arg10: memref<1x1024xf32, #tpu.memory_space<vmem>>, %arg11: memref<1x1024xf32, #tpu.memory_space<vmem>>, %arg12: memref<1x1024xf32, #tpu.memory_space<vmem>>, %arg13: memref<1x1x1024xf32, #tpu.memory_space<vmem>>, %arg14: memref<1x1x1024xf32, #tpu.memory_space<vmem>>) attributes {dimension_semantics = [#tpu.dimension_semantics<arbitrary>, #tpu.dimension_semantics<arbitrary>], iteration_bounds = array<i64: 2, 4>, scalar_prefetch = 0 : i64, scratch_operands = 0 : i64, tpu.core_type = #tpu.core_type<tc>, window_params = [{transform_indices = @transform_0, window_bounds = array<i64: 1, 64, 3>}, {transform_indices = @transform_1, window_bounds = array<i64: 1, 3, 64>}, {pipeline_mode = #tpu.pipeline_mode<synchronous>, transform_indices = @transform_2, window_bounds = array<i64: 1, 64>}, {pipeline_mode = #tpu.pipeline_mode<synchronous>, transform_indices = @transform_3, window_bounds = array<i64: 1, 64>}, {pipeline_mode = #tpu.pipeline_mode<synchronous>, transform_indices = @transform_4, window_bounds = array<i64: 64, 128>}, {pipeline_mode = #tpu.pipeline_mode<synchronous>, transform_indices = @transform_5, window_bounds = array<i64: 1, 128>}, {pipeline_mode = #tpu.pipeline_mode<synchronous>, transform_indices = @transform_6, window_bounds = array<i64: 1, 128>}, {pipeline_mode = #tpu.pipeline_mode<synchronous>, transform_indices = @transform_7, window_bounds = array<i64: 128, 1024>}, {pipeline_mode = #tpu.pipeline_mode<synchronous>, transform_indices = @transform_8, window_bounds = array<i64: 1, 1024>}, {pipeline_mode = #tpu.pipeline_mode<synchronous>, transform_indices = @transform_9, window_bounds = array<i64: 1, 1024>}, {pipeline_mode = #tpu.pipeline_mode<synchronous>, transform_indices = @transform_10, window_bounds = array<i64: 1, 1024>}, {transform_indices = @transform_11, window_bounds = array<i64: 1, 1, 1024>}, {transform_indices = @transform_12, window_bounds = array<i64: 1, 1, 1024>}]} {
    %c0 = arith.constant 0 : index
    %c0_0 = arith.constant 0 : index
    %c0_1 = arith.constant 0 : index
    %0 = vector.load %arg2[%c0, %c0_0, %c0_1] : memref<1x64x3xf32, #tpu.memory_space<vmem>>, vector<1x64x3xf32>
    %1 = vector.shape_cast %0 : vector<1x64x3xf32> to vector<64x3xf32>
    %c0_2 = arith.constant 0 : index
    %c0_3 = arith.constant 0 : index
    %c0_4 = arith.constant 0 : index
    %2 = vector.load %arg3[%c0_2, %c0_3, %c0_4] : memref<1x3x64xf32, #tpu.memory_space<vmem>>, vector<1x3x64xf32>
    %3 = vector.shape_cast %2 : vector<1x3x64xf32> to vector<3x64xf32>
    %4 = vector.extract_strided_slice %1 {offsets = [0, 0], sizes = [64, 1], strides = [1, 1]} : vector<64x3xf32> to vector<64x1xf32>
    %5 = vector.extract_strided_slice %3 {offsets = [0, 0], sizes = [1, 64], strides = [1, 1]} : vector<3x64xf32> to vector<1x64xf32>
    %6 = vector.broadcast %4 : vector<64x1xf32> to vector<64x64xf32>
    %7 = vector.broadcast %5 : vector<1x64xf32> to vector<64x64xf32>
    %8 = arith.mulf %6, %7 : vector<64x64xf32>
    %9 = vector.extract_strided_slice %1 {offsets = [0, 1], sizes = [64, 1], strides = [1, 1]} : vector<64x3xf32> to vector<64x1xf32>
    %10 = vector.extract_strided_slice %3 {offsets = [1, 0], sizes = [1, 64], strides = [1, 1]} : vector<3x64xf32> to vector<1x64xf32>
    %11 = vector.broadcast %9 : vector<64x1xf32> to vector<64x64xf32>
    %12 = vector.broadcast %10 : vector<1x64xf32> to vector<64x64xf32>
    %13 = arith.mulf %11, %12 : vector<64x64xf32>
    %14 = arith.addf %8, %13 : vector<64x64xf32>
    %15 = vector.extract_strided_slice %1 {offsets = [0, 2], sizes = [64, 1], strides = [1, 1]} : vector<64x3xf32> to vector<64x1xf32>
    %16 = vector.extract_strided_slice %3 {offsets = [2, 0], sizes = [1, 64], strides = [1, 1]} : vector<3x64xf32> to vector<1x64xf32>
    %17 = vector.broadcast %15 : vector<64x1xf32> to vector<64x64xf32>
    %18 = vector.broadcast %16 : vector<1x64xf32> to vector<64x64xf32>
    %19 = arith.mulf %17, %18 : vector<64x64xf32>
    %20 = arith.addf %14, %19 : vector<64x64xf32>
    %c0_5 = arith.constant 0 : index
    %c0_6 = arith.constant 0 : index
    %21 = vector.load %arg4[%c0_5, %c0_6] : memref<1x64xf32, #tpu.memory_space<vmem>>, vector<1x64xf32>
    %c0_7 = arith.constant 0 : index
    %c0_8 = arith.constant 0 : index
    %22 = vector.load %arg5[%c0_7, %c0_8] : memref<1x64xf32, #tpu.memory_space<vmem>>, vector<1x64xf32>
    %23 = vector.broadcast %21 : vector<1x64xf32> to vector<64x64xf32>
    %24 = arith.mulf %20, %23 : vector<64x64xf32>
    %25 = vector.broadcast %22 : vector<1x64xf32> to vector<64x64xf32>
    %26 = arith.addf %24, %25 : vector<64x64xf32>
    %cst = arith.constant 0.000000e+00 : f32
    %27 = vector.broadcast %cst : f32 to vector<64x64xf32>
    %28 = arith.maximumf %26, %27 : vector<64x64xf32>
    %c0_9 = arith.constant 0 : index
    %c0_10 = arith.constant 0 : index
    %29 = vector.load %arg6[%c0_9, %c0_10] : memref<64x128xbf16, #tpu.memory_space<vmem>>, vector<64x128xbf16>
    %30 = arith.truncf %28 : vector<64x64xf32> to vector<64x64xbf16>
    %cst_11 = arith.constant dense<0.000000e+00> : vector<64x128xf32>
    %31 = tpu.matmul %30, %29, %cst_11 {dimension_numbers = #tpu.dot_dimension_numbers<[1], [0], [0], [1], [0, 0, 1, 1], [], []>} : vector<64x64xbf16>, vector<64x128xbf16>, vector<64x128xf32> -> vector<64x128xf32>
    %c0_12 = arith.constant 0 : index
    %c0_13 = arith.constant 0 : index
    %32 = vector.load %arg7[%c0_12, %c0_13] : memref<1x128xf32, #tpu.memory_space<vmem>>, vector<1x128xf32>
    %c0_14 = arith.constant 0 : index
    %c0_15 = arith.constant 0 : index
    %33 = vector.load %arg8[%c0_14, %c0_15] : memref<1x128xf32, #tpu.memory_space<vmem>>, vector<1x128xf32>
    %34 = vector.broadcast %32 : vector<1x128xf32> to vector<64x128xf32>
    %35 = arith.mulf %31, %34 : vector<64x128xf32>
    %36 = vector.broadcast %33 : vector<1x128xf32> to vector<64x128xf32>
    %37 = arith.addf %35, %36 : vector<64x128xf32>
    %cst_16 = arith.constant 0.000000e+00 : f32
    %38 = vector.broadcast %cst_16 : f32 to vector<64x128xf32>
    %39 = arith.maximumf %37, %38 : vector<64x128xf32>
    %c0_17 = arith.constant 0 : index
    %c0_18 = arith.constant 0 : index
    %40 = vector.load %arg9[%c0_17, %c0_18] : memref<128x1024xbf16, #tpu.memory_space<vmem>>, vector<128x1024xbf16>
    %41 = arith.truncf %39 : vector<64x128xf32> to vector<64x128xbf16>
    %cst_19 = arith.constant dense<0.000000e+00> : vector<64x1024xf32>
    %42 = tpu.matmul %41, %40, %cst_19 {dimension_numbers = #tpu.dot_dimension_numbers<[1], [0], [0], [1], [0, 0, 1, 1], [], []>} : vector<64x128xbf16>, vector<128x1024xbf16>, vector<64x1024xf32> -> vector<64x1024xf32>
    %c0_i32 = arith.constant 0 : i32
    %43 = arith.cmpi eq, %arg0, %c0_i32 : i32
    %c0_i32_20 = arith.constant 0 : i32
    %44 = arith.cmpi eq, %arg1, %c0_i32_20 : i32
    %45 = arith.andi %43, %44 : i1
    %46 = arith.extui %45 : i1 to i32
    %c0_i32_21 = arith.constant 0 : i32
    %47 = arith.cmpi ne, %46, %c0_i32_21 : i32
    scf.if %47 {
      %cst_40 = arith.constant dense<0.000000e+00> : vector<1024xf32>
      %74 = vector.multi_reduction <add>, %42, %cst_40 [0] : vector<64x1024xf32> to vector<1024xf32>
      %75 = vector.shape_cast %74 : vector<1024xf32> to vector<1x1024xf32>
      %cst_41 = arith.constant 1.562500e-02 : f32
      %76 = vector.broadcast %cst_41 : f32 to vector<1x1024xf32>
      %77 = arith.mulf %75, %76 : vector<1x1024xf32>
      %c0_42 = arith.constant 0 : index
      %c0_43 = arith.constant 0 : index
      %78 = vector.load %arg10[%c0_42, %c0_43] : memref<1x1024xf32, #tpu.memory_space<vmem>>, vector<1x1024xf32>
      tpu.vector_store %arg10[%c0_42, %c0_43], %77 {strides = array<i32>} : memref<1x1024xf32, #tpu.memory_space<vmem>>, vector<1x1024xf32>,
      %cst_44 = arith.constant 0.000000e+00 : f32
      %79 = vector.broadcast %cst_44 : f32 to vector<1x1024xf32>
      %c0_45 = arith.constant 0 : index
      %c0_46 = arith.constant 0 : index
      %80 = vector.load %arg11[%c0_45, %c0_46] : memref<1x1024xf32, #tpu.memory_space<vmem>>, vector<1x1024xf32>
      tpu.vector_store %arg11[%c0_45, %c0_46], %79 {strides = array<i32>} : memref<1x1024xf32, #tpu.memory_space<vmem>>, vector<1x1024xf32>,
      %cst_47 = arith.constant 0.000000e+00 : f32
      %81 = vector.broadcast %cst_47 : f32 to vector<1x1024xf32>
      %c0_48 = arith.constant 0 : index
      %c0_49 = arith.constant 0 : index
      %82 = vector.load %arg12[%c0_48, %c0_49] : memref<1x1024xf32, #tpu.memory_space<vmem>>, vector<1x1024xf32>
      tpu.vector_store %arg12[%c0_48, %c0_49], %81 {strides = array<i32>} : memref<1x1024xf32, #tpu.memory_space<vmem>>, vector<1x1024xf32>,
    } else {
    }
    %c0_22 = arith.constant 0 : index
    %c0_23 = arith.constant 0 : index
    %48 = vector.load %arg10[%c0_22, %c0_23] : memref<1x1024xf32, #tpu.memory_space<vmem>>, vector<1x1024xf32>
    %49 = vector.broadcast %48 : vector<1x1024xf32> to vector<64x1024xf32>
    %50 = arith.subf %42, %49 : vector<64x1024xf32>
    %c0_24 = arith.constant 0 : index
    %c0_25 = arith.constant 0 : index
    %51 = vector.load %arg11[%c0_24, %c0_25] : memref<1x1024xf32, #tpu.memory_space<vmem>>, vector<1x1024xf32>
    %cst_26 = arith.constant dense<0.000000e+00> : vector<1024xf32>
    %52 = vector.multi_reduction <add>, %50, %cst_26 [0] : vector<64x1024xf32> to vector<1024xf32>
    %53 = vector.shape_cast %52 : vector<1024xf32> to vector<1x1024xf32>
    %54 = arith.addf %51, %53 : vector<1x1024xf32>
    %c0_27 = arith.constant 0 : index
    %c0_28 = arith.constant 0 : index
    %55 = vector.load %arg11[%c0_27, %c0_28] : memref<1x1024xf32, #tpu.memory_space<vmem>>, vector<1x1024xf32>
    tpu.vector_store %arg11[%c0_27, %c0_28], %54 {strides = array<i32>} : memref<1x1024xf32, #tpu.memory_space<vmem>>, vector<1x1024xf32>,
    %c0_29 = arith.constant 0 : index
    %c0_30 = arith.constant 0 : index
    %56 = vector.load %arg12[%c0_29, %c0_30] : memref<1x1024xf32, #tpu.memory_space<vmem>>, vector<1x1024xf32>
    %57 = arith.mulf %50, %50 : vector<64x1024xf32>
    %cst_31 = arith.constant dense<0.000000e+00> : vector<1024xf32>
    %58 = vector.multi_reduction <add>, %57, %cst_31 [0] : vector<64x1024xf32> to vector<1024xf32>
    %59 = vector.shape_cast %58 : vector<1024xf32> to vector<1x1024xf32>
    %60 = arith.addf %56, %59 : vector<1x1024xf32>
    %c0_32 = arith.constant 0 : index
    %c0_33 = arith.constant 0 : index
    %61 = vector.load %arg12[%c0_32, %c0_33] : memref<1x1024xf32, #tpu.memory_space<vmem>>, vector<1x1024xf32>
    tpu.vector_store %arg12[%c0_32, %c0_33], %60 {strides = array<i32>} : memref<1x1024xf32, #tpu.memory_space<vmem>>, vector<1x1024xf32>,
    %cst_34 = arith.constant dense<0xFF800000> : vector<1024xf32>
    %62 = vector.multi_reduction <maximumf>, %42, %cst_34 [0] : vector<64x1024xf32> to vector<1024xf32>
    %63 = vector.shape_cast %62 : vector<1024xf32> to vector<1x1024xf32>
    %64 = vector.shape_cast %63 : vector<1x1024xf32> to vector<1x1x1024xf32>
    %cst_35 = arith.constant dense<0x7F800000> : vector<1024xf32>
    %65 = vector.multi_reduction <minimumf>, %42, %cst_35 [0] : vector<64x1024xf32> to vector<1024xf32>
    %66 = vector.shape_cast %65 : vector<1024xf32> to vector<1x1024xf32>
    %67 = vector.shape_cast %66 : vector<1x1024xf32> to vector<1x1x1024xf32>
    %c0_i32_36 = arith.constant 0 : i32
    %68 = arith.cmpi eq, %arg1, %c0_i32_36 : i32
    %69 = arith.extui %68 : i1 to i32
    %c0_i32_37 = arith.constant 0 : i32
    %70 = arith.cmpi ne, %69, %c0_i32_37 : i32
    scf.if %70 {
      %c0_40 = arith.constant 0 : index
      %c0_41 = arith.constant 0 : index
      %c0_42 = arith.constant 0 : index
      %74 = vector.load %arg13[%c0_40, %c0_41, %c0_42] : memref<1x1x1024xf32, #tpu.memory_space<vmem>>, vector<1x1x1024xf32>
      tpu.vector_store %arg13[%c0_40, %c0_41, %c0_42], %64 {strides = array<i32>} : memref<1x1x1024xf32, #tpu.memory_space<vmem>>, vector<1x1x1024xf32>,
      %c0_43 = arith.constant 0 : index
      %c0_44 = arith.constant 0 : index
      %c0_45 = arith.constant 0 : index
      %75 = vector.load %arg14[%c0_43, %c0_44, %c0_45] : memref<1x1x1024xf32, #tpu.memory_space<vmem>>, vector<1x1x1024xf32>
      tpu.vector_store %arg14[%c0_43, %c0_44, %c0_45], %67 {strides = array<i32>} : memref<1x1x1024xf32, #tpu.memory_space<vmem>>, vector<1x1x1024xf32>,
    } else {
    }
    %c0_i32_38 = arith.constant 0 : i32
    %71 = arith.cmpi sgt, %arg1, %c0_i32_38 : i32
    %72 = arith.extui %71 : i1 to i32
    %c0_i32_39 = arith.constant 0 : i32
    %73 = arith.cmpi ne, %72, %c0_i32_39 : i32
    scf.if %73 {
      %c0_40 = arith.constant 0 : index
      %c0_41 = arith.constant 0 : index
      %c0_42 = arith.constant 0 : index
      %74 = vector.load %arg13[%c0_40, %c0_41, %c0_42] : memref<1x1x1024xf32, #tpu.memory_space<vmem>>, vector<1x1x1024xf32>
      %75 = arith.maximumf %74, %64 : vector<1x1x1024xf32>
      %c0_43 = arith.constant 0 : index
      %c0_44 = arith.constant 0 : index
      %c0_45 = arith.constant 0 : index
      %76 = vector.load %arg13[%c0_43, %c0_44, %c0_45] : memref<1x1x1024xf32, #tpu.memory_space<vmem>>, vector<1x1x1024xf32>
      tpu.vector_store %arg13[%c0_43, %c0_44, %c0_45], %75 {strides = array<i32>} : memref<1x1x1024xf32, #tpu.memory_space<vmem>>, vector<1x1x1024xf32>,
      %c0_46 = arith.constant 0 : index
      %c0_47 = arith.constant 0 : index
      %c0_48 = arith.constant 0 : index
      %77 = vector.load %arg14[%c0_46, %c0_47, %c0_48] : memref<1x1x1024xf32, #tpu.memory_space<vmem>>, vector<1x1x1024xf32>
      %78 = arith.minimumf %77, %67 : vector<1x1x1024xf32>
      %c0_49 = arith.constant 0 : index
      %c0_50 = arith.constant 0 : index
      %c0_51 = arith.constant 0 : index
      %79 = vector.load %arg14[%c0_49, %c0_50, %c0_51] : memref<1x1x1024xf32, #tpu.memory_space<vmem>>, vector<1x1x1024xf32>
      tpu.vector_store %arg14[%c0_49, %c0_50, %c0_51], %78 {strides = array<i32>} : memref<1x1x1024xf32, #tpu.memory_space<vmem>>, vector<1x1x1024xf32>,
    } else {
    }
    return
  }
  func.func @transform_0(%arg0: i32, %arg1: i32) -> (i32, i32, i32) {
    %c0_i32 = arith.constant 0 : i32
    %c0_i32_0 = arith.constant 0 : i32
    return %arg0, %arg1, %c0_i32 : i32, i32, i32
  }
  func.func @transform_1(%arg0: i32, %arg1: i32) -> (i32, i32, i32) {
    %c0_i32 = arith.constant 0 : i32
    %c0_i32_0 = arith.constant 0 : i32
    %c0_i32_1 = arith.constant 0 : i32
    return %arg0, %c0_i32, %c0_i32_0 : i32, i32, i32
  }
  func.func @transform_2(%arg0: i32, %arg1: i32) -> (i32, i32) {
    %c0_i32 = arith.constant 0 : i32
    %c0_i32_0 = arith.constant 0 : i32
    %c0_i32_1 = arith.constant 0 : i32
    return %c0_i32, %c0_i32_0 : i32, i32
  }
  func.func @transform_3(%arg0: i32, %arg1: i32) -> (i32, i32) {
    %c0_i32 = arith.constant 0 : i32
    %c0_i32_0 = arith.constant 0 : i32
    %c0_i32_1 = arith.constant 0 : i32
    return %c0_i32, %c0_i32_0 : i32, i32
  }
  func.func @transform_4(%arg0: i32, %arg1: i32) -> (i32, i32) {
    %c0_i32 = arith.constant 0 : i32
    %c0_i32_0 = arith.constant 0 : i32
    %c0_i32_1 = arith.constant 0 : i32
    return %c0_i32, %c0_i32_0 : i32, i32
  }
  func.func @transform_5(%arg0: i32, %arg1: i32) -> (i32, i32) {
    %c0_i32 = arith.constant 0 : i32
    %c0_i32_0 = arith.constant 0 : i32
    %c0_i32_1 = arith.constant 0 : i32
    return %c0_i32, %c0_i32_0 : i32, i32
  }
  func.func @transform_6(%arg0: i32, %arg1: i32) -> (i32, i32) {
    %c0_i32 = arith.constant 0 : i32
    %c0_i32_0 = arith.constant 0 : i32
    %c0_i32_1 = arith.constant 0 : i32
    return %c0_i32, %c0_i32_0 : i32, i32
  }
  func.func @transform_7(%arg0: i32, %arg1: i32) -> (i32, i32) {
    %c0_i32 = arith.constant 0 : i32
    %c0_i32_0 = arith.constant 0 : i32
    %c0_i32_1 = arith.constant 0 : i32
    return %c0_i32, %c0_i32_0 : i32, i32
  }
  func.func @transform_8(%arg0: i32, %arg1: i32) -> (i32, i32) {
    %c0_i32 = arith.constant 0 : i32
    %c0_i32_0 = arith.constant 0 : i32
    %c0_i32_1 = arith.constant 0 : i32
    return %c0_i32, %c0_i32_0 : i32, i32
  }
  func.func @transform_9(%arg0: i32, %arg1: i32) -> (i32, i32) {
    %c0_i32 = arith.constant 0 : i32
    %c0_i32_0 = arith.constant 0 : i32
    %c0_i32_1 = arith.constant 0 : i32
    return %c0_i32, %c0_i32_0 : i32, i32
  }
  func.func @transform_10(%arg0: i32, %arg1: i32) -> (i32, i32) {
    %c0_i32 = arith.constant 0 : i32
    %c0_i32_0 = arith.constant 0 : i32
    %c0_i32_1 = arith.constant 0 : i32
    return %c0_i32, %c0_i32_0 : i32, i32
  }
  func.func @transform_11(%arg0: i32, %arg1: i32) -> (i32, i32, i32) {
    %c0_i32 = arith.constant 0 : i32
    %c0_i32_0 = arith.constant 0 : i32
    %c0_i32_1 = arith.constant 0 : i32
    return %arg0, %c0_i32, %c0_i32_0 : i32, i32, i32
  }
  func.func @transform_12(%arg0: i32, %arg1: i32) -> (i32, i32, i32) {
    %c0_i32 = arith.constant 0 : i32
    %c0_i32_0 = arith.constant 0 : i32
    %c0_i32_1 = arith.constant 0 : i32
    return %arg0, %c0_i32, %c0_i32_0 : i32, i32, i32
  }
}

module attributes {stable_mosaic.version = 11 : i64} {
  func.func @_tnet_head_kernel(%arg0: memref<2x1024xf32, #tpu.memory_space<vmem>>, %arg1: memref<2x1024xf32, #tpu.memory_space<vmem>>, %arg2: memref<1x1024xf32, #tpu.memory_space<vmem>>, %arg3: memref<1x1024xf32, #tpu.memory_space<vmem>>, %arg4: memref<1024x512xbf16, #tpu.memory_space<vmem>>, %arg5: memref<1x512xf32, #tpu.memory_space<vmem>>, %arg6: memref<1x512xf32, #tpu.memory_space<vmem>>, %arg7: memref<512x256xbf16, #tpu.memory_space<vmem>>, %arg8: memref<1x256xf32, #tpu.memory_space<vmem>>, %arg9: memref<1x256xf32, #tpu.memory_space<vmem>>, %arg10: memref<256x128xbf16, #tpu.memory_space<vmem>>, %arg11: memref<2x128xf32, #tpu.memory_space<vmem>>) attributes {dimension_semantics = [], scalar_prefetch = 0 : i64, scratch_operands = 0 : i64, tpu.core_type = #tpu.core_type<tc>} {
    %c0 = arith.constant 0 : index
    %c0_0 = arith.constant 0 : index
    %0 = vector.load %arg2[%c0, %c0_0] : memref<1x1024xf32, #tpu.memory_space<vmem>>, vector<1x1024xf32>
    %cst = arith.constant 0.000000e+00 : f32
    %1 = vector.broadcast %cst : f32 to vector<1x1024xf32>
    %2 = arith.cmpf ogt, %0, %1 : vector<1x1024xf32>
    %c0_1 = arith.constant 0 : index
    %c0_2 = arith.constant 0 : index
    %3 = vector.load %arg0[%c0_1, %c0_2] : memref<2x1024xf32, #tpu.memory_space<vmem>>, vector<2x1024xf32>
    %c0_3 = arith.constant 0 : index
    %c0_4 = arith.constant 0 : index
    %4 = vector.load %arg1[%c0_3, %c0_4] : memref<2x1024xf32, #tpu.memory_space<vmem>>, vector<2x1024xf32>
    %5 = vector.shape_cast %2 : vector<1x1024xi1> to vector<1x1024xi1>
    %6 = vector.broadcast %5 : vector<1x1024xi1> to vector<2x1024xi1>
    %7 = arith.select %6, %3, %4 : vector<2x1024xi1>, vector<2x1024xf32>
    %8 = vector.broadcast %0 : vector<1x1024xf32> to vector<2x1024xf32>
    %9 = arith.mulf %7, %8 : vector<2x1024xf32>
    %c0_5 = arith.constant 0 : index
    %c0_6 = arith.constant 0 : index
    %10 = vector.load %arg3[%c0_5, %c0_6] : memref<1x1024xf32, #tpu.memory_space<vmem>>, vector<1x1024xf32>
    %11 = vector.broadcast %10 : vector<1x1024xf32> to vector<2x1024xf32>
    %12 = arith.addf %9, %11 : vector<2x1024xf32>
    %cst_7 = arith.constant 0.000000e+00 : f32
    %13 = vector.broadcast %cst_7 : f32 to vector<2x1024xf32>
    %14 = arith.maximumf %12, %13 : vector<2x1024xf32>
    %c0_8 = arith.constant 0 : index
    %c0_9 = arith.constant 0 : index
    %15 = vector.load %arg4[%c0_8, %c0_9] : memref<1024x512xbf16, #tpu.memory_space<vmem>>, vector<1024x512xbf16>
    %16 = arith.truncf %14 : vector<2x1024xf32> to vector<2x1024xbf16>
    %cst_10 = arith.constant dense<0.000000e+00> : vector<2x512xf32>
    %17 = tpu.matmul %16, %15, %cst_10 {dimension_numbers = #tpu.dot_dimension_numbers<[1], [0], [0], [1], [0, 0, 1, 1], [], []>} : vector<2x1024xbf16>, vector<1024x512xbf16>, vector<2x512xf32> -> vector<2x512xf32>
    %c0_11 = arith.constant 0 : index
    %c0_12 = arith.constant 0 : index
    %18 = vector.load %arg5[%c0_11, %c0_12] : memref<1x512xf32, #tpu.memory_space<vmem>>, vector<1x512xf32>
    %c0_13 = arith.constant 0 : index
    %c0_14 = arith.constant 0 : index
    %19 = vector.load %arg6[%c0_13, %c0_14] : memref<1x512xf32, #tpu.memory_space<vmem>>, vector<1x512xf32>
    %cst_15 = arith.constant dense<0.000000e+00> : vector<512xf32>
    %20 = vector.multi_reduction <add>, %17, %cst_15 [0] : vector<2x512xf32> to vector<512xf32>
    %21 = vector.shape_cast %20 : vector<512xf32> to vector<1x512xf32>
    %cst_16 = arith.constant 2.000000e+00 : f32
    %22 = vector.broadcast %cst_16 : f32 to vector<1x512xf32>
    %23 = arith.divf %21, %22 : vector<1x512xf32>
    %24 = vector.broadcast %23 : vector<1x512xf32> to vector<2x512xf32>
    %25 = arith.subf %17, %24 : vector<2x512xf32>
    %26 = arith.mulf %25, %25 : vector<2x512xf32>
    %cst_17 = arith.constant dense<0.000000e+00> : vector<512xf32>
    %27 = vector.multi_reduction <add>, %26, %cst_17 [0] : vector<2x512xf32> to vector<512xf32>
    %28 = vector.shape_cast %27 : vector<512xf32> to vector<1x512xf32>
    %cst_18 = arith.constant 2.000000e+00 : f32
    %29 = vector.broadcast %cst_18 : f32 to vector<1x512xf32>
    %30 = arith.divf %28, %29 : vector<1x512xf32>
    %cst_19 = arith.constant 9.99999974E-6 : f32
    %31 = vector.broadcast %cst_19 : f32 to vector<1x512xf32>
    %32 = arith.addf %30, %31 : vector<1x512xf32>
    %33 = math.rsqrt %32 : vector<1x512xf32>
    %34 = arith.mulf %18, %33 : vector<1x512xf32>
    %35 = vector.broadcast %34 : vector<1x512xf32> to vector<2x512xf32>
    %36 = arith.mulf %25, %35 : vector<2x512xf32>
    %37 = vector.broadcast %19 : vector<1x512xf32> to vector<2x512xf32>
    %38 = arith.addf %36, %37 : vector<2x512xf32>
    %cst_20 = arith.constant 0.000000e+00 : f32
    %39 = vector.broadcast %cst_20 : f32 to vector<2x512xf32>
    %40 = arith.maximumf %38, %39 : vector<2x512xf32>
    %c0_21 = arith.constant 0 : index
    %c0_22 = arith.constant 0 : index
    %41 = vector.load %arg7[%c0_21, %c0_22] : memref<512x256xbf16, #tpu.memory_space<vmem>>, vector<512x256xbf16>
    %42 = arith.truncf %40 : vector<2x512xf32> to vector<2x512xbf16>
    %cst_23 = arith.constant dense<0.000000e+00> : vector<2x256xf32>
    %43 = tpu.matmul %42, %41, %cst_23 {dimension_numbers = #tpu.dot_dimension_numbers<[1], [0], [0], [1], [0, 0, 1, 1], [], []>} : vector<2x512xbf16>, vector<512x256xbf16>, vector<2x256xf32> -> vector<2x256xf32>
    %c0_24 = arith.constant 0 : index
    %c0_25 = arith.constant 0 : index
    %44 = vector.load %arg8[%c0_24, %c0_25] : memref<1x256xf32, #tpu.memory_space<vmem>>, vector<1x256xf32>
    %c0_26 = arith.constant 0 : index
    %c0_27 = arith.constant 0 : index
    %45 = vector.load %arg9[%c0_26, %c0_27] : memref<1x256xf32, #tpu.memory_space<vmem>>, vector<1x256xf32>
    %cst_28 = arith.constant dense<0.000000e+00> : vector<256xf32>
    %46 = vector.multi_reduction <add>, %43, %cst_28 [0] : vector<2x256xf32> to vector<256xf32>
    %47 = vector.shape_cast %46 : vector<256xf32> to vector<1x256xf32>
    %cst_29 = arith.constant 2.000000e+00 : f32
    %48 = vector.broadcast %cst_29 : f32 to vector<1x256xf32>
    %49 = arith.divf %47, %48 : vector<1x256xf32>
    %50 = vector.broadcast %49 : vector<1x256xf32> to vector<2x256xf32>
    %51 = arith.subf %43, %50 : vector<2x256xf32>
    %52 = arith.mulf %51, %51 : vector<2x256xf32>
    %cst_30 = arith.constant dense<0.000000e+00> : vector<256xf32>
    %53 = vector.multi_reduction <add>, %52, %cst_30 [0] : vector<2x256xf32> to vector<256xf32>
    %54 = vector.shape_cast %53 : vector<256xf32> to vector<1x256xf32>
    %cst_31 = arith.constant 2.000000e+00 : f32
    %55 = vector.broadcast %cst_31 : f32 to vector<1x256xf32>
    %56 = arith.divf %54, %55 : vector<1x256xf32>
    %cst_32 = arith.constant 9.99999974E-6 : f32
    %57 = vector.broadcast %cst_32 : f32 to vector<1x256xf32>
    %58 = arith.addf %56, %57 : vector<1x256xf32>
    %59 = math.rsqrt %58 : vector<1x256xf32>
    %60 = arith.mulf %44, %59 : vector<1x256xf32>
    %61 = vector.broadcast %60 : vector<1x256xf32> to vector<2x256xf32>
    %62 = arith.mulf %51, %61 : vector<2x256xf32>
    %63 = vector.broadcast %45 : vector<1x256xf32> to vector<2x256xf32>
    %64 = arith.addf %62, %63 : vector<2x256xf32>
    %cst_33 = arith.constant 0.000000e+00 : f32
    %65 = vector.broadcast %cst_33 : f32 to vector<2x256xf32>
    %66 = arith.maximumf %64, %65 : vector<2x256xf32>
    %c0_34 = arith.constant 0 : index
    %c0_35 = arith.constant 0 : index
    %67 = vector.load %arg10[%c0_34, %c0_35] : memref<256x128xbf16, #tpu.memory_space<vmem>>, vector<256x128xbf16>
    %68 = arith.truncf %66 : vector<2x256xf32> to vector<2x256xbf16>
    %cst_36 = arith.constant dense<0.000000e+00> : vector<2x128xf32>
    %69 = tpu.matmul %68, %67, %cst_36 {dimension_numbers = #tpu.dot_dimension_numbers<[1], [0], [0], [1], [0, 0, 1, 1], [], []>} : vector<2x256xbf16>, vector<256x128xbf16>, vector<2x128xf32> -> vector<2x128xf32>
    %c0_37 = arith.constant 0 : index
    %c0_38 = arith.constant 0 : index
    %70 = vector.load %arg11[%c0_37, %c0_38] : memref<2x128xf32, #tpu.memory_space<vmem>>, vector<2x128xf32>
    tpu.vector_store %arg11[%c0_37, %c0_38], %69 {strides = array<i32>} : memref<2x128xf32, #tpu.memory_space<vmem>>, vector<2x128xf32>,
    return
  }
}

</mosaic_0001>

<llo_original>
// kernel: pointnetfeat_forward.7
$region0: #{pointnetfeat_forward.7}
  #allocation0 [shape = 'u32[]', space=smem, size = 0x4, offset = 0x4, fixed_abs, tag = 'smem constant byte address 0x4 - core index']
  #allocation1 [shape = 'u32[72,128]{1,0:T(1,128)}', space=vmem, size = 0x9000, scoped, tag = 'internal scratch']
  %s0 = inlined_call_operand.vmem [shape: f32[2,256,3], index: 0, kind: input, shape index: {}]
  %s1 = inlined_call_operand.vmem [shape: f32[2,3,64], index: 1, kind: input, shape index: {}]
  %s2 = inlined_call_operand.vmem [shape: f32[1,64], index: 2, kind: output, shape index: {0}]
  %s3 = inlined_call_operand.vmem [shape: f32[1,64], index: 3, kind: output, shape index: {1}]
  %s4 = inlined_call_operand.vmem [shape: f32[1,64], index: 4, kind: output, shape index: {2}]
  %5 = xla_tuple %s2, %s3, %s4
  %s6 = sld [smem:[#allocation0]]
  $region61: #{pointnetfeat_forward.7} parent=0
    _
  %s8 = ssub.s32 1, %s6
  %s9 = scalar_select 0, %s8, %s6
  loop: start=0, step=1, limit=10
  $region2: #{pointnetfeat_forward.7} parent=0 // loop_pre_header
    _
  $region3: #{pointnetfeat_forward.7} parent=0 // loop_header
    %s11 = sphi 0, %s15
    %p12 = scmp.ge.s32.totalorder %s11, 10
    %s18 = sphi 0, %s30
    %s19 = sphi 0, %s26
    %s20 = sphi 0, %s18
    %s21 = sphi 0, %s19
    %s22 = sphi 0, %s20
    %s23 = sphi 0, %s21
    %s35 = sphi 0, %s37
    %s38 = sphi 0, %s35
    %s39 = sphi 0, %s38
    %s55 = sphi 0, %s39
    %s61 = sphi 0, %s63
    %s64 = sphi 0, %s61
    %s65 = sphi 0, %s64
    %s81 = sphi 0, %s65
    %s85 = sphi 0, %s85
    %s87 = sphi 0, %s85
    %s88 = sphi 0, %s87
    %s102 = sphi 0, %s88
    %s106 = sphi 0, %s106
    %s108 = sphi 0, %s106
    %s109 = sphi 0, %s108
    %s123 = sphi 0, %s109
    %s127 = sphi 0, %s127
    %s129 = sphi 0, %s127
    %s130 = sphi 0, %s129
    %s144 = sphi 0, %s130
  $region4: #{pointnetfeat_forward.7} parent=0 // loop_header_branch
    %14 = sbr.rel (%p12) target = $region8
  $region5: #{pointnetfeat_forward.7} parent=0 // loop_body
    %s16 = ssub.s32 %s11, 1
    %s17 = ssub.s32 %s11, 2
    %s24 = sadd.s32 1, %s19
    %p25 = scmp.ge.s32.totalorder %s24, 4
    %s26 = scalar_select %p25, 0, %s24
    %s27 = sadd.s32 1, %s18
    %s28 = scalar_select %p25, %s27, %s18
    %p29 = scmp.ge.s32.totalorder %s28, 2
    %s30 = scalar_select %p29, 0, %s28
    %s31 = ssub.s32 %s18, %s30
    %s32 = ssub.s32 %s19, %s26
    %s33 = sor.u32 %s31, %s32
    %p34 = scmp.eq.s32.totalorder %s33, 0
    %s36 = sadd.s32 %s35, 1
    %s37 = scalar_select %p34, %s35, %s36
    %p40 = pneg %p34
    %p41 = scmp.eq.s32.totalorder %s11, 7
    %p42 = por %p40, %p41
    %p43 = scmp.ne.s32.totalorder %s35, %s38
    %p44 = scmp.eq.s32.totalorder %s11, 0
    %p45 = por %p43, %p44
    %p46 = scmp.ne.s32.totalorder %s35, %s38
    %p47 = scmp.eq.s32.totalorder %s16, 7
    %p48 = por %p46, %p47
    %p49 = scmp.ne.s32.totalorder %s38, %s39
    %p50 = scmp.eq.s32.totalorder %s16, 0
    %p51 = por %p49, %p50
    %p52 = scmp.ne.s32.totalorder %s38, %s39
    %p53 = scmp.eq.s32.totalorder %s17, 7
    %p54 = por %p52, %p53
    %p56 = scmp.ne.s32.totalorder %s39, %s55
    %p57 = scmp.eq.s32.totalorder %s17, 0
    %p58 = por %p56, %p57
    %s59 = ssub.s32 %s18, %s30
    %p60 = scmp.eq.s32.totalorder %s59, 0
    %s62 = sadd.s32 %s61, 1
    %s63 = scalar_select %p60, %s61, %s62
    %p66 = pneg %p60
    %p67 = scmp.eq.s32.totalorder %s11, 7
    %p68 = por %p66, %p67
    %p69 = scmp.ne.s32.totalorder %s61, %s64
    %p70 = scmp.eq.s32.totalorder %s11, 0
    %p71 = por %p69, %p70
    %p72 = scmp.ne.s32.totalorder %s61, %s64
    %p73 = scmp.eq.s32.totalorder %s16, 7
    %p74 = por %p72, %p73
    %p75 = scmp.ne.s32.totalorder %s64, %s65
    %p76 = scmp.eq.s32.totalorder %s16, 0
    %p77 = por %p75, %p76
    %p78 = scmp.ne.s32.totalorder %s64, %s65
    %p79 = scmp.eq.s32.totalorder %s17, 7
    %p80 = por %p78, %p79
    %p82 = scmp.ne.s32.totalorder %s65, %s81
    %p83 = scmp.eq.s32.totalorder %s17, 0
    %p84 = por %p82, %p83
    %s86 = sadd.s32 %s85, 1
    %p89 = scmp.eq.s32.totalorder %s11, 7
    %p90 = scmp.ne.s32.totalorder %s85, %s87
    %p91 = scmp.eq.s32.totalorder %s11, 0
    %p92 = por %p90, %p91
    %p93 = scmp.ne.s32.totalorder %s85, %s87
    %p94 = scmp.eq.s32.totalorder %s16, 7
    %p95 = por %p93, %p94
    %p96 = scmp.ne.s32.totalorder %s87, %s88
    %p97 = scmp.eq.s32.totalorder %s16, 0
    %p98 = por %p96, %p97
    %p99 = scmp.ne.s32.totalorder %s87, %s88
    %p100 = scmp.eq.s32.totalorder %s17, 7
    %p101 = por %p99, %p100
    %p103 = scmp.ne.s32.totalorder %s88, %s102
    %p104 = scmp.eq.s32.totalorder %s17, 0
    %p105 = por %p103, %p104
    %s107 = sadd.s32 %s106, 1
    %p110 = scmp.eq.s32.totalorder %s11, 7
    %p111 = scmp.ne.s32.totalorder %s106, %s108
    %p112 = scmp.eq.s32.totalorder %s11, 0
    %p113 = por %p111, %p112
    %p114 = scmp.ne.s32.totalorder %s106, %s108
    %p115 = scmp.eq.s32.totalorder %s16, 7
    %p116 = por %p114, %p115
    %p117 = scmp.ne.s32.totalorder %s108, %s109
    %p118 = scmp.eq.s32.totalorder %s16, 0
    %p119 = por %p117, %p118
    %p120 = scmp.ne.s32.totalorder %s108, %s109
    %p121 = scmp.eq.s32.totalorder %s17, 7
    %p122 = por %p120, %p121
    %p124 = scmp.ne.s32.totalorder %s109, %s123
    %p125 = scmp.eq.s32.totalorder %s17, 0
    %p126 = por %p124, %p125
    %s128 = sadd.s32 %s127, 1
    %p131 = scmp.eq.s32.totalorder %s11, 7
    %p132 = scmp.ne.s32.totalorder %s127, %s129
    %p133 = scmp.eq.s32.totalorder %s11, 0
    %p134 = por %p132, %p133
    %p135 = scmp.ne.s32.totalorder %s127, %s129
    %p136 = scmp.eq.s32.totalorder %s16, 7
    %p137 = por %p135, %p136
    %p138 = scmp.ne.s32.totalorder %s129, %s130
    %p139 = scmp.eq.s32.totalorder %s16, 0
    %p140 = por %p138, %p139
    %p141 = scmp.ne.s32.totalorder %s129, %s130
    %p142 = scmp.eq.s32.totalorder %s17, 7
    %p143 = por %p141, %p142
    %p145 = scmp.ne.s32.totalorder %s130, %s144
    %p146 = scmp.eq.s32.totalorder %s17, 0
    %p147 = por %p145, %p146
    %p148 = scmp.le.s32.totalorder 1, %s11
    %p149 = scmp.lt.s32.totalorder %s11, 9
    %p150 = pnand %p148, %p149
    %p151 = pneg %p150
    // Predicated region
    $region9: #{pointnetfeat_forward.7} parent=5 // pred_check
      _
    $region10: #{pointnetfeat_forward.7} parent=5 // pred_check_branch
      %153 = sbr.rel (%p150) target = $region12
    $region11: #{pointnetfeat_forward.7} parent=5 // pred_region
      %s154 = ssub.s32 %s11, 1
    $region12: #{pointnetfeat_forward.7} parent=5 // pred_fallthru
      _
    %p155 = scmp.lt.s32.totalorder %s11, 8
    // Predicated region
    $region13: #{pointnetfeat_forward.7} parent=5 // pred_check
      %p156 = pneg %p155
    $region14: #{pointnetfeat_forward.7} parent=5 // pred_check_branch
      %158 = sbr.rel (%p156) target = $region16
    $region15: #{pointnetfeat_forward.7} parent=5 // pred_region
      // Predicated region
      $region17: #{pointnetfeat_forward.7} parent=15 // pred_check
        %p159 = pneg %p45
      $region18: #{pointnetfeat_forward.7} parent=15 // pred_check_branch
        %161 = sbr.rel (%p159) target = $region20
      $region19: #{pointnetfeat_forward.7} parent=15 // pred_region
        %s162 = smul.u32 8, %s19
        %p163 = scmp.lt.s32.totalorder %s18, 1
        %s164 = scalar_select %p163, %s18, 1
        %p165 = scmp.lt.s32.totalorder %s162, 31
        %s166 = scalar_select %p165, %s162, 31
        %s167 = smul.addr %s164, 32
        %s168 = sadd.s32 %s166, %s167
        %s169 = smul.addr %s168, 8
        %s170 = scalar_lea.vmem %s0, %s169
        %s171 = smul.u32 8, %s19
      $region20: #{pointnetfeat_forward.7} parent=15 // pred_fallthru
        _
      // Predicated region
      $region21: #{pointnetfeat_forward.7} parent=15 // pred_check
        %p172 = pneg %p71
      $region22: #{pointnetfeat_forward.7} parent=15 // pred_check_branch
        %174 = sbr.rel (%p172) target = $region24
      $region23: #{pointnetfeat_forward.7} parent=15 // pred_region
        %p175 = scmp.lt.s32.totalorder %s18, 1
        %s176 = scalar_select %p175, %s18, 1
        %s177 = smul.addr %s176, 4
        %s178 = scalar_lea.vmem %s1, %s177
      $region24: #{pointnetfeat_forward.7} parent=15 // pred_fallthru
        _
    $region16: #{pointnetfeat_forward.7} parent=5 // pred_fallthru
      _
    %p179 = scmp.le.s32.totalorder 1, %s11
    %p180 = scmp.lt.s32.totalorder %s11, 9
    %p181 = pnand %p179, %p180
    %p182 = pneg %p181
    // Predicated region
    $region25: #{pointnetfeat_forward.7} parent=5 // pred_check
      _
    $region26: #{pointnetfeat_forward.7} parent=5 // pred_check_branch
      %184 = sbr.rel (%p181) target = $region28
    $region27: #{pointnetfeat_forward.7} parent=5 // pred_region
      %s185 = ssub.s32 %s11, 1
      %s186 = smul.u32 8, %s21
      %p187 = scmp.lt.s32.totalorder %s20, 1
      %s188 = scalar_select %p187, %s20, 1
      %p189 = scmp.lt.s32.totalorder %s186, 31
      %s190 = scalar_select %p189, %s186, 31
      %s191 = smul.addr %s188, 32
      %s192 = sadd.s32 %s190, %s191
      %s193 = smul.addr %s192, 8
      %s194 = scalar_lea.vmem %s0, %s193
      %p195 = pneg %p51
      %p196 = pneg %p48
      %p197 = scmp.lt.s32.totalorder %s20, 1
      %s198 = scalar_select %p197, %s20, 1
      %s199 = smul.addr %s198, 4
      %s200 = scalar_lea.vmem %s1, %s199
      %p201 = pneg %p77
      %p202 = pneg %p74
      %p203 = pneg %p98
      %p204 = pneg %p95
      %p205 = pneg %p119
      %p206 = pneg %p116
      %p207 = pneg %p140
      %p208 = pneg %p137
      %s209 = smul.u32 8, %s21
      %p210 = scmp.lt.s32.totalorder %s20, 1
      %s211 = scalar_select %p210, %s20, 1
      %p212 = scmp.lt.s32.totalorder %s209, 31
      %s213 = scalar_select %p212, %s209, 31
      %s214 = smul.addr %s211, 32
      %s215 = sadd.s32 %s213, %s214
      %s216 = smul.addr %s215, 8
      %s217 = scalar_lea.vmem %s0, %s216
      %s218 = smul.u32 8, %s21
      %p219 = scmp.lt.s32.totalorder %s20, 1
      %s220 = scalar_select %p219, %s20, 1
      %s221 = smul.addr %s220, 4
      %s222 = scalar_lea.vmem %s1, %s221
      %v223 = vld [vmem:[%s217] sm:$0xff]
      %v224 = vld [vmem:[%s217 + $0x8] sm:$0xff]
      %v225 = vld [vmem:[%s217 + $0x10] sm:$0xff]
      %v226 = vld [vmem:[%s217 + $0x18] sm:$0xff]
      %v227 = vld [vmem:[%s217 + $0x20] sm:$0xff]
      %v228 = vld [vmem:[%s217 + $0x28] sm:$0xff]
      %v229 = vld [vmem:[%s217 + $0x30] sm:$0xff]
      %v230 = vld [vmem:[%s217 + $0x38] sm:$0xff]
      %v231 = vld [vmem:[%s222] sm:$0x7]
      %233 = vset.pattern.permute.xlu0 0
      %234 = vperm.xlu0 %233, %v223
      %v235 = vpop.permute.xlu0 %234
      %238 = vset.pattern.permute.xlu0 0
      %239 = vperm.xlu0 %238, %v224
      %v240 = vpop.permute.xlu0 %239
      %243 = vset.pattern.permute.xlu0 0
      %244 = vperm.xlu0 %243, %v225
      %v245 = vpop.permute.xlu0 %244
      %248 = vset.pattern.permute.xlu0 0
      %249 = vperm.xlu0 %248, %v226
      %v250 = vpop.permute.xlu0 %249
      %253 = vset.pattern.permute.xlu0 0
      %254 = vperm.xlu0 %253, %v227
      %v255 = vpop.permute.xlu0 %254
      %258 = vset.pattern.permute.xlu0 0
      %259 = vperm.xlu0 %258, %v228
      %v260 = vpop.permute.xlu0 %259
      %263 = vset.pattern.permute.xlu0 0
      %264 = vperm.xlu0 %263, %v229
      %v265 = vpop.permute.xlu0 %264
      %268 = vset.pattern.permute.xlu0 0
      %269 = vperm.xlu0 %268, %v230
      %v270 = vpop.permute.xlu0 %269
      %v272 = vperm.slane %v231, 0
      %v273 = vmul.f32 %v235, %v272
      %v274 = vmul.f32 %v240, %v272
      %v275 = vmul.f32 %v245, %v272
      %v276 = vmul.f32 %v250, %v272
      %v277 = vmul.f32 %v255, %v272
      %v278 = vmul.f32 %v260, %v272
      %v279 = vmul.f32 %v265, %v272
      %v280 = vmul.f32 %v270, %v272
      %281 = vset.pattern.permute.xlu0 1
      %282 = vperm.xlu0 %281, %v223
      %v283 = vpop.permute.xlu0 %282
      %285 = vset.pattern.permute.xlu0 1
      %286 = vperm.xlu0 %285, %v224
      %v287 = vpop.permute.xlu0 %286
      %289 = vset.pattern.permute.xlu0 1
      %290 = vperm.xlu0 %289, %v225
      %v291 = vpop.permute.xlu0 %290
      %293 = vset.pattern.permute.xlu0 1
      %294 = vperm.xlu0 %293, %v226
      %v295 = vpop.permute.xlu0 %294
      %297 = vset.pattern.permute.xlu0 1
      %298 = vperm.xlu0 %297, %v227
      %v299 = vpop.permute.xlu0 %298
      %301 = vset.pattern.permute.xlu0 1
      %302 = vperm.xlu0 %301, %v228
      %v303 = vpop.permute.xlu0 %302
      %305 = vset.pattern.permute.xlu0 1
      %306 = vperm.xlu0 %305, %v229
      %v307 = vpop.permute.xlu0 %306
      %309 = vset.pattern.permute.xlu0 1
      %310 = vperm.xlu0 %309, %v230
      %v311 = vpop.permute.xlu0 %310
      %v313 = vperm.slane %v231, 1
      %v314 = vmul.f32 %v283, %v313
      %v315 = vmul.f32 %v287, %v313
      %v316 = vmul.f32 %v291, %v313
      %v317 = vmul.f32 %v295, %v313
      %v318 = vmul.f32 %v299, %v313
      %v319 = vmul.f32 %v303, %v313
      %v320 = vmul.f32 %v307, %v313
      %v321 = vmul.f32 %v311, %v313
      %v322 = vadd.f32 %v273, %v314
      %v323 = vadd.f32 %v274, %v315
      %v324 = vadd.f32 %v275, %v316
      %v325 = vadd.f32 %v276, %v317
      %v326 = vadd.f32 %v277, %v318
      %v327 = vadd.f32 %v278, %v319
      %v328 = vadd.f32 %v279, %v320
      %v329 = vadd.f32 %v280, %v321
      %330 = vset.pattern.permute.xlu0 2
      %331 = vperm.xlu0 %330, %v223
      %v332 = vpop.permute.xlu0 %331
      %334 = vset.pattern.permute.xlu0 2
      %335 = vperm.xlu0 %334, %v224
      %v336 = vpop.permute.xlu0 %335
      %338 = vset.pattern.permute.xlu0 2
      %339 = vperm.xlu0 %338, %v225
      %v340 = vpop.permute.xlu0 %339
      %342 = vset.pattern.permute.xlu0 2
      %343 = vperm.xlu0 %342, %v226
      %v344 = vpop.permute.xlu0 %343
      %346 = vset.pattern.permute.xlu0 2
      %347 = vperm.xlu0 %346, %v227
      %v348 = vpop.permute.xlu0 %347
      %350 = vset.pattern.permute.xlu0 2
      %351 = vperm.xlu0 %350, %v228
      %v352 = vpop.permute.xlu0 %351
      %354 = vset.pattern.permute.xlu0 2
      %355 = vperm.xlu0 %354, %v229
      %v356 = vpop.permute.xlu0 %355
      %358 = vset.pattern.permute.xlu0 2
      %359 = vperm.xlu0 %358, %v230
      %v360 = vpop.permute.xlu0 %359
      %v362 = vperm.slane %v231, 2
      %v363 = vmul.f32 %v332, %v362
      %v364 = vmul.f32 %v336, %v362
      %v365 = vmul.f32 %v340, %v362
      %v366 = vmul.f32 %v344, %v362
      %v367 = vmul.f32 %v348, %v362
      %v368 = vmul.f32 %v352, %v362
      %v369 = vmul.f32 %v356, %v362
      %v370 = vmul.f32 %v360, %v362
      %v371 = vadd.f32 %v322, %v363
      %v372 = vadd.f32 %v323, %v364
      %v373 = vadd.f32 %v324, %v365
      %v374 = vadd.f32 %v325, %v366
      %v375 = vadd.f32 %v326, %v367
      %v376 = vadd.f32 %v327, %v368
      %v377 = vadd.f32 %v328, %v369
      %v378 = vadd.f32 %v329, %v370
      %p379 = scmp.eq.s32.totalorder %s20, 0
      %p380 = scmp.eq.s32.totalorder %s21, 0
      %p381 = pnand %p379, %p380
      %p382 = pneg %p381
      // Predicated region
      $region29: #{pointnetfeat_forward.7} parent=27 // pred_check
        _
      $region30: #{pointnetfeat_forward.7} parent=27 // pred_check_branch
        %384 = sbr.rel (%p381) target = $region32
      $region31: #{pointnetfeat_forward.7} parent=27 // pred_region
        %vm385 = vcmask 523264
        %v386 = vsel %vm385, %v371, 0.0
        %v387 = vsel %vm385, %v372, 0.0
        %v388 = vadd.f32 %v386, %v387
        %v389 = vsel %vm385, %v373, 0.0
        %v390 = vadd.f32 %v388, %v389
        %v391 = vsel %vm385, %v374, 0.0
        %v392 = vadd.f32 %v390, %v391
        %v393 = vsel %vm385, %v375, 0.0
        %v394 = vadd.f32 %v392, %v393
        %v395 = vsel %vm385, %v376, 0.0
        %v396 = vadd.f32 %v394, %v395
        %v397 = vsel %vm385, %v377, 0.0
        %v398 = vadd.f32 %v396, %v397
        %v399 = vsel %vm385, %v378, 0.0
        %v400 = vadd.f32 %v398, %v399
        %v401 = vrot.slane %v400, 4
        %v402 = vadd.f32 %v400, %v401
        %v403 = vrot.slane %v402, 2
        %v404 = vadd.f32 %v402, %v403
        %v405 = vrot.slane %v404, 1
        %v406 = vadd.f32 %v404, %v405
        %v407 = vmul.f32 %v406, 0.015625
        %vm408 = vcmask 516096
        %409 = vst.msk [vmem:[%s2] sm:$0x1] %vm408, %v407
        %410 = vst.msk [vmem:[%s3] sm:$0x1] %vm408, 0.0
        %411 = vst.msk [vmem:[%s4] sm:$0x1] %vm408, 0.0
      $region32: #{pointnetfeat_forward.7} parent=27 // pred_fallthru
        _
      %v412 = vld [vmem:[%s2] sm:$0x1]
      %v414 = vperm.slane %v412, 0
      %v416 = vsub.f32 %v371, %v414
      %v417 = vsub.f32 %v372, %v414
      %v418 = vsub.f32 %v373, %v414
      %v419 = vsub.f32 %v374, %v414
      %v420 = vsub.f32 %v375, %v414
      %v421 = vsub.f32 %v376, %v414
      %v422 = vsub.f32 %v377, %v414
      %v423 = vsub.f32 %v378, %v414
      %v424 = vld [vmem:[%s3] sm:$0x1]
      %vm425 = vcmask 523264
      %v426 = vsel %vm425, %v416, 0.0
      %v427 = vsel %vm425, %v417, 0.0
      %v428 = vadd.f32 %v426, %v427
      %v429 = vsel %vm425, %v418, 0.0
      %v430 = vadd.f32 %v428, %v429
      %v431 = vsel %vm425, %v419, 0.0
      %v432 = vadd.f32 %v430, %v431
      %v433 = vsel %vm425, %v420, 0.0
      %v434 = vadd.f32 %v432, %v433
      %v435 = vsel %vm425, %v421, 0.0
      %v436 = vadd.f32 %v434, %v435
      %v437 = vsel %vm425, %v422, 0.0
      %v438 = vadd.f32 %v436, %v437
      %v439 = vsel %vm425, %v423, 0.0
      %v440 = vadd.f32 %v438, %v439
      %v441 = vrot.slane %v440, 4
      %v442 = vadd.f32 %v440, %v441
      %v443 = vrot.slane %v442, 2
      %v444 = vadd.f32 %v442, %v443
      %v445 = vrot.slane %v444, 1
      %v446 = vadd.f32 %v444, %v445
      %v447 = vadd.f32 %v424, %v446
      %vm448 = vcmask 516096
      %449 = vst.msk [vmem:[%s3] sm:$0x1] %vm448, %v447
      %v450 = vld [vmem:[%s4] sm:$0x1]
      %v451 = vmul.f32 %v416, %v416
      %v452 = vmul.f32 %v417, %v417
      %v453 = vmul.f32 %v418, %v418
      %v454 = vmul.f32 %v419, %v419
      %v455 = vmul.f32 %v420, %v420
      %v456 = vmul.f32 %v421, %v421
      %v457 = vmul.f32 %v422, %v422
      %v458 = vmul.f32 %v423, %v423
      %v459 = vsel %vm425, %v451, 0.0
      %v460 = vsel %vm425, %v452, 0.0
      %v461 = vadd.f32 %v459, %v460
      %v462 = vsel %vm425, %v453, 0.0
      %v463 = vadd.f32 %v461, %v462
      %v464 = vsel %vm425, %v454, 0.0
      %v465 = vadd.f32 %v463, %v464
      %v466 = vsel %vm425, %v455, 0.0
      %v467 = vadd.f32 %v465, %v466
      %v468 = vsel %vm425, %v456, 0.0
      %v469 = vadd.f32 %v467, %v468
      %v470 = vsel %vm425, %v457, 0.0
      %v471 = vadd.f32 %v469, %v470
      %v472 = vsel %vm425, %v458, 0.0
      %v473 = vadd.f32 %v471, %v472
      %v474 = vrot.slane %v473, 4
      %v475 = vadd.f32 %v473, %v474
      %v476 = vrot.slane %v475, 2
      %v477 = vadd.f32 %v475, %v476
      %v478 = vrot.slane %v477, 1
      %v479 = vadd.f32 %v477, %v478
      %v480 = vadd.f32 %v450, %v479
      %481 = vst.msk [vmem:[%s4] sm:$0x1] %vm448, %v480
      // Predicated region
      $region33: #{pointnetfeat_forward.7} parent=27 // pred_check
        %p482 = pneg %p95
      $region34: #{pointnetfeat_forward.7} parent=27 // pred_check_branch
        %484 = sbr.rel (%p482) target = $region36
      $region35: #{pointnetfeat_forward.7} parent=27 // pred_region
        _
      $region36: #{pointnetfeat_forward.7} parent=27 // pred_fallthru
        _
      // Predicated region
      $region37: #{pointnetfeat_forward.7} parent=27 // pred_check
        %p485 = pneg %p116
      $region38: #{pointnetfeat_forward.7} parent=27 // pred_check_branch
        %487 = sbr.rel (%p485) target = $region40
      $region39: #{pointnetfeat_forward.7} parent=27 // pred_region
        _
      $region40: #{pointnetfeat_forward.7} parent=27 // pred_fallthru
        _
      // Predicated region
      $region41: #{pointnetfeat_forward.7} parent=27 // pred_check
        %p488 = pneg %p137
      $region42: #{pointnetfeat_forward.7} parent=27 // pred_check_branch
        %490 = sbr.rel (%p488) target = $region44
      $region43: #{pointnetfeat_forward.7} parent=27 // pred_region
        _
      $region44: #{pointnetfeat_forward.7} parent=27 // pred_fallthru
        _
      // Predicated region
      $region45: #{pointnetfeat_forward.7} parent=27 // pred_check
        %p491 = pneg %p95
      $region46: #{pointnetfeat_forward.7} parent=27 // pred_check_branch
        %493 = sbr.rel (%p491) target = $region48
      $region47: #{pointnetfeat_forward.7} parent=27 // pred_region
        _
      $region48: #{pointnetfeat_forward.7} parent=27 // pred_fallthru
        _
      // Predicated region
      $region49: #{pointnetfeat_forward.7} parent=27 // pred_check
        %p494 = pneg %p116
      $region50: #{pointnetfeat_forward.7} parent=27 // pred_check_branch
        %496 = sbr.rel (%p494) target = $region52
      $region51: #{pointnetfeat_forward.7} parent=27 // pred_region
        _
      $region52: #{pointnetfeat_forward.7} parent=27 // pred_fallthru
        _
      // Predicated region
      $region53: #{pointnetfeat_forward.7} parent=27 // pred_check
        %p497 = pneg %p137
      $region54: #{pointnetfeat_forward.7} parent=27 // pred_check_branch
        %499 = sbr.rel (%p497) target = $region56
      $region55: #{pointnetfeat_forward.7} parent=27 // pred_region
        _
      $region56: #{pointnetfeat_forward.7} parent=27 // pred_fallthru
        _
    $region28: #{pointnetfeat_forward.7} parent=5 // pred_fallthru
      _
    %p500 = scmp.le.s32.totalorder 2, %s11
    // Predicated region
    $region57: #{pointnetfeat_forward.7} parent=5 // pred_check
      %p501 = pneg %p500
    $region58: #{pointnetfeat_forward.7} parent=5 // pred_check_branch
      %503 = sbr.rel (%p501) target = $region60
    $region59: #{pointnetfeat_forward.7} parent=5 // pred_region
      %s504 = ssub.s32 %s11, 2
    $region60: #{pointnetfeat_forward.7} parent=5 // pred_fallthru
      _
  $region6: #{pointnetfeat_forward.7} parent=0 // loop_footer
    %s15 = sadd.s32 1, %s11
  $region7: #{pointnetfeat_forward.7} parent=0 // loop_footer_branch
    %10 = sbr.rel target = $region3
  $region8: #{pointnetfeat_forward.7} parent=0 // loop_exit
    _

// kernel: pointnetfeat_forward.8
$region0: #{pointnetfeat_forward.8}
  #allocation0 [shape = 'u32[]', space=smem, size = 0x4, offset = 0x4, fixed_abs, tag = 'smem constant byte address 0x4 - core index']
  #allocation1 [shape = 'u32[72,128]{1,0:T(1,128)}', space=vmem, size = 0x9000, scoped, tag = 'internal scratch']
  %s0 = inlined_call_operand.vmem [shape: f32[2,256,3], index: 0, kind: input, shape index: {}]
  %s1 = inlined_call_operand.vmem [shape: f32[2,3,64], index: 1, kind: input, shape index: {}]
  %s2 = inlined_call_operand.vmem [shape: f32[1,64], index: 2, kind: input, shape index: {}]
  %s3 = inlined_call_operand.vmem [shape: f32[1,64], index: 3, kind: input, shape index: {}]
  %s4 = inlined_call_operand.vmem [shape: bf16[64,128], index: 4, kind: input, shape index: {}]
  %s5 = inlined_call_operand.vmem [shape: f32[1,128], index: 5, kind: output, shape index: {0}]
  %s6 = inlined_call_operand.vmem [shape: f32[1,128], index: 6, kind: output, shape index: {1}]
  %s7 = inlined_call_operand.vmem [shape: f32[1,128], index: 7, kind: output, shape index: {2}]
  %8 = xla_tuple %s5, %s6, %s7
  %s9 = sld [smem:[#allocation0]]
  $region73: #{pointnetfeat_forward.8} parent=0
    _
  %s11 = ssub.s32 1, %s9
  %s12 = scalar_select 0, %s11, %s9
  loop: start=0, step=1, limit=10
  $region2: #{pointnetfeat_forward.8} parent=0 // loop_pre_header
    _
  $region3: #{pointnetfeat_forward.8} parent=0 // loop_header
    %s14 = sphi 0, %s18
    %p15 = scmp.ge.s32.totalorder %s14, 10
    %s21 = sphi 0, %s33
    %s22 = sphi 0, %s29
    %s23 = sphi 0, %s21
    %s24 = sphi 0, %s22
    %s25 = sphi 0, %s23
    %s26 = sphi 0, %s24
    %s38 = sphi 0, %s40
    %s41 = sphi 0, %s38
    %s42 = sphi 0, %s41
    %s58 = sphi 0, %s42
    %s64 = sphi 0, %s66
    %s67 = sphi 0, %s64
    %s68 = sphi 0, %s67
    %s84 = sphi 0, %s68
    %s88 = sphi 0, %s88
    %s90 = sphi 0, %s88
    %s91 = sphi 0, %s90
    %s105 = sphi 0, %s91
    %s109 = sphi 0, %s109
    %s111 = sphi 0, %s109
    %s112 = sphi 0, %s111
    %s126 = sphi 0, %s112
    %s130 = sphi 0, %s130
    %s132 = sphi 0, %s130
    %s133 = sphi 0, %s132
    %s147 = sphi 0, %s133
    %s151 = sphi 0, %s151
    %s153 = sphi 0, %s151
    %s154 = sphi 0, %s153
    %s168 = sphi 0, %s154
    %s172 = sphi 0, %s172
    %s174 = sphi 0, %s172
    %s175 = sphi 0, %s174
    %s189 = sphi 0, %s175
    %s193 = sphi 0, %s193
    %s195 = sphi 0, %s193
    %s196 = sphi 0, %s195
    %s210 = sphi 0, %s196
  $region4: #{pointnetfeat_forward.8} parent=0 // loop_header_branch
    %17 = sbr.rel (%p15) target = $region8
  $region5: #{pointnetfeat_forward.8} parent=0 // loop_body
    %s19 = ssub.s32 %s14, 1
    %s20 = ssub.s32 %s14, 2
    %s27 = sadd.s32 1, %s22
    %p28 = scmp.ge.s32.totalorder %s27, 4
    %s29 = scalar_select %p28, 0, %s27
    %s30 = sadd.s32 1, %s21
    %s31 = scalar_select %p28, %s30, %s21
    %p32 = scmp.ge.s32.totalorder %s31, 2
    %s33 = scalar_select %p32, 0, %s31
    %s34 = ssub.s32 %s21, %s33
    %s35 = ssub.s32 %s22, %s29
    %s36 = sor.u32 %s34, %s35
    %p37 = scmp.eq.s32.totalorder %s36, 0
    %s39 = sadd.s32 %s38, 1
    %s40 = scalar_select %p37, %s38, %s39
    %p43 = pneg %p37
    %p44 = scmp.eq.s32.totalorder %s14, 7
    %p45 = por %p43, %p44
    %p46 = scmp.ne.s32.totalorder %s38, %s41
    %p47 = scmp.eq.s32.totalorder %s14, 0
    %p48 = por %p46, %p47
    %p49 = scmp.ne.s32.totalorder %s38, %s41
    %p50 = scmp.eq.s32.totalorder %s19, 7
    %p51 = por %p49, %p50
    %p52 = scmp.ne.s32.totalorder %s41, %s42
    %p53 = scmp.eq.s32.totalorder %s19, 0
    %p54 = por %p52, %p53
    %p55 = scmp.ne.s32.totalorder %s41, %s42
    %p56 = scmp.eq.s32.totalorder %s20, 7
    %p57 = por %p55, %p56
    %p59 = scmp.ne.s32.totalorder %s42, %s58
    %p60 = scmp.eq.s32.totalorder %s20, 0
    %p61 = por %p59, %p60
    %s62 = ssub.s32 %s21, %s33
    %p63 = scmp.eq.s32.totalorder %s62, 0
    %s65 = sadd.s32 %s64, 1
    %s66 = scalar_select %p63, %s64, %s65
    %p69 = pneg %p63
    %p70 = scmp.eq.s32.totalorder %s14, 7
    %p71 = por %p69, %p70
    %p72 = scmp.ne.s32.totalorder %s64, %s67
    %p73 = scmp.eq.s32.totalorder %s14, 0
    %p74 = por %p72, %p73
    %p75 = scmp.ne.s32.totalorder %s64, %s67
    %p76 = scmp.eq.s32.totalorder %s19, 7
    %p77 = por %p75, %p76
    %p78 = scmp.ne.s32.totalorder %s67, %s68
    %p79 = scmp.eq.s32.totalorder %s19, 0
    %p80 = por %p78, %p79
    %p81 = scmp.ne.s32.totalorder %s67, %s68
    %p82 = scmp.eq.s32.totalorder %s20, 7
    %p83 = por %p81, %p82
    %p85 = scmp.ne.s32.totalorder %s68, %s84
    %p86 = scmp.eq.s32.totalorder %s20, 0
    %p87 = por %p85, %p86
    %s89 = sadd.s32 %s88, 1
    %p92 = scmp.eq.s32.totalorder %s14, 7
    %p93 = scmp.ne.s32.totalorder %s88, %s90
    %p94 = scmp.eq.s32.totalorder %s14, 0
    %p95 = por %p93, %p94
    %p96 = scmp.ne.s32.totalorder %s88, %s90
    %p97 = scmp.eq.s32.totalorder %s19, 7
    %p98 = por %p96, %p97
    %p99 = scmp.ne.s32.totalorder %s90, %s91
    %p100 = scmp.eq.s32.totalorder %s19, 0
    %p101 = por %p99, %p100
    %p102 = scmp.ne.s32.totalorder %s90, %s91
    %p103 = scmp.eq.s32.totalorder %s20, 7
    %p104 = por %p102, %p103
    %p106 = scmp.ne.s32.totalorder %s91, %s105
    %p107 = scmp.eq.s32.totalorder %s20, 0
    %p108 = por %p106, %p107
    %s110 = sadd.s32 %s109, 1
    %p113 = scmp.eq.s32.totalorder %s14, 7
    %p114 = scmp.ne.s32.totalorder %s109, %s111
    %p115 = scmp.eq.s32.totalorder %s14, 0
    %p116 = por %p114, %p115
    %p117 = scmp.ne.s32.totalorder %s109, %s111
    %p118 = scmp.eq.s32.totalorder %s19, 7
    %p119 = por %p117, %p118
    %p120 = scmp.ne.s32.totalorder %s111, %s112
    %p121 = scmp.eq.s32.totalorder %s19, 0
    %p122 = por %p120, %p121
    %p123 = scmp.ne.s32.totalorder %s111, %s112
    %p124 = scmp.eq.s32.totalorder %s20, 7
    %p125 = por %p123, %p124
    %p127 = scmp.ne.s32.totalorder %s112, %s126
    %p128 = scmp.eq.s32.totalorder %s20, 0
    %p129 = por %p127, %p128
    %s131 = sadd.s32 %s130, 1
    %p134 = scmp.eq.s32.totalorder %s14, 7
    %p135 = scmp.ne.s32.totalorder %s130, %s132
    %p136 = scmp.eq.s32.totalorder %s14, 0
    %p137 = por %p135, %p136
    %p138 = scmp.ne.s32.totalorder %s130, %s132
    %p139 = scmp.eq.s32.totalorder %s19, 7
    %p140 = por %p138, %p139
    %p141 = scmp.ne.s32.totalorder %s132, %s133
    %p142 = scmp.eq.s32.totalorder %s19, 0
    %p143 = por %p141, %p142
    %p144 = scmp.ne.s32.totalorder %s132, %s133
    %p145 = scmp.eq.s32.totalorder %s20, 7
    %p146 = por %p144, %p145
    %p148 = scmp.ne.s32.totalorder %s133, %s147
    %p149 = scmp.eq.s32.totalorder %s20, 0
    %p150 = por %p148, %p149
    %s152 = sadd.s32 %s151, 1
    %p155 = scmp.eq.s32.totalorder %s14, 7
    %p156 = scmp.ne.s32.totalorder %s151, %s153
    %p157 = scmp.eq.s32.totalorder %s14, 0
    %p158 = por %p156, %p157
    %p159 = scmp.ne.s32.totalorder %s151, %s153
    %p160 = scmp.eq.s32.totalorder %s19, 7
    %p161 = por %p159, %p160
    %p162 = scmp.ne.s32.totalorder %s153, %s154
    %p163 = scmp.eq.s32.totalorder %s19, 0
    %p164 = por %p162, %p163
    %p165 = scmp.ne.s32.totalorder %s153, %s154
    %p166 = scmp.eq.s32.totalorder %s20, 7
    %p167 = por %p165, %p166
    %p169 = scmp.ne.s32.totalorder %s154, %s168
    %p170 = scmp.eq.s32.totalorder %s20, 0
    %p171 = por %p169, %p170
    %s173 = sadd.s32 %s172, 1
    %p176 = scmp.eq.s32.totalorder %s14, 7
    %p177 = scmp.ne.s32.totalorder %s172, %s174
    %p178 = scmp.eq.s32.totalorder %s14, 0
    %p179 = por %p177, %p178
    %p180 = scmp.ne.s32.totalorder %s172, %s174
    %p181 = scmp.eq.s32.totalorder %s19, 7
    %p182 = por %p180, %p181
    %p183 = scmp.ne.s32.totalorder %s174, %s175
    %p184 = scmp.eq.s32.totalorder %s19, 0
    %p185 = por %p183, %p184
    %p186 = scmp.ne.s32.totalorder %s174, %s175
    %p187 = scmp.eq.s32.totalorder %s20, 7
    %p188 = por %p186, %p187
    %p190 = scmp.ne.s32.totalorder %s175, %s189
    %p191 = scmp.eq.s32.totalorder %s20, 0
    %p192 = por %p190, %p191
    %s194 = sadd.s32 %s193, 1
    %p197 = scmp.eq.s32.totalorder %s14, 7
    %p198 = scmp.ne.s32.totalorder %s193, %s195
    %p199 = scmp.eq.s32.totalorder %s14, 0
    %p200 = por %p198, %p199
    %p201 = scmp.ne.s32.totalorder %s193, %s195
    %p202 = scmp.eq.s32.totalorder %s19, 7
    %p203 = por %p201, %p202
    %p204 = scmp.ne.s32.totalorder %s195, %s196
    %p205 = scmp.eq.s32.totalorder %s19, 0
    %p206 = por %p204, %p205
    %p207 = scmp.ne.s32.totalorder %s195, %s196
    %p208 = scmp.eq.s32.totalorder %s20, 7
    %p209 = por %p207, %p208
    %p211 = scmp.ne.s32.totalorder %s196, %s210
    %p212 = scmp.eq.s32.totalorder %s20, 0
    %p213 = por %p211, %p212
    %p214 = scmp.le.s32.totalorder 1, %s14
    %p215 = scmp.lt.s32.totalorder %s14, 9
    %p216 = pnand %p214, %p215
    %p217 = pneg %p216
    // Predicated region
    $region9: #{pointnetfeat_forward.8} parent=5 // pred_check
      _
    $region10: #{pointnetfeat_forward.8} parent=5 // pred_check_branch
      %219 = sbr.rel (%p216) target = $region12
    $region11: #{pointnetfeat_forward.8} parent=5 // pred_region
      %s220 = ssub.s32 %s14, 1
      // Predicated region
      $region13: #{pointnetfeat_forward.8} parent=11 // pred_check
        %p221 = pneg %p101
      $region14: #{pointnetfeat_forward.8} parent=11 // pred_check_branch
        %223 = sbr.rel (%p221) target = $region16
      $region15: #{pointnetfeat_forward.8} parent=11 // pred_region
        _
      $region16: #{pointnetfeat_forward.8} parent=11 // pred_fallthru
        _
      // Predicated region
      $region17: #{pointnetfeat_forward.8} parent=11 // pred_check
        %p224 = pneg %p122
      $region18: #{pointnetfeat_forward.8} parent=11 // pred_check_branch
        %226 = sbr.rel (%p224) target = $region20
      $region19: #{pointnetfeat_forward.8} parent=11 // pred_region
        _
      $region20: #{pointnetfeat_forward.8} parent=11 // pred_fallthru
        _
      // Predicated region
      $region21: #{pointnetfeat_forward.8} parent=11 // pred_check
        %p227 = pneg %p143
      $region22: #{pointnetfeat_forward.8} parent=11 // pred_check_branch
        %229 = sbr.rel (%p227) target = $region24
      $region23: #{pointnetfeat_forward.8} parent=11 // pred_region
        _
      $region24: #{pointnetfeat_forward.8} parent=11 // pred_fallthru
        _
    $region12: #{pointnetfeat_forward.8} parent=5 // pred_fallthru
      _
    %p230 = scmp.lt.s32.totalorder %s14, 8
    // Predicated region
    $region25: #{pointnetfeat_forward.8} parent=5 // pred_check
      %p231 = pneg %p230
    $region26: #{pointnetfeat_forward.8} parent=5 // pred_check_branch
      %233 = sbr.rel (%p231) target = $region28
    $region27: #{pointnetfeat_forward.8} parent=5 // pred_region
      // Predicated region
      $region29: #{pointnetfeat_forward.8} parent=27 // pred_check
        %p234 = pneg %p48
      $region30: #{pointnetfeat_forward.8} parent=27 // pred_check_branch
        %236 = sbr.rel (%p234) target = $region32
      $region31: #{pointnetfeat_forward.8} parent=27 // pred_region
        %s237 = smul.u32 8, %s22
        %p238 = scmp.lt.s32.totalorder %s21, 1
        %s239 = scalar_select %p238, %s21, 1
        %p240 = scmp.lt.s32.totalorder %s237, 31
        %s241 = scalar_select %p240, %s237, 31
        %s242 = smul.addr %s239, 32
        %s243 = sadd.s32 %s241, %s242
        %s244 = smul.addr %s243, 8
        %s245 = scalar_lea.vmem %s0, %s244
        %s246 = smul.u32 8, %s22
      $region32: #{pointnetfeat_forward.8} parent=27 // pred_fallthru
        _
      // Predicated region
      $region33: #{pointnetfeat_forward.8} parent=27 // pred_check
        %p247 = pneg %p74
      $region34: #{pointnetfeat_forward.8} parent=27 // pred_check_branch
        %249 = sbr.rel (%p247) target = $region36
      $region35: #{pointnetfeat_forward.8} parent=27 // pred_region
        %p250 = scmp.lt.s32.totalorder %s21, 1
        %s251 = scalar_select %p250, %s21, 1
        %s252 = smul.addr %s251, 4
        %s253 = scalar_lea.vmem %s1, %s252
      $region36: #{pointnetfeat_forward.8} parent=27 // pred_fallthru
        _
    $region28: #{pointnetfeat_forward.8} parent=5 // pred_fallthru
      _
    %p254 = scmp.le.s32.totalorder 1, %s14
    %p255 = scmp.lt.s32.totalorder %s14, 9
    %p256 = pnand %p254, %p255
    %p257 = pneg %p256
    // Predicated region
    $region37: #{pointnetfeat_forward.8} parent=5 // pred_check
      _
    $region38: #{pointnetfeat_forward.8} parent=5 // pred_check_branch
      %259 = sbr.rel (%p256) target = $region40
    $region39: #{pointnetfeat_forward.8} parent=5 // pred_region
      %s260 = ssub.s32 %s14, 1
      %s261 = smul.u32 8, %s24
      %p262 = scmp.lt.s32.totalorder %s23, 1
      %s263 = scalar_select %p262, %s23, 1
      %p264 = scmp.lt.s32.totalorder %s261, 31
      %s265 = scalar_select %p264, %s261, 31
      %s266 = smul.addr %s263, 32
      %s267 = sadd.s32 %s265, %s266
      %s268 = smul.addr %s267, 8
      %s269 = scalar_lea.vmem %s0, %s268
      %p270 = pneg %p54
      %p271 = pneg %p51
      %p272 = scmp.lt.s32.totalorder %s23, 1
      %s273 = scalar_select %p272, %s23, 1
      %s274 = smul.addr %s273, 4
      %s275 = scalar_lea.vmem %s1, %s274
      %p276 = pneg %p80
      %p277 = pneg %p77
      %p278 = pneg %p101
      %p279 = pneg %p98
      %p280 = pneg %p122
      %p281 = pneg %p119
      %p282 = pneg %p143
      %p283 = pneg %p140
      %p284 = pneg %p164
      %p285 = pneg %p161
      %p286 = pneg %p185
      %p287 = pneg %p182
      %p288 = pneg %p206
      %p289 = pneg %p203
      %s290 = smul.u32 8, %s24
      %p291 = scmp.lt.s32.totalorder %s23, 1
      %s292 = scalar_select %p291, %s23, 1
      %p293 = scmp.lt.s32.totalorder %s290, 31
      %s294 = scalar_select %p293, %s290, 31
      %s295 = smul.addr %s292, 32
      %s296 = sadd.s32 %s294, %s295
      %s297 = smul.addr %s296, 8
      %s298 = scalar_lea.vmem %s0, %s297
      %s299 = smul.u32 8, %s24
      %p300 = scmp.lt.s32.totalorder %s23, 1
      %s301 = scalar_select %p300, %s23, 1
      %s302 = smul.addr %s301, 4
      %s303 = scalar_lea.vmem %s1, %s302
      %v305 = vld [vmem:[%s298] sm:$0xff]
      %v306 = vld [vmem:[%s298 + $0x8] sm:$0xff]
      %v307 = vld [vmem:[%s298 + $0x10] sm:$0xff]
      %v308 = vld [vmem:[%s298 + $0x18] sm:$0xff]
      %v309 = vld [vmem:[%s298 + $0x20] sm:$0xff]
      %v310 = vld [vmem:[%s298 + $0x28] sm:$0xff]
      %v311 = vld [vmem:[%s298 + $0x30] sm:$0xff]
      %v312 = vld [vmem:[%s298 + $0x38] sm:$0xff]
      %v313 = vld [vmem:[%s303] sm:$0x7]
      %315 = vset.pattern.permute.xlu0 0
      %316 = vperm.xlu0 %315, %v305
      %v317 = vpop.permute.xlu0 %316
      %320 = vset.pattern.permute.xlu0 0
      %321 = vperm.xlu0 %320, %v306
      %v322 = vpop.permute.xlu0 %321
      %325 = vset.pattern.permute.xlu0 0
      %326 = vperm.xlu0 %325, %v307
      %v327 = vpop.permute.xlu0 %326
      %330 = vset.pattern.permute.xlu0 0
      %331 = vperm.xlu0 %330, %v308
      %v332 = vpop.permute.xlu0 %331
      %335 = vset.pattern.permute.xlu0 0
      %336 = vperm.xlu0 %335, %v309
      %v337 = vpop.permute.xlu0 %336
      %340 = vset.pattern.permute.xlu0 0
      %341 = vperm.xlu0 %340, %v310
      %v342 = vpop.permute.xlu0 %341
      %345 = vset.pattern.permute.xlu0 0
      %346 = vperm.xlu0 %345, %v311
      %v347 = vpop.permute.xlu0 %346
      %350 = vset.pattern.permute.xlu0 0
      %351 = vperm.xlu0 %350, %v312
      %v352 = vpop.permute.xlu0 %351
      %v354 = vperm.slane %v313, 0
      %v355 = vmul.f32 %v317, %v354
      %v356 = vmul.f32 %v322, %v354
      %v357 = vmul.f32 %v327, %v354
      %v358 = vmul.f32 %v332, %v354
      %v359 = vmul.f32 %v337, %v354
      %v360 = vmul.f32 %v342, %v354
      %v361 = vmul.f32 %v347, %v354
      %v362 = vmul.f32 %v352, %v354
      %363 = vset.pattern.permute.xlu0 1
      %364 = vperm.xlu0 %363, %v305
      %v365 = vpop.permute.xlu0 %364
      %367 = vset.pattern.permute.xlu0 1
      %368 = vperm.xlu0 %367, %v306
      %v369 = vpop.permute.xlu0 %368
      %371 = vset.pattern.permute.xlu0 1
      %372 = vperm.xlu0 %371, %v307
      %v373 = vpop.permute.xlu0 %372
      %375 = vset.pattern.permute.xlu0 1
      %376 = vperm.xlu0 %375, %v308
      %v377 = vpop.permute.xlu0 %376
      %379 = vset.pattern.permute.xlu0 1
      %380 = vperm.xlu0 %379, %v309
      %v381 = vpop.permute.xlu0 %380
      %383 = vset.pattern.permute.xlu0 1
      %384 = vperm.xlu0 %383, %v310
      %v385 = vpop.permute.xlu0 %384
      %387 = vset.pattern.permute.xlu0 1
      %388 = vperm.xlu0 %387, %v311
      %v389 = vpop.permute.xlu0 %388
      %391 = vset.pattern.permute.xlu0 1
      %392 = vperm.xlu0 %391, %v312
      %v393 = vpop.permute.xlu0 %392
      %v395 = vperm.slane %v313, 1
      %v396 = vmul.f32 %v365, %v395
      %v397 = vmul.f32 %v369, %v395
      %v398 = vmul.f32 %v373, %v395
      %v399 = vmul.f32 %v377, %v395
      %v400 = vmul.f32 %v381, %v395
      %v401 = vmul.f32 %v385, %v395
      %v402 = vmul.f32 %v389, %v395
      %v403 = vmul.f32 %v393, %v395
      %v404 = vadd.f32 %v355, %v396
      %v405 = vadd.f32 %v356, %v397
      %v406 = vadd.f32 %v357, %v398
      %v407 = vadd.f32 %v358, %v399
      %v408 = vadd.f32 %v359, %v400
      %v409 = vadd.f32 %v360, %v401
      %v410 = vadd.f32 %v361, %v402
      %v411 = vadd.f32 %v362, %v403
      %412 = vset.pattern.permute.xlu0 2
      %413 = vperm.xlu0 %412, %v305
      %v414 = vpop.permute.xlu0 %413
      %416 = vset.pattern.permute.xlu0 2
      %417 = vperm.xlu0 %416, %v306
      %v418 = vpop.permute.xlu0 %417
      %420 = vset.pattern.permute.xlu0 2
      %421 = vperm.xlu0 %420, %v307
      %v422 = vpop.permute.xlu0 %421
      %424 = vset.pattern.permute.xlu0 2
      %425 = vperm.xlu0 %424, %v308
      %v426 = vpop.permute.xlu0 %425
      %428 = vset.pattern.permute.xlu0 2
      %429 = vperm.xlu0 %428, %v309
      %v430 = vpop.permute.xlu0 %429
      %432 = vset.pattern.permute.xlu0 2
      %433 = vperm.xlu0 %432, %v310
      %v434 = vpop.permute.xlu0 %433
      %436 = vset.pattern.permute.xlu0 2
      %437 = vperm.xlu0 %436, %v311
      %v438 = vpop.permute.xlu0 %437
      %440 = vset.pattern.permute.xlu0 2
      %441 = vperm.xlu0 %440, %v312
      %v442 = vpop.permute.xlu0 %441
      %v444 = vperm.slane %v313, 2
      %v445 = vmul.f32 %v414, %v444
      %v446 = vmul.f32 %v418, %v444
      %v447 = vmul.f32 %v422, %v444
      %v448 = vmul.f32 %v426, %v444
      %v449 = vmul.f32 %v430, %v444
      %v450 = vmul.f32 %v434, %v444
      %v451 = vmul.f32 %v438, %v444
      %v452 = vmul.f32 %v442, %v444
      %v453 = vadd.f32 %v404, %v445
      %v454 = vadd.f32 %v405, %v446
      %v455 = vadd.f32 %v406, %v447
      %v456 = vadd.f32 %v407, %v448
      %v457 = vadd.f32 %v408, %v449
      %v458 = vadd.f32 %v409, %v450
      %v459 = vadd.f32 %v410, %v451
      %v460 = vadd.f32 %v411, %v452
      %v461 = vld [vmem:[%s2] sm:$0x1]
      %v462 = vld [vmem:[%s3] sm:$0x1]
      %v464 = vperm.slane %v461, 0
      %v466 = vmul.f32 %v453, %v464
      %v467 = vmul.f32 %v454, %v464
      %v468 = vmul.f32 %v455, %v464
      %v469 = vmul.f32 %v456, %v464
      %v470 = vmul.f32 %v457, %v464
      %v471 = vmul.f32 %v458, %v464
      %v472 = vmul.f32 %v459, %v464
      %v473 = vmul.f32 %v460, %v464
      %v475 = vperm.slane %v462, 0
      %v477 = vadd.f32 %v466, %v475
      %v478 = vadd.f32 %v467, %v475
      %v479 = vadd.f32 %v468, %v475
      %v480 = vadd.f32 %v469, %v475
      %v481 = vadd.f32 %v470, %v475
      %v482 = vadd.f32 %v471, %v475
      %v483 = vadd.f32 %v472, %v475
      %v484 = vadd.f32 %v473, %v475
      %v485 = vmax.f32 %v477, 0.0
      %v486 = vmax.f32 %v478, 0.0
      %v487 = vmax.f32 %v479, 0.0
      %v488 = vmax.f32 %v480, 0.0
      %v489 = vmax.f32 %v481, 0.0
      %v490 = vmax.f32 %v482, 0.0
      %v491 = vmax.f32 %v483, 0.0
      %v492 = vmax.f32 %v484, 0.0
      %v493 = vld [vmem:[%s4] sm:$0xf]
      %v494 = vld [vmem:[%s4 + $0x4] sm:$0xf]
      %v495 = vld [vmem:[%s4 + $0x8] sm:$0xf]
      %v496 = vld [vmem:[%s4 + $0xc] sm:$0xf]
      %v497 = vld [vmem:[%s4 + $0x10] sm:$0xf]
      %v498 = vld [vmem:[%s4 + $0x14] sm:$0xf]
      %v499 = vld [vmem:[%s4 + $0x18] sm:$0xf]
      %v500 = vld [vmem:[%s4 + $0x1c] sm:$0xf]
      %v501 = vpack.c.bf16 %v486, %v485
      %v502 = vpack.c.bf16 %v488, %v487
      %v503 = vpack.c.bf16 %v490, %v489
      %v504 = vpack.c.bf16 %v492, %v491
      %v513 = vunpack.c.l.b16 %v493
      %v514 = vunpack.c.l.b16 %v494
      %v515 = vunpack.c.l.b16 %v495
      %v516 = vunpack.c.l.b16 %v496
      %v517 = vunpack.c.l.b16 %v497
      %v518 = vunpack.c.l.b16 %v498
      %v519 = vunpack.c.l.b16 %v499
      %v520 = vunpack.c.l.b16 %v500
      %v521 = vpack.c.b16 %v514, %v513
      %v522 = vpack.c.b16 %v516, %v515
      %v523 = vpack.c.b16 %v518, %v517
      %v524 = vpack.c.b16 %v520, %v519
      %vm529 = vcmask 523264
      %v531 = vsel %vm529, %v501, 0
      %v534 = vsel %vm529, %v502, 0
      %v537 = vsel %vm529, %v503, 0
      %v540 = vsel %vm529, %v504, 0
      %542 = vmatpush.bf16.msra.mxu0 0
      %543 = vmatpush.bf16.msra.mxu0 0
      %544 = vmatpush.bf16.msra.mxu0 0
      %545 = vmatpush.bf16.msra.mxu0 0
      %546 = vmatpush.bf16.msra.mxu0 %v524
      %547 = vmatpush.bf16.msra.mxu0 %v523
      %548 = vmatpush.bf16.msra.mxu0 %v522
      %549 = vmatpush.bf16.msra.mxu0 %v521
      %550 = vmatmul.bf16.gmra.mxu0 %v531
      %v551 = vpop.f32.mrf.mxu0
      %v552 = vadd.f32 0.0, %v551
      %v553 = vpop.f32.mrf.mxu0
      %v554 = vadd.f32 0.0, %v553
      %555 = vmatmul.bf16.gmra.mxu0 %v534
      %v556 = vpop.f32.mrf.mxu0
      %v557 = vadd.f32 0.0, %v556
      %v558 = vpop.f32.mrf.mxu0
      %v559 = vadd.f32 0.0, %v558
      %560 = vmatmul.bf16.gmra.mxu0 %v537
      %v561 = vpop.f32.mrf.mxu0
      %v562 = vadd.f32 0.0, %v561
      %v563 = vpop.f32.mrf.mxu0
      %v564 = vadd.f32 0.0, %v563
      %565 = vmatmul.bf16.gmra.mxu0 %v540
      %v566 = vpop.f32.mrf.mxu0
      %v567 = vadd.f32 0.0, %v566
      %v568 = vpop.f32.mrf.mxu0
      %v569 = vadd.f32 0.0, %v568
      %570 = vdwg.mxu0
      %p571 = scmp.eq.s32.totalorder %s23, 0
      %p572 = scmp.eq.s32.totalorder %s24, 0
      %p573 = pnand %p571, %p572
      %p574 = pneg %p573
      // Predicated region
      $region41: #{pointnetfeat_forward.8} parent=39 // pred_check
        _
      $region42: #{pointnetfeat_forward.8} parent=39 // pred_check_branch
        %576 = sbr.rel (%p573) target = $region44
      $region43: #{pointnetfeat_forward.8} parent=39 // pred_region
        %v577 = vadd.f32 %v552, %v554
        %v578 = vadd.f32 %v577, %v557
        %v579 = vadd.f32 %v578, %v559
        %v580 = vadd.f32 %v579, %v562
        %v581 = vadd.f32 %v580, %v564
        %v582 = vadd.f32 %v581, %v567
        %v583 = vadd.f32 %v582, %v569
        %v584 = vrot.slane %v583, 4
        %v585 = vadd.f32 %v583, %v584
        %v586 = vrot.slane %v585, 2
        %v587 = vadd.f32 %v585, %v586
        %v588 = vrot.slane %v587, 1
        %v589 = vadd.f32 %v587, %v588
        %v590 = vmul.f32 %v589, 0.015625
        %591 = vst [vmem:[%s5] sm:$0x1] %v590
        %592 = vst [vmem:[%s6] sm:$0x1] 0.0
        %593 = vst [vmem:[%s7] sm:$0x1] 0.0
      $region44: #{pointnetfeat_forward.8} parent=39 // pred_fallthru
        _
      %v594 = vld [vmem:[%s5] sm:$0x1]
      %v596 = vperm.slane %v594, 0
      %v598 = vsub.f32 %v552, %v596
      %v599 = vsub.f32 %v554, %v596
      %v600 = vsub.f32 %v557, %v596
      %v601 = vsub.f32 %v559, %v596
      %v602 = vsub.f32 %v562, %v596
      %v603 = vsub.f32 %v564, %v596
      %v604 = vsub.f32 %v567, %v596
      %v605 = vsub.f32 %v569, %v596
      %v606 = vld [vmem:[%s6] sm:$0x1]
      %v607 = vadd.f32 %v598, %v599
      %v608 = vadd.f32 %v607, %v600
      %v609 = vadd.f32 %v608, %v601
      %v610 = vadd.f32 %v609, %v602
      %v611 = vadd.f32 %v610, %v603
      %v612 = vadd.f32 %v611, %v604
      %v613 = vadd.f32 %v612, %v605
      %v614 = vrot.slane %v613, 4
      %v615 = vadd.f32 %v613, %v614
      %v616 = vrot.slane %v615, 2
      %v617 = vadd.f32 %v615, %v616
      %v618 = vrot.slane %v617, 1
      %v619 = vadd.f32 %v617, %v618
      %v620 = vadd.f32 %v606, %v619
      %621 = vst [vmem:[%s6] sm:$0x1] %v620
      %v622 = vld [vmem:[%s7] sm:$0x1]
      %v623 = vmul.f32 %v598, %v598
      %v624 = vmul.f32 %v599, %v599
      %v625 = vmul.f32 %v600, %v600
      %v626 = vmul.f32 %v601, %v601
      %v627 = vmul.f32 %v602, %v602
      %v628 = vmul.f32 %v603, %v603
      %v629 = vmul.f32 %v604, %v604
      %v630 = vmul.f32 %v605, %v605
      %v631 = vadd.f32 %v623, %v624
      %v632 = vadd.f32 %v631, %v625
      %v633 = vadd.f32 %v632, %v626
      %v634 = vadd.f32 %v633, %v627
      %v635 = vadd.f32 %v634, %v628
      %v636 = vadd.f32 %v635, %v629
      %v637 = vadd.f32 %v636, %v630
      %v638 = vrot.slane %v637, 4
      %v639 = vadd.f32 %v637, %v638
      %v640 = vrot.slane %v639, 2
      %v641 = vadd.f32 %v639, %v640
      %v642 = vrot.slane %v641, 1
      %v643 = vadd.f32 %v641, %v642
      %v644 = vadd.f32 %v622, %v643
      %645 = vst [vmem:[%s7] sm:$0x1] %v644
      // Predicated region
      $region45: #{pointnetfeat_forward.8} parent=39 // pred_check
        %p646 = pneg %p161
      $region46: #{pointnetfeat_forward.8} parent=39 // pred_check_branch
        %648 = sbr.rel (%p646) target = $region48
      $region47: #{pointnetfeat_forward.8} parent=39 // pred_region
        _
      $region48: #{pointnetfeat_forward.8} parent=39 // pred_fallthru
        _
      // Predicated region
      $region49: #{pointnetfeat_forward.8} parent=39 // pred_check
        %p649 = pneg %p182
      $region50: #{pointnetfeat_forward.8} parent=39 // pred_check_branch
        %651 = sbr.rel (%p649) target = $region52
      $region51: #{pointnetfeat_forward.8} parent=39 // pred_region
        _
      $region52: #{pointnetfeat_forward.8} parent=39 // pred_fallthru
        _
      // Predicated region
      $region53: #{pointnetfeat_forward.8} parent=39 // pred_check
        %p652 = pneg %p203
      $region54: #{pointnetfeat_forward.8} parent=39 // pred_check_branch
        %654 = sbr.rel (%p652) target = $region56
      $region55: #{pointnetfeat_forward.8} parent=39 // pred_region
        _
      $region56: #{pointnetfeat_forward.8} parent=39 // pred_fallthru
        _
      // Predicated region
      $region57: #{pointnetfeat_forward.8} parent=39 // pred_check
        %p655 = pneg %p161
      $region58: #{pointnetfeat_forward.8} parent=39 // pred_check_branch
        %657 = sbr.rel (%p655) target = $region60
      $region59: #{pointnetfeat_forward.8} parent=39 // pred_region
        _
      $region60: #{pointnetfeat_forward.8} parent=39 // pred_fallthru
        _
      // Predicated region
      $region61: #{pointnetfeat_forward.8} parent=39 // pred_check
        %p658 = pneg %p182
      $region62: #{pointnetfeat_forward.8} parent=39 // pred_check_branch
        %660 = sbr.rel (%p658) target = $region64
      $region63: #{pointnetfeat_forward.8} parent=39 // pred_region
        _
      $region64: #{pointnetfeat_forward.8} parent=39 // pred_fallthru
        _
      // Predicated region
      $region65: #{pointnetfeat_forward.8} parent=39 // pred_check
        %p661 = pneg %p203
      $region66: #{pointnetfeat_forward.8} parent=39 // pred_check_branch
        %663 = sbr.rel (%p661) target = $region68
      $region67: #{pointnetfeat_forward.8} parent=39 // pred_region
        _
      $region68: #{pointnetfeat_forward.8} parent=39 // pred_fallthru
        _
    $region40: #{pointnetfeat_forward.8} parent=5 // pred_fallthru
      _
    %p664 = scmp.le.s32.totalorder 2, %s14
    // Predicated region
    $region69: #{pointnetfeat_forward.8} parent=5 // pred_check
      %p665 = pneg %p664
    $region70: #{pointnetfeat_forward.8} parent=5 // pred_check_branch
      %667 = sbr.rel (%p665) target = $region72
    $region71: #{pointnetfeat_forward.8} parent=5 // pred_region
      %s668 = ssub.s32 %s14, 2
    $region72: #{pointnetfeat_forward.8} parent=5 // pred_fallthru
      _
  $region6: #{pointnetfeat_forward.8} parent=0 // loop_footer
    %s18 = sadd.s32 1, %s14
  $region7: #{pointnetfeat_forward.8} parent=0 // loop_footer_branch
    %13 = sbr.rel target = $region3
  $region8: #{pointnetfeat_forward.8} parent=0 // loop_exit
    _

// kernel: pointnetfeat_forward.9
$region0: #{pointnetfeat_forward.9}
  #allocation0 [shape = 'u32[]', space=smem, size = 0x4, offset = 0x4, fixed_abs, tag = 'smem constant byte address 0x4 - core index']
  #allocation1 [shape = 'u32[72,128]{1,0:T(1,128)}', space=vmem, size = 0x9000, scoped, tag = 'internal scratch']
  %s0 = inlined_call_operand.vmem [shape: f32[2,256,3], index: 0, kind: input, shape index: {}]
  %s1 = inlined_call_operand.vmem [shape: f32[2,3,64], index: 1, kind: input, shape index: {}]
  %s2 = inlined_call_operand.vmem [shape: f32[1,64], index: 2, kind: input, shape index: {}]
  %s3 = inlined_call_operand.vmem [shape: f32[1,64], index: 3, kind: input, shape index: {}]
  %s4 = inlined_call_operand.vmem [shape: bf16[64,128], index: 4, kind: input, shape index: {}]
  %s5 = inlined_call_operand.vmem [shape: f32[1,128], index: 5, kind: input, shape index: {}]
  %s6 = inlined_call_operand.vmem [shape: f32[1,128], index: 6, kind: input, shape index: {}]
  %s7 = inlined_call_operand.vmem [shape: bf16[128,1024], index: 7, kind: input, shape index: {}]
  %s8 = inlined_call_operand.vmem [shape: f32[1,1024], index: 8, kind: output, shape index: {0}]
  %s9 = inlined_call_operand.vmem [shape: f32[1,1024], index: 9, kind: output, shape index: {1}]
  %s10 = inlined_call_operand.vmem [shape: f32[1,1024], index: 10, kind: output, shape index: {2}]
  %s11 = inlined_call_operand.vmem [shape: f32[2,1,1024], index: 11, kind: output, shape index: {3}]
  %s12 = inlined_call_operand.vmem [shape: f32[2,1,1024], index: 12, kind: output, shape index: {4}]
  %13 = xla_tuple %s8, %s9, %s10, %s11, %s12
  %s14 = sld [smem:[#allocation0]]
  $region109: #{pointnetfeat_forward.9} parent=0
    _
  %s16 = ssub.s32 1, %s14
  %s17 = scalar_select 0, %s16, %s14
  loop: start=0, step=1, limit=10
  $region2: #{pointnetfeat_forward.9} parent=0 // loop_pre_header
    _
  $region3: #{pointnetfeat_forward.9} parent=0 // loop_header
    %s19 = sphi 0, %s23
    %p20 = scmp.ge.s32.totalorder %s19, 10
    %s26 = sphi 0, %s38
    %s27 = sphi 0, %s34
    %s28 = sphi 0, %s26
    %s29 = sphi 0, %s27
    %s30 = sphi 0, %s28
    %s31 = sphi 0, %s29
    %s43 = sphi 0, %s45
    %s46 = sphi 0, %s43
    %s47 = sphi 0, %s46
    %s63 = sphi 0, %s47
    %s69 = sphi 0, %s71
    %s72 = sphi 0, %s69
    %s73 = sphi 0, %s72
    %s89 = sphi 0, %s73
    %s93 = sphi 0, %s93
    %s95 = sphi 0, %s93
    %s96 = sphi 0, %s95
    %s110 = sphi 0, %s96
    %s114 = sphi 0, %s114
    %s116 = sphi 0, %s114
    %s117 = sphi 0, %s116
    %s131 = sphi 0, %s117
    %s135 = sphi 0, %s135
    %s137 = sphi 0, %s135
    %s138 = sphi 0, %s137
    %s152 = sphi 0, %s138
    %s156 = sphi 0, %s156
    %s158 = sphi 0, %s156
    %s159 = sphi 0, %s158
    %s173 = sphi 0, %s159
    %s177 = sphi 0, %s177
    %s179 = sphi 0, %s177
    %s180 = sphi 0, %s179
    %s194 = sphi 0, %s180
    %s198 = sphi 0, %s198
    %s200 = sphi 0, %s198
    %s201 = sphi 0, %s200
    %s215 = sphi 0, %s201
    %s219 = sphi 0, %s219
    %s221 = sphi 0, %s219
    %s222 = sphi 0, %s221
    %s236 = sphi 0, %s222
    %s240 = sphi 0, %s240
    %s242 = sphi 0, %s240
    %s243 = sphi 0, %s242
    %s257 = sphi 0, %s243
    %s261 = sphi 0, %s261
    %s263 = sphi 0, %s261
    %s264 = sphi 0, %s263
    %s278 = sphi 0, %s264
    %s284 = sphi 0, %s286
    %s287 = sphi 0, %s284
    %s288 = sphi 0, %s287
    %s304 = sphi 0, %s288
    %s310 = sphi 0, %s312
    %s313 = sphi 0, %s310
    %s314 = sphi 0, %s313
    %s330 = sphi 0, %s314
  $region4: #{pointnetfeat_forward.9} parent=0 // loop_header_branch
    %22 = sbr.rel (%p20) target = $region8
  $region5: #{pointnetfeat_forward.9} parent=0 // loop_body
    %s24 = ssub.s32 %s19, 1
    %s25 = ssub.s32 %s19, 2
    %s32 = sadd.s32 1, %s27
    %p33 = scmp.ge.s32.totalorder %s32, 4
    %s34 = scalar_select %p33, 0, %s32
    %s35 = sadd.s32 1, %s26
    %s36 = scalar_select %p33, %s35, %s26
    %p37 = scmp.ge.s32.totalorder %s36, 2
    %s38 = scalar_select %p37, 0, %s36
    %s39 = ssub.s32 %s26, %s38
    %s40 = ssub.s32 %s27, %s34
    %s41 = sor.u32 %s39, %s40
    %p42 = scmp.eq.s32.totalorder %s41, 0
    %s44 = sadd.s32 %s43, 1
    %s45 = scalar_select %p42, %s43, %s44
    %p48 = pneg %p42
    %p49 = scmp.eq.s32.totalorder %s19, 7
    %p50 = por %p48, %p49
    %p51 = scmp.ne.s32.totalorder %s43, %s46
    %p52 = scmp.eq.s32.totalorder %s19, 0
    %p53 = por %p51, %p52
    %p54 = scmp.ne.s32.totalorder %s43, %s46
    %p55 = scmp.eq.s32.totalorder %s24, 7
    %p56 = por %p54, %p55
    %p57 = scmp.ne.s32.totalorder %s46, %s47
    %p58 = scmp.eq.s32.totalorder %s24, 0
    %p59 = por %p57, %p58
    %p60 = scmp.ne.s32.totalorder %s46, %s47
    %p61 = scmp.eq.s32.totalorder %s25, 7
    %p62 = por %p60, %p61
    %p64 = scmp.ne.s32.totalorder %s47, %s63
    %p65 = scmp.eq.s32.totalorder %s25, 0
    %p66 = por %p64, %p65
    %s67 = ssub.s32 %s26, %s38
    %p68 = scmp.eq.s32.totalorder %s67, 0
    %s70 = sadd.s32 %s69, 1
    %s71 = scalar_select %p68, %s69, %s70
    %p74 = pneg %p68
    %p75 = scmp.eq.s32.totalorder %s19, 7
    %p76 = por %p74, %p75
    %p77 = scmp.ne.s32.totalorder %s69, %s72
    %p78 = scmp.eq.s32.totalorder %s19, 0
    %p79 = por %p77, %p78
    %p80 = scmp.ne.s32.totalorder %s69, %s72
    %p81 = scmp.eq.s32.totalorder %s24, 7
    %p82 = por %p80, %p81
    %p83 = scmp.ne.s32.totalorder %s72, %s73
    %p84 = scmp.eq.s32.totalorder %s24, 0
    %p85 = por %p83, %p84
    %p86 = scmp.ne.s32.totalorder %s72, %s73
    %p87 = scmp.eq.s32.totalorder %s25, 7
    %p88 = por %p86, %p87
    %p90 = scmp.ne.s32.totalorder %s73, %s89
    %p91 = scmp.eq.s32.totalorder %s25, 0
    %p92 = por %p90, %p91
    %s94 = sadd.s32 %s93, 1
    %p97 = scmp.eq.s32.totalorder %s19, 7
    %p98 = scmp.ne.s32.totalorder %s93, %s95
    %p99 = scmp.eq.s32.totalorder %s19, 0
    %p100 = por %p98, %p99
    %p101 = scmp.ne.s32.totalorder %s93, %s95
    %p102 = scmp.eq.s32.totalorder %s24, 7
    %p103 = por %p101, %p102
    %p104 = scmp.ne.s32.totalorder %s95, %s96
    %p105 = scmp.eq.s32.totalorder %s24, 0
    %p106 = por %p104, %p105
    %p107 = scmp.ne.s32.totalorder %s95, %s96
    %p108 = scmp.eq.s32.totalorder %s25, 7
    %p109 = por %p107, %p108
    %p111 = scmp.ne.s32.totalorder %s96, %s110
    %p112 = scmp.eq.s32.totalorder %s25, 0
    %p113 = por %p111, %p112
    %s115 = sadd.s32 %s114, 1
    %p118 = scmp.eq.s32.totalorder %s19, 7
    %p119 = scmp.ne.s32.totalorder %s114, %s116
    %p120 = scmp.eq.s32.totalorder %s19, 0
    %p121 = por %p119, %p120
    %p122 = scmp.ne.s32.totalorder %s114, %s116
    %p123 = scmp.eq.s32.totalorder %s24, 7
    %p124 = por %p122, %p123
    %p125 = scmp.ne.s32.totalorder %s116, %s117
    %p126 = scmp.eq.s32.totalorder %s24, 0
    %p127 = por %p125, %p126
    %p128 = scmp.ne.s32.totalorder %s116, %s117
    %p129 = scmp.eq.s32.totalorder %s25, 7
    %p130 = por %p128, %p129
    %p132 = scmp.ne.s32.totalorder %s117, %s131
    %p133 = scmp.eq.s32.totalorder %s25, 0
    %p134 = por %p132, %p133
    %s136 = sadd.s32 %s135, 1
    %p139 = scmp.eq.s32.totalorder %s19, 7
    %p140 = scmp.ne.s32.totalorder %s135, %s137
    %p141 = scmp.eq.s32.totalorder %s19, 0
    %p142 = por %p140, %p141
    %p143 = scmp.ne.s32.totalorder %s135, %s137
    %p144 = scmp.eq.s32.totalorder %s24, 7
    %p145 = por %p143, %p144
    %p146 = scmp.ne.s32.totalorder %s137, %s138
    %p147 = scmp.eq.s32.totalorder %s24, 0
    %p148 = por %p146, %p147
    %p149 = scmp.ne.s32.totalorder %s137, %s138
    %p150 = scmp.eq.s32.totalorder %s25, 7
    %p151 = por %p149, %p150
    %p153 = scmp.ne.s32.totalorder %s138, %s152
    %p154 = scmp.eq.s32.totalorder %s25, 0
    %p155 = por %p153, %p154
    %s157 = sadd.s32 %s156, 1
    %p160 = scmp.eq.s32.totalorder %s19, 7
    %p161 = scmp.ne.s32.totalorder %s156, %s158
    %p162 = scmp.eq.s32.totalorder %s19, 0
    %p163 = por %p161, %p162
    %p164 = scmp.ne.s32.totalorder %s156, %s158
    %p165 = scmp.eq.s32.totalorder %s24, 7
    %p166 = por %p164, %p165
    %p167 = scmp.ne.s32.totalorder %s158, %s159
    %p168 = scmp.eq.s32.totalorder %s24, 0
    %p169 = por %p167, %p168
    %p170 = scmp.ne.s32.totalorder %s158, %s159
    %p171 = scmp.eq.s32.totalorder %s25, 7
    %p172 = por %p170, %p171
    %p174 = scmp.ne.s32.totalorder %s159, %s173
    %p175 = scmp.eq.s32.totalorder %s25, 0
    %p176 = por %p174, %p175
    %s178 = sadd.s32 %s177, 1
    %p181 = scmp.eq.s32.totalorder %s19, 7
    %p182 = scmp.ne.s32.totalorder %s177, %s179
    %p183 = scmp.eq.s32.totalorder %s19, 0
    %p184 = por %p182, %p183
    %p185 = scmp.ne.s32.totalorder %s177, %s179
    %p186 = scmp.eq.s32.totalorder %s24, 7
    %p187 = por %p185, %p186
    %p188 = scmp.ne.s32.totalorder %s179, %s180
    %p189 = scmp.eq.s32.totalorder %s24, 0
    %p190 = por %p188, %p189
    %p191 = scmp.ne.s32.totalorder %s179, %s180
    %p192 = scmp.eq.s32.totalorder %s25, 7
    %p193 = por %p191, %p192
    %p195 = scmp.ne.s32.totalorder %s180, %s194
    %p196 = scmp.eq.s32.totalorder %s25, 0
    %p197 = por %p195, %p196
    %s199 = sadd.s32 %s198, 1
    %p202 = scmp.eq.s32.totalorder %s19, 7
    %p203 = scmp.ne.s32.totalorder %s198, %s200
    %p204 = scmp.eq.s32.totalorder %s19, 0
    %p205 = por %p203, %p204
    %p206 = scmp.ne.s32.totalorder %s198, %s200
    %p207 = scmp.eq.s32.totalorder %s24, 7
    %p208 = por %p206, %p207
    %p209 = scmp.ne.s32.totalorder %s200, %s201
    %p210 = scmp.eq.s32.totalorder %s24, 0
    %p211 = por %p209, %p210
    %p212 = scmp.ne.s32.totalorder %s200, %s201
    %p213 = scmp.eq.s32.totalorder %s25, 7
    %p214 = por %p212, %p213
    %p216 = scmp.ne.s32.totalorder %s201, %s215
    %p217 = scmp.eq.s32.totalorder %s25, 0
    %p218 = por %p216, %p217
    %s220 = sadd.s32 %s219, 1
    %p223 = scmp.eq.s32.totalorder %s19, 7
    %p224 = scmp.ne.s32.totalorder %s219, %s221
    %p225 = scmp.eq.s32.totalorder %s19, 0
    %p226 = por %p224, %p225
    %p227 = scmp.ne.s32.totalorder %s219, %s221
    %p228 = scmp.eq.s32.totalorder %s24, 7
    %p229 = por %p227, %p228
    %p230 = scmp.ne.s32.totalorder %s221, %s222
    %p231 = scmp.eq.s32.totalorder %s24, 0
    %p232 = por %p230, %p231
    %p233 = scmp.ne.s32.totalorder %s221, %s222
    %p234 = scmp.eq.s32.totalorder %s25, 7
    %p235 = por %p233, %p234
    %p237 = scmp.ne.s32.totalorder %s222, %s236
    %p238 = scmp.eq.s32.totalorder %s25, 0
    %p239 = por %p237, %p238
    %s241 = sadd.s32 %s240, 1
    %p244 = scmp.eq.s32.totalorder %s19, 7
    %p245 = scmp.ne.s32.totalorder %s240, %s242
    %p246 = scmp.eq.s32.totalorder %s19, 0
    %p247 = por %p245, %p246
    %p248 = scmp.ne.s32.totalorder %s240, %s242
    %p249 = scmp.eq.s32.totalorder %s24, 7
    %p250 = por %p248, %p249
    %p251 = scmp.ne.s32.totalorder %s242, %s243
    %p252 = scmp.eq.s32.totalorder %s24, 0
    %p253 = por %p251, %p252
    %p254 = scmp.ne.s32.totalorder %s242, %s243
    %p255 = scmp.eq.s32.totalorder %s25, 7
    %p256 = por %p254, %p255
    %p258 = scmp.ne.s32.totalorder %s243, %s257
    %p259 = scmp.eq.s32.totalorder %s25, 0
    %p260 = por %p258, %p259
    %s262 = sadd.s32 %s261, 1
    %p265 = scmp.eq.s32.totalorder %s19, 7
    %p266 = scmp.ne.s32.totalorder %s261, %s263
    %p267 = scmp.eq.s32.totalorder %s19, 0
    %p268 = por %p266, %p267
    %p269 = scmp.ne.s32.totalorder %s261, %s263
    %p270 = scmp.eq.s32.totalorder %s24, 7
    %p271 = por %p269, %p270
    %p272 = scmp.ne.s32.totalorder %s263, %s264
    %p273 = scmp.eq.s32.totalorder %s24, 0
    %p274 = por %p272, %p273
    %p275 = scmp.ne.s32.totalorder %s263, %s264
    %p276 = scmp.eq.s32.totalorder %s25, 7
    %p277 = por %p275, %p276
    %p279 = scmp.ne.s32.totalorder %s264, %s278
    %p280 = scmp.eq.s32.totalorder %s25, 0
    %p281 = por %p279, %p280
    %s282 = ssub.s32 %s26, %s38
    %p283 = scmp.eq.s32.totalorder %s282, 0
    %s285 = sadd.s32 %s284, 1
    %s286 = scalar_select %p283, %s284, %s285
    %p289 = pneg %p283
    %p290 = scmp.eq.s32.totalorder %s19, 7
    %p291 = por %p289, %p290
    %p292 = scmp.ne.s32.totalorder %s284, %s287
    %p293 = scmp.eq.s32.totalorder %s19, 0
    %p294 = por %p292, %p293
    %p295 = scmp.ne.s32.totalorder %s284, %s287
    %p296 = scmp.eq.s32.totalorder %s24, 7
    %p297 = por %p295, %p296
    %p298 = scmp.ne.s32.totalorder %s287, %s288
    %p299 = scmp.eq.s32.totalorder %s24, 0
    %p300 = por %p298, %p299
    %p301 = scmp.ne.s32.totalorder %s287, %s288
    %p302 = scmp.eq.s32.totalorder %s25, 7
    %p303 = por %p301, %p302
    %p305 = scmp.ne.s32.totalorder %s288, %s304
    %p306 = scmp.eq.s32.totalorder %s25, 0
    %p307 = por %p305, %p306
    %s308 = ssub.s32 %s26, %s38
    %p309 = scmp.eq.s32.totalorder %s308, 0
    %s311 = sadd.s32 %s310, 1
    %s312 = scalar_select %p309, %s310, %s311
    %p315 = pneg %p309
    %p316 = scmp.eq.s32.totalorder %s19, 7
    %p317 = por %p315, %p316
    %p318 = scmp.ne.s32.totalorder %s310, %s313
    %p319 = scmp.eq.s32.totalorder %s19, 0
    %p320 = por %p318, %p319
    %p321 = scmp.ne.s32.totalorder %s310, %s313
    %p322 = scmp.eq.s32.totalorder %s24, 7
    %p323 = por %p321, %p322
    %p324 = scmp.ne.s32.totalorder %s313, %s314
    %p325 = scmp.eq.s32.totalorder %s24, 0
    %p326 = por %p324, %p325
    %p327 = scmp.ne.s32.totalorder %s313, %s314
    %p328 = scmp.eq.s32.totalorder %s25, 7
    %p329 = por %p327, %p328
    %p331 = scmp.ne.s32.totalorder %s314, %s330
    %p332 = scmp.eq.s32.totalorder %s25, 0
    %p333 = por %p331, %p332
    %p334 = scmp.le.s32.totalorder 1, %s19
    %p335 = scmp.lt.s32.totalorder %s19, 9
    %p336 = pnand %p334, %p335
    %p337 = pneg %p336
    // Predicated region
    $region9: #{pointnetfeat_forward.9} parent=5 // pred_check
      _
    $region10: #{pointnetfeat_forward.9} parent=5 // pred_check_branch
      %339 = sbr.rel (%p336) target = $region12
    $region11: #{pointnetfeat_forward.9} parent=5 // pred_region
      %s340 = ssub.s32 %s19, 1
      // Predicated region
      $region13: #{pointnetfeat_forward.9} parent=11 // pred_check
        %p341 = pneg %p106
      $region14: #{pointnetfeat_forward.9} parent=11 // pred_check_branch
        %343 = sbr.rel (%p341) target = $region16
      $region15: #{pointnetfeat_forward.9} parent=11 // pred_region
        _
      $region16: #{pointnetfeat_forward.9} parent=11 // pred_fallthru
        _
      // Predicated region
      $region17: #{pointnetfeat_forward.9} parent=11 // pred_check
        %p344 = pneg %p127
      $region18: #{pointnetfeat_forward.9} parent=11 // pred_check_branch
        %346 = sbr.rel (%p344) target = $region20
      $region19: #{pointnetfeat_forward.9} parent=11 // pred_region
        _
      $region20: #{pointnetfeat_forward.9} parent=11 // pred_fallthru
        _
      // Predicated region
      $region21: #{pointnetfeat_forward.9} parent=11 // pred_check
        %p347 = pneg %p148
      $region22: #{pointnetfeat_forward.9} parent=11 // pred_check_branch
        %349 = sbr.rel (%p347) target = $region24
      $region23: #{pointnetfeat_forward.9} parent=11 // pred_region
        _
      $region24: #{pointnetfeat_forward.9} parent=11 // pred_fallthru
        _
      // Predicated region
      $region25: #{pointnetfeat_forward.9} parent=11 // pred_check
        %p350 = pneg %p169
      $region26: #{pointnetfeat_forward.9} parent=11 // pred_check_branch
        %352 = sbr.rel (%p350) target = $region28
      $region27: #{pointnetfeat_forward.9} parent=11 // pred_region
        _
      $region28: #{pointnetfeat_forward.9} parent=11 // pred_fallthru
        _
      // Predicated region
      $region29: #{pointnetfeat_forward.9} parent=11 // pred_check
        %p353 = pneg %p190
      $region30: #{pointnetfeat_forward.9} parent=11 // pred_check_branch
        %355 = sbr.rel (%p353) target = $region32
      $region31: #{pointnetfeat_forward.9} parent=11 // pred_region
        _
      $region32: #{pointnetfeat_forward.9} parent=11 // pred_fallthru
        _
      // Predicated region
      $region33: #{pointnetfeat_forward.9} parent=11 // pred_check
        %p356 = pneg %p211
      $region34: #{pointnetfeat_forward.9} parent=11 // pred_check_branch
        %358 = sbr.rel (%p356) target = $region36
      $region35: #{pointnetfeat_forward.9} parent=11 // pred_region
        _
      $region36: #{pointnetfeat_forward.9} parent=11 // pred_fallthru
        _
    $region12: #{pointnetfeat_forward.9} parent=5 // pred_fallthru
      _
    %p359 = scmp.lt.s32.totalorder %s19, 8
    // Predicated region
    $region37: #{pointnetfeat_forward.9} parent=5 // pred_check
      %p360 = pneg %p359
    $region38: #{pointnetfeat_forward.9} parent=5 // pred_check_branch
      %362 = sbr.rel (%p360) target = $region40
    $region39: #{pointnetfeat_forward.9} parent=5 // pred_region
      // Predicated region
      $region41: #{pointnetfeat_forward.9} parent=39 // pred_check
        %p363 = pneg %p53
      $region42: #{pointnetfeat_forward.9} parent=39 // pred_check_branch
        %365 = sbr.rel (%p363) target = $region44
      $region43: #{pointnetfeat_forward.9} parent=39 // pred_region
        %s366 = smul.u32 8, %s27
        %p367 = scmp.lt.s32.totalorder %s26, 1
        %s368 = scalar_select %p367, %s26, 1
        %p369 = scmp.lt.s32.totalorder %s366, 31
        %s370 = scalar_select %p369, %s366, 31
        %s371 = smul.addr %s368, 32
        %s372 = sadd.s32 %s370, %s371
        %s373 = smul.addr %s372, 8
        %s374 = scalar_lea.vmem %s0, %s373
        %s375 = smul.u32 8, %s27
      $region44: #{pointnetfeat_forward.9} parent=39 // pred_fallthru
        _
      // Predicated region
      $region45: #{pointnetfeat_forward.9} parent=39 // pred_check
        %p376 = pneg %p79
      $region46: #{pointnetfeat_forward.9} parent=39 // pred_check_branch
        %378 = sbr.rel (%p376) target = $region48
      $region47: #{pointnetfeat_forward.9} parent=39 // pred_region
        %p379 = scmp.lt.s32.totalorder %s26, 1
        %s380 = scalar_select %p379, %s26, 1
        %s381 = smul.addr %s380, 4
        %s382 = scalar_lea.vmem %s1, %s381
      $region48: #{pointnetfeat_forward.9} parent=39 // pred_fallthru
        _
    $region40: #{pointnetfeat_forward.9} parent=5 // pred_fallthru
      _
    %p383 = scmp.le.s32.totalorder 1, %s19
    %p384 = scmp.lt.s32.totalorder %s19, 9
    %p385 = pnand %p383, %p384
    %p386 = pneg %p385
    // Predicated region
    $region49: #{pointnetfeat_forward.9} parent=5 // pred_check
      _
    $region50: #{pointnetfeat_forward.9} parent=5 // pred_check_branch
      %388 = sbr.rel (%p385) target = $region52
    $region51: #{pointnetfeat_forward.9} parent=5 // pred_region
      %s389 = ssub.s32 %s19, 1
      %s390 = smul.u32 8, %s29
      %p391 = scmp.lt.s32.totalorder %s28, 1
      %s392 = scalar_select %p391, %s28, 1
      %p393 = scmp.lt.s32.totalorder %s390, 31
      %s394 = scalar_select %p393, %s390, 31
      %s395 = smul.addr %s392, 32
      %s396 = sadd.s32 %s394, %s395
      %s397 = smul.addr %s396, 8
      %s398 = scalar_lea.vmem %s0, %s397
      %p399 = pneg %p59
      %p400 = pneg %p56
      %p401 = scmp.lt.s32.totalorder %s28, 1
      %s402 = scalar_select %p401, %s28, 1
      %s403 = smul.addr %s402, 4
      %s404 = scalar_lea.vmem %s1, %s403
      %p405 = pneg %p85
      %p406 = pneg %p82
      %p407 = pneg %p106
      %p408 = pneg %p103
      %p409 = pneg %p127
      %p410 = pneg %p124
      %p411 = pneg %p148
      %p412 = pneg %p145
      %p413 = pneg %p169
      %p414 = pneg %p166
      %p415 = pneg %p190
      %p416 = pneg %p187
      %p417 = pneg %p211
      %p418 = pneg %p208
      %p419 = pneg %p232
      %p420 = pneg %p229
      %p421 = pneg %p253
      %p422 = pneg %p250
      %p423 = pneg %p274
      %p424 = pneg %p271
      %p425 = pneg %p300
      %p426 = pneg %p297
      %p427 = scmp.lt.s32.totalorder %s28, 1
      %s428 = scalar_select %p427, %s28, 1
      %s429 = smul.addr %s428, 8
      %s430 = scalar_lea.vmem %s11, %s429
      %p431 = pneg %p326
      %p432 = pneg %p323
      %p433 = scmp.lt.s32.totalorder %s28, 1
      %s434 = scalar_select %p433, %s28, 1
      %s435 = smul.addr %s434, 8
      %s436 = scalar_lea.vmem %s12, %s435
      %s437 = smul.u32 8, %s29
      %p438 = scmp.lt.s32.totalorder %s28, 1
      %s439 = scalar_select %p438, %s28, 1
      %p440 = scmp.lt.s32.totalorder %s437, 31
      %s441 = scalar_select %p440, %s437, 31
      %s442 = smul.addr %s439, 32
      %s443 = sadd.s32 %s441, %s442
      %s444 = smul.addr %s443, 8
      %s445 = scalar_lea.vmem %s0, %s444
      %s446 = smul.u32 8, %s29
      %p447 = scmp.lt.s32.totalorder %s28, 1
      %s448 = scalar_select %p447, %s28, 1
      %s449 = smul.addr %s448, 4
      %s450 = scalar_lea.vmem %s1, %s449
      %p451 = scmp.lt.s32.totalorder %s28, 1
      %s452 = scalar_select %p451, %s28, 1
      %s453 = smul.addr %s452, 8
      %s454 = scalar_lea.vmem %s11, %s453
      %p455 = scmp.lt.s32.totalorder %s28, 1
      %s456 = scalar_select %p455, %s28, 1
      %s457 = smul.addr %s456, 8
      %s458 = scalar_lea.vmem %s12, %s457
      %v460 = vld [vmem:[%s445] sm:$0xff]
      %v461 = vld [vmem:[%s445 + $0x8] sm:$0xff]
      %v462 = vld [vmem:[%s445 + $0x10] sm:$0xff]
      %v463 = vld [vmem:[%s445 + $0x18] sm:$0xff]
      %v464 = vld [vmem:[%s445 + $0x20] sm:$0xff]
      %v465 = vld [vmem:[%s445 + $0x28] sm:$0xff]
      %v466 = vld [vmem:[%s445 + $0x30] sm:$0xff]
      %v467 = vld [vmem:[%s445 + $0x38] sm:$0xff]
      %v468 = vld [vmem:[%s450] sm:$0x7]
      %470 = vset.pattern.permute.xlu0 0
      %471 = vperm.xlu0 %470, %v460
      %v472 = vpop.permute.xlu0 %471
      %475 = vset.pattern.permute.xlu0 0
      %476 = vperm.xlu0 %475, %v461
      %v477 = vpop.permute.xlu0 %476
      %480 = vset.pattern.permute.xlu0 0
      %481 = vperm.xlu0 %480, %v462
      %v482 = vpop.permute.xlu0 %481
      %485 = vset.pattern.permute.xlu0 0
      %486 = vperm.xlu0 %485, %v463
      %v487 = vpop.permute.xlu0 %486
      %490 = vset.pattern.permute.xlu0 0
      %491 = vperm.xlu0 %490, %v464
      %v492 = vpop.permute.xlu0 %491
      %495 = vset.pattern.permute.xlu0 0
      %496 = vperm.xlu0 %495, %v465
      %v497 = vpop.permute.xlu0 %496
      %500 = vset.pattern.permute.xlu0 0
      %501 = vperm.xlu0 %500, %v466
      %v502 = vpop.permute.xlu0 %501
      %505 = vset.pattern.permute.xlu0 0
      %506 = vperm.xlu0 %505, %v467
      %v507 = vpop.permute.xlu0 %506
      %v509 = vperm.slane %v468, 0
      %v510 = vmul.f32 %v472, %v509
      %v511 = vmul.f32 %v477, %v509
      %v512 = vmul.f32 %v482, %v509
      %v513 = vmul.f32 %v487, %v509
      %v514 = vmul.f32 %v492, %v509
      %v515 = vmul.f32 %v497, %v509
      %v516 = vmul.f32 %v502, %v509
      %v517 = vmul.f32 %v507, %v509
      %518 = vset.pattern.permute.xlu0 1
      %519 = vperm.xlu0 %518, %v460
      %v520 = vpop.permute.xlu0 %519
      %522 = vset.pattern.permute.xlu0 1
      %523 = vperm.xlu0 %522, %v461
      %v524 = vpop.permute.xlu0 %523
      %526 = vset.pattern.permute.xlu0 1
      %527 = vperm.xlu0 %526, %v462
      %v528 = vpop.permute.xlu0 %527
      %530 = vset.pattern.permute.xlu0 1
      %531 = vperm.xlu0 %530, %v463
      %v532 = vpop.permute.xlu0 %531
      %534 = vset.pattern.permute.xlu0 1
      %535 = vperm.xlu0 %534, %v464
      %v536 = vpop.permute.xlu0 %535
      %538 = vset.pattern.permute.xlu0 1
      %539 = vperm.xlu0 %538, %v465
      %v540 = vpop.permute.xlu0 %539
      %542 = vset.pattern.permute.xlu0 1
      %543 = vperm.xlu0 %542, %v466
      %v544 = vpop.permute.xlu0 %543
      %546 = vset.pattern.permute.xlu0 1
      %547 = vperm.xlu0 %546, %v467
      %v548 = vpop.permute.xlu0 %547
      %v550 = vperm.slane %v468, 1
      %v551 = vmul.f32 %v520, %v550
      %v552 = vmul.f32 %v524, %v550
      %v553 = vmul.f32 %v528, %v550
      %v554 = vmul.f32 %v532, %v550
      %v555 = vmul.f32 %v536, %v550
      %v556 = vmul.f32 %v540, %v550
      %v557 = vmul.f32 %v544, %v550
      %v558 = vmul.f32 %v548, %v550
      %v559 = vadd.f32 %v510, %v551
      %v560 = vadd.f32 %v511, %v552
      %v561 = vadd.f32 %v512, %v553
      %v562 = vadd.f32 %v513, %v554
      %v563 = vadd.f32 %v514, %v555
      %v564 = vadd.f32 %v515, %v556
      %v565 = vadd.f32 %v516, %v557
      %v566 = vadd.f32 %v517, %v558
      %567 = vset.pattern.permute.xlu0 2
      %568 = vperm.xlu0 %567, %v460
      %v569 = vpop.permute.xlu0 %568
      %571 = vset.pattern.permute.xlu0 2
      %572 = vperm.xlu0 %571, %v461
      %v573 = vpop.permute.xlu0 %572
      %575 = vset.pattern.permute.xlu0 2
      %576 = vperm.xlu0 %575, %v462
      %v577 = vpop.permute.xlu0 %576
      %579 = vset.pattern.permute.xlu0 2
      %580 = vperm.xlu0 %579, %v463
      %v581 = vpop.permute.xlu0 %580
      %583 = vset.pattern.permute.xlu0 2
      %584 = vperm.xlu0 %583, %v464
      %v585 = vpop.permute.xlu0 %584
      %587 = vset.pattern.permute.xlu0 2
      %588 = vperm.xlu0 %587, %v465
      %v589 = vpop.permute.xlu0 %588
      %591 = vset.pattern.permute.xlu0 2
      %592 = vperm.xlu0 %591, %v466
      %v593 = vpop.permute.xlu0 %592
      %595 = vset.pattern.permute.xlu0 2
      %596 = vperm.xlu0 %595, %v467
      %v597 = vpop.permute.xlu0 %596
      %v599 = vperm.slane %v468, 2
      %v600 = vmul.f32 %v569, %v599
      %v601 = vmul.f32 %v573, %v599
      %v602 = vmul.f32 %v577, %v599
      %v603 = vmul.f32 %v581, %v599
      %v604 = vmul.f32 %v585, %v599
      %v605 = vmul.f32 %v589, %v599
      %v606 = vmul.f32 %v593, %v599
      %v607 = vmul.f32 %v597, %v599
      %v608 = vadd.f32 %v559, %v600
      %v609 = vadd.f32 %v560, %v601
      %v610 = vadd.f32 %v561, %v602
      %v611 = vadd.f32 %v562, %v603
      %v612 = vadd.f32 %v563, %v604
      %v613 = vadd.f32 %v564, %v605
      %v614 = vadd.f32 %v565, %v606
      %v615 = vadd.f32 %v566, %v607
      %v616 = vld [vmem:[%s2] sm:$0x1]
      %v617 = vld [vmem:[%s3] sm:$0x1]
      %v619 = vperm.slane %v616, 0
      %v621 = vmul.f32 %v608, %v619
      %v622 = vmul.f32 %v609, %v619
      %v623 = vmul.f32 %v610, %v619
      %v624 = vmul.f32 %v611, %v619
      %v625 = vmul.f32 %v612, %v619
      %v626 = vmul.f32 %v613, %v619
      %v627 = vmul.f32 %v614, %v619
      %v628 = vmul.f32 %v615, %v619
      %v630 = vperm.slane %v617, 0
      %v632 = vadd.f32 %v621, %v630
      %v633 = vadd.f32 %v622, %v630
      %v634 = vadd.f32 %v623, %v630
      %v635 = vadd.f32 %v624, %v630
      %v636 = vadd.f32 %v625, %v630
      %v637 = vadd.f32 %v626, %v630
      %v638 = vadd.f32 %v627, %v630
      %v639 = vadd.f32 %v628, %v630
      %v640 = vmax.f32 %v632, 0.0
      %v641 = vmax.f32 %v633, 0.0
      %v642 = vmax.f32 %v634, 0.0
      %v643 = vmax.f32 %v635, 0.0
      %v644 = vmax.f32 %v636, 0.0
      %v645 = vmax.f32 %v637, 0.0
      %v646 = vmax.f32 %v638, 0.0
      %v647 = vmax.f32 %v639, 0.0
      %v648 = vld [vmem:[%s4] sm:$0xf]
      %v649 = vld [vmem:[%s4 + $0x4] sm:$0xf]
      %v650 = vld [vmem:[%s4 + $0x8] sm:$0xf]
      %v651 = vld [vmem:[%s4 + $0xc] sm:$0xf]
      %v652 = vld [vmem:[%s4 + $0x10] sm:$0xf]
      %v653 = vld [vmem:[%s4 + $0x14] sm:$0xf]
      %v654 = vld [vmem:[%s4 + $0x18] sm:$0xf]
      %v655 = vld [vmem:[%s4 + $0x1c] sm:$0xf]
      %v656 = vpack.c.bf16 %v641, %v640
      %v657 = vpack.c.bf16 %v643, %v642
      %v658 = vpack.c.bf16 %v645, %v644
      %v659 = vpack.c.bf16 %v647, %v646
      %v668 = vunpack.c.l.b16 %v648
      %v669 = vunpack.c.l.b16 %v649
      %v670 = vunpack.c.l.b16 %v650
      %v671 = vunpack.c.l.b16 %v651
      %v672 = vunpack.c.l.b16 %v652
      %v673 = vunpack.c.l.b16 %v653
      %v674 = vunpack.c.l.b16 %v654
      %v675 = vunpack.c.l.b16 %v655
      %v676 = vpack.c.b16 %v669, %v668
      %v677 = vpack.c.b16 %v671, %v670
      %v678 = vpack.c.b16 %v673, %v672
      %v679 = vpack.c.b16 %v675, %v674
      %vm684 = vcmask 523264
      %v686 = vsel %vm684, %v656, 0
      %v689 = vsel %vm684, %v657, 0
      %v692 = vsel %vm684, %v658, 0
      %v695 = vsel %vm684, %v659, 0
      %697 = vmatpush.bf16.msra.mxu0 0
      %698 = vmatpush.bf16.msra.mxu0 0
      %699 = vmatpush.bf16.msra.mxu0 0
      %700 = vmatpush.bf16.msra.mxu0 0
      %701 = vmatpush.bf16.msra.mxu0 %v679
      %702 = vmatpush.bf16.msra.mxu0 %v678
      %703 = vmatpush.bf16.msra.mxu0 %v677
      %704 = vmatpush.bf16.msra.mxu0 %v676
      %705 = vmatmul.bf16.gmra.mxu0 %v686
      %v706 = vpop.f32.mrf.mxu0
      %v707 = vadd.f32 0.0, %v706
      %v708 = vpop.f32.mrf.mxu0
      %v709 = vadd.f32 0.0, %v708
      %710 = vmatmul.bf16.gmra.mxu0 %v689
      %v711 = vpop.f32.mrf.mxu0
      %v712 = vadd.f32 0.0, %v711
      %v713 = vpop.f32.mrf.mxu0
      %v714 = vadd.f32 0.0, %v713
      %715 = vmatmul.bf16.gmra.mxu0 %v692
      %v716 = vpop.f32.mrf.mxu0
      %v717 = vadd.f32 0.0, %v716
      %v718 = vpop.f32.mrf.mxu0
      %v719 = vadd.f32 0.0, %v718
      %720 = vmatmul.bf16.gmra.mxu0 %v695
      %v721 = vpop.f32.mrf.mxu0
      %v722 = vadd.f32 0.0, %v721
      %v723 = vpop.f32.mrf.mxu0
      %v724 = vadd.f32 0.0, %v723
      %725 = vdwg.mxu0
      %v726 = vld [vmem:[%s5] sm:$0x1]
      %v727 = vld [vmem:[%s6] sm:$0x1]
      %v729 = vperm.slane %v726, 0
      %v731 = vmul.f32 %v707, %v729
      %v732 = vmul.f32 %v709, %v729
      %v733 = vmul.f32 %v712, %v729
      %v734 = vmul.f32 %v714, %v729
      %v735 = vmul.f32 %v717, %v729
      %v736 = vmul.f32 %v719, %v729
      %v737 = vmul.f32 %v722, %v729
      %v738 = vmul.f32 %v724, %v729
      %v740 = vperm.slane %v727, 0
      %v742 = vadd.f32 %v731, %v740
      %v743 = vadd.f32 %v732, %v740
      %v744 = vadd.f32 %v733, %v740
      %v745 = vadd.f32 %v734, %v740
      %v746 = vadd.f32 %v735, %v740
      %v747 = vadd.f32 %v736, %v740
      %v748 = vadd.f32 %v737, %v740
      %v749 = vadd.f32 %v738, %v740
      %v750 = vmax.f32 %v742, 0.0
      %v751 = vmax.f32 %v743, 0.0
      %v752 = vmax.f32 %v744, 0.0
      %v753 = vmax.f32 %v745, 0.0
      %v754 = vmax.f32 %v746, 0.0
      %v755 = vmax.f32 %v747, 0.0
      %v756 = vmax.f32 %v748, 0.0
      %v757 = vmax.f32 %v749, 0.0
      %v758 = vld [vmem:[%s7] sm:$0xff]
      %v759 = vld [vmem:[%s7 + $0x8] sm:$0xff]
      %v760 = vld [vmem:[%s7 + $0x10] sm:$0xff]
      %v761 = vld [vmem:[%s7 + $0x18] sm:$0xff]
      %v762 = vld [vmem:[%s7 + $0x20] sm:$0xff]
      %v763 = vld [vmem:[%s7 + $0x28] sm:$0xff]
      %v764 = vld [vmem:[%s7 + $0x30] sm:$0xff]
      %v765 = vld [vmem:[%s7 + $0x38] sm:$0xff]
      %v766 = vld [vmem:[%s7 + $0x40] sm:$0xff]
      %v767 = vld [vmem:[%s7 + $0x48] sm:$0xff]
      %v768 = vld [vmem:[%s7 + $0x50] sm:$0xff]
      %v769 = vld [vmem:[%s7 + $0x58] sm:$0xff]
      %v770 = vld [vmem:[%s7 + $0x60] sm:$0xff]
      %v771 = vld [vmem:[%s7 + $0x68] sm:$0xff]
      %v772 = vld [vmem:[%s7 + $0x70] sm:$0xff]
      %v773 = vld [vmem:[%s7 + $0x78] sm:$0xff]
      %v774 = vld [vmem:[%s7 + $0x80] sm:$0xff]
      %v775 = vld [vmem:[%s7 + $0x88] sm:$0xff]
      %v776 = vld [vmem:[%s7 + $0x90] sm:$0xff]
      %v777 = vld [vmem:[%s7 + $0x98] sm:$0xff]
      %v778 = vld [vmem:[%s7 + $0xa0] sm:$0xff]
      %v779 = vld [vmem:[%s7 + $0xa8] sm:$0xff]
      %v780 = vld [vmem:[%s7 + $0xb0] sm:$0xff]
      %v781 = vld [vmem:[%s7 + $0xb8] sm:$0xff]
      %v782 = vld [vmem:[%s7 + $0xc0] sm:$0xff]
      %v783 = vld [vmem:[%s7 + $0xc8] sm:$0xff]
      %v784 = vld [vmem:[%s7 + $0xd0] sm:$0xff]
      %v785 = vld [vmem:[%s7 + $0xd8] sm:$0xff]
      %v786 = vld [vmem:[%s7 + $0xe0] sm:$0xff]
      %v787 = vld [vmem:[%s7 + $0xe8] sm:$0xff]
      %v788 = vld [vmem:[%s7 + $0xf0] sm:$0xff]
      %v789 = vld [vmem:[%s7 + $0xf8] sm:$0xff]
      %v790 = vld [vmem:[%s7 + $0x100] sm:$0xff]
      %v791 = vld [vmem:[%s7 + $0x108] sm:$0xff]
      %v792 = vld [vmem:[%s7 + $0x110] sm:$0xff]
      %v793 = vld [vmem:[%s7 + $0x118] sm:$0xff]
      %v794 = vld [vmem:[%s7 + $0x120] sm:$0xff]
      %v795 = vld [vmem:[%s7 + $0x128] sm:$0xff]
      %v796 = vld [vmem:[%s7 + $0x130] sm:$0xff]
      %v797 = vld [vmem:[%s7 + $0x138] sm:$0xff]
      %v798 = vld [vmem:[%s7 + $0x140] sm:$0xff]
      %v799 = vld [vmem:[%s7 + $0x148] sm:$0xff]
      %v800 = vld [vmem:[%s7 + $0x150] sm:$0xff]
      %v801 = vld [vmem:[%s7 + $0x158] sm:$0xff]
      %v802 = vld [vmem:[%s7 + $0x160] sm:$0xff]
      %v803 = vld [vmem:[%s7 + $0x168] sm:$0xff]
      %v804 = vld [vmem:[%s7 + $0x170] sm:$0xff]
      %v805 = vld [vmem:[%s7 + $0x178] sm:$0xff]
      %v806 = vld [vmem:[%s7 + $0x180] sm:$0xff]
      %v807 = vld [vmem:[%s7 + $0x188] sm:$0xff]
      %v808 = vld [vmem:[%s7 + $0x190] sm:$0xff]
      %v809 = vld [vmem:[%s7 + $0x198] sm:$0xff]
      %v810 = vld [vmem:[%s7 + $0x1a0] sm:$0xff]
      %v811 = vld [vmem:[%s7 + $0x1a8] sm:$0xff]
      %v812 = vld [vmem:[%s7 + $0x1b0] sm:$0xff]
      %v813 = vld [vmem:[%s7 + $0x1b8] sm:$0xff]
      %v814 = vld [vmem:[%s7 + $0x1c0] sm:$0xff]
      %v815 = vld [vmem:[%s7 + $0x1c8] sm:$0xff]
      %v816 = vld [vmem:[%s7 + $0x1d0] sm:$0xff]
      %v817 = vld [vmem:[%s7 + $0x1d8] sm:$0xff]
      %v818 = vld [vmem:[%s7 + $0x1e0] sm:$0xff]
      %v819 = vld [vmem:[%s7 + $0x1e8] sm:$0xff]
      %v820 = vld [vmem:[%s7 + $0x1f0] sm:$0xff]
      %v821 = vld [vmem:[%s7 + $0x1f8] sm:$0xff]
      %v822 = vpack.c.bf16 %v751, %v750
      %v823 = vpack.c.bf16 %v753, %v752
      %v824 = vpack.c.bf16 %v755, %v754
      %v825 = vpack.c.bf16 %v757, %v756
      %v890 = vunpack.c.l.b16 %v758
      %v891 = vunpack.c.h.b16 %v758
      %v892 = vunpack.c.l.b16 %v759
      %v893 = vunpack.c.h.b16 %v759
      %v894 = vunpack.c.l.b16 %v760
      %v895 = vunpack.c.h.b16 %v760
      %v896 = vunpack.c.l.b16 %v761
      %v897 = vunpack.c.h.b16 %v761
      %v898 = vunpack.c.l.b16 %v762
      %v899 = vunpack.c.h.b16 %v762
      %v900 = vunpack.c.l.b16 %v763
      %v901 = vunpack.c.h.b16 %v763
      %v902 = vunpack.c.l.b16 %v764
      %v903 = vunpack.c.h.b16 %v764
      %v904 = vunpack.c.l.b16 %v765
      %v905 = vunpack.c.h.b16 %v765
      %v906 = vunpack.c.l.b16 %v766
      %v907 = vunpack.c.h.b16 %v766
      %v908 = vunpack.c.l.b16 %v767
      %v909 = vunpack.c.h.b16 %v767
      %v910 = vunpack.c.l.b16 %v768
      %v911 = vunpack.c.h.b16 %v768
      %v912 = vunpack.c.l.b16 %v769
      %v913 = vunpack.c.h.b16 %v769
      %v914 = vunpack.c.l.b16 %v770
      %v915 = vunpack.c.h.b16 %v770
      %v916 = vunpack.c.l.b16 %v771
      %v917 = vunpack.c.h.b16 %v771
      %v918 = vunpack.c.l.b16 %v772
      %v919 = vunpack.c.h.b16 %v772
      %v920 = vunpack.c.l.b16 %v773
      %v921 = vunpack.c.h.b16 %v773
      %v922 = vunpack.c.l.b16 %v774
      %v923 = vunpack.c.h.b16 %v774
      %v924 = vunpack.c.l.b16 %v775
      %v925 = vunpack.c.h.b16 %v775
      %v926 = vunpack.c.l.b16 %v776
      %v927 = vunpack.c.h.b16 %v776
      %v928 = vunpack.c.l.b16 %v777
      %v929 = vunpack.c.h.b16 %v777
      %v930 = vunpack.c.l.b16 %v778
      %v931 = vunpack.c.h.b16 %v778
      %v932 = vunpack.c.l.b16 %v779
      %v933 = vunpack.c.h.b16 %v779
      %v934 = vunpack.c.l.b16 %v780
      %v935 = vunpack.c.h.b16 %v780
      %v936 = vunpack.c.l.b16 %v781
      %v937 = vunpack.c.h.b16 %v781
      %v938 = vunpack.c.l.b16 %v782
      %v939 = vunpack.c.h.b16 %v782
      %v940 = vunpack.c.l.b16 %v783
      %v941 = vunpack.c.h.b16 %v783
      %v942 = vunpack.c.l.b16 %v784
      %v943 = vunpack.c.h.b16 %v784
      %v944 = vunpack.c.l.b16 %v785
      %v945 = vunpack.c.h.b16 %v785
      %v946 = vunpack.c.l.b16 %v786
      %v947 = vunpack.c.h.b16 %v786
      %v948 = vunpack.c.l.b16 %v787
      %v949 = vunpack.c.h.b16 %v787
      %v950 = vunpack.c.l.b16 %v788
      %v951 = vunpack.c.h.b16 %v788
      %v952 = vunpack.c.l.b16 %v789
      %v953 = vunpack.c.h.b16 %v789
      %v954 = vunpack.c.l.b16 %v790
      %v955 = vunpack.c.h.b16 %v790
      %v956 = vunpack.c.l.b16 %v791
      %v957 = vunpack.c.h.b16 %v791
      %v958 = vunpack.c.l.b16 %v792
      %v959 = vunpack.c.h.b16 %v792
      %v960 = vunpack.c.l.b16 %v793
      %v961 = vunpack.c.h.b16 %v793
      %v962 = vunpack.c.l.b16 %v794
      %v963 = vunpack.c.h.b16 %v794
      %v964 = vunpack.c.l.b16 %v795
      %v965 = vunpack.c.h.b16 %v795
      %v966 = vunpack.c.l.b16 %v796
      %v967 = vunpack.c.h.b16 %v796
      %v968 = vunpack.c.l.b16 %v797
      %v969 = vunpack.c.h.b16 %v797
      %v970 = vunpack.c.l.b16 %v798
      %v971 = vunpack.c.h.b16 %v798
      %v972 = vunpack.c.l.b16 %v799
      %v973 = vunpack.c.h.b16 %v799
      %v974 = vunpack.c.l.b16 %v800
      %v975 = vunpack.c.h.b16 %v800
      %v976 = vunpack.c.l.b16 %v801
      %v977 = vunpack.c.h.b16 %v801
      %v978 = vunpack.c.l.b16 %v802
      %v979 = vunpack.c.h.b16 %v802
      %v980 = vunpack.c.l.b16 %v803
      %v981 = vunpack.c.h.b16 %v803
      %v982 = vunpack.c.l.b16 %v804
      %v983 = vunpack.c.h.b16 %v804
      %v984 = vunpack.c.l.b16 %v805
      %v985 = vunpack.c.h.b16 %v805
      %v986 = vunpack.c.l.b16 %v806
      %v987 = vunpack.c.h.b16 %v806
      %v988 = vunpack.c.l.b16 %v807
      %v989 = vunpack.c.h.b16 %v807
      %v990 = vunpack.c.l.b16 %v808
      %v991 = vunpack.c.h.b16 %v808
      %v992 = vunpack.c.l.b16 %v809
      %v993 = vunpack.c.h.b16 %v809
      %v994 = vunpack.c.l.b16 %v810
      %v995 = vunpack.c.h.b16 %v810
      %v996 = vunpack.c.l.b16 %v811
      %v997 = vunpack.c.h.b16 %v811
      %v998 = vunpack.c.l.b16 %v812
      %v999 = vunpack.c.h.b16 %v812
      %v1000 = vunpack.c.l.b16 %v813
      %v1001 = vunpack.c.h.b16 %v813
      %v1002 = vunpack.c.l.b16 %v814
      %v1003 = vunpack.c.h.b16 %v814
      %v1004 = vunpack.c.l.b16 %v815
      %v1005 = vunpack.c.h.b16 %v815
      %v1006 = vunpack.c.l.b16 %v816
      %v1007 = vunpack.c.h.b16 %v816
      %v1008 = vunpack.c.l.b16 %v817
      %v1009 = vunpack.c.h.b16 %v817
      %v1010 = vunpack.c.l.b16 %v818
      %v1011 = vunpack.c.h.b16 %v818
      %v1012 = vunpack.c.l.b16 %v819
      %v1013 = vunpack.c.h.b16 %v819
      %v1014 = vunpack.c.l.b16 %v820
      %v1015 = vunpack.c.h.b16 %v820
      %v1016 = vunpack.c.l.b16 %v821
      %v1017 = vunpack.c.h.b16 %v821
      %v1018 = vpack.c.b16 %v898, %v890
      %v1019 = vpack.c.b16 %v899, %v891
      %v1020 = vpack.c.b16 %v900, %v892
      %v1021 = vpack.c.b16 %v901, %v893
      %v1022 = vpack.c.b16 %v902, %v894
      %v1023 = vpack.c.b16 %v903, %v895
      %v1024 = vpack.c.b16 %v904, %v896
      %v1025 = vpack.c.b16 %v905, %v897
      %v1026 = vpack.c.b16 %v914, %v906
      %v1027 = vpack.c.b16 %v915, %v907
      %v1028 = vpack.c.b16 %v916, %v908
      %v1029 = vpack.c.b16 %v917, %v909
      %v1030 = vpack.c.b16 %v918, %v910
      %v1031 = vpack.c.b16 %v919, %v911
      %v1032 = vpack.c.b16 %v920, %v912
      %v1033 = vpack.c.b16 %v921, %v913
      %v1034 = vpack.c.b16 %v930, %v922
      %v1035 = vpack.c.b16 %v931, %v923
      %v1036 = vpack.c.b16 %v932, %v924
      %v1037 = vpack.c.b16 %v933, %v925
      %v1038 = vpack.c.b16 %v934, %v926
      %v1039 = vpack.c.b16 %v935, %v927
      %v1040 = vpack.c.b16 %v936, %v928
      %v1041 = vpack.c.b16 %v937, %v929
      %v1042 = vpack.c.b16 %v946, %v938
      %v1043 = vpack.c.b16 %v947, %v939
      %v1044 = vpack.c.b16 %v948, %v940
      %v1045 = vpack.c.b16 %v949, %v941
      %v1046 = vpack.c.b16 %v950, %v942
      %v1047 = vpack.c.b16 %v951, %v943
      %v1048 = vpack.c.b16 %v952, %v944
      %v1049 = vpack.c.b16 %v953, %v945
      %v1050 = vpack.c.b16 %v962, %v954
      %v1051 = vpack.c.b16 %v963, %v955
      %v1052 = vpack.c.b16 %v964, %v956
      %v1053 = vpack.c.b16 %v965, %v957
      %v1054 = vpack.c.b16 %v966, %v958
      %v1055 = vpack.c.b16 %v967, %v959
      %v1056 = vpack.c.b16 %v968, %v960
      %v1057 = vpack.c.b16 %v969, %v961
      %v1058 = vpack.c.b16 %v978, %v970
      %v1059 = vpack.c.b16 %v979, %v971
      %v1060 = vpack.c.b16 %v980, %v972
      %v1061 = vpack.c.b16 %v981, %v973
      %v1062 = vpack.c.b16 %v982, %v974
      %v1063 = vpack.c.b16 %v983, %v975
      %v1064 = vpack.c.b16 %v984, %v976
      %v1065 = vpack.c.b16 %v985, %v977
      %v1066 = vpack.c.b16 %v994, %v986
      %v1067 = vpack.c.b16 %v995, %v987
      %v1068 = vpack.c.b16 %v996, %v988
      %v1069 = vpack.c.b16 %v997, %v989
      %v1070 = vpack.c.b16 %v998, %v990
      %v1071 = vpack.c.b16 %v999, %v991
      %v1072 = vpack.c.b16 %v1000, %v992
      %v1073 = vpack.c.b16 %v1001, %v993
      %v1074 = vpack.c.b16 %v1010, %v1002
      %v1075 = vpack.c.b16 %v1011, %v1003
      %v1076 = vpack.c.b16 %v1012, %v1004
      %v1077 = vpack.c.b16 %v1013, %v1005
      %v1078 = vpack.c.b16 %v1014, %v1006
      %v1079 = vpack.c.b16 %v1015, %v1007
      %v1080 = vpack.c.b16 %v1016, %v1008
      %v1081 = vpack.c.b16 %v1017, %v1009
      %1146 = vmatpush.bf16.msra.mxu0 %v1074
      %1147 = vmatpush.bf16.msra.mxu0 %v1066
      %1148 = vmatpush.bf16.msra.mxu0 %v1058
      %1149 = vmatpush.bf16.msra.mxu0 %v1050
      %1150 = vmatpush.bf16.msra.mxu0 %v1042
      %1151 = vmatpush.bf16.msra.mxu0 %v1034
      %1152 = vmatpush.bf16.msra.mxu0 %v1026
      %1153 = vmatpush.bf16.msra.mxu0 %v1018
      %1154 = vmatmul.bf16.gmra.mxu0 %v822
      %v1155 = vpop.f32.mrf.mxu0
      %v1156 = vadd.f32 0.0, %v1155
      %v1157 = vpop.f32.mrf.mxu0
      %v1158 = vadd.f32 0.0, %v1157
      %1159 = vmatmul.bf16.gmra.mxu0 %v823
      %v1160 = vpop.f32.mrf.mxu0
      %v1161 = vadd.f32 0.0, %v1160
      %v1162 = vpop.f32.mrf.mxu0
      %v1163 = vadd.f32 0.0, %v1162
      %1164 = vmatmul.bf16.gmra.mxu0 %v824
      %v1165 = vpop.f32.mrf.mxu0
      %v1166 = vadd.f32 0.0, %v1165
      %v1167 = vpop.f32.mrf.mxu0
      %v1168 = vadd.f32 0.0, %v1167
      %1169 = vmatmul.bf16.gmra.mxu0 %v825
      %v1170 = vpop.f32.mrf.mxu0
      %v1171 = vadd.f32 0.0, %v1170
      %v1172 = vpop.f32.mrf.mxu0
      %v1173 = vadd.f32 0.0, %v1172
      %1174 = vdwg.mxu0
      %1175 = vmatpush.bf16.msra.mxu0 %v1075
      %1176 = vmatpush.bf16.msra.mxu0 %v1067
      %1177 = vmatpush.bf16.msra.mxu0 %v1059
      %1178 = vmatpush.bf16.msra.mxu0 %v1051
      %1179 = vmatpush.bf16.msra.mxu0 %v1043
      %1180 = vmatpush.bf16.msra.mxu0 %v1035
      %1181 = vmatpush.bf16.msra.mxu0 %v1027
      %1182 = vmatpush.bf16.msra.mxu0 %v1019
      %1183 = vmatmul.bf16.gmra.mxu0 %v822
      %v1184 = vpop.f32.mrf.mxu0
      %v1185 = vadd.f32 0.0, %v1184
      %v1186 = vpop.f32.mrf.mxu0
      %v1187 = vadd.f32 0.0, %v1186
      %1188 = vmatmul.bf16.gmra.mxu0 %v823
      %v1189 = vpop.f32.mrf.mxu0
      %v1190 = vadd.f32 0.0, %v1189
      %v1191 = vpop.f32.mrf.mxu0
      %v1192 = vadd.f32 0.0, %v1191
      %1193 = vmatmul.bf16.gmra.mxu0 %v824
      %v1194 = vpop.f32.mrf.mxu0
      %v1195 = vadd.f32 0.0, %v1194
      %v1196 = vpop.f32.mrf.mxu0
      %v1197 = vadd.f32 0.0, %v1196
      %1198 = vmatmul.bf16.gmra.mxu0 %v825
      %v1199 = vpop.f32.mrf.mxu0
      %v1200 = vadd.f32 0.0, %v1199
      %v1201 = vpop.f32.mrf.mxu0
      %v1202 = vadd.f32 0.0, %v1201
      %1203 = vdwg.mxu0
      %1204 = vmatpush.bf16.msra.mxu0 %v1076
      %1205 = vmatpush.bf16.msra.mxu0 %v1068
      %1206 = vmatpush.bf16.msra.mxu0 %v1060
      %1207 = vmatpush.bf16.msra.mxu0 %v1052
      %1208 = vmatpush.bf16.msra.mxu0 %v1044
      %1209 = vmatpush.bf16.msra.mxu0 %v1036
      %1210 = vmatpush.bf16.msra.mxu0 %v1028
      %1211 = vmatpush.bf16.msra.mxu0 %v1020
      %1212 = vmatmul.bf16.gmra.mxu0 %v822
      %v1213 = vpop.f32.mrf.mxu0
      %v1214 = vadd.f32 0.0, %v1213
      %v1215 = vpop.f32.mrf.mxu0
      %v1216 = vadd.f32 0.0, %v1215
      %1217 = vmatmul.bf16.gmra.mxu0 %v823
      %v1218 = vpop.f32.mrf.mxu0
      %v1219 = vadd.f32 0.0, %v1218
      %v1220 = vpop.f32.mrf.mxu0
      %v1221 = vadd.f32 0.0, %v1220
      %1222 = vmatmul.bf16.gmra.mxu0 %v824
      %v1223 = vpop.f32.mrf.mxu0
      %v1224 = vadd.f32 0.0, %v1223
      %v1225 = vpop.f32.mrf.mxu0
      %v1226 = vadd.f32 0.0, %v1225
      %1227 = vmatmul.bf16.gmra.mxu0 %v825
      %v1228 = vpop.f32.mrf.mxu0
      %v1229 = vadd.f32 0.0, %v1228
      %v1230 = vpop.f32.mrf.mxu0
      %v1231 = vadd.f32 0.0, %v1230
      %1232 = vdwg.mxu0
      %1233 = vmatpush.bf16.msra.mxu0 %v1077
      %1234 = vmatpush.bf16.msra.mxu0 %v1069
      %1235 = vmatpush.bf16.msra.mxu0 %v1061
      %1236 = vmatpush.bf16.msra.mxu0 %v1053
      %1237 = vmatpush.bf16.msra.mxu0 %v1045
      %1238 = vmatpush.bf16.msra.mxu0 %v1037
      %1239 = vmatpush.bf16.msra.mxu0 %v1029
      %1240 = vmatpush.bf16.msra.mxu0 %v1021
      %1241 = vmatmul.bf16.gmra.mxu0 %v822
      %v1242 = vpop.f32.mrf.mxu0
      %v1243 = vadd.f32 0.0, %v1242
      %v1244 = vpop.f32.mrf.mxu0
      %v1245 = vadd.f32 0.0, %v1244
      %1246 = vmatmul.bf16.gmra.mxu0 %v823
      %v1247 = vpop.f32.mrf.mxu0
      %v1248 = vadd.f32 0.0, %v1247
      %v1249 = vpop.f32.mrf.mxu0
      %v1250 = vadd.f32 0.0, %v1249
      %1251 = vmatmul.bf16.gmra.mxu0 %v824
      %v1252 = vpop.f32.mrf.mxu0
      %v1253 = vadd.f32 0.0, %v1252
      %v1254 = vpop.f32.mrf.mxu0
      %v1255 = vadd.f32 0.0, %v1254
      %1256 = vmatmul.bf16.gmra.mxu0 %v825
      %v1257 = vpop.f32.mrf.mxu0
      %v1258 = vadd.f32 0.0, %v1257
      %v1259 = vpop.f32.mrf.mxu0
      %v1260 = vadd.f32 0.0, %v1259
      %1261 = vdwg.mxu0
      %1262 = vmatpush.bf16.msra.mxu0 %v1078
      %1263 = vmatpush.bf16.msra.mxu0 %v1070
      %1264 = vmatpush.bf16.msra.mxu0 %v1062
      %1265 = vmatpush.bf16.msra.mxu0 %v1054
      %1266 = vmatpush.bf16.msra.mxu0 %v1046
      %1267 = vmatpush.bf16.msra.mxu0 %v1038
      %1268 = vmatpush.bf16.msra.mxu0 %v1030
      %1269 = vmatpush.bf16.msra.mxu0 %v1022
      %1270 = vmatmul.bf16.gmra.mxu0 %v822
      %v1271 = vpop.f32.mrf.mxu0
      %v1272 = vadd.f32 0.0, %v1271
      %v1273 = vpop.f32.mrf.mxu0
      %v1274 = vadd.f32 0.0, %v1273
      %1275 = vmatmul.bf16.gmra.mxu0 %v823
      %v1276 = vpop.f32.mrf.mxu0
      %v1277 = vadd.f32 0.0, %v1276
      %v1278 = vpop.f32.mrf.mxu0
      %v1279 = vadd.f32 0.0, %v1278
      %1280 = vmatmul.bf16.gmra.mxu0 %v824
      %v1281 = vpop.f32.mrf.mxu0
      %v1282 = vadd.f32 0.0, %v1281
      %v1283 = vpop.f32.mrf.mxu0
      %v1284 = vadd.f32 0.0, %v1283
      %1285 = vmatmul.bf16.gmra.mxu0 %v825
      %v1286 = vpop.f32.mrf.mxu0
      %v1287 = vadd.f32 0.0, %v1286
      %v1288 = vpop.f32.mrf.mxu0
      %v1289 = vadd.f32 0.0, %v1288
      %1290 = vdwg.mxu0
      %1291 = vmatpush.bf16.msra.mxu0 %v1079
      %1292 = vmatpush.bf16.msra.mxu0 %v1071
      %1293 = vmatpush.bf16.msra.mxu0 %v1063
      %1294 = vmatpush.bf16.msra.mxu0 %v1055
      %1295 = vmatpush.bf16.msra.mxu0 %v1047
      %1296 = vmatpush.bf16.msra.mxu0 %v1039
      %1297 = vmatpush.bf16.msra.mxu0 %v1031
      %1298 = vmatpush.bf16.msra.mxu0 %v1023
      %1299 = vmatmul.bf16.gmra.mxu0 %v822
      %v1300 = vpop.f32.mrf.mxu0
      %v1301 = vadd.f32 0.0, %v1300
      %v1302 = vpop.f32.mrf.mxu0
      %v1303 = vadd.f32 0.0, %v1302
      %1304 = vmatmul.bf16.gmra.mxu0 %v823
      %v1305 = vpop.f32.mrf.mxu0
      %v1306 = vadd.f32 0.0, %v1305
      %v1307 = vpop.f32.mrf.mxu0
      %v1308 = vadd.f32 0.0, %v1307
      %1309 = vmatmul.bf16.gmra.mxu0 %v824
      %v1310 = vpop.f32.mrf.mxu0
      %v1311 = vadd.f32 0.0, %v1310
      %v1312 = vpop.f32.mrf.mxu0
      %v1313 = vadd.f32 0.0, %v1312
      %1314 = vmatmul.bf16.gmra.mxu0 %v825
      %v1315 = vpop.f32.mrf.mxu0
      %v1316 = vadd.f32 0.0, %v1315
      %v1317 = vpop.f32.mrf.mxu0
      %v1318 = vadd.f32 0.0, %v1317
      %1319 = vdwg.mxu0
      %1320 = vmatpush.bf16.msra.mxu0 %v1080
      %1321 = vmatpush.bf16.msra.mxu0 %v1072
      %1322 = vmatpush.bf16.msra.mxu0 %v1064
      %1323 = vmatpush.bf16.msra.mxu0 %v1056
      %1324 = vmatpush.bf16.msra.mxu0 %v1048
      %1325 = vmatpush.bf16.msra.mxu0 %v1040
      %1326 = vmatpush.bf16.msra.mxu0 %v1032
      %1327 = vmatpush.bf16.msra.mxu0 %v1024
      %1328 = vmatmul.bf16.gmra.mxu0 %v822
      %v1329 = vpop.f32.mrf.mxu0
      %v1330 = vadd.f32 0.0, %v1329
      %v1331 = vpop.f32.mrf.mxu0
      %v1332 = vadd.f32 0.0, %v1331
      %1333 = vmatmul.bf16.gmra.mxu0 %v823
      %v1334 = vpop.f32.mrf.mxu0
      %v1335 = vadd.f32 0.0, %v1334
      %v1336 = vpop.f32.mrf.mxu0
      %v1337 = vadd.f32 0.0, %v1336
      %1338 = vmatmul.bf16.gmra.mxu0 %v824
      %v1339 = vpop.f32.mrf.mxu0
      %v1340 = vadd.f32 0.0, %v1339
      %v1341 = vpop.f32.mrf.mxu0
      %v1342 = vadd.f32 0.0, %v1341
      %1343 = vmatmul.bf16.gmra.mxu0 %v825
      %v1344 = vpop.f32.mrf.mxu0
      %v1345 = vadd.f32 0.0, %v1344
      %v1346 = vpop.f32.mrf.mxu0
      %v1347 = vadd.f32 0.0, %v1346
      %1348 = vdwg.mxu0
      %1349 = vmatpush.bf16.msra.mxu0 %v1081
      %1350 = vmatpush.bf16.msra.mxu0 %v1073
      %1351 = vmatpush.bf16.msra.mxu0 %v1065
      %1352 = vmatpush.bf16.msra.mxu0 %v1057
      %1353 = vmatpush.bf16.msra.mxu0 %v1049
      %1354 = vmatpush.bf16.msra.mxu0 %v1041
      %1355 = vmatpush.bf16.msra.mxu0 %v1033
      %1356 = vmatpush.bf16.msra.mxu0 %v1025
      %1357 = vmatmul.bf16.gmra.mxu0 %v822
      %v1358 = vpop.f32.mrf.mxu0
      %v1359 = vadd.f32 0.0, %v1358
      %v1360 = vpop.f32.mrf.mxu0
      %v1361 = vadd.f32 0.0, %v1360
      %1362 = vmatmul.bf16.gmra.mxu0 %v823
      %v1363 = vpop.f32.mrf.mxu0
      %v1364 = vadd.f32 0.0, %v1363
      %v1365 = vpop.f32.mrf.mxu0
      %v1366 = vadd.f32 0.0, %v1365
      %1367 = vmatmul.bf16.gmra.mxu0 %v824
      %v1368 = vpop.f32.mrf.mxu0
      %v1369 = vadd.f32 0.0, %v1368
      %v1370 = vpop.f32.mrf.mxu0
      %v1371 = vadd.f32 0.0, %v1370
      %1372 = vmatmul.bf16.gmra.mxu0 %v825
      %v1373 = vpop.f32.mrf.mxu0
      %v1374 = vadd.f32 0.0, %v1373
      %v1375 = vpop.f32.mrf.mxu0
      %v1376 = vadd.f32 0.0, %v1375
      %1377 = vdwg.mxu0
      %p1378 = scmp.eq.s32.totalorder %s28, 0
      %p1379 = scmp.eq.s32.totalorder %s29, 0
      %p1380 = pnand %p1378, %p1379
      %p1381 = pneg %p1380
      // Predicated region
      $region53: #{pointnetfeat_forward.9} parent=51 // pred_check
        _
      $region54: #{pointnetfeat_forward.9} parent=51 // pred_check_branch
        %1383 = sbr.rel (%p1380) target = $region56
      $region55: #{pointnetfeat_forward.9} parent=51 // pred_region
        %v1384 = vadd.f32 %v1156, %v1158
        %v1385 = vadd.f32 %v1384, %v1161
        %v1386 = vadd.f32 %v1385, %v1163
        %v1387 = vadd.f32 %v1386, %v1166
        %v1388 = vadd.f32 %v1387, %v1168
        %v1389 = vadd.f32 %v1388, %v1171
        %v1390 = vadd.f32 %v1389, %v1173
        %v1391 = vrot.slane %v1390, 4
        %v1392 = vadd.f32 %v1390, %v1391
        %v1393 = vrot.slane %v1392, 2
        %v1394 = vadd.f32 %v1392, %v1393
        %v1395 = vrot.slane %v1394, 1
        %v1396 = vadd.f32 %v1394, %v1395
        %v1397 = vadd.f32 %v1185, %v1187
        %v1398 = vadd.f32 %v1397, %v1190
        %v1399 = vadd.f32 %v1398, %v1192
        %v1400 = vadd.f32 %v1399, %v1195
        %v1401 = vadd.f32 %v1400, %v1197
        %v1402 = vadd.f32 %v1401, %v1200
        %v1403 = vadd.f32 %v1402, %v1202
        %v1404 = vrot.slane %v1403, 4
        %v1405 = vadd.f32 %v1403, %v1404
        %v1406 = vrot.slane %v1405, 2
        %v1407 = vadd.f32 %v1405, %v1406
        %v1408 = vrot.slane %v1407, 1
        %v1409 = vadd.f32 %v1407, %v1408
        %v1410 = vadd.f32 %v1214, %v1216
        %v1411 = vadd.f32 %v1410, %v1219
        %v1412 = vadd.f32 %v1411, %v1221
        %v1413 = vadd.f32 %v1412, %v1224
        %v1414 = vadd.f32 %v1413, %v1226
        %v1415 = vadd.f32 %v1414, %v1229
        %v1416 = vadd.f32 %v1415, %v1231
        %v1417 = vrot.slane %v1416, 4
        %v1418 = vadd.f32 %v1416, %v1417
        %v1419 = vrot.slane %v1418, 2
        %v1420 = vadd.f32 %v1418, %v1419
        %v1421 = vrot.slane %v1420, 1
        %v1422 = vadd.f32 %v1420, %v1421
        %v1423 = vadd.f32 %v1243, %v1245
        %v1424 = vadd.f32 %v1423, %v1248
        %v1425 = vadd.f32 %v1424, %v1250
        %v1426 = vadd.f32 %v1425, %v1253
        %v1427 = vadd.f32 %v1426, %v1255
        %v1428 = vadd.f32 %v1427, %v1258
        %v1429 = vadd.f32 %v1428, %v1260
        %v1430 = vrot.slane %v1429, 4
        %v1431 = vadd.f32 %v1429, %v1430
        %v1432 = vrot.slane %v1431, 2
        %v1433 = vadd.f32 %v1431, %v1432
        %v1434 = vrot.slane %v1433, 1
        %v1435 = vadd.f32 %v1433, %v1434
        %v1436 = vadd.f32 %v1272, %v1274
        %v1437 = vadd.f32 %v1436, %v1277
        %v1438 = vadd.f32 %v1437, %v1279
        %v1439 = vadd.f32 %v1438, %v1282
        %v1440 = vadd.f32 %v1439, %v1284
        %v1441 = vadd.f32 %v1440, %v1287
        %v1442 = vadd.f32 %v1441, %v1289
        %v1443 = vrot.slane %v1442, 4
        %v1444 = vadd.f32 %v1442, %v1443
        %v1445 = vrot.slane %v1444, 2
        %v1446 = vadd.f32 %v1444, %v1445
        %v1447 = vrot.slane %v1446, 1
        %v1448 = vadd.f32 %v1446, %v1447
        %v1449 = vadd.f32 %v1301, %v1303
        %v1450 = vadd.f32 %v1449, %v1306
        %v1451 = vadd.f32 %v1450, %v1308
        %v1452 = vadd.f32 %v1451, %v1311
        %v1453 = vadd.f32 %v1452, %v1313
        %v1454 = vadd.f32 %v1453, %v1316
        %v1455 = vadd.f32 %v1454, %v1318
        %v1456 = vrot.slane %v1455, 4
        %v1457 = vadd.f32 %v1455, %v1456
        %v1458 = vrot.slane %v1457, 2
        %v1459 = vadd.f32 %v1457, %v1458
        %v1460 = vrot.slane %v1459, 1
        %v1461 = vadd.f32 %v1459, %v1460
        %v1462 = vadd.f32 %v1330, %v1332
        %v1463 = vadd.f32 %v1462, %v1335
        %v1464 = vadd.f32 %v1463, %v1337
        %v1465 = vadd.f32 %v1464, %v1340
        %v1466 = vadd.f32 %v1465, %v1342
        %v1467 = vadd.f32 %v1466, %v1345
        %v1468 = vadd.f32 %v1467, %v1347
        %v1469 = vrot.slane %v1468, 4
        %v1470 = vadd.f32 %v1468, %v1469
        %v1471 = vrot.slane %v1470, 2
        %v1472 = vadd.f32 %v1470, %v1471
        %v1473 = vrot.slane %v1472, 1
        %v1474 = vadd.f32 %v1472, %v1473
        %v1475 = vadd.f32 %v1359, %v1361
        %v1476 = vadd.f32 %v1475, %v1364
        %v1477 = vadd.f32 %v1476, %v1366
        %v1478 = vadd.f32 %v1477, %v1369
        %v1479 = vadd.f32 %v1478, %v1371
        %v1480 = vadd.f32 %v1479, %v1374
        %v1481 = vadd.f32 %v1480, %v1376
        %v1482 = vrot.slane %v1481, 4
        %v1483 = vadd.f32 %v1481, %v1482
        %v1484 = vrot.slane %v1483, 2
        %v1485 = vadd.f32 %v1483, %v1484
        %v1486 = vrot.slane %v1485, 1
        %v1487 = vadd.f32 %v1485, %v1486
        %v1488 = vmul.f32 %v1396, 0.015625
        %v1489 = vmul.f32 %v1409, 0.015625
        %v1490 = vmul.f32 %v1422, 0.015625
        %v1491 = vmul.f32 %v1435, 0.015625
        %v1492 = vmul.f32 %v1448, 0.015625
        %v1493 = vmul.f32 %v1461, 0.015625
        %v1494 = vmul.f32 %v1474, 0.015625
        %v1495 = vmul.f32 %v1487, 0.015625
        %v1504 = vrot.slane %v1489, 7
        %v1505 = vrot.slane %v1490, 6
        %v1506 = vrot.slane %v1491, 5
        %v1507 = vrot.slane %v1492, 4
        %v1508 = vrot.slane %v1493, 3
        %v1509 = vrot.slane %v1494, 2
        %v1510 = vrot.slane %v1495, 1
        %vm1511 = vcmask 1040384
        %v1512 = vsel %vm1511, %v1488, %v1504
        %vm1513 = vcmask 1042434
        %v1514 = vsel %vm1513, %v1505, %v1506
        %vm1515 = vcmask 1041408
        %v1516 = vsel %vm1515, %v1512, %v1514
        %vm1517 = vcmask 1044484
        %v1518 = vsel %vm1517, %v1507, %v1508
        %vm1519 = vcmask 1046534
        %v1520 = vsel %vm1519, %v1509, %v1510
        %vm1521 = vcmask 1045508
        %v1522 = vsel %vm1521, %v1518, %v1520
        %vm1523 = vcmask 1043456
        %v1524 = vsel %vm1523, %v1516, %v1522
        %1526 = vst [vmem:[%s8] sm:$0xff] %v1524
        %1527 = vst [vmem:[%s9] sm:$0xff] 0.0
        %1528 = vst [vmem:[%s10] sm:$0xff] 0.0
      $region56: #{pointnetfeat_forward.9} parent=51 // pred_fallthru
        _
      %v1529 = vld [vmem:[%s8] sm:$0xff]
      %v1531 = vperm.slane %v1529, 0
      %v1532 = vperm.slane %v1529, 1
      %v1533 = vperm.slane %v1529, 2
      %v1534 = vperm.slane %v1529, 3
      %v1535 = vperm.slane %v1529, 4
      %v1536 = vperm.slane %v1529, 5
      %v1537 = vperm.slane %v1529, 6
      %v1538 = vperm.slane %v1529, 7
      %v1547 = vsub.f32 %v1156, %v1531
      %v1548 = vsub.f32 %v1185, %v1532
      %v1549 = vsub.f32 %v1214, %v1533
      %v1550 = vsub.f32 %v1243, %v1534
      %v1551 = vsub.f32 %v1272, %v1535
      %v1552 = vsub.f32 %v1301, %v1536
      %v1553 = vsub.f32 %v1330, %v1537
      %v1554 = vsub.f32 %v1359, %v1538
      %v1555 = vsub.f32 %v1158, %v1531
      %v1556 = vsub.f32 %v1187, %v1532
      %v1557 = vsub.f32 %v1216, %v1533
      %v1558 = vsub.f32 %v1245, %v1534
      %v1559 = vsub.f32 %v1274, %v1535
      %v1560 = vsub.f32 %v1303, %v1536
      %v1561 = vsub.f32 %v1332, %v1537
      %v1562 = vsub.f32 %v1361, %v1538
      %v1563 = vsub.f32 %v1161, %v1531
      %v1564 = vsub.f32 %v1190, %v1532
      %v1565 = vsub.f32 %v1219, %v1533
      %v1566 = vsub.f32 %v1248, %v1534
      %v1567 = vsub.f32 %v1277, %v1535
      %v1568 = vsub.f32 %v1306, %v1536
      %v1569 = vsub.f32 %v1335, %v1537
      %v1570 = vsub.f32 %v1364, %v1538
      %v1571 = vsub.f32 %v1163, %v1531
      %v1572 = vsub.f32 %v1192, %v1532
      %v1573 = vsub.f32 %v1221, %v1533
      %v1574 = vsub.f32 %v1250, %v1534
      %v1575 = vsub.f32 %v1279, %v1535
      %v1576 = vsub.f32 %v1308, %v1536
      %v1577 = vsub.f32 %v1337, %v1537
      %v1578 = vsub.f32 %v1366, %v1538
      %v1579 = vsub.f32 %v1166, %v1531
      %v1580 = vsub.f32 %v1195, %v1532
      %v1581 = vsub.f32 %v1224, %v1533
      %v1582 = vsub.f32 %v1253, %v1534
      %v1583 = vsub.f32 %v1282, %v1535
      %v1584 = vsub.f32 %v1311, %v1536
      %v1585 = vsub.f32 %v1340, %v1537
      %v1586 = vsub.f32 %v1369, %v1538
      %v1587 = vsub.f32 %v1168, %v1531
      %v1588 = vsub.f32 %v1197, %v1532
      %v1589 = vsub.f32 %v1226, %v1533
      %v1590 = vsub.f32 %v1255, %v1534
      %v1591 = vsub.f32 %v1284, %v1535
      %v1592 = vsub.f32 %v1313, %v1536
      %v1593 = vsub.f32 %v1342, %v1537
      %v1594 = vsub.f32 %v1371, %v1538
      %v1595 = vsub.f32 %v1171, %v1531
      %v1596 = vsub.f32 %v1200, %v1532
      %v1597 = vsub.f32 %v1229, %v1533
      %v1598 = vsub.f32 %v1258, %v1534
      %v1599 = vsub.f32 %v1287, %v1535
      %v1600 = vsub.f32 %v1316, %v1536
      %v1601 = vsub.f32 %v1345, %v1537
      %v1602 = vsub.f32 %v1374, %v1538
      %v1603 = vsub.f32 %v1173, %v1531
      %v1604 = vsub.f32 %v1202, %v1532
      %v1605 = vsub.f32 %v1231, %v1533
      %v1606 = vsub.f32 %v1260, %v1534
      %v1607 = vsub.f32 %v1289, %v1535
      %v1608 = vsub.f32 %v1318, %v1536
      %v1609 = vsub.f32 %v1347, %v1537
      %v1610 = vsub.f32 %v1376, %v1538
      %v1611 = vld [vmem:[%s9] sm:$0xff]
      %v1612 = vadd.f32 %v1547, %v1555
      %v1613 = vadd.f32 %v1612, %v1563
      %v1614 = vadd.f32 %v1613, %v1571
      %v1615 = vadd.f32 %v1614, %v1579
      %v1616 = vadd.f32 %v1615, %v1587
      %v1617 = vadd.f32 %v1616, %v1595
      %v1618 = vadd.f32 %v1617, %v1603
      %v1619 = vrot.slane %v1618, 4
      %v1620 = vadd.f32 %v1618, %v1619
      %v1621 = vrot.slane %v1620, 2
      %v1622 = vadd.f32 %v1620, %v1621
      %v1623 = vrot.slane %v1622, 1
      %v1624 = vadd.f32 %v1622, %v1623
      %v1625 = vadd.f32 %v1548, %v1556
      %v1626 = vadd.f32 %v1625, %v1564
      %v1627 = vadd.f32 %v1626, %v1572
      %v1628 = vadd.f32 %v1627, %v1580
      %v1629 = vadd.f32 %v1628, %v1588
      %v1630 = vadd.f32 %v1629, %v1596
      %v1631 = vadd.f32 %v1630, %v1604
      %v1632 = vrot.slane %v1631, 4
      %v1633 = vadd.f32 %v1631, %v1632
      %v1634 = vrot.slane %v1633, 2
      %v1635 = vadd.f32 %v1633, %v1634
      %v1636 = vrot.slane %v1635, 1
      %v1637 = vadd.f32 %v1635, %v1636
      %v1638 = vadd.f32 %v1549, %v1557
      %v1639 = vadd.f32 %v1638, %v1565
      %v1640 = vadd.f32 %v1639, %v1573
      %v1641 = vadd.f32 %v1640, %v1581
      %v1642 = vadd.f32 %v1641, %v1589
      %v1643 = vadd.f32 %v1642, %v1597
      %v1644 = vadd.f32 %v1643, %v1605
      %v1645 = vrot.slane %v1644, 4
      %v1646 = vadd.f32 %v1644, %v1645
      %v1647 = vrot.slane %v1646, 2
      %v1648 = vadd.f32 %v1646, %v1647
      %v1649 = vrot.slane %v1648, 1
      %v1650 = vadd.f32 %v1648, %v1649
      %v1651 = vadd.f32 %v1550, %v1558
      %v1652 = vadd.f32 %v1651, %v1566
      %v1653 = vadd.f32 %v1652, %v1574
      %v1654 = vadd.f32 %v1653, %v1582
      %v1655 = vadd.f32 %v1654, %v1590
      %v1656 = vadd.f32 %v1655, %v1598
      %v1657 = vadd.f32 %v1656, %v1606
      %v1658 = vrot.slane %v1657, 4
      %v1659 = vadd.f32 %v1657, %v1658
      %v1660 = vrot.slane %v1659, 2
      %v1661 = vadd.f32 %v1659, %v1660
      %v1662 = vrot.slane %v1661, 1
      %v1663 = vadd.f32 %v1661, %v1662
      %v1664 = vadd.f32 %v1551, %v1559
      %v1665 = vadd.f32 %v1664, %v1567
      %v1666 = vadd.f32 %v1665, %v1575
      %v1667 = vadd.f32 %v1666, %v1583
      %v1668 = vadd.f32 %v1667, %v1591
      %v1669 = vadd.f32 %v1668, %v1599
      %v1670 = vadd.f32 %v1669, %v1607
      %v1671 = vrot.slane %v1670, 4
      %v1672 = vadd.f32 %v1670, %v1671
      %v1673 = vrot.slane %v1672, 2
      %v1674 = vadd.f32 %v1672, %v1673
      %v1675 = vrot.slane %v1674, 1
      %v1676 = vadd.f32 %v1674, %v1675
      %v1677 = vadd.f32 %v1552, %v1560
      %v1678 = vadd.f32 %v1677, %v1568
      %v1679 = vadd.f32 %v1678, %v1576
      %v1680 = vadd.f32 %v1679, %v1584
      %v1681 = vadd.f32 %v1680, %v1592
      %v1682 = vadd.f32 %v1681, %v1600
      %v1683 = vadd.f32 %v1682, %v1608
      %v1684 = vrot.slane %v1683, 4
      %v1685 = vadd.f32 %v1683, %v1684
      %v1686 = vrot.slane %v1685, 2
      %v1687 = vadd.f32 %v1685, %v1686
      %v1688 = vrot.slane %v1687, 1
      %v1689 = vadd.f32 %v1687, %v1688
      %v1690 = vadd.f32 %v1553, %v1561
      %v1691 = vadd.f32 %v1690, %v1569
      %v1692 = vadd.f32 %v1691, %v1577
      %v1693 = vadd.f32 %v1692, %v1585
      %v1694 = vadd.f32 %v1693, %v1593
      %v1695 = vadd.f32 %v1694, %v1601
      %v1696 = vadd.f32 %v1695, %v1609
      %v1697 = vrot.slane %v1696, 4
      %v1698 = vadd.f32 %v1696, %v1697
      %v1699 = vrot.slane %v1698, 2
      %v1700 = vadd.f32 %v1698, %v1699
      %v1701 = vrot.slane %v1700, 1
      %v1702 = vadd.f32 %v1700, %v1701
      %v1703 = vadd.f32 %v1554, %v1562
      %v1704 = vadd.f32 %v1703, %v1570
      %v1705 = vadd.f32 %v1704, %v1578
      %v1706 = vadd.f32 %v1705, %v1586
      %v1707 = vadd.f32 %v1706, %v1594
      %v1708 = vadd.f32 %v1707, %v1602
      %v1709 = vadd.f32 %v1708, %v1610
      %v1710 = vrot.slane %v1709, 4
      %v1711 = vadd.f32 %v1709, %v1710
      %v1712 = vrot.slane %v1711, 2
      %v1713 = vadd.f32 %v1711, %v1712
      %v1714 = vrot.slane %v1713, 1
      %v1715 = vadd.f32 %v1713, %v1714
      %v1724 = vrot.slane %v1637, 7
      %v1725 = vrot.slane %v1650, 6
      %v1726 = vrot.slane %v1663, 5
      %v1727 = vrot.slane %v1676, 4
      %v1728 = vrot.slane %v1689, 3
      %v1729 = vrot.slane %v1702, 2
      %v1730 = vrot.slane %v1715, 1
      %vm1731 = vcmask 1040384
      %v1732 = vsel %vm1731, %v1624, %v1724
      %vm1733 = vcmask 1042434
      %v1734 = vsel %vm1733, %v1725, %v1726
      %vm1735 = vcmask 1041408
      %v1736 = vsel %vm1735, %v1732, %v1734
      %vm1737 = vcmask 1044484
      %v1738 = vsel %vm1737, %v1727, %v1728
      %vm1739 = vcmask 1046534
      %v1740 = vsel %vm1739, %v1729, %v1730
      %vm1741 = vcmask 1045508
      %v1742 = vsel %vm1741, %v1738, %v1740
      %vm1743 = vcmask 1043456
      %v1744 = vsel %vm1743, %v1736, %v1742
      %v1746 = vadd.f32 %v1611, %v1744
      %1747 = vst [vmem:[%s9] sm:$0xff] %v1746
      %v1748 = vld [vmem:[%s10] sm:$0xff]
      %v1749 = vmul.f32 %v1547, %v1547
      %v1750 = vmul.f32 %v1548, %v1548
      %v1751 = vmul.f32 %v1549, %v1549
      %v1752 = vmul.f32 %v1550, %v1550
      %v1753 = vmul.f32 %v1551, %v1551
      %v1754 = vmul.f32 %v1552, %v1552
      %v1755 = vmul.f32 %v1553, %v1553
      %v1756 = vmul.f32 %v1554, %v1554
      %v1757 = vmul.f32 %v1555, %v1555
      %v1758 = vmul.f32 %v1556, %v1556
      %v1759 = vmul.f32 %v1557, %v1557
      %v1760 = vmul.f32 %v1558, %v1558
      %v1761 = vmul.f32 %v1559, %v1559
      %v1762 = vmul.f32 %v1560, %v1560
      %v1763 = vmul.f32 %v1561, %v1561
      %v1764 = vmul.f32 %v1562, %v1562
      %v1765 = vmul.f32 %v1563, %v1563
      %v1766 = vmul.f32 %v1564, %v1564
      %v1767 = vmul.f32 %v1565, %v1565
      %v1768 = vmul.f32 %v1566, %v1566
      %v1769 = vmul.f32 %v1567, %v1567
      %v1770 = vmul.f32 %v1568, %v1568
      %v1771 = vmul.f32 %v1569, %v1569
      %v1772 = vmul.f32 %v1570, %v1570
      %v1773 = vmul.f32 %v1571, %v1571
      %v1774 = vmul.f32 %v1572, %v1572
      %v1775 = vmul.f32 %v1573, %v1573
      %v1776 = vmul.f32 %v1574, %v1574
      %v1777 = vmul.f32 %v1575, %v1575
      %v1778 = vmul.f32 %v1576, %v1576
      %v1779 = vmul.f32 %v1577, %v1577
      %v1780 = vmul.f32 %v1578, %v1578
      %v1781 = vmul.f32 %v1579, %v1579
      %v1782 = vmul.f32 %v1580, %v1580
      %v1783 = vmul.f32 %v1581, %v1581
      %v1784 = vmul.f32 %v1582, %v1582
      %v1785 = vmul.f32 %v1583, %v1583
      %v1786 = vmul.f32 %v1584, %v1584
      %v1787 = vmul.f32 %v1585, %v1585
      %v1788 = vmul.f32 %v1586, %v1586
      %v1789 = vmul.f32 %v1587, %v1587
      %v1790 = vmul.f32 %v1588, %v1588
      %v1791 = vmul.f32 %v1589, %v1589
      %v1792 = vmul.f32 %v1590, %v1590
      %v1793 = vmul.f32 %v1591, %v1591
      %v1794 = vmul.f32 %v1592, %v1592
      %v1795 = vmul.f32 %v1593, %v1593
      %v1796 = vmul.f32 %v1594, %v1594
      %v1797 = vmul.f32 %v1595, %v1595
      %v1798 = vmul.f32 %v1596, %v1596
      %v1799 = vmul.f32 %v1597, %v1597
      %v1800 = vmul.f32 %v1598, %v1598
      %v1801 = vmul.f32 %v1599, %v1599
      %v1802 = vmul.f32 %v1600, %v1600
      %v1803 = vmul.f32 %v1601, %v1601
      %v1804 = vmul.f32 %v1602, %v1602
      %v1805 = vmul.f32 %v1603, %v1603
      %v1806 = vmul.f32 %v1604, %v1604
      %v1807 = vmul.f32 %v1605, %v1605
      %v1808 = vmul.f32 %v1606, %v1606
      %v1809 = vmul.f32 %v1607, %v1607
      %v1810 = vmul.f32 %v1608, %v1608
      %v1811 = vmul.f32 %v1609, %v1609
      %v1812 = vmul.f32 %v1610, %v1610
      %v1813 = vadd.f32 %v1749, %v1757
      %v1814 = vadd.f32 %v1813, %v1765
      %v1815 = vadd.f32 %v1814, %v1773
      %v1816 = vadd.f32 %v1815, %v1781
      %v1817 = vadd.f32 %v1816, %v1789
      %v1818 = vadd.f32 %v1817, %v1797
      %v1819 = vadd.f32 %v1818, %v1805
      %v1820 = vrot.slane %v1819, 4
      %v1821 = vadd.f32 %v1819, %v1820
      %v1822 = vrot.slane %v1821, 2
      %v1823 = vadd.f32 %v1821, %v1822
      %v1824 = vrot.slane %v1823, 1
      %v1825 = vadd.f32 %v1823, %v1824
      %v1826 = vadd.f32 %v1750, %v1758
      %v1827 = vadd.f32 %v1826, %v1766
      %v1828 = vadd.f32 %v1827, %v1774
      %v1829 = vadd.f32 %v1828, %v1782
      %v1830 = vadd.f32 %v1829, %v1790
      %v1831 = vadd.f32 %v1830, %v1798
      %v1832 = vadd.f32 %v1831, %v1806
      %v1833 = vrot.slane %v1832, 4
      %v1834 = vadd.f32 %v1832, %v1833
      %v1835 = vrot.slane %v1834, 2
      %v1836 = vadd.f32 %v1834, %v1835
      %v1837 = vrot.slane %v1836, 1
      %v1838 = vadd.f32 %v1836, %v1837
      %v1839 = vadd.f32 %v1751, %v1759
      %v1840 = vadd.f32 %v1839, %v1767
      %v1841 = vadd.f32 %v1840, %v1775
      %v1842 = vadd.f32 %v1841, %v1783
      %v1843 = vadd.f32 %v1842, %v1791
      %v1844 = vadd.f32 %v1843, %v1799
      %v1845 = vadd.f32 %v1844, %v1807
      %v1846 = vrot.slane %v1845, 4
      %v1847 = vadd.f32 %v1845, %v1846
      %v1848 = vrot.slane %v1847, 2
      %v1849 = vadd.f32 %v1847, %v1848
      %v1850 = vrot.slane %v1849, 1
      %v1851 = vadd.f32 %v1849, %v1850
      %v1852 = vadd.f32 %v1752, %v1760
      %v1853 = vadd.f32 %v1852, %v1768
      %v1854 = vadd.f32 %v1853, %v1776
      %v1855 = vadd.f32 %v1854, %v1784
      %v1856 = vadd.f32 %v1855, %v1792
      %v1857 = vadd.f32 %v1856, %v1800
      %v1858 = vadd.f32 %v1857, %v1808
      %v1859 = vrot.slane %v1858, 4
      %v1860 = vadd.f32 %v1858, %v1859
      %v1861 = vrot.slane %v1860, 2
      %v1862 = vadd.f32 %v1860, %v1861
      %v1863 = vrot.slane %v1862, 1
      %v1864 = vadd.f32 %v1862, %v1863
      %v1865 = vadd.f32 %v1753, %v1761
      %v1866 = vadd.f32 %v1865, %v1769
      %v1867 = vadd.f32 %v1866, %v1777
      %v1868 = vadd.f32 %v1867, %v1785
      %v1869 = vadd.f32 %v1868, %v1793
      %v1870 = vadd.f32 %v1869, %v1801
      %v1871 = vadd.f32 %v1870, %v1809
      %v1872 = vrot.slane %v1871, 4
      %v1873 = vadd.f32 %v1871, %v1872
      %v1874 = vrot.slane %v1873, 2
      %v1875 = vadd.f32 %v1873, %v1874
      %v1876 = vrot.slane %v1875, 1
      %v1877 = vadd.f32 %v1875, %v1876
      %v1878 = vadd.f32 %v1754, %v1762
      %v1879 = vadd.f32 %v1878, %v1770
      %v1880 = vadd.f32 %v1879, %v1778
      %v1881 = vadd.f32 %v1880, %v1786
      %v1882 = vadd.f32 %v1881, %v1794
      %v1883 = vadd.f32 %v1882, %v1802
      %v1884 = vadd.f32 %v1883, %v1810
      %v1885 = vrot.slane %v1884, 4
      %v1886 = vadd.f32 %v1884, %v1885
      %v1887 = vrot.slane %v1886, 2
      %v1888 = vadd.f32 %v1886, %v1887
      %v1889 = vrot.slane %v1888, 1
      %v1890 = vadd.f32 %v1888, %v1889
      %v1891 = vadd.f32 %v1755, %v1763
      %v1892 = vadd.f32 %v1891, %v1771
      %v1893 = vadd.f32 %v1892, %v1779
      %v1894 = vadd.f32 %v1893, %v1787
      %v1895 = vadd.f32 %v1894, %v1795
      %v1896 = vadd.f32 %v1895, %v1803
      %v1897 = vadd.f32 %v1896, %v1811
      %v1898 = vrot.slane %v1897, 4
      %v1899 = vadd.f32 %v1897, %v1898
      %v1900 = vrot.slane %v1899, 2
      %v1901 = vadd.f32 %v1899, %v1900
      %v1902 = vrot.slane %v1901, 1
      %v1903 = vadd.f32 %v1901, %v1902
      %v1904 = vadd.f32 %v1756, %v1764
      %v1905 = vadd.f32 %v1904, %v1772
      %v1906 = vadd.f32 %v1905, %v1780
      %v1907 = vadd.f32 %v1906, %v1788
      %v1908 = vadd.f32 %v1907, %v1796
      %v1909 = vadd.f32 %v1908, %v1804
      %v1910 = vadd.f32 %v1909, %v1812
      %v1911 = vrot.slane %v1910, 4
      %v1912 = vadd.f32 %v1910, %v1911
      %v1913 = vrot.slane %v1912, 2
      %v1914 = vadd.f32 %v1912, %v1913
      %v1915 = vrot.slane %v1914, 1
      %v1916 = vadd.f32 %v1914, %v1915
      %v1925 = vrot.slane %v1838, 7
      %v1926 = vrot.slane %v1851, 6
      %v1927 = vrot.slane %v1864, 5
      %v1928 = vrot.slane %v1877, 4
      %v1929 = vrot.slane %v1890, 3
      %v1930 = vrot.slane %v1903, 2
      %v1931 = vrot.slane %v1916, 1
      %v1932 = vsel %vm1731, %v1825, %v1925
      %v1933 = vsel %vm1733, %v1926, %v1927
      %v1934 = vsel %vm1735, %v1932, %v1933
      %v1935 = vsel %vm1737, %v1928, %v1929
      %v1936 = vsel %vm1739, %v1930, %v1931
      %v1937 = vsel %vm1741, %v1935, %v1936
      %v1938 = vsel %vm1743, %v1934, %v1937
      %v1940 = vadd.f32 %v1748, %v1938
      %1941 = vst [vmem:[%s10] sm:$0xff] %v1940
      %v1942 = vmax.f32 %v1156, %v1158
      %v1943 = vmax.f32 %v1942, %v1161
      %v1944 = vmax.f32 %v1943, %v1163
      %v1945 = vmax.f32 %v1944, %v1166
      %v1946 = vmax.f32 %v1945, %v1168
      %v1947 = vmax.f32 %v1946, %v1171
      %v1948 = vmax.f32 %v1947, %v1173
      %v1949 = vrot.slane %v1948, 4
      %v1950 = vmax.f32 %v1948, %v1949
      %v1951 = vrot.slane %v1950, 2
      %v1952 = vmax.f32 %v1950, %v1951
      %v1953 = vrot.slane %v1952, 1
      %v1954 = vmax.f32 %v1952, %v1953
      %v1955 = vmax.f32 %v1185, %v1187
      %v1956 = vmax.f32 %v1955, %v1190
      %v1957 = vmax.f32 %v1956, %v1192
      %v1958 = vmax.f32 %v1957, %v1195
      %v1959 = vmax.f32 %v1958, %v1197
      %v1960 = vmax.f32 %v1959, %v1200
      %v1961 = vmax.f32 %v1960, %v1202
      %v1962 = vrot.slane %v1961, 4
      %v1963 = vmax.f32 %v1961, %v1962
      %v1964 = vrot.slane %v1963, 2
      %v1965 = vmax.f32 %v1963, %v1964
      %v1966 = vrot.slane %v1965, 1
      %v1967 = vmax.f32 %v1965, %v1966
      %v1968 = vmax.f32 %v1214, %v1216
      %v1969 = vmax.f32 %v1968, %v1219
      %v1970 = vmax.f32 %v1969, %v1221
      %v1971 = vmax.f32 %v1970, %v1224
      %v1972 = vmax.f32 %v1971, %v1226
      %v1973 = vmax.f32 %v1972, %v1229
      %v1974 = vmax.f32 %v1973, %v1231
      %v1975 = vrot.slane %v1974, 4
      %v1976 = vmax.f32 %v1974, %v1975
      %v1977 = vrot.slane %v1976, 2
      %v1978 = vmax.f32 %v1976, %v1977
      %v1979 = vrot.slane %v1978, 1
      %v1980 = vmax.f32 %v1978, %v1979
      %v1981 = vmax.f32 %v1243, %v1245
      %v1982 = vmax.f32 %v1981, %v1248
      %v1983 = vmax.f32 %v1982, %v1250
      %v1984 = vmax.f32 %v1983, %v1253
      %v1985 = vmax.f32 %v1984, %v1255
      %v1986 = vmax.f32 %v1985, %v1258
      %v1987 = vmax.f32 %v1986, %v1260
      %v1988 = vrot.slane %v1987, 4
      %v1989 = vmax.f32 %v1987, %v1988
      %v1990 = vrot.slane %v1989, 2
      %v1991 = vmax.f32 %v1989, %v1990
      %v1992 = vrot.slane %v1991, 1
      %v1993 = vmax.f32 %v1991, %v1992
      %v1994 = vmax.f32 %v1272, %v1274
      %v1995 = vmax.f32 %v1994, %v1277
      %v1996 = vmax.f32 %v1995, %v1279
      %v1997 = vmax.f32 %v1996, %v1282
      %v1998 = vmax.f32 %v1997, %v1284
      %v1999 = vmax.f32 %v1998, %v1287
      %v2000 = vmax.f32 %v1999, %v1289
      %v2001 = vrot.slane %v2000, 4
      %v2002 = vmax.f32 %v2000, %v2001
      %v2003 = vrot.slane %v2002, 2
      %v2004 = vmax.f32 %v2002, %v2003
      %v2005 = vrot.slane %v2004, 1
      %v2006 = vmax.f32 %v2004, %v2005
      %v2007 = vmax.f32 %v1301, %v1303
      %v2008 = vmax.f32 %v2007, %v1306
      %v2009 = vmax.f32 %v2008, %v1308
      %v2010 = vmax.f32 %v2009, %v1311
      %v2011 = vmax.f32 %v2010, %v1313
      %v2012 = vmax.f32 %v2011, %v1316
      %v2013 = vmax.f32 %v2012, %v1318
      %v2014 = vrot.slane %v2013, 4
      %v2015 = vmax.f32 %v2013, %v2014
      %v2016 = vrot.slane %v2015, 2
      %v2017 = vmax.f32 %v2015, %v2016
      %v2018 = vrot.slane %v2017, 1
      %v2019 = vmax.f32 %v2017, %v2018
      %v2020 = vmax.f32 %v1330, %v1332
      %v2021 = vmax.f32 %v2020, %v1335
      %v2022 = vmax.f32 %v2021, %v1337
      %v2023 = vmax.f32 %v2022, %v1340
      %v2024 = vmax.f32 %v2023, %v1342
      %v2025 = vmax.f32 %v2024, %v1345
      %v2026 = vmax.f32 %v2025, %v1347
      %v2027 = vrot.slane %v2026, 4
      %v2028 = vmax.f32 %v2026, %v2027
      %v2029 = vrot.slane %v2028, 2
      %v2030 = vmax.f32 %v2028, %v2029
      %v2031 = vrot.slane %v2030, 1
      %v2032 = vmax.f32 %v2030, %v2031
      %v2033 = vmax.f32 %v1359, %v1361
      %v2034 = vmax.f32 %v2033, %v1364
      %v2035 = vmax.f32 %v2034, %v1366
      %v2036 = vmax.f32 %v2035, %v1369
      %v2037 = vmax.f32 %v2036, %v1371
      %v2038 = vmax.f32 %v2037, %v1374
      %v2039 = vmax.f32 %v2038, %v1376
      %v2040 = vrot.slane %v2039, 4
      %v2041 = vmax.f32 %v2039, %v2040
      %v2042 = vrot.slane %v2041, 2
      %v2043 = vmax.f32 %v2041, %v2042
      %v2044 = vrot.slane %v2043, 1
      %v2045 = vmax.f32 %v2043, %v2044
      %v2046 = vmin.f32 %v1156, %v1158
      %v2047 = vmin.f32 %v2046, %v1161
      %v2048 = vmin.f32 %v2047, %v1163
      %v2049 = vmin.f32 %v2048, %v1166
      %v2050 = vmin.f32 %v2049, %v1168
      %v2051 = vmin.f32 %v2050, %v1171
      %v2052 = vmin.f32 %v2051, %v1173
      %v2053 = vrot.slane %v2052, 4
      %v2054 = vmin.f32 %v2052, %v2053
      %v2055 = vrot.slane %v2054, 2
      %v2056 = vmin.f32 %v2054, %v2055
      %v2057 = vrot.slane %v2056, 1
      %v2058 = vmin.f32 %v2056, %v2057
      %v2059 = vmin.f32 %v1185, %v1187
      %v2060 = vmin.f32 %v2059, %v1190
      %v2061 = vmin.f32 %v2060, %v1192
      %v2062 = vmin.f32 %v2061, %v1195
      %v2063 = vmin.f32 %v2062, %v1197
      %v2064 = vmin.f32 %v2063, %v1200
      %v2065 = vmin.f32 %v2064, %v1202
      %v2066 = vrot.slane %v2065, 4
      %v2067 = vmin.f32 %v2065, %v2066
      %v2068 = vrot.slane %v2067, 2
      %v2069 = vmin.f32 %v2067, %v2068
      %v2070 = vrot.slane %v2069, 1
      %v2071 = vmin.f32 %v2069, %v2070
      %v2072 = vmin.f32 %v1214, %v1216
      %v2073 = vmin.f32 %v2072, %v1219
      %v2074 = vmin.f32 %v2073, %v1221
      %v2075 = vmin.f32 %v2074, %v1224
      %v2076 = vmin.f32 %v2075, %v1226
      %v2077 = vmin.f32 %v2076, %v1229
      %v2078 = vmin.f32 %v2077, %v1231
      %v2079 = vrot.slane %v2078, 4
      %v2080 = vmin.f32 %v2078, %v2079
      %v2081 = vrot.slane %v2080, 2
      %v2082 = vmin.f32 %v2080, %v2081
      %v2083 = vrot.slane %v2082, 1
      %v2084 = vmin.f32 %v2082, %v2083
      %v2085 = vmin.f32 %v1243, %v1245
      %v2086 = vmin.f32 %v2085, %v1248
      %v2087 = vmin.f32 %v2086, %v1250
      %v2088 = vmin.f32 %v2087, %v1253
      %v2089 = vmin.f32 %v2088, %v1255
      %v2090 = vmin.f32 %v2089, %v1258
      %v2091 = vmin.f32 %v2090, %v1260
      %v2092 = vrot.slane %v2091, 4
      %v2093 = vmin.f32 %v2091, %v2092
      %v2094 = vrot.slane %v2093, 2
      %v2095 = vmin.f32 %v2093, %v2094
      %v2096 = vrot.slane %v2095, 1
      %v2097 = vmin.f32 %v2095, %v2096
      %v2098 = vmin.f32 %v1272, %v1274
      %v2099 = vmin.f32 %v2098, %v1277
      %v2100 = vmin.f32 %v2099, %v1279
      %v2101 = vmin.f32 %v2100, %v1282
      %v2102 = vmin.f32 %v2101, %v1284
      %v2103 = vmin.f32 %v2102, %v1287
      %v2104 = vmin.f32 %v2103, %v1289
      %v2105 = vrot.slane %v2104, 4
      %v2106 = vmin.f32 %v2104, %v2105
      %v2107 = vrot.slane %v2106, 2
      %v2108 = vmin.f32 %v2106, %v2107
      %v2109 = vrot.slane %v2108, 1
      %v2110 = vmin.f32 %v2108, %v2109
      %v2111 = vmin.f32 %v1301, %v1303
      %v2112 = vmin.f32 %v2111, %v1306
      %v2113 = vmin.f32 %v2112, %v1308
      %v2114 = vmin.f32 %v2113, %v1311
      %v2115 = vmin.f32 %v2114, %v1313
      %v2116 = vmin.f32 %v2115, %v1316
      %v2117 = vmin.f32 %v2116, %v1318
      %v2118 = vrot.slane %v2117, 4
      %v2119 = vmin.f32 %v2117, %v2118
      %v2120 = vrot.slane %v2119, 2
      %v2121 = vmin.f32 %v2119, %v2120
      %v2122 = vrot.slane %v2121, 1
      %v2123 = vmin.f32 %v2121, %v2122
      %v2124 = vmin.f32 %v1330, %v1332
      %v2125 = vmin.f32 %v2124, %v1335
      %v2126 = vmin.f32 %v2125, %v1337
      %v2127 = vmin.f32 %v2126, %v1340
      %v2128 = vmin.f32 %v2127, %v1342
      %v2129 = vmin.f32 %v2128, %v1345
      %v2130 = vmin.f32 %v2129, %v1347
      %v2131 = vrot.slane %v2130, 4
      %v2132 = vmin.f32 %v2130, %v2131
      %v2133 = vrot.slane %v2132, 2
      %v2134 = vmin.f32 %v2132, %v2133
      %v2135 = vrot.slane %v2134, 1
      %v2136 = vmin.f32 %v2134, %v2135
      %v2137 = vmin.f32 %v1359, %v1361
      %v2138 = vmin.f32 %v2137, %v1364
      %v2139 = vmin.f32 %v2138, %v1366
      %v2140 = vmin.f32 %v2139, %v1369
      %v2141 = vmin.f32 %v2140, %v1371
      %v2142 = vmin.f32 %v2141, %v1374
      %v2143 = vmin.f32 %v2142, %v1376
      %v2144 = vrot.slane %v2143, 4
      %v2145 = vmin.f32 %v2143, %v2144
      %v2146 = vrot.slane %v2145, 2
      %v2147 = vmin.f32 %v2145, %v2146
      %v2148 = vrot.slane %v2147, 1
      %v2149 = vmin.f32 %v2147, %v2148
      // Predicated region
      $region57: #{pointnetfeat_forward.9} parent=51 // pred_check
        %p2150 = pneg %p1379
      $region58: #{pointnetfeat_forward.9} parent=51 // pred_check_branch
        %2152 = sbr.rel (%p2150) target = $region60
      $region59: #{pointnetfeat_forward.9} parent=51 // pred_region
        %v2161 = vrot.slane %v1967, 7
        %v2162 = vrot.slane %v1980, 6
        %v2163 = vrot.slane %v1993, 5
        %v2164 = vrot.slane %v2006, 4
        %v2165 = vrot.slane %v2019, 3
        %v2166 = vrot.slane %v2032, 2
        %v2167 = vrot.slane %v2045, 1
        %v2168 = vsel %vm1731, %v1954, %v2161
        %v2169 = vsel %vm1733, %v2162, %v2163
        %v2170 = vsel %vm1735, %v2168, %v2169
        %v2171 = vsel %vm1737, %v2164, %v2165
        %v2172 = vsel %vm1739, %v2166, %v2167
        %v2173 = vsel %vm1741, %v2171, %v2172
        %v2174 = vsel %vm1743, %v2170, %v2173
        %2176 = vst [vmem:[%s454] sm:$0xff] %v2174
        %v2185 = vrot.slane %v2071, 7
        %v2186 = vrot.slane %v2084, 6
        %v2187 = vrot.slane %v2097, 5
        %v2188 = vrot.slane %v2110, 4
        %v2189 = vrot.slane %v2123, 3
        %v2190 = vrot.slane %v2136, 2
        %v2191 = vrot.slane %v2149, 1
        %v2192 = vsel %vm1731, %v2058, %v2185
        %v2193 = vsel %vm1733, %v2186, %v2187
        %v2194 = vsel %vm1735, %v2192, %v2193
        %v2195 = vsel %vm1737, %v2188, %v2189
        %v2196 = vsel %vm1739, %v2190, %v2191
        %v2197 = vsel %vm1741, %v2195, %v2196
        %v2198 = vsel %vm1743, %v2194, %v2197
        %2200 = vst [vmem:[%s458] sm:$0xff] %v2198
      $region60: #{pointnetfeat_forward.9} parent=51 // pred_fallthru
        _
      %p2201 = scmp.gt.s32.totalorder %s29, 0
      // Predicated region
      $region61: #{pointnetfeat_forward.9} parent=51 // pred_check
        %p2202 = pneg %p2201
      $region62: #{pointnetfeat_forward.9} parent=51 // pred_check_branch
        %2204 = sbr.rel (%p2202) target = $region64
      $region63: #{pointnetfeat_forward.9} parent=51 // pred_region
        %v2205 = vld [vmem:[%s454] sm:$0xff]
        %v2214 = vrot.slane %v1967, 7
        %v2215 = vrot.slane %v1980, 6
        %v2216 = vrot.slane %v1993, 5
        %v2217 = vrot.slane %v2006, 4
        %v2218 = vrot.slane %v2019, 3
        %v2219 = vrot.slane %v2032, 2
        %v2220 = vrot.slane %v2045, 1
        %v2221 = vsel %vm1731, %v1954, %v2214
        %v2222 = vsel %vm1733, %v2215, %v2216
        %v2223 = vsel %vm1735, %v2221, %v2222
        %v2224 = vsel %vm1737, %v2217, %v2218
        %v2225 = vsel %vm1739, %v2219, %v2220
        %v2226 = vsel %vm1741, %v2224, %v2225
        %v2227 = vsel %vm1743, %v2223, %v2226
        %v2229 = vmax.f32 %v2205, %v2227
        %2230 = vst [vmem:[%s454] sm:$0xff] %v2229
        %v2231 = vld [vmem:[%s458] sm:$0xff]
        %v2240 = vrot.slane %v2071, 7
        %v2241 = vrot.slane %v2084, 6
        %v2242 = vrot.slane %v2097, 5
        %v2243 = vrot.slane %v2110, 4
        %v2244 = vrot.slane %v2123, 3
        %v2245 = vrot.slane %v2136, 2
        %v2246 = vrot.slane %v2149, 1
        %v2247 = vsel %vm1731, %v2058, %v2240
        %v2248 = vsel %vm1733, %v2241, %v2242
        %v2249 = vsel %vm1735, %v2247, %v2248
        %v2250 = vsel %vm1737, %v2243, %v2244
        %v2251 = vsel %vm1739, %v2245, %v2246
        %v2252 = vsel %vm1741, %v2250, %v2251
        %v2253 = vsel %vm1743, %v2249, %v2252
        %v2255 = vmin.f32 %v2231, %v2253
        %2256 = vst [vmem:[%s458] sm:$0xff] %v2255
      $region64: #{pointnetfeat_forward.9} parent=51 // pred_fallthru
        _
      %p2257 = scmp.lt.s32.totalorder %s28, 1
      %s2258 = scalar_select %p2257, %s28, 1
      %s2259 = smul.addr %s2258, 8
      %s2260 = scalar_lea.vmem %s11, %s2259
      %p2261 = scmp.lt.s32.totalorder %s28, 1
      %s2262 = scalar_select %p2261, %s28, 1
      %s2263 = smul.addr %s2262, 8
      %s2264 = scalar_lea.vmem %s12, %s2263
      // Predicated region
      $region65: #{pointnetfeat_forward.9} parent=51 // pred_check
        %p2265 = pneg %p229
      $region66: #{pointnetfeat_forward.9} parent=51 // pred_check_branch
        %2267 = sbr.rel (%p2265) target = $region68
      $region67: #{pointnetfeat_forward.9} parent=51 // pred_region
        _
      $region68: #{pointnetfeat_forward.9} parent=51 // pred_fallthru
        _
      // Predicated region
      $region69: #{pointnetfeat_forward.9} parent=51 // pred_check
        %p2268 = pneg %p250
      $region70: #{pointnetfeat_forward.9} parent=51 // pred_check_branch
        %2270 = sbr.rel (%p2268) target = $region72
      $region71: #{pointnetfeat_forward.9} parent=51 // pred_region
        _
      $region72: #{pointnetfeat_forward.9} parent=51 // pred_fallthru
        _
      // Predicated region
      $region73: #{pointnetfeat_forward.9} parent=51 // pred_check
        %p2271 = pneg %p271
      $region74: #{pointnetfeat_forward.9} parent=51 // pred_check_branch
        %2273 = sbr.rel (%p2271) target = $region76
      $region75: #{pointnetfeat_forward.9} parent=51 // pred_region
        _
      $region76: #{pointnetfeat_forward.9} parent=51 // pred_fallthru
        _
      // Predicated region
      $region77: #{pointnetfeat_forward.9} parent=51 // pred_check
        %p2274 = pneg %p297
      $region78: #{pointnetfeat_forward.9} parent=51 // pred_check_branch
        %2276 = sbr.rel (%p2274) target = $region80
      $region79: #{pointnetfeat_forward.9} parent=51 // pred_region
        _
      $region80: #{pointnetfeat_forward.9} parent=51 // pred_fallthru
        _
      // Predicated region
      $region81: #{pointnetfeat_forward.9} parent=51 // pred_check
        %p2277 = pneg %p323
      $region82: #{pointnetfeat_forward.9} parent=51 // pred_check_branch
        %2279 = sbr.rel (%p2277) target = $region84
      $region83: #{pointnetfeat_forward.9} parent=51 // pred_region
        _
      $region84: #{pointnetfeat_forward.9} parent=51 // pred_fallthru
        _
      // Predicated region
      $region85: #{pointnetfeat_forward.9} parent=51 // pred_check
        %p2280 = pneg %p229
      $region86: #{pointnetfeat_forward.9} parent=51 // pred_check_branch
        %2282 = sbr.rel (%p2280) target = $region88
      $region87: #{pointnetfeat_forward.9} parent=51 // pred_region
        _
      $region88: #{pointnetfeat_forward.9} parent=51 // pred_fallthru
        _
      // Predicated region
      $region89: #{pointnetfeat_forward.9} parent=51 // pred_check
        %p2283 = pneg %p250
      $region90: #{pointnetfeat_forward.9} parent=51 // pred_check_branch
        %2285 = sbr.rel (%p2283) target = $region92
      $region91: #{pointnetfeat_forward.9} parent=51 // pred_region
        _
      $region92: #{pointnetfeat_forward.9} parent=51 // pred_fallthru
        _
      // Predicated region
      $region93: #{pointnetfeat_forward.9} parent=51 // pred_check
        %p2286 = pneg %p271
      $region94: #{pointnetfeat_forward.9} parent=51 // pred_check_branch
        %2288 = sbr.rel (%p2286) target = $region96
      $region95: #{pointnetfeat_forward.9} parent=51 // pred_region
        _
      $region96: #{pointnetfeat_forward.9} parent=51 // pred_fallthru
        _
    $region52: #{pointnetfeat_forward.9} parent=5 // pred_fallthru
      _
    %p2289 = scmp.le.s32.totalorder 2, %s19
    // Predicated region
    $region97: #{pointnetfeat_forward.9} parent=5 // pred_check
      %p2290 = pneg %p2289
    $region98: #{pointnetfeat_forward.9} parent=5 // pred_check_branch
      %2292 = sbr.rel (%p2290) target = $region100
    $region99: #{pointnetfeat_forward.9} parent=5 // pred_region
      %s2293 = ssub.s32 %s19, 2
      // Predicated region
      $region101: #{pointnetfeat_forward.9} parent=99 // pred_check
        %p2294 = pneg %p303
      $region102: #{pointnetfeat_forward.9} parent=99 // pred_check_branch
        %2296 = sbr.rel (%p2294) target = $region104
      $region103: #{pointnetfeat_forward.9} parent=99 // pred_region
        %p2297 = scmp.lt.s32.totalorder %s30, 1
        %s2298 = scalar_select %p2297, %s30, 1
        %s2299 = smul.addr %s2298, 8
        %s2300 = scalar_lea.vmem %s11, %s2299
      $region104: #{pointnetfeat_forward.9} parent=99 // pred_fallthru
        _
      // Predicated region
      $region105: #{pointnetfeat_forward.9} parent=99 // pred_check
        %p2301 = pneg %p329
      $region106: #{pointnetfeat_forward.9} parent=99 // pred_check_branch
        %2303 = sbr.rel (%p2301) target = $region108
      $region107: #{pointnetfeat_forward.9} parent=99 // pred_region
        %p2304 = scmp.lt.s32.totalorder %s30, 1
        %s2305 = scalar_select %p2304, %s30, 1
        %s2306 = smul.addr %s2305, 8
        %s2307 = scalar_lea.vmem %s12, %s2306
      $region108: #{pointnetfeat_forward.9} parent=99 // pred_fallthru
        _
    $region100: #{pointnetfeat_forward.9} parent=5 // pred_fallthru
      _
  $region6: #{pointnetfeat_forward.9} parent=0 // loop_footer
    %s23 = sadd.s32 1, %s19
  $region7: #{pointnetfeat_forward.9} parent=0 // loop_footer_branch
    %18 = sbr.rel target = $region3
  $region8: #{pointnetfeat_forward.9} parent=0 // loop_exit
    _

// kernel: pointnetfeat_forward.10
$region0: #{pointnetfeat_forward.10}
  #allocation0 [shape = 'u32[]', space=smem, size = 0x4, offset = 0x4, fixed_abs, tag = 'smem constant byte address 0x4 - core index']
  #allocation1 [shape = 'u32[72,128]{1,0:T(1,128)}', space=vmem, size = 0x9000, scoped, tag = 'internal scratch']
  %s0 = inlined_call_operand.vmem [shape: f32[2,1024], index: 0, kind: input, shape index: {}]
  %s1 = inlined_call_operand.vmem [shape: f32[2,1024], index: 1, kind: input, shape index: {}]
  %s2 = inlined_call_operand.vmem [shape: f32[1,1024], index: 2, kind: input, shape index: {}]
  %s3 = inlined_call_operand.vmem [shape: f32[1,1024], index: 3, kind: input, shape index: {}]
  %s4 = inlined_call_operand.vmem [shape: bf16[1024,512], index: 4, kind: input, shape index: {}]
  %s5 = inlined_call_operand.vmem [shape: f32[1,512], index: 5, kind: input, shape index: {}]
  %s6 = inlined_call_operand.vmem [shape: f32[1,512], index: 6, kind: input, shape index: {}]
  %s7 = inlined_call_operand.vmem [shape: bf16[512,256], index: 7, kind: input, shape index: {}]
  %s8 = inlined_call_operand.vmem [shape: f32[1,256], index: 8, kind: input, shape index: {}]
  %s9 = inlined_call_operand.vmem [shape: f32[1,256], index: 9, kind: input, shape index: {}]
  %s10 = inlined_call_operand.vmem [shape: bf16[256,128], index: 10, kind: input, shape index: {}]
  %s11 = inlined_call_operand.vmem [shape: f32[2,128], index: 11, kind: output, shape index: {}]
  %s12 = sld [smem:[#allocation0]]
  $region54: #{pointnetfeat_forward.10} parent=0
    _
  %s14 = ssub.s32 1, %s12
  %s15 = scalar_select 0, %s14, %s12
  // Predicated region
  $region2: #{pointnetfeat_forward.10} parent=0 // pred_check
    _
  $region3: #{pointnetfeat_forward.10} parent=0 // pred_check_branch
    %17 = sbr.rel (0) target = $region5
  $region4: #{pointnetfeat_forward.10} parent=0 // pred_region
    _
  $region5: #{pointnetfeat_forward.10} parent=0 // pred_fallthru
    _
  // Predicated region
  $region6: #{pointnetfeat_forward.10} parent=0 // pred_check
    _
  $region7: #{pointnetfeat_forward.10} parent=0 // pred_check_branch
    %19 = sbr.rel (0) target = $region9
  $region8: #{pointnetfeat_forward.10} parent=0 // pred_region
    _
  $region9: #{pointnetfeat_forward.10} parent=0 // pred_fallthru
    _
  // Predicated region
  $region10: #{pointnetfeat_forward.10} parent=0 // pred_check
    _
  $region11: #{pointnetfeat_forward.10} parent=0 // pred_check_branch
    %21 = sbr.rel (0) target = $region13
  $region12: #{pointnetfeat_forward.10} parent=0 // pred_region
    _
  $region13: #{pointnetfeat_forward.10} parent=0 // pred_fallthru
    _
  // Predicated region
  $region14: #{pointnetfeat_forward.10} parent=0 // pred_check
    _
  $region15: #{pointnetfeat_forward.10} parent=0 // pred_check_branch
    %23 = sbr.rel (0) target = $region17
  $region16: #{pointnetfeat_forward.10} parent=0 // pred_region
    _
  $region17: #{pointnetfeat_forward.10} parent=0 // pred_fallthru
    _
  // Predicated region
  $region18: #{pointnetfeat_forward.10} parent=0 // pred_check
    _
  $region19: #{pointnetfeat_forward.10} parent=0 // pred_check_branch
    %25 = sbr.rel (0) target = $region21
  $region20: #{pointnetfeat_forward.10} parent=0 // pred_region
    _
  $region21: #{pointnetfeat_forward.10} parent=0 // pred_fallthru
    _
  // Predicated region
  $region22: #{pointnetfeat_forward.10} parent=0 // pred_check
    _
  $region23: #{pointnetfeat_forward.10} parent=0 // pred_check_branch
    %27 = sbr.rel (0) target = $region25
  $region24: #{pointnetfeat_forward.10} parent=0 // pred_region
    _
  $region25: #{pointnetfeat_forward.10} parent=0 // pred_fallthru
    _
  // Predicated region
  $region26: #{pointnetfeat_forward.10} parent=0 // pred_check
    _
  $region27: #{pointnetfeat_forward.10} parent=0 // pred_check_branch
    %29 = sbr.rel (0) target = $region29
  $region28: #{pointnetfeat_forward.10} parent=0 // pred_region
    _
  $region29: #{pointnetfeat_forward.10} parent=0 // pred_fallthru
    _
  // Predicated region
  $region30: #{pointnetfeat_forward.10} parent=0 // pred_check
    _
  $region31: #{pointnetfeat_forward.10} parent=0 // pred_check_branch
    %31 = sbr.rel (0) target = $region33
  $region32: #{pointnetfeat_forward.10} parent=0 // pred_region
    _
  $region33: #{pointnetfeat_forward.10} parent=0 // pred_fallthru
    _
  // Predicated region
  $region34: #{pointnetfeat_forward.10} parent=0 // pred_check
    _
  $region35: #{pointnetfeat_forward.10} parent=0 // pred_check_branch
    %33 = sbr.rel (0) target = $region37
  $region36: #{pointnetfeat_forward.10} parent=0 // pred_region
    _
  $region37: #{pointnetfeat_forward.10} parent=0 // pred_fallthru
    _
  // Predicated region
  $region38: #{pointnetfeat_forward.10} parent=0 // pred_check
    _
  $region39: #{pointnetfeat_forward.10} parent=0 // pred_check_branch
    %35 = sbr.rel (0) target = $region41
  $region40: #{pointnetfeat_forward.10} parent=0 // pred_region
    _
  $region41: #{pointnetfeat_forward.10} parent=0 // pred_fallthru
    _
  // Predicated region
  $region42: #{pointnetfeat_forward.10} parent=0 // pred_check
    _
  $region43: #{pointnetfeat_forward.10} parent=0 // pred_check_branch
    %37 = sbr.rel (0) target = $region45
  $region44: #{pointnetfeat_forward.10} parent=0 // pred_region
    _
  $region45: #{pointnetfeat_forward.10} parent=0 // pred_fallthru
    _
  %v38 = vld [vmem:[%s2] sm:$0xff]
  %vm39 = vcmp.gt.f32.partialorder %v38, 0.0
  %v40 = vld [vmem:[%s0] sm:$0xff]
  %v41 = vld [vmem:[%s0 + $0x8] sm:$0xff]
  %v42 = vld [vmem:[%s1] sm:$0xff]
  %v43 = vld [vmem:[%s1 + $0x8] sm:$0xff]
  %v44 = vsel %vm39, 1, 0
  %v45 = vperm.slane %v44, 0
  %v46 = vperm.slane %v44, 1
  %v47 = vperm.slane %v44, 2
  %v48 = vperm.slane %v44, 3
  %v49 = vperm.slane %v44, 4
  %v50 = vperm.slane %v44, 5
  %v51 = vperm.slane %v44, 6
  %v52 = vperm.slane %v44, 7
  %vm53 = vcmp.eq.s32.totalorder %v45, 1
  %vm54 = vcmp.eq.s32.totalorder %v46, 1
  %vm55 = vcmp.eq.s32.totalorder %v47, 1
  %vm56 = vcmp.eq.s32.totalorder %v48, 1
  %vm57 = vcmp.eq.s32.totalorder %v49, 1
  %vm58 = vcmp.eq.s32.totalorder %v50, 1
  %vm59 = vcmp.eq.s32.totalorder %v51, 1
  %vm60 = vcmp.eq.s32.totalorder %v52, 1
  %63 = vst [vmem:[#allocation1] ss:$4 sm:$0xff] %v40
  %s64 = scalar_lea.vmem [#allocation1], 32
  %65 = vst [vmem:[%s64] ss:$4 sm:$0xff] %v41
  %v66 = vld.sshfl [vmem:[#allocation1] sm:$0xff pattern:$0x73625140]
  %v67 = vld.sshfl [vmem:[#allocation1 + $0x8] sm:$0xff pattern:$0x73625140]
  %v68 = vld.sshfl [vmem:[#allocation1 + $0x10] sm:$0xff pattern:$0x73625140]
  %v69 = vld.sshfl [vmem:[#allocation1 + $0x18] sm:$0xff pattern:$0x73625140]
  %v70 = vld.sshfl [vmem:[#allocation1 + $0x20] sm:$0xff pattern:$0x73625140]
  %v71 = vld.sshfl [vmem:[#allocation1 + $0x28] sm:$0xff pattern:$0x73625140]
  %v72 = vld.sshfl [vmem:[#allocation1 + $0x30] sm:$0xff pattern:$0x73625140]
  %v73 = vld.sshfl [vmem:[#allocation1 + $0x38] sm:$0xff pattern:$0x73625140]
  %84 = vst [vmem:[#allocation1] ss:$4 sm:$0xff] %v42
  %s85 = scalar_lea.vmem [#allocation1], 32
  %86 = vst [vmem:[%s85] ss:$4 sm:$0xff] %v43
  %v87 = vld.sshfl [vmem:[#allocation1] sm:$0xff pattern:$0x73625140]
  %v88 = vld.sshfl [vmem:[#allocation1 + $0x8] sm:$0xff pattern:$0x73625140]
  %v89 = vld.sshfl [vmem:[#allocation1 + $0x10] sm:$0xff pattern:$0x73625140]
  %v90 = vld.sshfl [vmem:[#allocation1 + $0x18] sm:$0xff pattern:$0x73625140]
  %v91 = vld.sshfl [vmem:[#allocation1 + $0x20] sm:$0xff pattern:$0x73625140]
  %v92 = vld.sshfl [vmem:[#allocation1 + $0x28] sm:$0xff pattern:$0x73625140]
  %v93 = vld.sshfl [vmem:[#allocation1 + $0x30] sm:$0xff pattern:$0x73625140]
  %v94 = vld.sshfl [vmem:[#allocation1 + $0x38] sm:$0xff pattern:$0x73625140]
  %v103 = vsel %vm53, %v66, %v87
  %v104 = vsel %vm54, %v67, %v88
  %v105 = vsel %vm55, %v68, %v89
  %v106 = vsel %vm56, %v69, %v90
  %v107 = vsel %vm57, %v70, %v91
  %v108 = vsel %vm58, %v71, %v92
  %v109 = vsel %vm59, %v72, %v93
  %v110 = vsel %vm60, %v73, %v94
  %v112 = vperm.slane %v38, 0
  %v113 = vperm.slane %v38, 1
  %v114 = vperm.slane %v38, 2
  %v115 = vperm.slane %v38, 3
  %v116 = vperm.slane %v38, 4
  %v117 = vperm.slane %v38, 5
  %v118 = vperm.slane %v38, 6
  %v119 = vperm.slane %v38, 7
  %v128 = vmul.f32 %v103, %v112
  %v129 = vmul.f32 %v104, %v113
  %v130 = vmul.f32 %v105, %v114
  %v131 = vmul.f32 %v106, %v115
  %v132 = vmul.f32 %v107, %v116
  %v133 = vmul.f32 %v108, %v117
  %v134 = vmul.f32 %v109, %v118
  %v135 = vmul.f32 %v110, %v119
  %v136 = vld [vmem:[%s3] sm:$0xff]
  %v138 = vperm.slane %v136, 0
  %v139 = vperm.slane %v136, 1
  %v140 = vperm.slane %v136, 2
  %v141 = vperm.slane %v136, 3
  %v142 = vperm.slane %v136, 4
  %v143 = vperm.slane %v136, 5
  %v144 = vperm.slane %v136, 6
  %v145 = vperm.slane %v136, 7
  %v154 = vadd.f32 %v128, %v138
  %v155 = vadd.f32 %v129, %v139
  %v156 = vadd.f32 %v130, %v140
  %v157 = vadd.f32 %v131, %v141
  %v158 = vadd.f32 %v132, %v142
  %v159 = vadd.f32 %v133, %v143
  %v160 = vadd.f32 %v134, %v144
  %v161 = vadd.f32 %v135, %v145
  %v162 = vmax.f32 %v154, 0.0
  %v163 = vmax.f32 %v155, 0.0
  %v164 = vmax.f32 %v156, 0.0
  %v165 = vmax.f32 %v157, 0.0
  %v166 = vmax.f32 %v158, 0.0
  %v167 = vmax.f32 %v159, 0.0
  %v168 = vmax.f32 %v160, 0.0
  %v169 = vmax.f32 %v161, 0.0
  %v170 = vld [vmem:[%s4] sm:$0xff]
  %v171 = vld [vmem:[%s4 + $0x8] sm:$0xff]
  %v172 = vld [vmem:[%s4 + $0x10] sm:$0xff]
  %v173 = vld [vmem:[%s4 + $0x18] sm:$0xff]
  %v174 = vld [vmem:[%s4 + $0x20] sm:$0xff]
  %v175 = vld [vmem:[%s4 + $0x28] sm:$0xff]
  %v176 = vld [vmem:[%s4 + $0x30] sm:$0xff]
  %v177 = vld [vmem:[%s4 + $0x38] sm:$0xff]
  %v178 = vld [vmem:[%s4 + $0x40] sm:$0xff]
  %v179 = vld [vmem:[%s4 + $0x48] sm:$0xff]
  %v180 = vld [vmem:[%s4 + $0x50] sm:$0xff]
  %v181 = vld [vmem:[%s4 + $0x58] sm:$0xff]
  %v182 = vld [vmem:[%s4 + $0x60] sm:$0xff]
  %v183 = vld [vmem:[%s4 + $0x68] sm:$0xff]
  %v184 = vld [vmem:[%s4 + $0x70] sm:$0xff]
  %v185 = vld [vmem:[%s4 + $0x78] sm:$0xff]
  %v186 = vld [vmem:[%s4 + $0x80] sm:$0xff]
  %v187 = vld [vmem:[%s4 + $0x88] sm:$0xff]
  %v188 = vld [vmem:[%s4 + $0x90] sm:$0xff]
  %v189 = vld [vmem:[%s4 + $0x98] sm:$0xff]
  %v190 = vld [vmem:[%s4 + $0xa0] sm:$0xff]
  %v191 = vld [vmem:[%s4 + $0xa8] sm:$0xff]
  %v192 = vld [vmem:[%s4 + $0xb0] sm:$0xff]
  %v193 = vld [vmem:[%s4 + $0xb8] sm:$0xff]
  %v194 = vld [vmem:[%s4 + $0xc0] sm:$0xff]
  %v195 = vld [vmem:[%s4 + $0xc8] sm:$0xff]
  %v196 = vld [vmem:[%s4 + $0xd0] sm:$0xff]
  %v197 = vld [vmem:[%s4 + $0xd8] sm:$0xff]
  %v198 = vld [vmem:[%s4 + $0xe0] sm:$0xff]
  %v199 = vld [vmem:[%s4 + $0xe8] sm:$0xff]
  %v200 = vld [vmem:[%s4 + $0xf0] sm:$0xff]
  %v201 = vld [vmem:[%s4 + $0xf8] sm:$0xff]
  %v202 = vld [vmem:[%s4 + $0x100] sm:$0xff]
  %v203 = vld [vmem:[%s4 + $0x108] sm:$0xff]
  %v204 = vld [vmem:[%s4 + $0x110] sm:$0xff]
  %v205 = vld [vmem:[%s4 + $0x118] sm:$0xff]
  %v206 = vld [vmem:[%s4 + $0x120] sm:$0xff]
  %v207 = vld [vmem:[%s4 + $0x128] sm:$0xff]
  %v208 = vld [vmem:[%s4 + $0x130] sm:$0xff]
  %v209 = vld [vmem:[%s4 + $0x138] sm:$0xff]
  %v210 = vld [vmem:[%s4 + $0x140] sm:$0xff]
  %v211 = vld [vmem:[%s4 + $0x148] sm:$0xff]
  %v212 = vld [vmem:[%s4 + $0x150] sm:$0xff]
  %v213 = vld [vmem:[%s4 + $0x158] sm:$0xff]
  %v214 = vld [vmem:[%s4 + $0x160] sm:$0xff]
  %v215 = vld [vmem:[%s4 + $0x168] sm:$0xff]
  %v216 = vld [vmem:[%s4 + $0x170] sm:$0xff]
  %v217 = vld [vmem:[%s4 + $0x178] sm:$0xff]
  %v218 = vld [vmem:[%s4 + $0x180] sm:$0xff]
  %v219 = vld [vmem:[%s4 + $0x188] sm:$0xff]
  %v220 = vld [vmem:[%s4 + $0x190] sm:$0xff]
  %v221 = vld [vmem:[%s4 + $0x198] sm:$0xff]
  %v222 = vld [vmem:[%s4 + $0x1a0] sm:$0xff]
  %v223 = vld [vmem:[%s4 + $0x1a8] sm:$0xff]
  %v224 = vld [vmem:[%s4 + $0x1b0] sm:$0xff]
  %v225 = vld [vmem:[%s4 + $0x1b8] sm:$0xff]
  %v226 = vld [vmem:[%s4 + $0x1c0] sm:$0xff]
  %v227 = vld [vmem:[%s4 + $0x1c8] sm:$0xff]
  %v228 = vld [vmem:[%s4 + $0x1d0] sm:$0xff]
  %v229 = vld [vmem:[%s4 + $0x1d8] sm:$0xff]
  %v230 = vld [vmem:[%s4 + $0x1e0] sm:$0xff]
  %v231 = vld [vmem:[%s4 + $0x1e8] sm:$0xff]
  %v232 = vld [vmem:[%s4 + $0x1f0] sm:$0xff]
  %v233 = vld [vmem:[%s4 + $0x1f8] sm:$0xff]
  %v234 = vld [vmem:[%s4 + $0x200] sm:$0xff]
  %v235 = vld [vmem:[%s4 + $0x208] sm:$0xff]
  %v236 = vld [vmem:[%s4 + $0x210] sm:$0xff]
  %v237 = vld [vmem:[%s4 + $0x218] sm:$0xff]
  %v238 = vld [vmem:[%s4 + $0x220] sm:$0xff]
  %v239 = vld [vmem:[%s4 + $0x228] sm:$0xff]
  %v240 = vld [vmem:[%s4 + $0x230] sm:$0xff]
  %v241 = vld [vmem:[%s4 + $0x238] sm:$0xff]
  %v242 = vld [vmem:[%s4 + $0x240] sm:$0xff]
  %v243 = vld [vmem:[%s4 + $0x248] sm:$0xff]
  %v244 = vld [vmem:[%s4 + $0x250] sm:$0xff]
  %v245 = vld [vmem:[%s4 + $0x258] sm:$0xff]
  %v246 = vld [vmem:[%s4 + $0x260] sm:$0xff]
  %v247 = vld [vmem:[%s4 + $0x268] sm:$0xff]
  %v248 = vld [vmem:[%s4 + $0x270] sm:$0xff]
  %v249 = vld [vmem:[%s4 + $0x278] sm:$0xff]
  %v250 = vld [vmem:[%s4 + $0x280] sm:$0xff]
  %v251 = vld [vmem:[%s4 + $0x288] sm:$0xff]
  %v252 = vld [vmem:[%s4 + $0x290] sm:$0xff]
  %v253 = vld [vmem:[%s4 + $0x298] sm:$0xff]
  %v254 = vld [vmem:[%s4 + $0x2a0] sm:$0xff]
  %v255 = vld [vmem:[%s4 + $0x2a8] sm:$0xff]
  %v256 = vld [vmem:[%s4 + $0x2b0] sm:$0xff]
  %v257 = vld [vmem:[%s4 + $0x2b8] sm:$0xff]
  %v258 = vld [vmem:[%s4 + $0x2c0] sm:$0xff]
  %v259 = vld [vmem:[%s4 + $0x2c8] sm:$0xff]
  %v260 = vld [vmem:[%s4 + $0x2d0] sm:$0xff]
  %v261 = vld [vmem:[%s4 + $0x2d8] sm:$0xff]
  %v262 = vld [vmem:[%s4 + $0x2e0] sm:$0xff]
  %v263 = vld [vmem:[%s4 + $0x2e8] sm:$0xff]
  %v264 = vld [vmem:[%s4 + $0x2f0] sm:$0xff]
  %v265 = vld [vmem:[%s4 + $0x2f8] sm:$0xff]
  %v266 = vld [vmem:[%s4 + $0x300] sm:$0xff]
  %v267 = vld [vmem:[%s4 + $0x308] sm:$0xff]
  %v268 = vld [vmem:[%s4 + $0x310] sm:$0xff]
  %v269 = vld [vmem:[%s4 + $0x318] sm:$0xff]
  %v270 = vld [vmem:[%s4 + $0x320] sm:$0xff]
  %v271 = vld [vmem:[%s4 + $0x328] sm:$0xff]
  %v272 = vld [vmem:[%s4 + $0x330] sm:$0xff]
  %v273 = vld [vmem:[%s4 + $0x338] sm:$0xff]
  %v274 = vld [vmem:[%s4 + $0x340] sm:$0xff]
  %v275 = vld [vmem:[%s4 + $0x348] sm:$0xff]
  %v276 = vld [vmem:[%s4 + $0x350] sm:$0xff]
  %v277 = vld [vmem:[%s4 + $0x358] sm:$0xff]
  %v278 = vld [vmem:[%s4 + $0x360] sm:$0xff]
  %v279 = vld [vmem:[%s4 + $0x368] sm:$0xff]
  %v280 = vld [vmem:[%s4 + $0x370] sm:$0xff]
  %v281 = vld [vmem:[%s4 + $0x378] sm:$0xff]
  %v282 = vld [vmem:[%s4 + $0x380] sm:$0xff]
  %v283 = vld [vmem:[%s4 + $0x388] sm:$0xff]
  %v284 = vld [vmem:[%s4 + $0x390] sm:$0xff]
  %v285 = vld [vmem:[%s4 + $0x398] sm:$0xff]
  %v286 = vld [vmem:[%s4 + $0x3a0] sm:$0xff]
  %v287 = vld [vmem:[%s4 + $0x3a8] sm:$0xff]
  %v288 = vld [vmem:[%s4 + $0x3b0] sm:$0xff]
  %v289 = vld [vmem:[%s4 + $0x3b8] sm:$0xff]
  %v290 = vld [vmem:[%s4 + $0x3c0] sm:$0xff]
  %v291 = vld [vmem:[%s4 + $0x3c8] sm:$0xff]
  %v292 = vld [vmem:[%s4 + $0x3d0] sm:$0xff]
  %v293 = vld [vmem:[%s4 + $0x3d8] sm:$0xff]
  %v294 = vld [vmem:[%s4 + $0x3e0] sm:$0xff]
  %v295 = vld [vmem:[%s4 + $0x3e8] sm:$0xff]
  %v296 = vld [vmem:[%s4 + $0x3f0] sm:$0xff]
  %v297 = vld [vmem:[%s4 + $0x3f8] sm:$0xff]
  %v298 = vld [vmem:[%s4 + $0x400] sm:$0xff]
  %v299 = vld [vmem:[%s4 + $0x408] sm:$0xff]
  %v300 = vld [vmem:[%s4 + $0x410] sm:$0xff]
  %v301 = vld [vmem:[%s4 + $0x418] sm:$0xff]
  %v302 = vld [vmem:[%s4 + $0x420] sm:$0xff]
  %v303 = vld [vmem:[%s4 + $0x428] sm:$0xff]
  %v304 = vld [vmem:[%s4 + $0x430] sm:$0xff]
  %v305 = vld [vmem:[%s4 + $0x438] sm:$0xff]
  %v306 = vld [vmem:[%s4 + $0x440] sm:$0xff]
  %v307 = vld [vmem:[%s4 + $0x448] sm:$0xff]
  %v308 = vld [vmem:[%s4 + $0x450] sm:$0xff]
  %v309 = vld [vmem:[%s4 + $0x458] sm:$0xff]
  %v310 = vld [vmem:[%s4 + $0x460] sm:$0xff]
  %v311 = vld [vmem:[%s4 + $0x468] sm:$0xff]
  %v312 = vld [vmem:[%s4 + $0x470] sm:$0xff]
  %v313 = vld [vmem:[%s4 + $0x478] sm:$0xff]
  %v314 = vld [vmem:[%s4 + $0x480] sm:$0xff]
  %v315 = vld [vmem:[%s4 + $0x488] sm:$0xff]
  %v316 = vld [vmem:[%s4 + $0x490] sm:$0xff]
  %v317 = vld [vmem:[%s4 + $0x498] sm:$0xff]
  %v318 = vld [vmem:[%s4 + $0x4a0] sm:$0xff]
  %v319 = vld [vmem:[%s4 + $0x4a8] sm:$0xff]
  %v320 = vld [vmem:[%s4 + $0x4b0] sm:$0xff]
  %v321 = vld [vmem:[%s4 + $0x4b8] sm:$0xff]
  %v322 = vld [vmem:[%s4 + $0x4c0] sm:$0xff]
  %v323 = vld [vmem:[%s4 + $0x4c8] sm:$0xff]
  %v324 = vld [vmem:[%s4 + $0x4d0] sm:$0xff]
  %v325 = vld [vmem:[%s4 + $0x4d8] sm:$0xff]
  %v326 = vld [vmem:[%s4 + $0x4e0] sm:$0xff]
  %v327 = vld [vmem:[%s4 + $0x4e8] sm:$0xff]
  %v328 = vld [vmem:[%s4 + $0x4f0] sm:$0xff]
  %v329 = vld [vmem:[%s4 + $0x4f8] sm:$0xff]
  %v330 = vld [vmem:[%s4 + $0x500] sm:$0xff]
  %v331 = vld [vmem:[%s4 + $0x508] sm:$0xff]
  %v332 = vld [vmem:[%s4 + $0x510] sm:$0xff]
  %v333 = vld [vmem:[%s4 + $0x518] sm:$0xff]
  %v334 = vld [vmem:[%s4 + $0x520] sm:$0xff]
  %v335 = vld [vmem:[%s4 + $0x528] sm:$0xff]
  %v336 = vld [vmem:[%s4 + $0x530] sm:$0xff]
  %v337 = vld [vmem:[%s4 + $0x538] sm:$0xff]
  %v338 = vld [vmem:[%s4 + $0x540] sm:$0xff]
  %v339 = vld [vmem:[%s4 + $0x548] sm:$0xff]
  %v340 = vld [vmem:[%s4 + $0x550] sm:$0xff]
  %v341 = vld [vmem:[%s4 + $0x558] sm:$0xff]
  %v342 = vld [vmem:[%s4 + $0x560] sm:$0xff]
  %v343 = vld [vmem:[%s4 + $0x568] sm:$0xff]
  %v344 = vld [vmem:[%s4 + $0x570] sm:$0xff]
  %v345 = vld [vmem:[%s4 + $0x578] sm:$0xff]
  %v346 = vld [vmem:[%s4 + $0x580] sm:$0xff]
  %v347 = vld [vmem:[%s4 + $0x588] sm:$0xff]
  %v348 = vld [vmem:[%s4 + $0x590] sm:$0xff]
  %v349 = vld [vmem:[%s4 + $0x598] sm:$0xff]
  %v350 = vld [vmem:[%s4 + $0x5a0] sm:$0xff]
  %v351 = vld [vmem:[%s4 + $0x5a8] sm:$0xff]
  %v352 = vld [vmem:[%s4 + $0x5b0] sm:$0xff]
  %v353 = vld [vmem:[%s4 + $0x5b8] sm:$0xff]
  %v354 = vld [vmem:[%s4 + $0x5c0] sm:$0xff]
  %v355 = vld [vmem:[%s4 + $0x5c8] sm:$0xff]
  %v356 = vld [vmem:[%s4 + $0x5d0] sm:$0xff]
  %v357 = vld [vmem:[%s4 + $0x5d8] sm:$0xff]
  %v358 = vld [vmem:[%s4 + $0x5e0] sm:$0xff]
  %v359 = vld [vmem:[%s4 + $0x5e8] sm:$0xff]
  %v360 = vld [vmem:[%s4 + $0x5f0] sm:$0xff]
  %v361 = vld [vmem:[%s4 + $0x5f8] sm:$0xff]
  %v362 = vld [vmem:[%s4 + $0x600] sm:$0xff]
  %v363 = vld [vmem:[%s4 + $0x608] sm:$0xff]
  %v364 = vld [vmem:[%s4 + $0x610] sm:$0xff]
  %v365 = vld [vmem:[%s4 + $0x618] sm:$0xff]
  %v366 = vld [vmem:[%s4 + $0x620] sm:$0xff]
  %v367 = vld [vmem:[%s4 + $0x628] sm:$0xff]
  %v368 = vld [vmem:[%s4 + $0x630] sm:$0xff]
  %v369 = vld [vmem:[%s4 + $0x638] sm:$0xff]
  %v370 = vld [vmem:[%s4 + $0x640] sm:$0xff]
  %v371 = vld [vmem:[%s4 + $0x648] sm:$0xff]
  %v372 = vld [vmem:[%s4 + $0x650] sm:$0xff]
  %v373 = vld [vmem:[%s4 + $0x658] sm:$0xff]
  %v374 = vld [vmem:[%s4 + $0x660] sm:$0xff]
  %v375 = vld [vmem:[%s4 + $0x668] sm:$0xff]
  %v376 = vld [vmem:[%s4 + $0x670] sm:$0xff]
  %v377 = vld [vmem:[%s4 + $0x678] sm:$0xff]
  %v378 = vld [vmem:[%s4 + $0x680] sm:$0xff]
  %v379 = vld [vmem:[%s4 + $0x688] sm:$0xff]
  %v380 = vld [vmem:[%s4 + $0x690] sm:$0xff]
  %v381 = vld [vmem:[%s4 + $0x698] sm:$0xff]
  %v382 = vld [vmem:[%s4 + $0x6a0] sm:$0xff]
  %v383 = vld [vmem:[%s4 + $0x6a8] sm:$0xff]
  %v384 = vld [vmem:[%s4 + $0x6b0] sm:$0xff]
  %v385 = vld [vmem:[%s4 + $0x6b8] sm:$0xff]
  %v386 = vld [vmem:[%s4 + $0x6c0] sm:$0xff]
  %v387 = vld [vmem:[%s4 + $0x6c8] sm:$0xff]
  %v388 = vld [vmem:[%s4 + $0x6d0] sm:$0xff]
  %v389 = vld [vmem:[%s4 + $0x6d8] sm:$0xff]
  %v390 = vld [vmem:[%s4 + $0x6e0] sm:$0xff]
  %v391 = vld [vmem:[%s4 + $0x6e8] sm:$0xff]
  %v392 = vld [vmem:[%s4 + $0x6f0] sm:$0xff]
  %v393 = vld [vmem:[%s4 + $0x6f8] sm:$0xff]
  %v394 = vld [vmem:[%s4 + $0x700] sm:$0xff]
  %v395 = vld [vmem:[%s4 + $0x708] sm:$0xff]
  %v396 = vld [vmem:[%s4 + $0x710] sm:$0xff]
  %v397 = vld [vmem:[%s4 + $0x718] sm:$0xff]
  %v398 = vld [vmem:[%s4 + $0x720] sm:$0xff]
  %v399 = vld [vmem:[%s4 + $0x728] sm:$0xff]
  %v400 = vld [vmem:[%s4 + $0x730] sm:$0xff]
  %v401 = vld [vmem:[%s4 + $0x738] sm:$0xff]
  %v402 = vld [vmem:[%s4 + $0x740] sm:$0xff]
  %v403 = vld [vmem:[%s4 + $0x748] sm:$0xff]
  %v404 = vld [vmem:[%s4 + $0x750] sm:$0xff]
  %v405 = vld [vmem:[%s4 + $0x758] sm:$0xff]
  %v406 = vld [vmem:[%s4 + $0x760] sm:$0xff]
  %v407 = vld [vmem:[%s4 + $0x768] sm:$0xff]
  %v408 = vld [vmem:[%s4 + $0x770] sm:$0xff]
  %v409 = vld [vmem:[%s4 + $0x778] sm:$0xff]
  %v410 = vld [vmem:[%s4 + $0x780] sm:$0xff]
  %v411 = vld [vmem:[%s4 + $0x788] sm:$0xff]
  %v412 = vld [vmem:[%s4 + $0x790] sm:$0xff]
  %v413 = vld [vmem:[%s4 + $0x798] sm:$0xff]
  %v414 = vld [vmem:[%s4 + $0x7a0] sm:$0xff]
  %v415 = vld [vmem:[%s4 + $0x7a8] sm:$0xff]
  %v416 = vld [vmem:[%s4 + $0x7b0] sm:$0xff]
  %v417 = vld [vmem:[%s4 + $0x7b8] sm:$0xff]
  %v418 = vld [vmem:[%s4 + $0x7c0] sm:$0xff]
  %v419 = vld [vmem:[%s4 + $0x7c8] sm:$0xff]
  %v420 = vld [vmem:[%s4 + $0x7d0] sm:$0xff]
  %v421 = vld [vmem:[%s4 + $0x7d8] sm:$0xff]
  %v422 = vld [vmem:[%s4 + $0x7e0] sm:$0xff]
  %v423 = vld [vmem:[%s4 + $0x7e8] sm:$0xff]
  %v424 = vld [vmem:[%s4 + $0x7f0] sm:$0xff]
  %v425 = vld [vmem:[%s4 + $0x7f8] sm:$0xff]
  %v426 = vpack.c.bf16 %v162, %v162
  %v427 = vpack.c.bf16 %v163, %v163
  %v428 = vpack.c.bf16 %v164, %v164
  %v429 = vpack.c.bf16 %v165, %v165
  %v430 = vpack.c.bf16 %v166, %v166
  %v431 = vpack.c.bf16 %v167, %v167
  %v432 = vpack.c.bf16 %v168, %v168
  %v433 = vpack.c.bf16 %v169, %v169
  %v690 = vunpack.c.l.b16 %v170
  %v691 = vunpack.c.h.b16 %v170
  %v692 = vunpack.c.l.b16 %v171
  %v693 = vunpack.c.h.b16 %v171
  %v694 = vunpack.c.l.b16 %v172
  %v695 = vunpack.c.h.b16 %v172
  %v696 = vunpack.c.l.b16 %v173
  %v697 = vunpack.c.h.b16 %v173
  %v698 = vunpack.c.l.b16 %v174
  %v699 = vunpack.c.h.b16 %v174
  %v700 = vunpack.c.l.b16 %v175
  %v701 = vunpack.c.h.b16 %v175
  %v702 = vunpack.c.l.b16 %v176
  %v703 = vunpack.c.h.b16 %v176
  %v704 = vunpack.c.l.b16 %v177
  %v705 = vunpack.c.h.b16 %v177
  %v706 = vunpack.c.l.b16 %v178
  %v707 = vunpack.c.h.b16 %v178
  %v708 = vunpack.c.l.b16 %v179
  %v709 = vunpack.c.h.b16 %v179
  %v710 = vunpack.c.l.b16 %v180
  %v711 = vunpack.c.h.b16 %v180
  %v712 = vunpack.c.l.b16 %v181
  %v713 = vunpack.c.h.b16 %v181
  %v714 = vunpack.c.l.b16 %v182
  %v715 = vunpack.c.h.b16 %v182
  %v716 = vunpack.c.l.b16 %v183
  %v717 = vunpack.c.h.b16 %v183
  %v718 = vunpack.c.l.b16 %v184
  %v719 = vunpack.c.h.b16 %v184
  %v720 = vunpack.c.l.b16 %v185
  %v721 = vunpack.c.h.b16 %v185
  %v722 = vunpack.c.l.b16 %v186
  %v723 = vunpack.c.h.b16 %v186
  %v724 = vunpack.c.l.b16 %v187
  %v725 = vunpack.c.h.b16 %v187
  %v726 = vunpack.c.l.b16 %v188
  %v727 = vunpack.c.h.b16 %v188
  %v728 = vunpack.c.l.b16 %v189
  %v729 = vunpack.c.h.b16 %v189
  %v730 = vunpack.c.l.b16 %v190
  %v731 = vunpack.c.h.b16 %v190
  %v732 = vunpack.c.l.b16 %v191
  %v733 = vunpack.c.h.b16 %v191
  %v734 = vunpack.c.l.b16 %v192
  %v735 = vunpack.c.h.b16 %v192
  %v736 = vunpack.c.l.b16 %v193
  %v737 = vunpack.c.h.b16 %v193
  %v738 = vunpack.c.l.b16 %v194
  %v739 = vunpack.c.h.b16 %v194
  %v740 = vunpack.c.l.b16 %v195
  %v741 = vunpack.c.h.b16 %v195
  %v742 = vunpack.c.l.b16 %v196
  %v743 = vunpack.c.h.b16 %v196
  %v744 = vunpack.c.l.b16 %v197
  %v745 = vunpack.c.h.b16 %v197
  %v746 = vunpack.c.l.b16 %v198
  %v747 = vunpack.c.h.b16 %v198
  %v748 = vunpack.c.l.b16 %v199
  %v749 = vunpack.c.h.b16 %v199
  %v750 = vunpack.c.l.b16 %v200
  %v751 = vunpack.c.h.b16 %v200
  %v752 = vunpack.c.l.b16 %v201
  %v753 = vunpack.c.h.b16 %v201
  %v754 = vunpack.c.l.b16 %v202
  %v755 = vunpack.c.h.b16 %v202
  %v756 = vunpack.c.l.b16 %v203
  %v757 = vunpack.c.h.b16 %v203
  %v758 = vunpack.c.l.b16 %v204
  %v759 = vunpack.c.h.b16 %v204
  %v760 = vunpack.c.l.b16 %v205
  %v761 = vunpack.c.h.b16 %v205
  %v762 = vunpack.c.l.b16 %v206
  %v763 = vunpack.c.h.b16 %v206
  %v764 = vunpack.c.l.b16 %v207
  %v765 = vunpack.c.h.b16 %v207
  %v766 = vunpack.c.l.b16 %v208
  %v767 = vunpack.c.h.b16 %v208
  %v768 = vunpack.c.l.b16 %v209
  %v769 = vunpack.c.h.b16 %v209
  %v770 = vunpack.c.l.b16 %v210
  %v771 = vunpack.c.h.b16 %v210
  %v772 = vunpack.c.l.b16 %v211
  %v773 = vunpack.c.h.b16 %v211
  %v774 = vunpack.c.l.b16 %v212
  %v775 = vunpack.c.h.b16 %v212
  %v776 = vunpack.c.l.b16 %v213
  %v777 = vunpack.c.h.b16 %v213
  %v778 = vunpack.c.l.b16 %v214
  %v779 = vunpack.c.h.b16 %v214
  %v780 = vunpack.c.l.b16 %v215
  %v781 = vunpack.c.h.b16 %v215
  %v782 = vunpack.c.l.b16 %v216
  %v783 = vunpack.c.h.b16 %v216
  %v784 = vunpack.c.l.b16 %v217
  %v785 = vunpack.c.h.b16 %v217
  %v786 = vunpack.c.l.b16 %v218
  %v787 = vunpack.c.h.b16 %v218
  %v788 = vunpack.c.l.b16 %v219
  %v789 = vunpack.c.h.b16 %v219
  %v790 = vunpack.c.l.b16 %v220
  %v791 = vunpack.c.h.b16 %v220
  %v792 = vunpack.c.l.b16 %v221
  %v793 = vunpack.c.h.b16 %v221
  %v794 = vunpack.c.l.b16 %v222
  %v795 = vunpack.c.h.b16 %v222
  %v796 = vunpack.c.l.b16 %v223
  %v797 = vunpack.c.h.b16 %v223
  %v798 = vunpack.c.l.b16 %v224
  %v799 = vunpack.c.h.b16 %v224
  %v800 = vunpack.c.l.b16 %v225
  %v801 = vunpack.c.h.b16 %v225
  %v802 = vunpack.c.l.b16 %v226
  %v803 = vunpack.c.h.b16 %v226
  %v804 = vunpack.c.l.b16 %v227
  %v805 = vunpack.c.h.b16 %v227
  %v806 = vunpack.c.l.b16 %v228
  %v807 = vunpack.c.h.b16 %v228
  %v808 = vunpack.c.l.b16 %v229
  %v809 = vunpack.c.h.b16 %v229
  %v810 = vunpack.c.l.b16 %v230
  %v811 = vunpack.c.h.b16 %v230
  %v812 = vunpack.c.l.b16 %v231
  %v813 = vunpack.c.h.b16 %v231
  %v814 = vunpack.c.l.b16 %v232
  %v815 = vunpack.c.h.b16 %v232
  %v816 = vunpack.c.l.b16 %v233
  %v817 = vunpack.c.h.b16 %v233
  %v818 = vunpack.c.l.b16 %v234
  %v819 = vunpack.c.h.b16 %v234
  %v820 = vunpack.c.l.b16 %v235
  %v821 = vunpack.c.h.b16 %v235
  %v822 = vunpack.c.l.b16 %v236
  %v823 = vunpack.c.h.b16 %v236
  %v824 = vunpack.c.l.b16 %v237
  %v825 = vunpack.c.h.b16 %v237
  %v826 = vunpack.c.l.b16 %v238
  %v827 = vunpack.c.h.b16 %v238
  %v828 = vunpack.c.l.b16 %v239
  %v829 = vunpack.c.h.b16 %v239
  %v830 = vunpack.c.l.b16 %v240
  %v831 = vunpack.c.h.b16 %v240
  %v832 = vunpack.c.l.b16 %v241
  %v833 = vunpack.c.h.b16 %v241
  %v834 = vunpack.c.l.b16 %v242
  %v835 = vunpack.c.h.b16 %v242
  %v836 = vunpack.c.l.b16 %v243
  %v837 = vunpack.c.h.b16 %v243
  %v838 = vunpack.c.l.b16 %v244
  %v839 = vunpack.c.h.b16 %v244
  %v840 = vunpack.c.l.b16 %v245
  %v841 = vunpack.c.h.b16 %v245
  %v842 = vunpack.c.l.b16 %v246
  %v843 = vunpack.c.h.b16 %v246
  %v844 = vunpack.c.l.b16 %v247
  %v845 = vunpack.c.h.b16 %v247
  %v846 = vunpack.c.l.b16 %v248
  %v847 = vunpack.c.h.b16 %v248
  %v848 = vunpack.c.l.b16 %v249
  %v849 = vunpack.c.h.b16 %v249
  %v850 = vunpack.c.l.b16 %v250
  %v851 = vunpack.c.h.b16 %v250
  %v852 = vunpack.c.l.b16 %v251
  %v853 = vunpack.c.h.b16 %v251
  %v854 = vunpack.c.l.b16 %v252
  %v855 = vunpack.c.h.b16 %v252
  %v856 = vunpack.c.l.b16 %v253
  %v857 = vunpack.c.h.b16 %v253
  %v858 = vunpack.c.l.b16 %v254
  %v859 = vunpack.c.h.b16 %v254
  %v860 = vunpack.c.l.b16 %v255
  %v861 = vunpack.c.h.b16 %v255
  %v862 = vunpack.c.l.b16 %v256
  %v863 = vunpack.c.h.b16 %v256
  %v864 = vunpack.c.l.b16 %v257
  %v865 = vunpack.c.h.b16 %v257
  %v866 = vunpack.c.l.b16 %v258
  %v867 = vunpack.c.h.b16 %v258
  %v868 = vunpack.c.l.b16 %v259
  %v869 = vunpack.c.h.b16 %v259
  %v870 = vunpack.c.l.b16 %v260
  %v871 = vunpack.c.h.b16 %v260
  %v872 = vunpack.c.l.b16 %v261
  %v873 = vunpack.c.h.b16 %v261
  %v874 = vunpack.c.l.b16 %v262
  %v875 = vunpack.c.h.b16 %v262
  %v876 = vunpack.c.l.b16 %v263
  %v877 = vunpack.c.h.b16 %v263
  %v878 = vunpack.c.l.b16 %v264
  %v879 = vunpack.c.h.b16 %v264
  %v880 = vunpack.c.l.b16 %v265
  %v881 = vunpack.c.h.b16 %v265
  %v882 = vunpack.c.l.b16 %v266
  %v883 = vunpack.c.h.b16 %v266
  %v884 = vunpack.c.l.b16 %v267
  %v885 = vunpack.c.h.b16 %v267
  %v886 = vunpack.c.l.b16 %v268
  %v887 = vunpack.c.h.b16 %v268
  %v888 = vunpack.c.l.b16 %v269
  %v889 = vunpack.c.h.b16 %v269
  %v890 = vunpack.c.l.b16 %v270
  %v891 = vunpack.c.h.b16 %v270
  %v892 = vunpack.c.l.b16 %v271
  %v893 = vunpack.c.h.b16 %v271
  %v894 = vunpack.c.l.b16 %v272
  %v895 = vunpack.c.h.b16 %v272
  %v896 = vunpack.c.l.b16 %v273
  %v897 = vunpack.c.h.b16 %v273
  %v898 = vunpack.c.l.b16 %v274
  %v899 = vunpack.c.h.b16 %v274
  %v900 = vunpack.c.l.b16 %v275
  %v901 = vunpack.c.h.b16 %v275
  %v902 = vunpack.c.l.b16 %v276
  %v903 = vunpack.c.h.b16 %v276
  %v904 = vunpack.c.l.b16 %v277
  %v905 = vunpack.c.h.b16 %v277
  %v906 = vunpack.c.l.b16 %v278
  %v907 = vunpack.c.h.b16 %v278
  %v908 = vunpack.c.l.b16 %v279
  %v909 = vunpack.c.h.b16 %v279
  %v910 = vunpack.c.l.b16 %v280
  %v911 = vunpack.c.h.b16 %v280
  %v912 = vunpack.c.l.b16 %v281
  %v913 = vunpack.c.h.b16 %v281
  %v914 = vunpack.c.l.b16 %v282
  %v915 = vunpack.c.h.b16 %v282
  %v916 = vunpack.c.l.b16 %v283
  %v917 = vunpack.c.h.b16 %v283
  %v918 = vunpack.c.l.b16 %v284
  %v919 = vunpack.c.h.b16 %v284
  %v920 = vunpack.c.l.b16 %v285
  %v921 = vunpack.c.h.b16 %v285
  %v922 = vunpack.c.l.b16 %v286
  %v923 = vunpack.c.h.b16 %v286
  %v924 = vunpack.c.l.b16 %v287
  %v925 = vunpack.c.h.b16 %v287
  %v926 = vunpack.c.l.b16 %v288
  %v927 = vunpack.c.h.b16 %v288
  %v928 = vunpack.c.l.b16 %v289
  %v929 = vunpack.c.h.b16 %v289
  %v930 = vunpack.c.l.b16 %v290
  %v931 = vunpack.c.h.b16 %v290
  %v932 = vunpack.c.l.b16 %v291
  %v933 = vunpack.c.h.b16 %v291
  %v934 = vunpack.c.l.b16 %v292
  %v935 = vunpack.c.h.b16 %v292
  %v936 = vunpack.c.l.b16 %v293
  %v937 = vunpack.c.h.b16 %v293
  %v938 = vunpack.c.l.b16 %v294
  %v939 = vunpack.c.h.b16 %v294
  %v940 = vunpack.c.l.b16 %v295
  %v941 = vunpack.c.h.b16 %v295
  %v942 = vunpack.c.l.b16 %v296
  %v943 = vunpack.c.h.b16 %v296
  %v944 = vunpack.c.l.b16 %v297
  %v945 = vunpack.c.h.b16 %v297
  %v946 = vunpack.c.l.b16 %v298
  %v947 = vunpack.c.h.b16 %v298
  %v948 = vunpack.c.l.b16 %v299
  %v949 = vunpack.c.h.b16 %v299
  %v950 = vunpack.c.l.b16 %v300
  %v951 = vunpack.c.h.b16 %v300
  %v952 = vunpack.c.l.b16 %v301
  %v953 = vunpack.c.h.b16 %v301
  %v954 = vunpack.c.l.b16 %v302
  %v955 = vunpack.c.h.b16 %v302
  %v956 = vunpack.c.l.b16 %v303
  %v957 = vunpack.c.h.b16 %v303
  %v958 = vunpack.c.l.b16 %v304
  %v959 = vunpack.c.h.b16 %v304
  %v960 = vunpack.c.l.b16 %v305
  %v961 = vunpack.c.h.b16 %v305
  %v962 = vunpack.c.l.b16 %v306
  %v963 = vunpack.c.h.b16 %v306
  %v964 = vunpack.c.l.b16 %v307
  %v965 = vunpack.c.h.b16 %v307
  %v966 = vunpack.c.l.b16 %v308
  %v967 = vunpack.c.h.b16 %v308
  %v968 = vunpack.c.l.b16 %v309
  %v969 = vunpack.c.h.b16 %v309
  %v970 = vunpack.c.l.b16 %v310
  %v971 = vunpack.c.h.b16 %v310
  %v972 = vunpack.c.l.b16 %v311
  %v973 = vunpack.c.h.b16 %v311
  %v974 = vunpack.c.l.b16 %v312
  %v975 = vunpack.c.h.b16 %v312
  %v976 = vunpack.c.l.b16 %v313
  %v977 = vunpack.c.h.b16 %v313
  %v978 = vunpack.c.l.b16 %v314
  %v979 = vunpack.c.h.b16 %v314
  %v980 = vunpack.c.l.b16 %v315
  %v981 = vunpack.c.h.b16 %v315
  %v982 = vunpack.c.l.b16 %v316
  %v983 = vunpack.c.h.b16 %v316
  %v984 = vunpack.c.l.b16 %v317
  %v985 = vunpack.c.h.b16 %v317
  %v986 = vunpack.c.l.b16 %v318
  %v987 = vunpack.c.h.b16 %v318
  %v988 = vunpack.c.l.b16 %v319
  %v989 = vunpack.c.h.b16 %v319
  %v990 = vunpack.c.l.b16 %v320
  %v991 = vunpack.c.h.b16 %v320
  %v992 = vunpack.c.l.b16 %v321
  %v993 = vunpack.c.h.b16 %v321
  %v994 = vunpack.c.l.b16 %v322
  %v995 = vunpack.c.h.b16 %v322
  %v996 = vunpack.c.l.b16 %v323
  %v997 = vunpack.c.h.b16 %v323
  %v998 = vunpack.c.l.b16 %v324
  %v999 = vunpack.c.h.b16 %v324
  %v1000 = vunpack.c.l.b16 %v325
  %v1001 = vunpack.c.h.b16 %v325
  %v1002 = vunpack.c.l.b16 %v326
  %v1003 = vunpack.c.h.b16 %v326
  %v1004 = vunpack.c.l.b16 %v327
  %v1005 = vunpack.c.h.b16 %v327
  %v1006 = vunpack.c.l.b16 %v328
  %v1007 = vunpack.c.h.b16 %v328
  %v1008 = vunpack.c.l.b16 %v329
  %v1009 = vunpack.c.h.b16 %v329
  %v1010 = vunpack.c.l.b16 %v330
  %v1011 = vunpack.c.h.b16 %v330
  %v1012 = vunpack.c.l.b16 %v331
  %v1013 = vunpack.c.h.b16 %v331
  %v1014 = vunpack.c.l.b16 %v332
  %v1015 = vunpack.c.h.b16 %v332
  %v1016 = vunpack.c.l.b16 %v333
  %v1017 = vunpack.c.h.b16 %v333
  %v1018 = vunpack.c.l.b16 %v334
  %v1019 = vunpack.c.h.b16 %v334
  %v1020 = vunpack.c.l.b16 %v335
  %v1021 = vunpack.c.h.b16 %v335
  %v1022 = vunpack.c.l.b16 %v336
  %v1023 = vunpack.c.h.b16 %v336
  %v1024 = vunpack.c.l.b16 %v337
  %v1025 = vunpack.c.h.b16 %v337
  %v1026 = vunpack.c.l.b16 %v338
  %v1027 = vunpack.c.h.b16 %v338
  %v1028 = vunpack.c.l.b16 %v339
  %v1029 = vunpack.c.h.b16 %v339
  %v1030 = vunpack.c.l.b16 %v340
  %v1031 = vunpack.c.h.b16 %v340
  %v1032 = vunpack.c.l.b16 %v341
  %v1033 = vunpack.c.h.b16 %v341
  %v1034 = vunpack.c.l.b16 %v342
  %v1035 = vunpack.c.h.b16 %v342
  %v1036 = vunpack.c.l.b16 %v343
  %v1037 = vunpack.c.h.b16 %v343
  %v1038 = vunpack.c.l.b16 %v344
  %v1039 = vunpack.c.h.b16 %v344
  %v1040 = vunpack.c.l.b16 %v345
  %v1041 = vunpack.c.h.b16 %v345
  %v1042 = vunpack.c.l.b16 %v346
  %v1043 = vunpack.c.h.b16 %v346
  %v1044 = vunpack.c.l.b16 %v347
  %v1045 = vunpack.c.h.b16 %v347
  %v1046 = vunpack.c.l.b16 %v348
  %v1047 = vunpack.c.h.b16 %v348
  %v1048 = vunpack.c.l.b16 %v349
  %v1049 = vunpack.c.h.b16 %v349
  %v1050 = vunpack.c.l.b16 %v350
  %v1051 = vunpack.c.h.b16 %v350
  %v1052 = vunpack.c.l.b16 %v351
  %v1053 = vunpack.c.h.b16 %v351
  %v1054 = vunpack.c.l.b16 %v352
  %v1055 = vunpack.c.h.b16 %v352
  %v1056 = vunpack.c.l.b16 %v353
  %v1057 = vunpack.c.h.b16 %v353
  %v1058 = vunpack.c.l.b16 %v354
  %v1059 = vunpack.c.h.b16 %v354
  %v1060 = vunpack.c.l.b16 %v355
  %v1061 = vunpack.c.h.b16 %v355
  %v1062 = vunpack.c.l.b16 %v356
  %v1063 = vunpack.c.h.b16 %v356
  %v1064 = vunpack.c.l.b16 %v357
  %v1065 = vunpack.c.h.b16 %v357
  %v1066 = vunpack.c.l.b16 %v358
  %v1067 = vunpack.c.h.b16 %v358
  %v1068 = vunpack.c.l.b16 %v359
  %v1069 = vunpack.c.h.b16 %v359
  %v1070 = vunpack.c.l.b16 %v360
  %v1071 = vunpack.c.h.b16 %v360
  %v1072 = vunpack.c.l.b16 %v361
  %v1073 = vunpack.c.h.b16 %v361
  %v1074 = vunpack.c.l.b16 %v362
  %v1075 = vunpack.c.h.b16 %v362
  %v1076 = vunpack.c.l.b16 %v363
  %v1077 = vunpack.c.h.b16 %v363
  %v1078 = vunpack.c.l.b16 %v364
  %v1079 = vunpack.c.h.b16 %v364
  %v1080 = vunpack.c.l.b16 %v365
  %v1081 = vunpack.c.h.b16 %v365
  %v1082 = vunpack.c.l.b16 %v366
  %v1083 = vunpack.c.h.b16 %v366
  %v1084 = vunpack.c.l.b16 %v367
  %v1085 = vunpack.c.h.b16 %v367
  %v1086 = vunpack.c.l.b16 %v368
  %v1087 = vunpack.c.h.b16 %v368
  %v1088 = vunpack.c.l.b16 %v369
  %v1089 = vunpack.c.h.b16 %v369
  %v1090 = vunpack.c.l.b16 %v370
  %v1091 = vunpack.c.h.b16 %v370
  %v1092 = vunpack.c.l.b16 %v371
  %v1093 = vunpack.c.h.b16 %v371
  %v1094 = vunpack.c.l.b16 %v372
  %v1095 = vunpack.c.h.b16 %v372
  %v1096 = vunpack.c.l.b16 %v373
  %v1097 = vunpack.c.h.b16 %v373
  %v1098 = vunpack.c.l.b16 %v374
  %v1099 = vunpack.c.h.b16 %v374
  %v1100 = vunpack.c.l.b16 %v375
  %v1101 = vunpack.c.h.b16 %v375
  %v1102 = vunpack.c.l.b16 %v376
  %v1103 = vunpack.c.h.b16 %v376
  %v1104 = vunpack.c.l.b16 %v377
  %v1105 = vunpack.c.h.b16 %v377
  %v1106 = vunpack.c.l.b16 %v378
  %v1107 = vunpack.c.h.b16 %v378
  %v1108 = vunpack.c.l.b16 %v379
  %v1109 = vunpack.c.h.b16 %v379
  %v1110 = vunpack.c.l.b16 %v380
  %v1111 = vunpack.c.h.b16 %v380
  %v1112 = vunpack.c.l.b16 %v381
  %v1113 = vunpack.c.h.b16 %v381
  %v1114 = vunpack.c.l.b16 %v382
  %v1115 = vunpack.c.h.b16 %v382
  %v1116 = vunpack.c.l.b16 %v383
  %v1117 = vunpack.c.h.b16 %v383
  %v1118 = vunpack.c.l.b16 %v384
  %v1119 = vunpack.c.h.b16 %v384
  %v1120 = vunpack.c.l.b16 %v385
  %v1121 = vunpack.c.h.b16 %v385
  %v1122 = vunpack.c.l.b16 %v386
  %v1123 = vunpack.c.h.b16 %v386
  %v1124 = vunpack.c.l.b16 %v387
  %v1125 = vunpack.c.h.b16 %v387
  %v1126 = vunpack.c.l.b16 %v388
  %v1127 = vunpack.c.h.b16 %v388
  %v1128 = vunpack.c.l.b16 %v389
  %v1129 = vunpack.c.h.b16 %v389
  %v1130 = vunpack.c.l.b16 %v390
  %v1131 = vunpack.c.h.b16 %v390
  %v1132 = vunpack.c.l.b16 %v391
  %v1133 = vunpack.c.h.b16 %v391
  %v1134 = vunpack.c.l.b16 %v392
  %v1135 = vunpack.c.h.b16 %v392
  %v1136 = vunpack.c.l.b16 %v393
  %v1137 = vunpack.c.h.b16 %v393
  %v1138 = vunpack.c.l.b16 %v394
  %v1139 = vunpack.c.h.b16 %v394
  %v1140 = vunpack.c.l.b16 %v395
  %v1141 = vunpack.c.h.b16 %v395
  %v1142 = vunpack.c.l.b16 %v396
  %v1143 = vunpack.c.h.b16 %v396
  %v1144 = vunpack.c.l.b16 %v397
  %v1145 = vunpack.c.h.b16 %v397
  %v1146 = vunpack.c.l.b16 %v398
  %v1147 = vunpack.c.h.b16 %v398
  %v1148 = vunpack.c.l.b16 %v399
  %v1149 = vunpack.c.h.b16 %v399
  %v1150 = vunpack.c.l.b16 %v400
  %v1151 = vunpack.c.h.b16 %v400
  %v1152 = vunpack.c.l.b16 %v401
  %v1153 = vunpack.c.h.b16 %v401
  %v1154 = vunpack.c.l.b16 %v402
  %v1155 = vunpack.c.h.b16 %v402
  %v1156 = vunpack.c.l.b16 %v403
  %v1157 = vunpack.c.h.b16 %v403
  %v1158 = vunpack.c.l.b16 %v404
  %v1159 = vunpack.c.h.b16 %v404
  %v1160 = vunpack.c.l.b16 %v405
  %v1161 = vunpack.c.h.b16 %v405
  %v1162 = vunpack.c.l.b16 %v406
  %v1163 = vunpack.c.h.b16 %v406
  %v1164 = vunpack.c.l.b16 %v407
  %v1165 = vunpack.c.h.b16 %v407
  %v1166 = vunpack.c.l.b16 %v408
  %v1167 = vunpack.c.h.b16 %v408
  %v1168 = vunpack.c.l.b16 %v409
  %v1169 = vunpack.c.h.b16 %v409
  %v1170 = vunpack.c.l.b16 %v410
  %v1171 = vunpack.c.h.b16 %v410
  %v1172 = vunpack.c.l.b16 %v411
  %v1173 = vunpack.c.h.b16 %v411
  %v1174 = vunpack.c.l.b16 %v412
  %v1175 = vunpack.c.h.b16 %v412
  %v1176 = vunpack.c.l.b16 %v413
  %v1177 = vunpack.c.h.b16 %v413
  %v1178 = vunpack.c.l.b16 %v414
  %v1179 = vunpack.c.h.b16 %v414
  %v1180 = vunpack.c.l.b16 %v415
  %v1181 = vunpack.c.h.b16 %v415
  %v1182 = vunpack.c.l.b16 %v416
  %v1183 = vunpack.c.h.b16 %v416
  %v1184 = vunpack.c.l.b16 %v417
  %v1185 = vunpack.c.h.b16 %v417
  %v1186 = vunpack.c.l.b16 %v418
  %v1187 = vunpack.c.h.b16 %v418
  %v1188 = vunpack.c.l.b16 %v419
  %v1189 = vunpack.c.h.b16 %v419
  %v1190 = vunpack.c.l.b16 %v420
  %v1191 = vunpack.c.h.b16 %v420
  %v1192 = vunpack.c.l.b16 %v421
  %v1193 = vunpack.c.h.b16 %v421
  %v1194 = vunpack.c.l.b16 %v422
  %v1195 = vunpack.c.h.b16 %v422
  %v1196 = vunpack.c.l.b16 %v423
  %v1197 = vunpack.c.h.b16 %v423
  %v1198 = vunpack.c.l.b16 %v424
  %v1199 = vunpack.c.h.b16 %v424
  %v1200 = vunpack.c.l.b16 %v425
  %v1201 = vunpack.c.h.b16 %v425
  %v1202 = vpack.c.b16 %v694, %v690
  %v1203 = vpack.c.b16 %v695, %v691
  %v1204 = vpack.c.b16 %v696, %v692
  %v1205 = vpack.c.b16 %v697, %v693
  %v1206 = vpack.c.b16 %v702, %v698
  %v1207 = vpack.c.b16 %v703, %v699
  %v1208 = vpack.c.b16 %v704, %v700
  %v1209 = vpack.c.b16 %v705, %v701
  %v1210 = vpack.c.b16 %v710, %v706
  %v1211 = vpack.c.b16 %v711, %v707
  %v1212 = vpack.c.b16 %v712, %v708
  %v1213 = vpack.c.b16 %v713, %v709
  %v1214 = vpack.c.b16 %v718, %v714
  %v1215 = vpack.c.b16 %v719, %v715
  %v1216 = vpack.c.b16 %v720, %v716
  %v1217 = vpack.c.b16 %v721, %v717
  %v1218 = vpack.c.b16 %v726, %v722
  %v1219 = vpack.c.b16 %v727, %v723
  %v1220 = vpack.c.b16 %v728, %v724
  %v1221 = vpack.c.b16 %v729, %v725
  %v1222 = vpack.c.b16 %v734, %v730
  %v1223 = vpack.c.b16 %v735, %v731
  %v1224 = vpack.c.b16 %v736, %v732
  %v1225 = vpack.c.b16 %v737, %v733
  %v1226 = vpack.c.b16 %v742, %v738
  %v1227 = vpack.c.b16 %v743, %v739
  %v1228 = vpack.c.b16 %v744, %v740
  %v1229 = vpack.c.b16 %v745, %v741
  %v1230 = vpack.c.b16 %v750, %v746
  %v1231 = vpack.c.b16 %v751, %v747
  %v1232 = vpack.c.b16 %v752, %v748
  %v1233 = vpack.c.b16 %v753, %v749
  %v1234 = vpack.c.b16 %v758, %v754
  %v1235 = vpack.c.b16 %v759, %v755
  %v1236 = vpack.c.b16 %v760, %v756
  %v1237 = vpack.c.b16 %v761, %v757
  %v1238 = vpack.c.b16 %v766, %v762
  %v1239 = vpack.c.b16 %v767, %v763
  %v1240 = vpack.c.b16 %v768, %v764
  %v1241 = vpack.c.b16 %v769, %v765
  %v1242 = vpack.c.b16 %v774, %v770
  %v1243 = vpack.c.b16 %v775, %v771
  %v1244 = vpack.c.b16 %v776, %v772
  %v1245 = vpack.c.b16 %v777, %v773
  %v1246 = vpack.c.b16 %v782, %v778
  %v1247 = vpack.c.b16 %v783, %v779
  %v1248 = vpack.c.b16 %v784, %v780
  %v1249 = vpack.c.b16 %v785, %v781
  %v1250 = vpack.c.b16 %v790, %v786
  %v1251 = vpack.c.b16 %v791, %v787
  %v1252 = vpack.c.b16 %v792, %v788
  %v1253 = vpack.c.b16 %v793, %v789
  %v1254 = vpack.c.b16 %v798, %v794
  %v1255 = vpack.c.b16 %v799, %v795
  %v1256 = vpack.c.b16 %v800, %v796
  %v1257 = vpack.c.b16 %v801, %v797
  %v1258 = vpack.c.b16 %v806, %v802
  %v1259 = vpack.c.b16 %v807, %v803
  %v1260 = vpack.c.b16 %v808, %v804
  %v1261 = vpack.c.b16 %v809, %v805
  %v1262 = vpack.c.b16 %v814, %v810
  %v1263 = vpack.c.b16 %v815, %v811
  %v1264 = vpack.c.b16 %v816, %v812
  %v1265 = vpack.c.b16 %v817, %v813
  %v1266 = vpack.c.b16 %v822, %v818
  %v1267 = vpack.c.b16 %v823, %v819
  %v1268 = vpack.c.b16 %v824, %v820
  %v1269 = vpack.c.b16 %v825, %v821
  %v1270 = vpack.c.b16 %v830, %v826
  %v1271 = vpack.c.b16 %v831, %v827
  %v1272 = vpack.c.b16 %v832, %v828
  %v1273 = vpack.c.b16 %v833, %v829
  %v1274 = vpack.c.b16 %v838, %v834
  %v1275 = vpack.c.b16 %v839, %v835
  %v1276 = vpack.c.b16 %v840, %v836
  %v1277 = vpack.c.b16 %v841, %v837
  %v1278 = vpack.c.b16 %v846, %v842
  %v1279 = vpack.c.b16 %v847, %v843
  %v1280 = vpack.c.b16 %v848, %v844
  %v1281 = vpack.c.b16 %v849, %v845
  %v1282 = vpack.c.b16 %v854, %v850
  %v1283 = vpack.c.b16 %v855, %v851
  %v1284 = vpack.c.b16 %v856, %v852
  %v1285 = vpack.c.b16 %v857, %v853
  %v1286 = vpack.c.b16 %v862, %v858
  %v1287 = vpack.c.b16 %v863, %v859
  %v1288 = vpack.c.b16 %v864, %v860
  %v1289 = vpack.c.b16 %v865, %v861
  %v1290 = vpack.c.b16 %v870, %v866
  %v1291 = vpack.c.b16 %v871, %v867
  %v1292 = vpack.c.b16 %v872, %v868
  %v1293 = vpack.c.b16 %v873, %v869
  %v1294 = vpack.c.b16 %v878, %v874
  %v1295 = vpack.c.b16 %v879, %v875
  %v1296 = vpack.c.b16 %v880, %v876
  %v1297 = vpack.c.b16 %v881, %v877
  %v1298 = vpack.c.b16 %v886, %v882
  %v1299 = vpack.c.b16 %v887, %v883
  %v1300 = vpack.c.b16 %v888, %v884
  %v1301 = vpack.c.b16 %v889, %v885
  %v1302 = vpack.c.b16 %v894, %v890
  %v1303 = vpack.c.b16 %v895, %v891
  %v1304 = vpack.c.b16 %v896, %v892
  %v1305 = vpack.c.b16 %v897, %v893
  %v1306 = vpack.c.b16 %v902, %v898
  %v1307 = vpack.c.b16 %v903, %v899
  %v1308 = vpack.c.b16 %v904, %v900
  %v1309 = vpack.c.b16 %v905, %v901
  %v1310 = vpack.c.b16 %v910, %v906
  %v1311 = vpack.c.b16 %v911, %v907
  %v1312 = vpack.c.b16 %v912, %v908
  %v1313 = vpack.c.b16 %v913, %v909
  %v1314 = vpack.c.b16 %v918, %v914
  %v1315 = vpack.c.b16 %v919, %v915
  %v1316 = vpack.c.b16 %v920, %v916
  %v1317 = vpack.c.b16 %v921, %v917
  %v1318 = vpack.c.b16 %v926, %v922
  %v1319 = vpack.c.b16 %v927, %v923
  %v1320 = vpack.c.b16 %v928, %v924
  %v1321 = vpack.c.b16 %v929, %v925
  %v1322 = vpack.c.b16 %v934, %v930
  %v1323 = vpack.c.b16 %v935, %v931
  %v1324 = vpack.c.b16 %v936, %v932
  %v1325 = vpack.c.b16 %v937, %v933
  %v1326 = vpack.c.b16 %v942, %v938
  %v1327 = vpack.c.b16 %v943, %v939
  %v1328 = vpack.c.b16 %v944, %v940
  %v1329 = vpack.c.b16 %v945, %v941
  %v1330 = vpack.c.b16 %v950, %v946
  %v1331 = vpack.c.b16 %v951, %v947
  %v1332 = vpack.c.b16 %v952, %v948
  %v1333 = vpack.c.b16 %v953, %v949
  %v1334 = vpack.c.b16 %v958, %v954
  %v1335 = vpack.c.b16 %v959, %v955
  %v1336 = vpack.c.b16 %v960, %v956
  %v1337 = vpack.c.b16 %v961, %v957
  %v1338 = vpack.c.b16 %v966, %v962
  %v1339 = vpack.c.b16 %v967, %v963
  %v1340 = vpack.c.b16 %v968, %v964
  %v1341 = vpack.c.b16 %v969, %v965
  %v1342 = vpack.c.b16 %v974, %v970
  %v1343 = vpack.c.b16 %v975, %v971
  %v1344 = vpack.c.b16 %v976, %v972
  %v1345 = vpack.c.b16 %v977, %v973
  %v1346 = vpack.c.b16 %v982, %v978
  %v1347 = vpack.c.b16 %v983, %v979
  %v1348 = vpack.c.b16 %v984, %v980
  %v1349 = vpack.c.b16 %v985, %v981
  %v1350 = vpack.c.b16 %v990, %v986
  %v1351 = vpack.c.b16 %v991, %v987
  %v1352 = vpack.c.b16 %v992, %v988
  %v1353 = vpack.c.b16 %v993, %v989
  %v1354 = vpack.c.b16 %v998, %v994
  %v1355 = vpack.c.b16 %v999, %v995
  %v1356 = vpack.c.b16 %v1000, %v996
  %v1357 = vpack.c.b16 %v1001, %v997
  %v1358 = vpack.c.b16 %v1006, %v1002
  %v1359 = vpack.c.b16 %v1007, %v1003
  %v1360 = vpack.c.b16 %v1008, %v1004
  %v1361 = vpack.c.b16 %v1009, %v1005
  %v1362 = vpack.c.b16 %v1014, %v1010
  %v1363 = vpack.c.b16 %v1015, %v1011
  %v1364 = vpack.c.b16 %v1016, %v1012
  %v1365 = vpack.c.b16 %v1017, %v1013
  %v1366 = vpack.c.b16 %v1022, %v1018
  %v1367 = vpack.c.b16 %v1023, %v1019
  %v1368 = vpack.c.b16 %v1024, %v1020
  %v1369 = vpack.c.b16 %v1025, %v1021
  %v1370 = vpack.c.b16 %v1030, %v1026
  %v1371 = vpack.c.b16 %v1031, %v1027
  %v1372 = vpack.c.b16 %v1032, %v1028
  %v1373 = vpack.c.b16 %v1033, %v1029
  %v1374 = vpack.c.b16 %v1038, %v1034
  %v1375 = vpack.c.b16 %v1039, %v1035
  %v1376 = vpack.c.b16 %v1040, %v1036
  %v1377 = vpack.c.b16 %v1041, %v1037
  %v1378 = vpack.c.b16 %v1046, %v1042
  %v1379 = vpack.c.b16 %v1047, %v1043
  %v1380 = vpack.c.b16 %v1048, %v1044
  %v1381 = vpack.c.b16 %v1049, %v1045
  %v1382 = vpack.c.b16 %v1054, %v1050
  %v1383 = vpack.c.b16 %v1055, %v1051
  %v1384 = vpack.c.b16 %v1056, %v1052
  %v1385 = vpack.c.b16 %v1057, %v1053
  %v1386 = vpack.c.b16 %v1062, %v1058
  %v1387 = vpack.c.b16 %v1063, %v1059
  %v1388 = vpack.c.b16 %v1064, %v1060
  %v1389 = vpack.c.b16 %v1065, %v1061
  %v1390 = vpack.c.b16 %v1070, %v1066
  %v1391 = vpack.c.b16 %v1071, %v1067
  %v1392 = vpack.c.b16 %v1072, %v1068
  %v1393 = vpack.c.b16 %v1073, %v1069
  %v1394 = vpack.c.b16 %v1078, %v1074
  %v1395 = vpack.c.b16 %v1079, %v1075
  %v1396 = vpack.c.b16 %v1080, %v1076
  %v1397 = vpack.c.b16 %v1081, %v1077
  %v1398 = vpack.c.b16 %v1086, %v1082
  %v1399 = vpack.c.b16 %v1087, %v1083
  %v1400 = vpack.c.b16 %v1088, %v1084
  %v1401 = vpack.c.b16 %v1089, %v1085
  %v1402 = vpack.c.b16 %v1094, %v1090
  %v1403 = vpack.c.b16 %v1095, %v1091
  %v1404 = vpack.c.b16 %v1096, %v1092
  %v1405 = vpack.c.b16 %v1097, %v1093
  %v1406 = vpack.c.b16 %v1102, %v1098
  %v1407 = vpack.c.b16 %v1103, %v1099
  %v1408 = vpack.c.b16 %v1104, %v1100
  %v1409 = vpack.c.b16 %v1105, %v1101
  %v1410 = vpack.c.b16 %v1110, %v1106
  %v1411 = vpack.c.b16 %v1111, %v1107
  %v1412 = vpack.c.b16 %v1112, %v1108
  %v1413 = vpack.c.b16 %v1113, %v1109
  %v1414 = vpack.c.b16 %v1118, %v1114
  %v1415 = vpack.c.b16 %v1119, %v1115
  %v1416 = vpack.c.b16 %v1120, %v1116
  %v1417 = vpack.c.b16 %v1121, %v1117
  %v1418 = vpack.c.b16 %v1126, %v1122
  %v1419 = vpack.c.b16 %v1127, %v1123
  %v1420 = vpack.c.b16 %v1128, %v1124
  %v1421 = vpack.c.b16 %v1129, %v1125
  %v1422 = vpack.c.b16 %v1134, %v1130
  %v1423 = vpack.c.b16 %v1135, %v1131
  %v1424 = vpack.c.b16 %v1136, %v1132
  %v1425 = vpack.c.b16 %v1137, %v1133
  %v1426 = vpack.c.b16 %v1142, %v1138
  %v1427 = vpack.c.b16 %v1143, %v1139
  %v1428 = vpack.c.b16 %v1144, %v1140
  %v1429 = vpack.c.b16 %v1145, %v1141
  %v1430 = vpack.c.b16 %v1150, %v1146
  %v1431 = vpack.c.b16 %v1151, %v1147
  %v1432 = vpack.c.b16 %v1152, %v1148
  %v1433 = vpack.c.b16 %v1153, %v1149
  %v1434 = vpack.c.b16 %v1158, %v1154
  %v1435 = vpack.c.b16 %v1159, %v1155
  %v1436 = vpack.c.b16 %v1160, %v1156
  %v1437 = vpack.c.b16 %v1161, %v1157
  %v1438 = vpack.c.b16 %v1166, %v1162
  %v1439 = vpack.c.b16 %v1167, %v1163
  %v1440 = vpack.c.b16 %v1168, %v1164
  %v1441 = vpack.c.b16 %v1169, %v1165
  %v1442 = vpack.c.b16 %v1174, %v1170
  %v1443 = vpack.c.b16 %v1175, %v1171
  %v1444 = vpack.c.b16 %v1176, %v1172
  %v1445 = vpack.c.b16 %v1177, %v1173
  %v1446 = vpack.c.b16 %v1182, %v1178
  %v1447 = vpack.c.b16 %v1183, %v1179
  %v1448 = vpack.c.b16 %v1184, %v1180
  %v1449 = vpack.c.b16 %v1185, %v1181
  %v1450 = vpack.c.b16 %v1190, %v1186
  %v1451 = vpack.c.b16 %v1191, %v1187
  %v1452 = vpack.c.b16 %v1192, %v1188
  %v1453 = vpack.c.b16 %v1193, %v1189
  %v1454 = vpack.c.b16 %v1198, %v1194
  %v1455 = vpack.c.b16 %v1199, %v1195
  %v1456 = vpack.c.b16 %v1200, %v1196
  %v1457 = vpack.c.b16 %v1201, %v1197
  %1714 = vmatpush.bf16.msra.mxu0 %v1230
  %1715 = vmatpush.bf16.msra.mxu0 %v1226
  %1716 = vmatpush.bf16.msra.mxu0 %v1222
  %1717 = vmatpush.bf16.msra.mxu0 %v1218
  %1718 = vmatpush.bf16.msra.mxu0 %v1214
  %1719 = vmatpush.bf16.msra.mxu0 %v1210
  %1720 = vmatpush.bf16.msra.mxu0 %v1206
  %1721 = vmatpush.bf16.msra.mxu0 %v1202
  %1722 = vmatmul.bf16.gmra.mxu0 %v426
  %v1723 = vpop.f32.mrf.mxu0
  %v1724 = vadd.f32 0.0, %v1723
  %v1725 = vpop.f32.mrf.mxu0
  %1726 = vdwg.mxu0
  %1727 = vmatpush.bf16.msra.mxu0 %v1262
  %1728 = vmatpush.bf16.msra.mxu0 %v1258
  %1729 = vmatpush.bf16.msra.mxu0 %v1254
  %1730 = vmatpush.bf16.msra.mxu0 %v1250
  %1731 = vmatpush.bf16.msra.mxu0 %v1246
  %1732 = vmatpush.bf16.msra.mxu0 %v1242
  %1733 = vmatpush.bf16.msra.mxu0 %v1238
  %1734 = vmatpush.bf16.msra.mxu0 %v1234
  %1735 = vmatmul.bf16.gmra.mxu0 %v427
  %v1736 = vpop.f32.mrf.mxu0
  %v1737 = vadd.f32 %v1724, %v1736
  %v1738 = vpop.f32.mrf.mxu0
  %1739 = vdwg.mxu0
  %1740 = vmatpush.bf16.msra.mxu0 %v1294
  %1741 = vmatpush.bf16.msra.mxu0 %v1290
  %1742 = vmatpush.bf16.msra.mxu0 %v1286
  %1743 = vmatpush.bf16.msra.mxu0 %v1282
  %1744 = vmatpush.bf16.msra.mxu0 %v1278
  %1745 = vmatpush.bf16.msra.mxu0 %v1274
  %1746 = vmatpush.bf16.msra.mxu0 %v1270
  %1747 = vmatpush.bf16.msra.mxu0 %v1266
  %1748 = vmatmul.bf16.gmra.mxu0 %v428
  %v1749 = vpop.f32.mrf.mxu0
  %v1750 = vadd.f32 %v1737, %v1749
  %v1751 = vpop.f32.mrf.mxu0
  %1752 = vdwg.mxu0
  %1753 = vmatpush.bf16.msra.mxu0 %v1326
  %1754 = vmatpush.bf16.msra.mxu0 %v1322
  %1755 = vmatpush.bf16.msra.mxu0 %v1318
  %1756 = vmatpush.bf16.msra.mxu0 %v1314
  %1757 = vmatpush.bf16.msra.mxu0 %v1310
  %1758 = vmatpush.bf16.msra.mxu0 %v1306
  %1759 = vmatpush.bf16.msra.mxu0 %v1302
  %1760 = vmatpush.bf16.msra.mxu0 %v1298
  %1761 = vmatmul.bf16.gmra.mxu0 %v429
  %v1762 = vpop.f32.mrf.mxu0
  %v1763 = vadd.f32 %v1750, %v1762
  %v1764 = vpop.f32.mrf.mxu0
  %1765 = vdwg.mxu0
  %1766 = vmatpush.bf16.msra.mxu0 %v1358
  %1767 = vmatpush.bf16.msra.mxu0 %v1354
  %1768 = vmatpush.bf16.msra.mxu0 %v1350
  %1769 = vmatpush.bf16.msra.mxu0 %v1346
  %1770 = vmatpush.bf16.msra.mxu0 %v1342
  %1771 = vmatpush.bf16.msra.mxu0 %v1338
  %1772 = vmatpush.bf16.msra.mxu0 %v1334
  %1773 = vmatpush.bf16.msra.mxu0 %v1330
  %1774 = vmatmul.bf16.gmra.mxu0 %v430
  %v1775 = vpop.f32.mrf.mxu0
  %v1776 = vadd.f32 %v1763, %v1775
  %v1777 = vpop.f32.mrf.mxu0
  %1778 = vdwg.mxu0
  %1779 = vmatpush.bf16.msra.mxu0 %v1390
  %1780 = vmatpush.bf16.msra.mxu0 %v1386
  %1781 = vmatpush.bf16.msra.mxu0 %v1382
  %1782 = vmatpush.bf16.msra.mxu0 %v1378
  %1783 = vmatpush.bf16.msra.mxu0 %v1374
  %1784 = vmatpush.bf16.msra.mxu0 %v1370
  %1785 = vmatpush.bf16.msra.mxu0 %v1366
  %1786 = vmatpush.bf16.msra.mxu0 %v1362
  %1787 = vmatmul.bf16.gmra.mxu0 %v431
  %v1788 = vpop.f32.mrf.mxu0
  %v1789 = vadd.f32 %v1776, %v1788
  %v1790 = vpop.f32.mrf.mxu0
  %1791 = vdwg.mxu0
  %1792 = vmatpush.bf16.msra.mxu0 %v1422
  %1793 = vmatpush.bf16.msra.mxu0 %v1418
  %1794 = vmatpush.bf16.msra.mxu0 %v1414
  %1795 = vmatpush.bf16.msra.mxu0 %v1410
  %1796 = vmatpush.bf16.msra.mxu0 %v1406
  %1797 = vmatpush.bf16.msra.mxu0 %v1402
  %1798 = vmatpush.bf16.msra.mxu0 %v1398
  %1799 = vmatpush.bf16.msra.mxu0 %v1394
  %1800 = vmatmul.bf16.gmra.mxu0 %v432
  %v1801 = vpop.f32.mrf.mxu0
  %v1802 = vadd.f32 %v1789, %v1801
  %v1803 = vpop.f32.mrf.mxu0
  %1804 = vdwg.mxu0
  %1805 = vmatpush.bf16.msra.mxu0 %v1454
  %1806 = vmatpush.bf16.msra.mxu0 %v1450
  %1807 = vmatpush.bf16.msra.mxu0 %v1446
  %1808 = vmatpush.bf16.msra.mxu0 %v1442
  %1809 = vmatpush.bf16.msra.mxu0 %v1438
  %1810 = vmatpush.bf16.msra.mxu0 %v1434
  %1811 = vmatpush.bf16.msra.mxu0 %v1430
  %1812 = vmatpush.bf16.msra.mxu0 %v1426
  %1813 = vmatmul.bf16.gmra.mxu0 %v433
  %v1814 = vpop.f32.mrf.mxu0
  %v1815 = vadd.f32 %v1802, %v1814
  %v1816 = vpop.f32.mrf.mxu0
  %1817 = vdwg.mxu0
  %1818 = vmatpush.bf16.msra.mxu0 %v1231
  %1819 = vmatpush.bf16.msra.mxu0 %v1227
  %1820 = vmatpush.bf16.msra.mxu0 %v1223
  %1821 = vmatpush.bf16.msra.mxu0 %v1219
  %1822 = vmatpush.bf16.msra.mxu0 %v1215
  %1823 = vmatpush.bf16.msra.mxu0 %v1211
  %1824 = vmatpush.bf16.msra.mxu0 %v1207
  %1825 = vmatpush.bf16.msra.mxu0 %v1203
  %1826 = vmatmul.bf16.gmra.mxu0 %v426
  %v1827 = vpop.f32.mrf.mxu0
  %v1828 = vadd.f32 0.0, %v1827
  %v1829 = vpop.f32.mrf.mxu0
  %1830 = vdwg.mxu0
  %1831 = vmatpush.bf16.msra.mxu0 %v1263
  %1832 = vmatpush.bf16.msra.mxu0 %v1259
  %1833 = vmatpush.bf16.msra.mxu0 %v1255
  %1834 = vmatpush.bf16.msra.mxu0 %v1251
  %1835 = vmatpush.bf16.msra.mxu0 %v1247
  %1836 = vmatpush.bf16.msra.mxu0 %v1243
  %1837 = vmatpush.bf16.msra.mxu0 %v1239
  %1838 = vmatpush.bf16.msra.mxu0 %v1235
  %1839 = vmatmul.bf16.gmra.mxu0 %v427
  %v1840 = vpop.f32.mrf.mxu0
  %v1841 = vadd.f32 %v1828, %v1840
  %v1842 = vpop.f32.mrf.mxu0
  %1843 = vdwg.mxu0
  %1844 = vmatpush.bf16.msra.mxu0 %v1295
  %1845 = vmatpush.bf16.msra.mxu0 %v1291
  %1846 = vmatpush.bf16.msra.mxu0 %v1287
  %1847 = vmatpush.bf16.msra.mxu0 %v1283
  %1848 = vmatpush.bf16.msra.mxu0 %v1279
  %1849 = vmatpush.bf16.msra.mxu0 %v1275
  %1850 = vmatpush.bf16.msra.mxu0 %v1271
  %1851 = vmatpush.bf16.msra.mxu0 %v1267
  %1852 = vmatmul.bf16.gmra.mxu0 %v428
  %v1853 = vpop.f32.mrf.mxu0
  %v1854 = vadd.f32 %v1841, %v1853
  %v1855 = vpop.f32.mrf.mxu0
  %1856 = vdwg.mxu0
  %1857 = vmatpush.bf16.msra.mxu0 %v1327
  %1858 = vmatpush.bf16.msra.mxu0 %v1323
  %1859 = vmatpush.bf16.msra.mxu0 %v1319
  %1860 = vmatpush.bf16.msra.mxu0 %v1315
  %1861 = vmatpush.bf16.msra.mxu0 %v1311
  %1862 = vmatpush.bf16.msra.mxu0 %v1307
  %1863 = vmatpush.bf16.msra.mxu0 %v1303
  %1864 = vmatpush.bf16.msra.mxu0 %v1299
  %1865 = vmatmul.bf16.gmra.mxu0 %v429
  %v1866 = vpop.f32.mrf.mxu0
  %v1867 = vadd.f32 %v1854, %v1866
  %v1868 = vpop.f32.mrf.mxu0
  %1869 = vdwg.mxu0
  %1870 = vmatpush.bf16.msra.mxu0 %v1359
  %1871 = vmatpush.bf16.msra.mxu0 %v1355
  %1872 = vmatpush.bf16.msra.mxu0 %v1351
  %1873 = vmatpush.bf16.msra.mxu0 %v1347
  %1874 = vmatpush.bf16.msra.mxu0 %v1343
  %1875 = vmatpush.bf16.msra.mxu0 %v1339
  %1876 = vmatpush.bf16.msra.mxu0 %v1335
  %1877 = vmatpush.bf16.msra.mxu0 %v1331
  %1878 = vmatmul.bf16.gmra.mxu0 %v430
  %v1879 = vpop.f32.mrf.mxu0
  %v1880 = vadd.f32 %v1867, %v1879
  %v1881 = vpop.f32.mrf.mxu0
  %1882 = vdwg.mxu0
  %1883 = vmatpush.bf16.msra.mxu0 %v1391
  %1884 = vmatpush.bf16.msra.mxu0 %v1387
  %1885 = vmatpush.bf16.msra.mxu0 %v1383
  %1886 = vmatpush.bf16.msra.mxu0 %v1379
  %1887 = vmatpush.bf16.msra.mxu0 %v1375
  %1888 = vmatpush.bf16.msra.mxu0 %v1371
  %1889 = vmatpush.bf16.msra.mxu0 %v1367
  %1890 = vmatpush.bf16.msra.mxu0 %v1363
  %1891 = vmatmul.bf16.gmra.mxu0 %v431
  %v1892 = vpop.f32.mrf.mxu0
  %v1893 = vadd.f32 %v1880, %v1892
  %v1894 = vpop.f32.mrf.mxu0
  %1895 = vdwg.mxu0
  %1896 = vmatpush.bf16.msra.mxu0 %v1423
  %1897 = vmatpush.bf16.msra.mxu0 %v1419
  %1898 = vmatpush.bf16.msra.mxu0 %v1415
  %1899 = vmatpush.bf16.msra.mxu0 %v1411
  %1900 = vmatpush.bf16.msra.mxu0 %v1407
  %1901 = vmatpush.bf16.msra.mxu0 %v1403
  %1902 = vmatpush.bf16.msra.mxu0 %v1399
  %1903 = vmatpush.bf16.msra.mxu0 %v1395
  %1904 = vmatmul.bf16.gmra.mxu0 %v432
  %v1905 = vpop.f32.mrf.mxu0
  %v1906 = vadd.f32 %v1893, %v1905
  %v1907 = vpop.f32.mrf.mxu0
  %1908 = vdwg.mxu0
  %1909 = vmatpush.bf16.msra.mxu0 %v1455
  %1910 = vmatpush.bf16.msra.mxu0 %v1451
  %1911 = vmatpush.bf16.msra.mxu0 %v1447
  %1912 = vmatpush.bf16.msra.mxu0 %v1443
  %1913 = vmatpush.bf16.msra.mxu0 %v1439
  %1914 = vmatpush.bf16.msra.mxu0 %v1435
  %1915 = vmatpush.bf16.msra.mxu0 %v1431
  %1916 = vmatpush.bf16.msra.mxu0 %v1427
  %1917 = vmatmul.bf16.gmra.mxu0 %v433
  %v1918 = vpop.f32.mrf.mxu0
  %v1919 = vadd.f32 %v1906, %v1918
  %v1920 = vpop.f32.mrf.mxu0
  %1921 = vdwg.mxu0
  %1922 = vmatpush.bf16.msra.mxu0 %v1232
  %1923 = vmatpush.bf16.msra.mxu0 %v1228
  %1924 = vmatpush.bf16.msra.mxu0 %v1224
  %1925 = vmatpush.bf16.msra.mxu0 %v1220
  %1926 = vmatpush.bf16.msra.mxu0 %v1216
  %1927 = vmatpush.bf16.msra.mxu0 %v1212
  %1928 = vmatpush.bf16.msra.mxu0 %v1208
  %1929 = vmatpush.bf16.msra.mxu0 %v1204
  %1930 = vmatmul.bf16.gmra.mxu0 %v426
  %v1931 = vpop.f32.mrf.mxu0
  %v1932 = vadd.f32 0.0, %v1931
  %v1933 = vpop.f32.mrf.mxu0
  %1934 = vdwg.mxu0
  %1935 = vmatpush.bf16.msra.mxu0 %v1264
  %1936 = vmatpush.bf16.msra.mxu0 %v1260
  %1937 = vmatpush.bf16.msra.mxu0 %v1256
  %1938 = vmatpush.bf16.msra.mxu0 %v1252
  %1939 = vmatpush.bf16.msra.mxu0 %v1248
  %1940 = vmatpush.bf16.msra.mxu0 %v1244
  %1941 = vmatpush.bf16.msra.mxu0 %v1240
  %1942 = vmatpush.bf16.msra.mxu0 %v1236
  %1943 = vmatmul.bf16.gmra.mxu0 %v427
  %v1944 = vpop.f32.mrf.mxu0
  %v1945 = vadd.f32 %v1932, %v1944
  %v1946 = vpop.f32.mrf.mxu0
  %1947 = vdwg.mxu0
  %1948 = vmatpush.bf16.msra.mxu0 %v1296
  %1949 = vmatpush.bf16.msra.mxu0 %v1292
  %1950 = vmatpush.bf16.msra.mxu0 %v1288
  %1951 = vmatpush.bf16.msra.mxu0 %v1284
  %1952 = vmatpush.bf16.msra.mxu0 %v1280
  %1953 = vmatpush.bf16.msra.mxu0 %v1276
  %1954 = vmatpush.bf16.msra.mxu0 %v1272
  %1955 = vmatpush.bf16.msra.mxu0 %v1268
  %1956 = vmatmul.bf16.gmra.mxu0 %v428
  %v1957 = vpop.f32.mrf.mxu0
  %v1958 = vadd.f32 %v1945, %v1957
  %v1959 = vpop.f32.mrf.mxu0
  %1960 = vdwg.mxu0
  %1961 = vmatpush.bf16.msra.mxu0 %v1328
  %1962 = vmatpush.bf16.msra.mxu0 %v1324
  %1963 = vmatpush.bf16.msra.mxu0 %v1320
  %1964 = vmatpush.bf16.msra.mxu0 %v1316
  %1965 = vmatpush.bf16.msra.mxu0 %v1312
  %1966 = vmatpush.bf16.msra.mxu0 %v1308
  %1967 = vmatpush.bf16.msra.mxu0 %v1304
  %1968 = vmatpush.bf16.msra.mxu0 %v1300
  %1969 = vmatmul.bf16.gmra.mxu0 %v429
  %v1970 = vpop.f32.mrf.mxu0
  %v1971 = vadd.f32 %v1958, %v1970
  %v1972 = vpop.f32.mrf.mxu0
  %1973 = vdwg.mxu0
  %1974 = vmatpush.bf16.msra.mxu0 %v1360
  %1975 = vmatpush.bf16.msra.mxu0 %v1356
  %1976 = vmatpush.bf16.msra.mxu0 %v1352
  %1977 = vmatpush.bf16.msra.mxu0 %v1348
  %1978 = vmatpush.bf16.msra.mxu0 %v1344
  %1979 = vmatpush.bf16.msra.mxu0 %v1340
  %1980 = vmatpush.bf16.msra.mxu0 %v1336
  %1981 = vmatpush.bf16.msra.mxu0 %v1332
  %1982 = vmatmul.bf16.gmra.mxu0 %v430
  %v1983 = vpop.f32.mrf.mxu0
  %v1984 = vadd.f32 %v1971, %v1983
  %v1985 = vpop.f32.mrf.mxu0
  %1986 = vdwg.mxu0
  %1987 = vmatpush.bf16.msra.mxu0 %v1392
  %1988 = vmatpush.bf16.msra.mxu0 %v1388
  %1989 = vmatpush.bf16.msra.mxu0 %v1384
  %1990 = vmatpush.bf16.msra.mxu0 %v1380
  %1991 = vmatpush.bf16.msra.mxu0 %v1376
  %1992 = vmatpush.bf16.msra.mxu0 %v1372
  %1993 = vmatpush.bf16.msra.mxu0 %v1368
  %1994 = vmatpush.bf16.msra.mxu0 %v1364
  %1995 = vmatmul.bf16.gmra.mxu0 %v431
  %v1996 = vpop.f32.mrf.mxu0
  %v1997 = vadd.f32 %v1984, %v1996
  %v1998 = vpop.f32.mrf.mxu0
  %1999 = vdwg.mxu0
  %2000 = vmatpush.bf16.msra.mxu0 %v1424
  %2001 = vmatpush.bf16.msra.mxu0 %v1420
  %2002 = vmatpush.bf16.msra.mxu0 %v1416
  %2003 = vmatpush.bf16.msra.mxu0 %v1412
  %2004 = vmatpush.bf16.msra.mxu0 %v1408
  %2005 = vmatpush.bf16.msra.mxu0 %v1404
  %2006 = vmatpush.bf16.msra.mxu0 %v1400
  %2007 = vmatpush.bf16.msra.mxu0 %v1396
  %2008 = vmatmul.bf16.gmra.mxu0 %v432
  %v2009 = vpop.f32.mrf.mxu0
  %v2010 = vadd.f32 %v1997, %v2009
  %v2011 = vpop.f32.mrf.mxu0
  %2012 = vdwg.mxu0
  %2013 = vmatpush.bf16.msra.mxu0 %v1456
  %2014 = vmatpush.bf16.msra.mxu0 %v1452
  %2015 = vmatpush.bf16.msra.mxu0 %v1448
  %2016 = vmatpush.bf16.msra.mxu0 %v1444
  %2017 = vmatpush.bf16.msra.mxu0 %v1440
  %2018 = vmatpush.bf16.msra.mxu0 %v1436
  %2019 = vmatpush.bf16.msra.mxu0 %v1432
  %2020 = vmatpush.bf16.msra.mxu0 %v1428
  %2021 = vmatmul.bf16.gmra.mxu0 %v433
  %v2022 = vpop.f32.mrf.mxu0
  %v2023 = vadd.f32 %v2010, %v2022
  %v2024 = vpop.f32.mrf.mxu0
  %2025 = vdwg.mxu0
  %2026 = vmatpush.bf16.msra.mxu0 %v1233
  %2027 = vmatpush.bf16.msra.mxu0 %v1229
  %2028 = vmatpush.bf16.msra.mxu0 %v1225
  %2029 = vmatpush.bf16.msra.mxu0 %v1221
  %2030 = vmatpush.bf16.msra.mxu0 %v1217
  %2031 = vmatpush.bf16.msra.mxu0 %v1213
  %2032 = vmatpush.bf16.msra.mxu0 %v1209
  %2033 = vmatpush.bf16.msra.mxu0 %v1205
  %2034 = vmatmul.bf16.gmra.mxu0 %v426
  %v2035 = vpop.f32.mrf.mxu0
  %v2036 = vadd.f32 0.0, %v2035
  %v2037 = vpop.f32.mrf.mxu0
  %2038 = vdwg.mxu0
  %2039 = vmatpush.bf16.msra.mxu0 %v1265
  %2040 = vmatpush.bf16.msra.mxu0 %v1261
  %2041 = vmatpush.bf16.msra.mxu0 %v1257
  %2042 = vmatpush.bf16.msra.mxu0 %v1253
  %2043 = vmatpush.bf16.msra.mxu0 %v1249
  %2044 = vmatpush.bf16.msra.mxu0 %v1245
  %2045 = vmatpush.bf16.msra.mxu0 %v1241
  %2046 = vmatpush.bf16.msra.mxu0 %v1237
  %2047 = vmatmul.bf16.gmra.mxu0 %v427
  %v2048 = vpop.f32.mrf.mxu0
  %v2049 = vadd.f32 %v2036, %v2048
  %v2050 = vpop.f32.mrf.mxu0
  %2051 = vdwg.mxu0
  %2052 = vmatpush.bf16.msra.mxu0 %v1297
  %2053 = vmatpush.bf16.msra.mxu0 %v1293
  %2054 = vmatpush.bf16.msra.mxu0 %v1289
  %2055 = vmatpush.bf16.msra.mxu0 %v1285
  %2056 = vmatpush.bf16.msra.mxu0 %v1281
  %2057 = vmatpush.bf16.msra.mxu0 %v1277
  %2058 = vmatpush.bf16.msra.mxu0 %v1273
  %2059 = vmatpush.bf16.msra.mxu0 %v1269
  %2060 = vmatmul.bf16.gmra.mxu0 %v428
  %v2061 = vpop.f32.mrf.mxu0
  %v2062 = vadd.f32 %v2049, %v2061
  %v2063 = vpop.f32.mrf.mxu0
  %2064 = vdwg.mxu0
  %2065 = vmatpush.bf16.msra.mxu0 %v1329
  %2066 = vmatpush.bf16.msra.mxu0 %v1325
  %2067 = vmatpush.bf16.msra.mxu0 %v1321
  %2068 = vmatpush.bf16.msra.mxu0 %v1317
  %2069 = vmatpush.bf16.msra.mxu0 %v1313
  %2070 = vmatpush.bf16.msra.mxu0 %v1309
  %2071 = vmatpush.bf16.msra.mxu0 %v1305
  %2072 = vmatpush.bf16.msra.mxu0 %v1301
  %2073 = vmatmul.bf16.gmra.mxu0 %v429
  %v2074 = vpop.f32.mrf.mxu0
  %v2075 = vadd.f32 %v2062, %v2074
  %v2076 = vpop.f32.mrf.mxu0
  %2077 = vdwg.mxu0
  %2078 = vmatpush.bf16.msra.mxu0 %v1361
  %2079 = vmatpush.bf16.msra.mxu0 %v1357
  %2080 = vmatpush.bf16.msra.mxu0 %v1353
  %2081 = vmatpush.bf16.msra.mxu0 %v1349
  %2082 = vmatpush.bf16.msra.mxu0 %v1345
  %2083 = vmatpush.bf16.msra.mxu0 %v1341
  %2084 = vmatpush.bf16.msra.mxu0 %v1337
  %2085 = vmatpush.bf16.msra.mxu0 %v1333
  %2086 = vmatmul.bf16.gmra.mxu0 %v430
  %v2087 = vpop.f32.mrf.mxu0
  %v2088 = vadd.f32 %v2075, %v2087
  %v2089 = vpop.f32.mrf.mxu0
  %2090 = vdwg.mxu0
  %2091 = vmatpush.bf16.msra.mxu0 %v1393
  %2092 = vmatpush.bf16.msra.mxu0 %v1389
  %2093 = vmatpush.bf16.msra.mxu0 %v1385
  %2094 = vmatpush.bf16.msra.mxu0 %v1381
  %2095 = vmatpush.bf16.msra.mxu0 %v1377
  %2096 = vmatpush.bf16.msra.mxu0 %v1373
  %2097 = vmatpush.bf16.msra.mxu0 %v1369
  %2098 = vmatpush.bf16.msra.mxu0 %v1365
  %2099 = vmatmul.bf16.gmra.mxu0 %v431
  %v2100 = vpop.f32.mrf.mxu0
  %v2101 = vadd.f32 %v2088, %v2100
  %v2102 = vpop.f32.mrf.mxu0
  %2103 = vdwg.mxu0
  %2104 = vmatpush.bf16.msra.mxu0 %v1425
  %2105 = vmatpush.bf16.msra.mxu0 %v1421
  %2106 = vmatpush.bf16.msra.mxu0 %v1417
  %2107 = vmatpush.bf16.msra.mxu0 %v1413
  %2108 = vmatpush.bf16.msra.mxu0 %v1409
  %2109 = vmatpush.bf16.msra.mxu0 %v1405
  %2110 = vmatpush.bf16.msra.mxu0 %v1401
  %2111 = vmatpush.bf16.msra.mxu0 %v1397
  %2112 = vmatmul.bf16.gmra.mxu0 %v432
  %v2113 = vpop.f32.mrf.mxu0
  %v2114 = vadd.f32 %v2101, %v2113
  %v2115 = vpop.f32.mrf.mxu0
  %2116 = vdwg.mxu0
  %2117 = vmatpush.bf16.msra.mxu0 %v1457
  %2118 = vmatpush.bf16.msra.mxu0 %v1453
  %2119 = vmatpush.bf16.msra.mxu0 %v1449
  %2120 = vmatpush.bf16.msra.mxu0 %v1445
  %2121 = vmatpush.bf16.msra.mxu0 %v1441
  %2122 = vmatpush.bf16.msra.mxu0 %v1437
  %2123 = vmatpush.bf16.msra.mxu0 %v1433
  %2124 = vmatpush.bf16.msra.mxu0 %v1429
  %2125 = vmatmul.bf16.gmra.mxu0 %v433
  %v2126 = vpop.f32.mrf.mxu0
  %v2127 = vadd.f32 %v2114, %v2126
  %v2128 = vpop.f32.mrf.mxu0
  %2129 = vdwg.mxu0
  %v2130 = vld [vmem:[%s5] sm:$0xf]
  %v2131 = vld [vmem:[%s6] sm:$0xf]
  %vm2132 = vcmask 1041408
  %v2133 = vsel %vm2132, %v1815, 0.0
  %v2134 = vrot.slane %v2133, 4
  %v2135 = vadd.f32 %v2133, %v2134
  %v2136 = vrot.slane %v2135, 2
  %v2137 = vadd.f32 %v2135, %v2136
  %v2138 = vrot.slane %v2137, 1
  %v2139 = vadd.f32 %v2137, %v2138
  %v2140 = vsel %vm2132, %v1919, 0.0
  %v2141 = vrot.slane %v2140, 4
  %v2142 = vadd.f32 %v2140, %v2141
  %v2143 = vrot.slane %v2142, 2
  %v2144 = vadd.f32 %v2142, %v2143
  %v2145 = vrot.slane %v2144, 1
  %v2146 = vadd.f32 %v2144, %v2145
  %v2147 = vsel %vm2132, %v2023, 0.0
  %v2148 = vrot.slane %v2147, 4
  %v2149 = vadd.f32 %v2147, %v2148
  %v2150 = vrot.slane %v2149, 2
  %v2151 = vadd.f32 %v2149, %v2150
  %v2152 = vrot.slane %v2151, 1
  %v2153 = vadd.f32 %v2151, %v2152
  %v2154 = vsel %vm2132, %v2127, 0.0
  %v2155 = vrot.slane %v2154, 4
  %v2156 = vadd.f32 %v2154, %v2155
  %v2157 = vrot.slane %v2156, 2
  %v2158 = vadd.f32 %v2156, %v2157
  %v2159 = vrot.slane %v2158, 1
  %v2160 = vadd.f32 %v2158, %v2159
  %v2161 = vrcp.pop 2.0
  %v2162 = vmul.f32 2.0, %v2161
  %v2163 = vsub.f32 1.0, %v2162
  %v2164 = vmul.f32 %v2161, %v2163
  %v2165 = vadd.f32 %v2161, %v2164
  %vm2166 = vweird.f32 %v2161
  %v2167 = vsel %vm2166, %v2161, %v2165
  %v2168 = vmul.f32 %v2139, %v2167
  %v2169 = vmul.f32 %v2146, %v2167
  %v2170 = vmul.f32 %v2153, %v2167
  %v2171 = vmul.f32 %v2160, %v2167
  %v2172 = vsub.f32 %v1815, %v2168
  %v2173 = vsub.f32 %v1919, %v2169
  %v2174 = vsub.f32 %v2023, %v2170
  %v2175 = vsub.f32 %v2127, %v2171
  %v2176 = vmul.f32 %v2172, %v2172
  %v2177 = vmul.f32 %v2173, %v2173
  %v2178 = vmul.f32 %v2174, %v2174
  %v2179 = vmul.f32 %v2175, %v2175
  %v2180 = vsel %vm2132, %v2176, 0.0
  %v2181 = vrot.slane %v2180, 4
  %v2182 = vadd.f32 %v2180, %v2181
  %v2183 = vrot.slane %v2182, 2
  %v2184 = vadd.f32 %v2182, %v2183
  %v2185 = vrot.slane %v2184, 1
  %v2186 = vadd.f32 %v2184, %v2185
  %v2187 = vsel %vm2132, %v2177, 0.0
  %v2188 = vrot.slane %v2187, 4
  %v2189 = vadd.f32 %v2187, %v2188
  %v2190 = vrot.slane %v2189, 2
  %v2191 = vadd.f32 %v2189, %v2190
  %v2192 = vrot.slane %v2191, 1
  %v2193 = vadd.f32 %v2191, %v2192
  %v2194 = vsel %vm2132, %v2178, 0.0
  %v2195 = vrot.slane %v2194, 4
  %v2196 = vadd.f32 %v2194, %v2195
  %v2197 = vrot.slane %v2196, 2
  %v2198 = vadd.f32 %v2196, %v2197
  %v2199 = vrot.slane %v2198, 1
  %v2200 = vadd.f32 %v2198, %v2199
  %v2201 = vsel %vm2132, %v2179, 0.0
  %v2202 = vrot.slane %v2201, 4
  %v2203 = vadd.f32 %v2201, %v2202
  %v2204 = vrot.slane %v2203, 2
  %v2205 = vadd.f32 %v2203, %v2204
  %v2206 = vrot.slane %v2205, 1
  %v2207 = vadd.f32 %v2205, %v2206
  %v2208 = vmul.f32 %v2186, %v2167
  %v2209 = vmul.f32 %v2193, %v2167
  %v2210 = vmul.f32 %v2200, %v2167
  %v2211 = vmul.f32 %v2207, %v2167
  %v2212 = vadd.f32 %v2208, 1e-05
  %v2213 = vadd.f32 %v2209, 1e-05
  %v2214 = vadd.f32 %v2210, 1e-05
  %v2215 = vadd.f32 %v2211, 1e-05
  %v2216 = vrsqrt.pop %v2212
  %v2217 = vmul.f32 %v2216, %v2212
  %v2218 = vmul.f32 %v2217, %v2216
  %v2219 = vmul.f32 0.5, %v2218
  %v2220 = vsub.f32 1.5, %v2219
  %v2221 = vmul.f32 %v2216, %v2220
  %vm2222 = vweird.f32 %v2212
  %vm2223 = vweird.f32 %v2216
  %vm2224 = vmor %vm2222, %vm2223
  %v2225 = vsel %vm2224, %v2216, %v2221
  %v2226 = vrsqrt.pop %v2213
  %v2227 = vmul.f32 %v2226, %v2213
  %v2228 = vmul.f32 %v2227, %v2226
  %v2229 = vmul.f32 0.5, %v2228
  %v2230 = vsub.f32 1.5, %v2229
  %v2231 = vmul.f32 %v2226, %v2230
  %vm2232 = vweird.f32 %v2213
  %vm2233 = vweird.f32 %v2226
  %vm2234 = vmor %vm2232, %vm2233
  %v2235 = vsel %vm2234, %v2226, %v2231
  %v2236 = vrsqrt.pop %v2214
  %v2237 = vmul.f32 %v2236, %v2214
  %v2238 = vmul.f32 %v2237, %v2236
  %v2239 = vmul.f32 0.5, %v2238
  %v2240 = vsub.f32 1.5, %v2239
  %v2241 = vmul.f32 %v2236, %v2240
  %vm2242 = vweird.f32 %v2214
  %vm2243 = vweird.f32 %v2236
  %vm2244 = vmor %vm2242, %vm2243
  %v2245 = vsel %vm2244, %v2236, %v2241
  %v2246 = vrsqrt.pop %v2215
  %v2247 = vmul.f32 %v2246, %v2215
  %v2248 = vmul.f32 %v2247, %v2246
  %v2249 = vmul.f32 0.5, %v2248
  %v2250 = vsub.f32 1.5, %v2249
  %v2251 = vmul.f32 %v2246, %v2250
  %vm2252 = vweird.f32 %v2215
  %vm2253 = vweird.f32 %v2246
  %vm2254 = vmor %vm2252, %vm2253
  %v2255 = vsel %vm2254, %v2246, %v2251
  %v2260 = vrot.slane %v2235, 7
  %v2261 = vrot.slane %v2245, 6
  %v2262 = vrot.slane %v2255, 5
  %vm2263 = vcmask 1040384
  %v2264 = vsel %vm2263, %v2225, %v2260
  %vm2265 = vcmask 1042434
  %v2266 = vsel %vm2265, %v2261, %v2262
  %v2267 = vsel %vm2132, %v2264, %v2266
  %v2269 = vmul.f32 %v2130, %v2267
  %v2271 = vperm.slane %v2269, 0
  %v2272 = vperm.slane %v2269, 1
  %v2273 = vperm.slane %v2269, 2
  %v2274 = vperm.slane %v2269, 3
  %v2279 = vmul.f32 %v2172, %v2271
  %v2280 = vmul.f32 %v2173, %v2272
  %v2281 = vmul.f32 %v2174, %v2273
  %v2282 = vmul.f32 %v2175, %v2274
  %v2284 = vperm.slane %v2131, 0
  %v2285 = vperm.slane %v2131, 1
  %v2286 = vperm.slane %v2131, 2
  %v2287 = vperm.slane %v2131, 3
  %v2292 = vadd.f32 %v2279, %v2284
  %v2293 = vadd.f32 %v2280, %v2285
  %v2294 = vadd.f32 %v2281, %v2286
  %v2295 = vadd.f32 %v2282, %v2287
  %v2296 = vmax.f32 %v2292, 0.0
  %v2297 = vmax.f32 %v2293, 0.0
  %v2298 = vmax.f32 %v2294, 0.0
  %v2299 = vmax.f32 %v2295, 0.0
  %v2300 = vld [vmem:[%s7] sm:$0xff]
  %v2301 = vld [vmem:[%s7 + $0x8] sm:$0xff]
  %v2302 = vld [vmem:[%s7 + $0x10] sm:$0xff]
  %v2303 = vld [vmem:[%s7 + $0x18] sm:$0xff]
  %v2304 = vld [vmem:[%s7 + $0x20] sm:$0xff]
  %v2305 = vld [vmem:[%s7 + $0x28] sm:$0xff]
  %v2306 = vld [vmem:[%s7 + $0x30] sm:$0xff]
  %v2307 = vld [vmem:[%s7 + $0x38] sm:$0xff]
  %v2308 = vld [vmem:[%s7 + $0x40] sm:$0xff]
  %v2309 = vld [vmem:[%s7 + $0x48] sm:$0xff]
  %v2310 = vld [vmem:[%s7 + $0x50] sm:$0xff]
  %v2311 = vld [vmem:[%s7 + $0x58] sm:$0xff]
  %v2312 = vld [vmem:[%s7 + $0x60] sm:$0xff]
  %v2313 = vld [vmem:[%s7 + $0x68] sm:$0xff]
  %v2314 = vld [vmem:[%s7 + $0x70] sm:$0xff]
  %v2315 = vld [vmem:[%s7 + $0x78] sm:$0xff]
  %v2316 = vld [vmem:[%s7 + $0x80] sm:$0xff]
  %v2317 = vld [vmem:[%s7 + $0x88] sm:$0xff]
  %v2318 = vld [vmem:[%s7 + $0x90] sm:$0xff]
  %v2319 = vld [vmem:[%s7 + $0x98] sm:$0xff]
  %v2320 = vld [vmem:[%s7 + $0xa0] sm:$0xff]
  %v2321 = vld [vmem:[%s7 + $0xa8] sm:$0xff]
  %v2322 = vld [vmem:[%s7 + $0xb0] sm:$0xff]
  %v2323 = vld [vmem:[%s7 + $0xb8] sm:$0xff]
  %v2324 = vld [vmem:[%s7 + $0xc0] sm:$0xff]
  %v2325 = vld [vmem:[%s7 + $0xc8] sm:$0xff]
  %v2326 = vld [vmem:[%s7 + $0xd0] sm:$0xff]
  %v2327 = vld [vmem:[%s7 + $0xd8] sm:$0xff]
  %v2328 = vld [vmem:[%s7 + $0xe0] sm:$0xff]
  %v2329 = vld [vmem:[%s7 + $0xe8] sm:$0xff]
  %v2330 = vld [vmem:[%s7 + $0xf0] sm:$0xff]
  %v2331 = vld [vmem:[%s7 + $0xf8] sm:$0xff]
  %v2332 = vld [vmem:[%s7 + $0x100] sm:$0xff]
  %v2333 = vld [vmem:[%s7 + $0x108] sm:$0xff]
  %v2334 = vld [vmem:[%s7 + $0x110] sm:$0xff]
  %v2335 = vld [vmem:[%s7 + $0x118] sm:$0xff]
  %v2336 = vld [vmem:[%s7 + $0x120] sm:$0xff]
  %v2337 = vld [vmem:[%s7 + $0x128] sm:$0xff]
  %v2338 = vld [vmem:[%s7 + $0x130] sm:$0xff]
  %v2339 = vld [vmem:[%s7 + $0x138] sm:$0xff]
  %v2340 = vld [vmem:[%s7 + $0x140] sm:$0xff]
  %v2341 = vld [vmem:[%s7 + $0x148] sm:$0xff]
  %v2342 = vld [vmem:[%s7 + $0x150] sm:$0xff]
  %v2343 = vld [vmem:[%s7 + $0x158] sm:$0xff]
  %v2344 = vld [vmem:[%s7 + $0x160] sm:$0xff]
  %v2345 = vld [vmem:[%s7 + $0x168] sm:$0xff]
  %v2346 = vld [vmem:[%s7 + $0x170] sm:$0xff]
  %v2347 = vld [vmem:[%s7 + $0x178] sm:$0xff]
  %v2348 = vld [vmem:[%s7 + $0x180] sm:$0xff]
  %v2349 = vld [vmem:[%s7 + $0x188] sm:$0xff]
  %v2350 = vld [vmem:[%s7 + $0x190] sm:$0xff]
  %v2351 = vld [vmem:[%s7 + $0x198] sm:$0xff]
  %v2352 = vld [vmem:[%s7 + $0x1a0] sm:$0xff]
  %v2353 = vld [vmem:[%s7 + $0x1a8] sm:$0xff]
  %v2354 = vld [vmem:[%s7 + $0x1b0] sm:$0xff]
  %v2355 = vld [vmem:[%s7 + $0x1b8] sm:$0xff]
  %v2356 = vld [vmem:[%s7 + $0x1c0] sm:$0xff]
  %v2357 = vld [vmem:[%s7 + $0x1c8] sm:$0xff]
  %v2358 = vld [vmem:[%s7 + $0x1d0] sm:$0xff]
  %v2359 = vld [vmem:[%s7 + $0x1d8] sm:$0xff]
  %v2360 = vld [vmem:[%s7 + $0x1e0] sm:$0xff]
  %v2361 = vld [vmem:[%s7 + $0x1e8] sm:$0xff]
  %v2362 = vld [vmem:[%s7 + $0x1f0] sm:$0xff]
  %v2363 = vld [vmem:[%s7 + $0x1f8] sm:$0xff]
  %v2364 = vpack.c.bf16 %v2296, %v2296
  %v2365 = vpack.c.bf16 %v2297, %v2297
  %v2366 = vpack.c.bf16 %v2298, %v2298
  %v2367 = vpack.c.bf16 %v2299, %v2299
  %v2432 = vunpack.c.l.b16 %v2300
  %v2433 = vunpack.c.h.b16 %v2300
  %v2434 = vunpack.c.l.b16 %v2301
  %v2435 = vunpack.c.h.b16 %v2301
  %v2436 = vunpack.c.l.b16 %v2302
  %v2437 = vunpack.c.h.b16 %v2302
  %v2438 = vunpack.c.l.b16 %v2303
  %v2439 = vunpack.c.h.b16 %v2303
  %v2440 = vunpack.c.l.b16 %v2304
  %v2441 = vunpack.c.h.b16 %v2304
  %v2442 = vunpack.c.l.b16 %v2305
  %v2443 = vunpack.c.h.b16 %v2305
  %v2444 = vunpack.c.l.b16 %v2306
  %v2445 = vunpack.c.h.b16 %v2306
  %v2446 = vunpack.c.l.b16 %v2307
  %v2447 = vunpack.c.h.b16 %v2307
  %v2448 = vunpack.c.l.b16 %v2308
  %v2449 = vunpack.c.h.b16 %v2308
  %v2450 = vunpack.c.l.b16 %v2309
  %v2451 = vunpack.c.h.b16 %v2309
  %v2452 = vunpack.c.l.b16 %v2310
  %v2453 = vunpack.c.h.b16 %v2310
  %v2454 = vunpack.c.l.b16 %v2311
  %v2455 = vunpack.c.h.b16 %v2311
  %v2456 = vunpack.c.l.b16 %v2312
  %v2457 = vunpack.c.h.b16 %v2312
  %v2458 = vunpack.c.l.b16 %v2313
  %v2459 = vunpack.c.h.b16 %v2313
  %v2460 = vunpack.c.l.b16 %v2314
  %v2461 = vunpack.c.h.b16 %v2314
  %v2462 = vunpack.c.l.b16 %v2315
  %v2463 = vunpack.c.h.b16 %v2315
  %v2464 = vunpack.c.l.b16 %v2316
  %v2465 = vunpack.c.h.b16 %v2316
  %v2466 = vunpack.c.l.b16 %v2317
  %v2467 = vunpack.c.h.b16 %v2317
  %v2468 = vunpack.c.l.b16 %v2318
  %v2469 = vunpack.c.h.b16 %v2318
  %v2470 = vunpack.c.l.b16 %v2319
  %v2471 = vunpack.c.h.b16 %v2319
  %v2472 = vunpack.c.l.b16 %v2320
  %v2473 = vunpack.c.h.b16 %v2320
  %v2474 = vunpack.c.l.b16 %v2321
  %v2475 = vunpack.c.h.b16 %v2321
  %v2476 = vunpack.c.l.b16 %v2322
  %v2477 = vunpack.c.h.b16 %v2322
  %v2478 = vunpack.c.l.b16 %v2323
  %v2479 = vunpack.c.h.b16 %v2323
  %v2480 = vunpack.c.l.b16 %v2324
  %v2481 = vunpack.c.h.b16 %v2324
  %v2482 = vunpack.c.l.b16 %v2325
  %v2483 = vunpack.c.h.b16 %v2325
  %v2484 = vunpack.c.l.b16 %v2326
  %v2485 = vunpack.c.h.b16 %v2326
  %v2486 = vunpack.c.l.b16 %v2327
  %v2487 = vunpack.c.h.b16 %v2327
  %v2488 = vunpack.c.l.b16 %v2328
  %v2489 = vunpack.c.h.b16 %v2328
  %v2490 = vunpack.c.l.b16 %v2329
  %v2491 = vunpack.c.h.b16 %v2329
  %v2492 = vunpack.c.l.b16 %v2330
  %v2493 = vunpack.c.h.b16 %v2330
  %v2494 = vunpack.c.l.b16 %v2331
  %v2495 = vunpack.c.h.b16 %v2331
  %v2496 = vunpack.c.l.b16 %v2332
  %v2497 = vunpack.c.h.b16 %v2332
  %v2498 = vunpack.c.l.b16 %v2333
  %v2499 = vunpack.c.h.b16 %v2333
  %v2500 = vunpack.c.l.b16 %v2334
  %v2501 = vunpack.c.h.b16 %v2334
  %v2502 = vunpack.c.l.b16 %v2335
  %v2503 = vunpack.c.h.b16 %v2335
  %v2504 = vunpack.c.l.b16 %v2336
  %v2505 = vunpack.c.h.b16 %v2336
  %v2506 = vunpack.c.l.b16 %v2337
  %v2507 = vunpack.c.h.b16 %v2337
  %v2508 = vunpack.c.l.b16 %v2338
  %v2509 = vunpack.c.h.b16 %v2338
  %v2510 = vunpack.c.l.b16 %v2339
  %v2511 = vunpack.c.h.b16 %v2339
  %v2512 = vunpack.c.l.b16 %v2340
  %v2513 = vunpack.c.h.b16 %v2340
  %v2514 = vunpack.c.l.b16 %v2341
  %v2515 = vunpack.c.h.b16 %v2341
  %v2516 = vunpack.c.l.b16 %v2342
  %v2517 = vunpack.c.h.b16 %v2342
  %v2518 = vunpack.c.l.b16 %v2343
  %v2519 = vunpack.c.h.b16 %v2343
  %v2520 = vunpack.c.l.b16 %v2344
  %v2521 = vunpack.c.h.b16 %v2344
  %v2522 = vunpack.c.l.b16 %v2345
  %v2523 = vunpack.c.h.b16 %v2345
  %v2524 = vunpack.c.l.b16 %v2346
  %v2525 = vunpack.c.h.b16 %v2346
  %v2526 = vunpack.c.l.b16 %v2347
  %v2527 = vunpack.c.h.b16 %v2347
  %v2528 = vunpack.c.l.b16 %v2348
  %v2529 = vunpack.c.h.b16 %v2348
  %v2530 = vunpack.c.l.b16 %v2349
  %v2531 = vunpack.c.h.b16 %v2349
  %v2532 = vunpack.c.l.b16 %v2350
  %v2533 = vunpack.c.h.b16 %v2350
  %v2534 = vunpack.c.l.b16 %v2351
  %v2535 = vunpack.c.h.b16 %v2351
  %v2536 = vunpack.c.l.b16 %v2352
  %v2537 = vunpack.c.h.b16 %v2352
  %v2538 = vunpack.c.l.b16 %v2353
  %v2539 = vunpack.c.h.b16 %v2353
  %v2540 = vunpack.c.l.b16 %v2354
  %v2541 = vunpack.c.h.b16 %v2354
  %v2542 = vunpack.c.l.b16 %v2355
  %v2543 = vunpack.c.h.b16 %v2355
  %v2544 = vunpack.c.l.b16 %v2356
  %v2545 = vunpack.c.h.b16 %v2356
  %v2546 = vunpack.c.l.b16 %v2357
  %v2547 = vunpack.c.h.b16 %v2357
  %v2548 = vunpack.c.l.b16 %v2358
  %v2549 = vunpack.c.h.b16 %v2358
  %v2550 = vunpack.c.l.b16 %v2359
  %v2551 = vunpack.c.h.b16 %v2359
  %v2552 = vunpack.c.l.b16 %v2360
  %v2553 = vunpack.c.h.b16 %v2360
  %v2554 = vunpack.c.l.b16 %v2361
  %v2555 = vunpack.c.h.b16 %v2361
  %v2556 = vunpack.c.l.b16 %v2362
  %v2557 = vunpack.c.h.b16 %v2362
  %v2558 = vunpack.c.l.b16 %v2363
  %v2559 = vunpack.c.h.b16 %v2363
  %v2560 = vpack.c.b16 %v2434, %v2432
  %v2561 = vpack.c.b16 %v2435, %v2433
  %v2562 = vpack.c.b16 %v2438, %v2436
  %v2563 = vpack.c.b16 %v2439, %v2437
  %v2564 = vpack.c.b16 %v2442, %v2440
  %v2565 = vpack.c.b16 %v2443, %v2441
  %v2566 = vpack.c.b16 %v2446, %v2444
  %v2567 = vpack.c.b16 %v2447, %v2445
  %v2568 = vpack.c.b16 %v2450, %v2448
  %v2569 = vpack.c.b16 %v2451, %v2449
  %v2570 = vpack.c.b16 %v2454, %v2452
  %v2571 = vpack.c.b16 %v2455, %v2453
  %v2572 = vpack.c.b16 %v2458, %v2456
  %v2573 = vpack.c.b16 %v2459, %v2457
  %v2574 = vpack.c.b16 %v2462, %v2460
  %v2575 = vpack.c.b16 %v2463, %v2461
  %v2576 = vpack.c.b16 %v2466, %v2464
  %v2577 = vpack.c.b16 %v2467, %v2465
  %v2578 = vpack.c.b16 %v2470, %v2468
  %v2579 = vpack.c.b16 %v2471, %v2469
  %v2580 = vpack.c.b16 %v2474, %v2472
  %v2581 = vpack.c.b16 %v2475, %v2473
  %v2582 = vpack.c.b16 %v2478, %v2476
  %v2583 = vpack.c.b16 %v2479, %v2477
  %v2584 = vpack.c.b16 %v2482, %v2480
  %v2585 = vpack.c.b16 %v2483, %v2481
  %v2586 = vpack.c.b16 %v2486, %v2484
  %v2587 = vpack.c.b16 %v2487, %v2485
  %v2588 = vpack.c.b16 %v2490, %v2488
  %v2589 = vpack.c.b16 %v2491, %v2489
  %v2590 = vpack.c.b16 %v2494, %v2492
  %v2591 = vpack.c.b16 %v2495, %v2493
  %v2592 = vpack.c.b16 %v2498, %v2496
  %v2593 = vpack.c.b16 %v2499, %v2497
  %v2594 = vpack.c.b16 %v2502, %v2500
  %v2595 = vpack.c.b16 %v2503, %v2501
  %v2596 = vpack.c.b16 %v2506, %v2504
  %v2597 = vpack.c.b16 %v2507, %v2505
  %v2598 = vpack.c.b16 %v2510, %v2508
  %v2599 = vpack.c.b16 %v2511, %v2509
  %v2600 = vpack.c.b16 %v2514, %v2512
  %v2601 = vpack.c.b16 %v2515, %v2513
  %v2602 = vpack.c.b16 %v2518, %v2516
  %v2603 = vpack.c.b16 %v2519, %v2517
  %v2604 = vpack.c.b16 %v2522, %v2520
  %v2605 = vpack.c.b16 %v2523, %v2521
  %v2606 = vpack.c.b16 %v2526, %v2524
  %v2607 = vpack.c.b16 %v2527, %v2525
  %v2608 = vpack.c.b16 %v2530, %v2528
  %v2609 = vpack.c.b16 %v2531, %v2529
  %v2610 = vpack.c.b16 %v2534, %v2532
  %v2611 = vpack.c.b16 %v2535, %v2533
  %v2612 = vpack.c.b16 %v2538, %v2536
  %v2613 = vpack.c.b16 %v2539, %v2537
  %v2614 = vpack.c.b16 %v2542, %v2540
  %v2615 = vpack.c.b16 %v2543, %v2541
  %v2616 = vpack.c.b16 %v2546, %v2544
  %v2617 = vpack.c.b16 %v2547, %v2545
  %v2618 = vpack.c.b16 %v2550, %v2548
  %v2619 = vpack.c.b16 %v2551, %v2549
  %v2620 = vpack.c.b16 %v2554, %v2552
  %v2621 = vpack.c.b16 %v2555, %v2553
  %v2622 = vpack.c.b16 %v2558, %v2556
  %v2623 = vpack.c.b16 %v2559, %v2557
  %2688 = vmatpush.bf16.msra.mxu0 %v2574
  %2689 = vmatpush.bf16.msra.mxu0 %v2572
  %2690 = vmatpush.bf16.msra.mxu0 %v2570
  %2691 = vmatpush.bf16.msra.mxu0 %v2568
  %2692 = vmatpush.bf16.msra.mxu0 %v2566
  %2693 = vmatpush.bf16.msra.mxu0 %v2564
  %2694 = vmatpush.bf16.msra.mxu0 %v2562
  %2695 = vmatpush.bf16.msra.mxu0 %v2560
  %2696 = vmatmul.bf16.gmra.mxu0 %v2364
  %v2697 = vpop.f32.mrf.mxu0
  %v2698 = vadd.f32 0.0, %v2697
  %v2699 = vpop.f32.mrf.mxu0
  %2700 = vdwg.mxu0
  %2701 = vmatpush.bf16.msra.mxu0 %v2590
  %2702 = vmatpush.bf16.msra.mxu0 %v2588
  %2703 = vmatpush.bf16.msra.mxu0 %v2586
  %2704 = vmatpush.bf16.msra.mxu0 %v2584
  %2705 = vmatpush.bf16.msra.mxu0 %v2582
  %2706 = vmatpush.bf16.msra.mxu0 %v2580
  %2707 = vmatpush.bf16.msra.mxu0 %v2578
  %2708 = vmatpush.bf16.msra.mxu0 %v2576
  %2709 = vmatmul.bf16.gmra.mxu0 %v2365
  %v2710 = vpop.f32.mrf.mxu0
  %v2711 = vadd.f32 %v2698, %v2710
  %v2712 = vpop.f32.mrf.mxu0
  %2713 = vdwg.mxu0
  %2714 = vmatpush.bf16.msra.mxu0 %v2606
  %2715 = vmatpush.bf16.msra.mxu0 %v2604
  %2716 = vmatpush.bf16.msra.mxu0 %v2602
  %2717 = vmatpush.bf16.msra.mxu0 %v2600
  %2718 = vmatpush.bf16.msra.mxu0 %v2598
  %2719 = vmatpush.bf16.msra.mxu0 %v2596
  %2720 = vmatpush.bf16.msra.mxu0 %v2594
  %2721 = vmatpush.bf16.msra.mxu0 %v2592
  %2722 = vmatmul.bf16.gmra.mxu0 %v2366
  %v2723 = vpop.f32.mrf.mxu0
  %v2724 = vadd.f32 %v2711, %v2723
  %v2725 = vpop.f32.mrf.mxu0
  %2726 = vdwg.mxu0
  %2727 = vmatpush.bf16.msra.mxu0 %v2622
  %2728 = vmatpush.bf16.msra.mxu0 %v2620
  %2729 = vmatpush.bf16.msra.mxu0 %v2618
  %2730 = vmatpush.bf16.msra.mxu0 %v2616
  %2731 = vmatpush.bf16.msra.mxu0 %v2614
  %2732 = vmatpush.bf16.msra.mxu0 %v2612
  %2733 = vmatpush.bf16.msra.mxu0 %v2610
  %2734 = vmatpush.bf16.msra.mxu0 %v2608
  %2735 = vmatmul.bf16.gmra.mxu0 %v2367
  %v2736 = vpop.f32.mrf.mxu0
  %v2737 = vadd.f32 %v2724, %v2736
  %v2738 = vpop.f32.mrf.mxu0
  %2739 = vdwg.mxu0
  %2740 = vmatpush.bf16.msra.mxu0 %v2575
  %2741 = vmatpush.bf16.msra.mxu0 %v2573
  %2742 = vmatpush.bf16.msra.mxu0 %v2571
  %2743 = vmatpush.bf16.msra.mxu0 %v2569
  %2744 = vmatpush.bf16.msra.mxu0 %v2567
  %2745 = vmatpush.bf16.msra.mxu0 %v2565
  %2746 = vmatpush.bf16.msra.mxu0 %v2563
  %2747 = vmatpush.bf16.msra.mxu0 %v2561
  %2748 = vmatmul.bf16.gmra.mxu0 %v2364
  %v2749 = vpop.f32.mrf.mxu0
  %v2750 = vadd.f32 0.0, %v2749
  %v2751 = vpop.f32.mrf.mxu0
  %2752 = vdwg.mxu0
  %2753 = vmatpush.bf16.msra.mxu0 %v2591
  %2754 = vmatpush.bf16.msra.mxu0 %v2589
  %2755 = vmatpush.bf16.msra.mxu0 %v2587
  %2756 = vmatpush.bf16.msra.mxu0 %v2585
  %2757 = vmatpush.bf16.msra.mxu0 %v2583
  %2758 = vmatpush.bf16.msra.mxu0 %v2581
  %2759 = vmatpush.bf16.msra.mxu0 %v2579
  %2760 = vmatpush.bf16.msra.mxu0 %v2577
  %2761 = vmatmul.bf16.gmra.mxu0 %v2365
  %v2762 = vpop.f32.mrf.mxu0
  %v2763 = vadd.f32 %v2750, %v2762
  %v2764 = vpop.f32.mrf.mxu0
  %2765 = vdwg.mxu0
  %2766 = vmatpush.bf16.msra.mxu0 %v2607
  %2767 = vmatpush.bf16.msra.mxu0 %v2605
  %2768 = vmatpush.bf16.msra.mxu0 %v2603
  %2769 = vmatpush.bf16.msra.mxu0 %v2601
  %2770 = vmatpush.bf16.msra.mxu0 %v2599
  %2771 = vmatpush.bf16.msra.mxu0 %v2597
  %2772 = vmatpush.bf16.msra.mxu0 %v2595
  %2773 = vmatpush.bf16.msra.mxu0 %v2593
  %2774 = vmatmul.bf16.gmra.mxu0 %v2366
  %v2775 = vpop.f32.mrf.mxu0
  %v2776 = vadd.f32 %v2763, %v2775
  %v2777 = vpop.f32.mrf.mxu0
  %2778 = vdwg.mxu0
  %2779 = vmatpush.bf16.msra.mxu0 %v2623
  %2780 = vmatpush.bf16.msra.mxu0 %v2621
  %2781 = vmatpush.bf16.msra.mxu0 %v2619
  %2782 = vmatpush.bf16.msra.mxu0 %v2617
  %2783 = vmatpush.bf16.msra.mxu0 %v2615
  %2784 = vmatpush.bf16.msra.mxu0 %v2613
  %2785 = vmatpush.bf16.msra.mxu0 %v2611
  %2786 = vmatpush.bf16.msra.mxu0 %v2609
  %2787 = vmatmul.bf16.gmra.mxu0 %v2367
  %v2788 = vpop.f32.mrf.mxu0
  %v2789 = vadd.f32 %v2776, %v2788
  %v2790 = vpop.f32.mrf.mxu0
  %2791 = vdwg.mxu0
  %v2792 = vld [vmem:[%s8] sm:$0x3]
  %v2793 = vld [vmem:[%s9] sm:$0x3]
  %v2794 = vsel %vm2132, %v2737, 0.0
  %v2795 = vrot.slane %v2794, 4
  %v2796 = vadd.f32 %v2794, %v2795
  %v2797 = vrot.slane %v2796, 2
  %v2798 = vadd.f32 %v2796, %v2797
  %v2799 = vrot.slane %v2798, 1
  %v2800 = vadd.f32 %v2798, %v2799
  %v2801 = vsel %vm2132, %v2789, 0.0
  %v2802 = vrot.slane %v2801, 4
  %v2803 = vadd.f32 %v2801, %v2802
  %v2804 = vrot.slane %v2803, 2
  %v2805 = vadd.f32 %v2803, %v2804
  %v2806 = vrot.slane %v2805, 1
  %v2807 = vadd.f32 %v2805, %v2806
  %v2808 = vmul.f32 %v2800, %v2167
  %v2809 = vmul.f32 %v2807, %v2167
  %v2810 = vsub.f32 %v2737, %v2808
  %v2811 = vsub.f32 %v2789, %v2809
  %v2812 = vmul.f32 %v2810, %v2810
  %v2813 = vmul.f32 %v2811, %v2811
  %v2814 = vsel %vm2132, %v2812, 0.0
  %v2815 = vrot.slane %v2814, 4
  %v2816 = vadd.f32 %v2814, %v2815
  %v2817 = vrot.slane %v2816, 2
  %v2818 = vadd.f32 %v2816, %v2817
  %v2819 = vrot.slane %v2818, 1
  %v2820 = vadd.f32 %v2818, %v2819
  %v2821 = vsel %vm2132, %v2813, 0.0
  %v2822 = vrot.slane %v2821, 4
  %v2823 = vadd.f32 %v2821, %v2822
  %v2824 = vrot.slane %v2823, 2
  %v2825 = vadd.f32 %v2823, %v2824
  %v2826 = vrot.slane %v2825, 1
  %v2827 = vadd.f32 %v2825, %v2826
  %v2828 = vmul.f32 %v2820, %v2167
  %v2829 = vmul.f32 %v2827, %v2167
  %v2830 = vadd.f32 %v2828, 1e-05
  %v2831 = vadd.f32 %v2829, 1e-05
  %v2832 = vrsqrt.pop %v2830
  %v2833 = vmul.f32 %v2832, %v2830
  %v2834 = vmul.f32 %v2833, %v2832
  %v2835 = vmul.f32 0.5, %v2834
  %v2836 = vsub.f32 1.5, %v2835
  %v2837 = vmul.f32 %v2832, %v2836
  %vm2838 = vweird.f32 %v2830
  %vm2839 = vweird.f32 %v2832
  %vm2840 = vmor %vm2838, %vm2839
  %v2841 = vsel %vm2840, %v2832, %v2837
  %v2842 = vrsqrt.pop %v2831
  %v2843 = vmul.f32 %v2842, %v2831
  %v2844 = vmul.f32 %v2843, %v2842
  %v2845 = vmul.f32 0.5, %v2844
  %v2846 = vsub.f32 1.5, %v2845
  %v2847 = vmul.f32 %v2842, %v2846
  %vm2848 = vweird.f32 %v2831
  %vm2849 = vweird.f32 %v2842
  %vm2850 = vmor %vm2848, %vm2849
  %v2851 = vsel %vm2850, %v2842, %v2847
  %v2854 = vrot.slane %v2851, 7
  %v2855 = vsel %vm2263, %v2841, %v2854
  %v2857 = vmul.f32 %v2792, %v2855
  %v2859 = vperm.slane %v2857, 0
  %v2860 = vperm.slane %v2857, 1
  %v2863 = vmul.f32 %v2810, %v2859
  %v2864 = vmul.f32 %v2811, %v2860
  %v2866 = vperm.slane %v2793, 0
  %v2867 = vperm.slane %v2793, 1
  %v2870 = vadd.f32 %v2863, %v2866
  %v2871 = vadd.f32 %v2864, %v2867
  %v2872 = vmax.f32 %v2870, 0.0
  %v2873 = vmax.f32 %v2871, 0.0
  %v2874 = vld [vmem:[%s10] sm:$0xf]
  %v2875 = vld [vmem:[%s10 + $0x4] sm:$0xf]
  %v2876 = vld [vmem:[%s10 + $0x8] sm:$0xf]
  %v2877 = vld [vmem:[%s10 + $0xc] sm:$0xf]
  %v2878 = vld [vmem:[%s10 + $0x10] sm:$0xf]
  %v2879 = vld [vmem:[%s10 + $0x14] sm:$0xf]
  %v2880 = vld [vmem:[%s10 + $0x18] sm:$0xf]
  %v2881 = vld [vmem:[%s10 + $0x1c] sm:$0xf]
  %v2882 = vld [vmem:[%s10 + $0x20] sm:$0xf]
  %v2883 = vld [vmem:[%s10 + $0x24] sm:$0xf]
  %v2884 = vld [vmem:[%s10 + $0x28] sm:$0xf]
  %v2885 = vld [vmem:[%s10 + $0x2c] sm:$0xf]
  %v2886 = vld [vmem:[%s10 + $0x30] sm:$0xf]
  %v2887 = vld [vmem:[%s10 + $0x34] sm:$0xf]
  %v2888 = vld [vmem:[%s10 + $0x38] sm:$0xf]
  %v2889 = vld [vmem:[%s10 + $0x3c] sm:$0xf]
  %v2890 = vld [vmem:[%s10 + $0x40] sm:$0xf]
  %v2891 = vld [vmem:[%s10 + $0x44] sm:$0xf]
  %v2892 = vld [vmem:[%s10 + $0x48] sm:$0xf]
  %v2893 = vld [vmem:[%s10 + $0x4c] sm:$0xf]
  %v2894 = vld [vmem:[%s10 + $0x50] sm:$0xf]
  %v2895 = vld [vmem:[%s10 + $0x54] sm:$0xf]
  %v2896 = vld [vmem:[%s10 + $0x58] sm:$0xf]
  %v2897 = vld [vmem:[%s10 + $0x5c] sm:$0xf]
  %v2898 = vld [vmem:[%s10 + $0x60] sm:$0xf]
  %v2899 = vld [vmem:[%s10 + $0x64] sm:$0xf]
  %v2900 = vld [vmem:[%s10 + $0x68] sm:$0xf]
  %v2901 = vld [vmem:[%s10 + $0x6c] sm:$0xf]
  %v2902 = vld [vmem:[%s10 + $0x70] sm:$0xf]
  %v2903 = vld [vmem:[%s10 + $0x74] sm:$0xf]
  %v2904 = vld [vmem:[%s10 + $0x78] sm:$0xf]
  %v2905 = vld [vmem:[%s10 + $0x7c] sm:$0xf]
  %v2906 = vpack.c.bf16 %v2872, %v2872
  %v2907 = vpack.c.bf16 %v2873, %v2873
  %v2940 = vunpack.c.l.b16 %v2874
  %v2941 = vunpack.c.l.b16 %v2875
  %v2942 = vunpack.c.l.b16 %v2876
  %v2943 = vunpack.c.l.b16 %v2877
  %v2944 = vunpack.c.l.b16 %v2878
  %v2945 = vunpack.c.l.b16 %v2879
  %v2946 = vunpack.c.l.b16 %v2880
  %v2947 = vunpack.c.l.b16 %v2881
  %v2948 = vunpack.c.l.b16 %v2882
  %v2949 = vunpack.c.l.b16 %v2883
  %v2950 = vunpack.c.l.b16 %v2884
  %v2951 = vunpack.c.l.b16 %v2885
  %v2952 = vunpack.c.l.b16 %v2886
  %v2953 = vunpack.c.l.b16 %v2887
  %v2954 = vunpack.c.l.b16 %v2888
  %v2955 = vunpack.c.l.b16 %v2889
  %v2956 = vunpack.c.l.b16 %v2890
  %v2957 = vunpack.c.l.b16 %v2891
  %v2958 = vunpack.c.l.b16 %v2892
  %v2959 = vunpack.c.l.b16 %v2893
  %v2960 = vunpack.c.l.b16 %v2894
  %v2961 = vunpack.c.l.b16 %v2895
  %v2962 = vunpack.c.l.b16 %v2896
  %v2963 = vunpack.c.l.b16 %v2897
  %v2964 = vunpack.c.l.b16 %v2898
  %v2965 = vunpack.c.l.b16 %v2899
  %v2966 = vunpack.c.l.b16 %v2900
  %v2967 = vunpack.c.l.b16 %v2901
  %v2968 = vunpack.c.l.b16 %v2902
  %v2969 = vunpack.c.l.b16 %v2903
  %v2970 = vunpack.c.l.b16 %v2904
  %v2971 = vunpack.c.l.b16 %v2905
  %v2972 = vpack.c.b16 %v2941, %v2940
  %v2973 = vpack.c.b16 %v2943, %v2942
  %v2974 = vpack.c.b16 %v2945, %v2944
  %v2975 = vpack.c.b16 %v2947, %v2946
  %v2976 = vpack.c.b16 %v2949, %v2948
  %v2977 = vpack.c.b16 %v2951, %v2950
  %v2978 = vpack.c.b16 %v2953, %v2952
  %v2979 = vpack.c.b16 %v2955, %v2954
  %v2980 = vpack.c.b16 %v2957, %v2956
  %v2981 = vpack.c.b16 %v2959, %v2958
  %v2982 = vpack.c.b16 %v2961, %v2960
  %v2983 = vpack.c.b16 %v2963, %v2962
  %v2984 = vpack.c.b16 %v2965, %v2964
  %v2985 = vpack.c.b16 %v2967, %v2966
  %v2986 = vpack.c.b16 %v2969, %v2968
  %v2987 = vpack.c.b16 %v2971, %v2970
  %3004 = vmatpush.bf16.msra.mxu0 %v2979
  %3005 = vmatpush.bf16.msra.mxu0 %v2978
  %3006 = vmatpush.bf16.msra.mxu0 %v2977
  %3007 = vmatpush.bf16.msra.mxu0 %v2976
  %3008 = vmatpush.bf16.msra.mxu0 %v2975
  %3009 = vmatpush.bf16.msra.mxu0 %v2974
  %3010 = vmatpush.bf16.msra.mxu0 %v2973
  %3011 = vmatpush.bf16.msra.mxu0 %v2972
  %3012 = vmatmul.bf16.gmra.mxu0 %v2906
  %v3013 = vpop.f32.mrf.mxu0
  %v3014 = vadd.f32 0.0, %v3013
  %v3015 = vpop.f32.mrf.mxu0
  %3016 = vdwg.mxu0
  %3017 = vmatpush.bf16.msra.mxu0 %v2987
  %3018 = vmatpush.bf16.msra.mxu0 %v2986
  %3019 = vmatpush.bf16.msra.mxu0 %v2985
  %3020 = vmatpush.bf16.msra.mxu0 %v2984
  %3021 = vmatpush.bf16.msra.mxu0 %v2983
  %3022 = vmatpush.bf16.msra.mxu0 %v2982
  %3023 = vmatpush.bf16.msra.mxu0 %v2981
  %3024 = vmatpush.bf16.msra.mxu0 %v2980
  %3025 = vmatmul.bf16.gmra.mxu0 %v2907
  %v3026 = vpop.f32.mrf.mxu0
  %v3027 = vadd.f32 %v3014, %v3026
  %v3028 = vpop.f32.mrf.mxu0
  %3029 = vdwg.mxu0
  %3030 = vst [vmem:[%s11] sm:$0x3] %v3027
  // Predicated region
  $region46: #{pointnetfeat_forward.10} parent=0 // pred_check
    _
  $region47: #{pointnetfeat_forward.10} parent=0 // pred_check_branch
    %3032 = sbr.rel (0) target = $region49
  $region48: #{pointnetfeat_forward.10} parent=0 // pred_region
    _
  $region49: #{pointnetfeat_forward.10} parent=0 // pred_fallthru
    _
  // Predicated region
  $region50: #{pointnetfeat_forward.10} parent=0 // pred_check
    _
  $region51: #{pointnetfeat_forward.10} parent=0 // pred_check_branch
    %3034 = sbr.rel (0) target = $region53
  $region52: #{pointnetfeat_forward.10} parent=0 // pred_region
    _
  $region53: #{pointnetfeat_forward.10} parent=0 // pred_fallthru
    _

</llo_original>
